<compile_context>
chip_gen: v6e
topology: v6e:2x2x1
jax: 0.10.0
libtpu: 0.0.40
codegen_flags: <defaults>
</compile_context>

<pallas_src>
import functools

import jax
import jax.numpy as jnp
from jax.experimental import pallas as pl
from jax.experimental.pallas import tpu as pltpu


def _vmem_limit():
    """~75% of this generation's physical VMEM (48 MiB v7x, 96 MiB v5e/v6e)."""
    try:
        cap = pltpu.get_tpu_info().vmem_capacity_bytes
    except Exception:
        cap = 64 * 1024 * 1024
    return int(cap * 3 // 4)


def _pick_tile(n, prefs):
    """Largest preferred tile that evenly divides n; fall back to n."""
    for p in prefs:
        if p <= n and n % p == 0:
            return p
    return n


def _permute_gates(w, H):
    """Permute the last (4H) axis from PyTorch gate order (i,f,g,o) to (i,f,o,g)."""
    return jnp.concatenate(
        [w[..., :2 * H], w[..., 3 * H:4 * H], w[..., 2 * H:3 * H]], axis=-1)


# ----------------------------------------------------------------------------
# Generic  out = x @ w + b  kernel (decoder fallback for large vocabularies).
# Vocab (N) is padded to a lane multiple so all tiles are (8,128)-aligned.
# ----------------------------------------------------------------------------
def _matmul_bias_kernel(x_ref, w_ref, b_ref, o_ref):
    acc = jnp.dot(x_ref[...], w_ref[...], preferred_element_type=jnp.float32)
    o_ref[...] = (acc + b_ref[...]).astype(o_ref.dtype)


def matmul_bias(x, w, b, *, out_dtype=jnp.float32):
    """x: (M, K); w: (K, N); b: (1, N)  ->  (M, N)."""
    M, K = x.shape
    K2, N = w.shape
    assert K == K2
    # Harden for arbitrary N (e.g. vocab 33278): pad to a multiple of 128 so the
    # weight is tiled into lane-dense blocks instead of one giant VMEM tile.
    Np = ((N + 127) // 128) * 128
    if Np != N:
        w = jnp.pad(w, ((0, 0), (0, Np - N)))
        b = jnp.pad(b, ((0, 0), (0, Np - N)))
    tm = _pick_tile(M, (512, 256, 128, 64, 32, 16, 8))
    tn = _pick_tile(Np, (512, 256, 128))
    grid = (M // tm, Np // tn)
    bytes_accessed = (M * K * x.dtype.itemsize + K * Np * w.dtype.itemsize
                      + Np * b.dtype.itemsize
                      + M * Np * jnp.dtype(out_dtype).itemsize)
    out = pl.pallas_call(
        _matmul_bias_kernel,
        out_shape=jax.ShapeDtypeStruct((M, Np), out_dtype),
        grid_spec=pltpu.PrefetchScalarGridSpec(
            num_scalar_prefetch=0,
            grid=grid,
            in_specs=[
                pl.BlockSpec((tm, K), lambda i, j: (i, 0)),
                pl.BlockSpec((K, tn), lambda i, j: (0, j)),
                pl.BlockSpec((1, tn), lambda i, j: (0, j)),
            ],
            out_specs=pl.BlockSpec((tm, tn), lambda i, j: (i, j)),
        ),
        compiler_params=pltpu.CompilerParams(
            dimension_semantics=("parallel", "parallel"),
            vmem_limit_bytes=_vmem_limit()),
        cost_estimate=pl.CostEstimate(
            flops=2 * M * K * Np, transcendentals=0,
            bytes_accessed=bytes_accessed),
    )(x, w, b)
    return out[:, :N] if Np != N else out


# ----------------------------------------------------------------------------
# Fused LSTM layer kernel: per time chunk, compute the input projection for the
# whole chunk with one MXU matmul, then run the recurrence with h/c carried in
# registers.  Optionally fuses the decoder matmul into the last grid step.
# ----------------------------------------------------------------------------
def _lstm_layer_kernel(*refs, with_decoder):
    if with_decoder:
        (x_ref, wi_ref, wh_ref, b_ref, h0_ref, c0_ref, dw_ref, db_ref,
         y_ref, hT_ref, cT_ref, logits_ref, gx_sc, y_sc) = refs
    else:
        (x_ref, wi_ref, wh_ref, b_ref, h0_ref, c0_ref,
         y_ref, hT_ref, cT_ref, gx_sc, y_sc) = refs
        dw_ref = db_ref = logits_ref = None

    s = pl.program_id(0)
    B, H = hT_ref.shape
    Tc = x_ref.shape[0] // B

    # Fused (hoisted) input projection for the entire chunk: lane-dense matmul
    # with M = Tc*B.  gx never leaves VMEM.
    gx_sc[...] = (jnp.dot(x_ref[...], wi_ref[...],
                          preferred_element_type=jnp.float32) + b_ref[...])

    @pl.when(s == 0)
    def _():
        hT_ref[...] = h0_ref[...]
        cT_ref[...] = c0_ref[...]

    # h / c live as fori_loop carries (1 f32 vreg each at B=8, H=128); refs are
    # touched only at chunk boundaries.
    carry0 = (hT_ref[...], cT_ref[...])

    def step(t, carry):
        h, c = carry
        r = t * B
        gates = gx_sc[pl.ds(r, B), :] + jnp.dot(
            h.astype(wh_ref.dtype), wh_ref[...],
            preferred_element_type=jnp.float32)
        # Gate columns are packed (i | f | o | g): one sigmoid over 3H, one tanh.
        sig = jax.nn.sigmoid(gates[:, :3 * H])
        i_g = sig[:, 0 * H:1 * H]
        f_g = sig[:, 1 * H:2 * H]
        o_g = sig[:, 2 * H:3 * H]
        g_g = jnp.tanh(gates[:, 3 * H:])
        c_new = f_g * c + i_g * g_g
        h_new = o_g * jnp.tanh(c_new)
        # Tile-aligned f32 staging store (B rows = one (8,128) f32 tile per step).
        y_sc[pl.ds(r, B), :] = h_new
        return (h_new, c_new)

    unroll = True if Tc <= 16 else 8
    h_fin, c_fin = jax.lax.fori_loop(0, Tc, step, carry0, unroll=unroll)

    hT_ref[...] = h_fin
    cT_ref[...] = c_fin
    # One dense, unmasked (Tc*B, H) bf16 store per chunk.
    y_ref[...] = y_sc[...].astype(y_ref.dtype)

    if with_decoder:
        @pl.when(s == pl.num_programs(0) - 1)
        def _():
            logits_ref[...] = (
                jnp.dot(h_fin.astype(dw_ref.dtype), dw_ref[...],
                        preferred_element_type=jnp.float32) + db_ref[...])


def lstm_layer(x2d, lp, h0, c0, *, seq, dec=None, y_dtype=jnp.bfloat16):
    """x2d: (seq*B, Din) bf16 (row t*B+b = timestep t, batch b).
    lp: dict with wi_t (Din,4H) bf16, wh_t (H,4H) bf16, b (1,4H) f32 — gate
    columns in (i,f,o,g) order.  h0/c0: (B, H) f32.
    dec: optional (dec_w_t (H,V) bf16, dec_b (1,V) f32) to fuse the decoder.
    Returns (y (seq*B,H) bf16, hT (B,H) f32, cT (B,H) f32[, logits (B,V) f32])."""
    SB, Din = x2d.shape
    B, H = h0.shape
    assert SB == seq * B
    Tc = _pick_tile(seq, (32, 16, 8, 4, 2, 1))
    grid = (seq // Tc,)

    in_specs = [
        pl.BlockSpec((Tc * B, Din), lambda s: (s, 0)),        # x chunk
        pl.BlockSpec((Din, 4 * H), lambda s: (0, 0)),         # W_ih^T (resident)
        pl.BlockSpec((H, 4 * H), lambda s: (0, 0)),           # W_hh^T (resident)
        pl.BlockSpec((1, 4 * H), lambda s: (0, 0)),           # bias    (resident)
        pl.BlockSpec((B, H), lambda s: (0, 0)),               # h0
        pl.BlockSpec((B, H), lambda s: (0, 0)),               # c0
    ]
    args = [x2d, lp["wi_t"], lp["wh_t"], lp["b"], h0, c0]
    out_shapes = [jax.ShapeDtypeStruct((SB, H), y_dtype),
                  jax.ShapeDtypeStruct((B, H), jnp.float32),
                  jax.ShapeDtypeStruct((B, H), jnp.float32)]
    out_specs = [pl.BlockSpec((Tc * B, H), lambda s: (s, 0)),  # y chunk (dense)
                 pl.BlockSpec((B, H), lambda s: (0, 0)),       # h_T (carried)
                 pl.BlockSpec((B, H), lambda s: (0, 0))]       # c_T (carried)

    with_dec = dec is not None
    if with_dec:
        dw, db = dec
        V = dw.shape[1]
        in_specs += [pl.BlockSpec((H, V), lambda s: (0, 0)),   # dec W (resident)
                     pl.BlockSpec((1, V), lambda s: (0, 0))]   # dec b (resident)
        args += [dw, db]
        out_shapes.append(jax.ShapeDtypeStruct((B, V), jnp.float32))
        out_specs.append(pl.BlockSpec((B, V), lambda s: (0, 0)))

    scratch = [pltpu.VMEM((Tc * B, 4 * H), jnp.float32),       # gx chunk
               pltpu.VMEM((Tc * B, H), jnp.float32)]           # y staging (f32)

    kernel = functools.partial(_lstm_layer_kernel, with_decoder=with_dec)
    return pl.pallas_call(
        kernel,
        out_shape=tuple(out_shapes),
        grid_spec=pltpu.PrefetchScalarGridSpec(
            num_scalar_prefetch=0,
            grid=grid,
            in_specs=in_specs,
            out_specs=out_specs,
            scratch_shapes=scratch),
        compiler_params=pltpu.CompilerParams(
            dimension_semantics=("arbitrary",),                # serial recurrence
            vmem_limit_bytes=_vmem_limit()),
    )(*args)


# ----------------------------------------------------------------------------
# Model: parameter setup + forward
# ----------------------------------------------------------------------------
def init_params(key, ntoken, ninp, nhid, nlayers):
    ks = jax.random.split(key, 2 + 4 * nlayers)
    initrange = 0.1
    enc_w = jax.random.uniform(ks[0], (ntoken, ninp), jnp.float32,
                               -initrange, initrange)
    dec_w = jax.random.uniform(ks[1], (ntoken, nhid), jnp.float32,
                               -initrange, initrange)
    params = {
        "enc_w": enc_w,
        "dec_w": dec_w,                                        # (V, H) torch layout (ref)
        "dec_b": jnp.zeros((1, ntoken), jnp.float32),
        "dec_w_t": dec_w.T.astype(jnp.bfloat16),               # (H, V) bf16 for kernels
        "layers": [],                                          # kernel packing
        "layers_torch": [],                                    # raw PyTorch-order weights (ref)
    }
    stdv = 1.0 / (nhid ** 0.5)
    for l in range(nlayers):
        din = ninp if l == 0 else nhid
        k0, k1, k2, k3 = ks[2 + 4 * l: 6 + 4 * l]
        w_ih = jax.random.uniform(k0, (4 * nhid, din), jnp.float32, -stdv, stdv)
        w_hh = jax.random.uniform(k1, (4 * nhid, nhid), jnp.float32, -stdv, stdv)
        b_ih = jax.random.uniform(k2, (4 * nhid,), jnp.float32, -stdv, stdv)
        b_hh = jax.random.uniform(k3, (4 * nhid,), jnp.float32, -stdv, stdv)
        params["layers_torch"].append(
            {"w_ih": w_ih, "w_hh": w_hh, "b_ih": b_ih, "b_hh": b_hh})
        # Kernel packing: transpose + permute gate columns (i,f,g,o) -> (i,f,o,g).
        params["layers"].append({
            "wi_t": _permute_gates(w_ih.T, nhid).astype(jnp.bfloat16),   # (din, 4H)
            "wh_t": _permute_gates(w_hh.T, nhid).astype(jnp.bfloat16),   # (H, 4H)
            "b": _permute_gates((b_ih + b_hh)[None, :], nhid),           # (1, 4H) f32
        })
    return params


def rnn_model_forward(params, tokens, h0, c0, *, fuse_decoder=True):
    """tokens: (seq, batch) int32; h0/c0: (nlayers, batch, nhid) f32."""
    seq, B = tokens.shape
    nlayers = len(params["layers"])
    H = h0.shape[-1]
    dec_w_t, dec_b = params["dec_w_t"], params["dec_b"]
    V = dec_w_t.shape[1]
    # Fuse the decoder into the top layer's last grid step when its weight is
    # comfortably VMEM-resident; otherwise use the tiled fallback kernel.
    can_fuse = fuse_decoder and (dec_w_t.size * dec_w_t.dtype.itemsize <= 8 * 1024 * 1024)

    # TODO(synk): embedding gather stays in plain JAX (no clean Pallas gather win here).
    emb = jnp.take(params["enc_w"], tokens.reshape(-1), axis=0)   # (seq*B, ninp)
    x = emb.astype(jnp.bfloat16)                                  # lane-dense 2D activations

    h_outs, c_outs = [], []
    logits = None
    for l, lp in enumerate(params["layers"]):
        is_top = (l == nlayers - 1)
        dec = (dec_w_t, dec_b) if (is_top and can_fuse) else None
        outs = lstm_layer(x, lp, h0[l], c0[l], seq=seq, dec=dec)
        if dec is not None:
            y, hT, cT, logits = outs
        else:
            y, hT, cT = outs
        x = y
        h_outs.append(hT)
        c_outs.append(cT)

    if logits is None:
        logits = matmul_bias(h_outs[-1].astype(jnp.bfloat16), dec_w_t, dec_b)  # (B, V)

    decoded_t = logits.T                                          # (V, B) — layout plumbing
    return decoded_t, (jnp.stack(h_outs), jnp.stack(c_outs))


# ----------------------------------------------------------------------------
# Pure-JAX reference: uses the raw PyTorch-order weights and the standard
# (i,f,g,o) gate slicing, mirroring the same bf16/f32 precision split.  This
# also validates the gate-column permutation done for the kernels.
# ----------------------------------------------------------------------------
def _reference_forward(params, tokens, h0, c0):
    seq, B = tokens.shape
    emb = jnp.take(params["enc_w"], tokens, axis=0)               # (seq, B, ninp)
    x = emb.astype(jnp.bfloat16)
    H = h0.shape[-1]
    h_outs, c_outs = [], []
    for l, lp in enumerate(params["layers_torch"]):
        wi_t = lp["w_ih"].T.astype(jnp.bfloat16)                  # (din, 4H)  (i,f,g,o)
        wh_t = lp["w_hh"].T.astype(jnp.bfloat16)                  # (H, 4H)
        b = (lp["b_ih"] + lp["b_hh"])[None, :]                    # (1, 4H) f32
        gx = (jnp.dot(x.reshape(seq * B, -1), wi_t,
                      preferred_element_type=jnp.float32) + b).reshape(seq, B, -1)

        def step(carry, gx_t, wh_t=wh_t):
            h, c = carry
            gates = gx_t + jnp.dot(h.astype(jnp.bfloat16), wh_t,
                                   preferred_element_type=jnp.float32)
            i = jax.nn.sigmoid(gates[:, 0 * H:1 * H])
            f = jax.nn.sigmoid(gates[:, 1 * H:2 * H])
            g = jnp.tanh(gates[:, 2 * H:3 * H])
            o = jax.nn.sigmoid(gates[:, 3 * H:4 * H])
            c_new = f * c + i * g
            h_new = o * jnp.tanh(c_new)
            return (h_new, c_new), h_new.astype(jnp.bfloat16)

        (hT, cT), ys = jax.lax.scan(step, (h0[l], c0[l]), gx)
        x = ys
        h_outs.append(hT)
        c_outs.append(cT)
    logits = (jnp.dot(h_outs[-1].astype(jnp.bfloat16),
                      params["dec_w"].T.astype(jnp.bfloat16),
                      preferred_element_type=jnp.float32) + params["dec_b"])
    return logits.T, (jnp.stack(h_outs), jnp.stack(c_outs))


if __name__ == "__main__":
    # Small but lane-aligned shapes: nhid multiple of 128, batch multiple of 8.
    ntoken, ninp, nhid, nlayers = 256, 128, 128, 2
    seq, batch = 16, 8

    key = jax.random.PRNGKey(0)
    pkey, tkey = jax.random.split(key)
    params = init_params(pkey, ntoken, ninp, nhid, nlayers)
    tokens = jax.random.randint(tkey, (seq, batch), 0, ntoken, dtype=jnp.int32)

    # init_hidden(bsz) -> zeros
    h0 = jnp.zeros((nlayers, batch, nhid), jnp.float32)
    c0 = jnp.zeros((nlayers, batch, nhid), jnp.float32)

    fwd_fused = jax.jit(functools.partial(rnn_model_forward, fuse_decoder=True))
    fwd_split = jax.jit(functools.partial(rnn_model_forward, fuse_decoder=False))

    dec_f, (h_f, c_f) = fwd_fused(params, tokens, h0, c0)
    dec_s, (h_s, c_s) = fwd_split(params, tokens, h0, c0)
    jax.block_until_ready((dec_f, h_f, c_f, dec_s, h_s, c_s))

    assert dec_f.shape == (ntoken, batch)
    assert h_f.shape == (nlayers, batch, nhid) and c_f.shape == (nlayers, batch, nhid)

    ref_dec, (ref_h, ref_c) = _reference_forward(params, tokens, h0, c0)
    assert jnp.allclose(dec_f, ref_dec, atol=1e-2), "decoder (fused) mismatch"
    assert jnp.allclose(h_f, ref_h, atol=1e-2), "hidden (fused) mismatch"
    assert jnp.allclose(c_f, ref_c, atol=1e-2), "cell (fused) mismatch"
    assert jnp.allclose(dec_s, ref_dec, atol=1e-2), "decoder (split) mismatch"
    assert jnp.allclose(h_s, ref_h, atol=1e-2), "hidden (split) mismatch"
    assert jnp.allclose(c_s, ref_c, atol=1e-2), "cell (split) mismatch"

    print("KERNEL_OK")
</pallas_src>

<mosaic_0001>
module attributes {stable_mosaic.version = 11 : i64} {
  func.func @_lstm_layer_kernel(%arg0: i32, %arg1: memref<128x128xbf16, #tpu.memory_space<vmem>>, %arg2: memref<128x512xbf16, #tpu.memory_space<vmem>>, %arg3: memref<128x512xbf16, #tpu.memory_space<vmem>>, %arg4: memref<1x512xf32, #tpu.memory_space<vmem>>, %arg5: memref<8x128xf32, #tpu.memory_space<vmem>>, %arg6: memref<8x128xf32, #tpu.memory_space<vmem>>, %arg7: memref<128x128xbf16, #tpu.memory_space<vmem>>, %arg8: memref<8x128xf32, #tpu.memory_space<vmem>>, %arg9: memref<8x128xf32, #tpu.memory_space<vmem>>, %arg10: memref<128x512xf32, #tpu.memory_space<vmem>>, %arg11: memref<128x128xf32, #tpu.memory_space<vmem>>) attributes {dimension_semantics = [#tpu.dimension_semantics<arbitrary>], iteration_bounds = array<i64: 1>, scalar_prefetch = 0 : i64, scratch_operands = 2 : i64, tpu.core_type = #tpu.core_type<tc>, window_params = [{transform_indices = @transform_0, window_bounds = array<i64: 128, 128>}, {pipeline_mode = #tpu.pipeline_mode<synchronous>, transform_indices = @transform_1, window_bounds = array<i64: 128, 512>}, {pipeline_mode = #tpu.pipeline_mode<synchronous>, transform_indices = @transform_2, window_bounds = array<i64: 128, 512>}, {pipeline_mode = #tpu.pipeline_mode<synchronous>, transform_indices = @transform_3, window_bounds = array<i64: 1, 512>}, {pipeline_mode = #tpu.pipeline_mode<synchronous>, transform_indices = @transform_4, window_bounds = array<i64: 8, 128>}, {pipeline_mode = #tpu.pipeline_mode<synchronous>, transform_indices = @transform_5, window_bounds = array<i64: 8, 128>}, {transform_indices = @transform_6, window_bounds = array<i64: 128, 128>}, {pipeline_mode = #tpu.pipeline_mode<synchronous>, transform_indices = @transform_7, window_bounds = array<i64: 8, 128>}, {pipeline_mode = #tpu.pipeline_mode<synchronous>, transform_indices = @transform_8, window_bounds = array<i64: 8, 128>}]} {
    %c0 = arith.constant 0 : index
    %c0_0 = arith.constant 0 : index
    %0 = vector.load %arg1[%c0, %c0_0] : memref<128x128xbf16, #tpu.memory_space<vmem>>, vector<128x128xbf16>
    %c0_1 = arith.constant 0 : index
    %c0_2 = arith.constant 0 : index
    %1 = vector.load %arg2[%c0_1, %c0_2] : memref<128x512xbf16, #tpu.memory_space<vmem>>, vector<128x512xbf16>
    %cst = arith.constant dense<0.000000e+00> : vector<128x512xf32>
    %2 = tpu.matmul %0, %1, %cst {dimension_numbers = #tpu.dot_dimension_numbers<[1], [0], [0], [1], [0, 0, 1, 1], [], []>} : vector<128x128xbf16>, vector<128x512xbf16>, vector<128x512xf32> -> vector<128x512xf32>
    %c0_3 = arith.constant 0 : index
    %c0_4 = arith.constant 0 : index
    %3 = vector.load %arg4[%c0_3, %c0_4] : memref<1x512xf32, #tpu.memory_space<vmem>>, vector<1x512xf32>
    %4 = vector.broadcast %3 : vector<1x512xf32> to vector<128x512xf32>
    %5 = arith.addf %2, %4 : vector<128x512xf32>
    %c0_5 = arith.constant 0 : index
    %c0_6 = arith.constant 0 : index
    %6 = vector.load %arg10[%c0_5, %c0_6] : memref<128x512xf32, #tpu.memory_space<vmem>>, vector<128x512xf32>
    tpu.vector_store %arg10[%c0_5, %c0_6], %5 {strides = array<i32>} : memref<128x512xf32, #tpu.memory_space<vmem>>, vector<128x512xf32>,
    %c0_i32 = arith.constant 0 : i32
    %7 = arith.cmpi eq, %arg0, %c0_i32 : i32
    %8 = arith.extui %7 : i1 to i32
    %c0_i32_7 = arith.constant 0 : i32
    %9 = arith.cmpi ne, %8, %c0_i32_7 : i32
    scf.if %9 {
      %c0_133 = arith.constant 0 : index
      %c0_134 = arith.constant 0 : index
      %417 = vector.load %arg5[%c0_133, %c0_134] : memref<8x128xf32, #tpu.memory_space<vmem>>, vector<8x128xf32>
      %c0_135 = arith.constant 0 : index
      %c0_136 = arith.constant 0 : index
      %418 = vector.load %arg8[%c0_135, %c0_136] : memref<8x128xf32, #tpu.memory_space<vmem>>, vector<8x128xf32>
      tpu.vector_store %arg8[%c0_135, %c0_136], %417 {strides = array<i32>} : memref<8x128xf32, #tpu.memory_space<vmem>>, vector<8x128xf32>,
      %c0_137 = arith.constant 0 : index
      %c0_138 = arith.constant 0 : index
      %419 = vector.load %arg6[%c0_137, %c0_138] : memref<8x128xf32, #tpu.memory_space<vmem>>, vector<8x128xf32>
      %c0_139 = arith.constant 0 : index
      %c0_140 = arith.constant 0 : index
      %420 = vector.load %arg9[%c0_139, %c0_140] : memref<8x128xf32, #tpu.memory_space<vmem>>, vector<8x128xf32>
      tpu.vector_store %arg9[%c0_139, %c0_140], %419 {strides = array<i32>} : memref<8x128xf32, #tpu.memory_space<vmem>>, vector<8x128xf32>,
    } else {
    }
    %c0_8 = arith.constant 0 : index
    %c0_9 = arith.constant 0 : index
    %10 = vector.load %arg8[%c0_8, %c0_9] : memref<8x128xf32, #tpu.memory_space<vmem>>, vector<8x128xf32>
    %c0_10 = arith.constant 0 : index
    %c0_11 = arith.constant 0 : index
    %11 = vector.load %arg9[%c0_10, %c0_11] : memref<8x128xf32, #tpu.memory_space<vmem>>, vector<8x128xf32>
    %c0_i32_12 = arith.constant 0 : i32
    %c8_i32 = arith.constant 8 : i32
    %12 = arith.muli %c0_i32_12, %c8_i32 : i32
    %13 = arith.index_cast %12 : i32 to index
    %c0_13 = arith.constant 0 : index
    %14 = vector.load %arg10[%13, %c0_13] : memref<128x512xf32, #tpu.memory_space<vmem>>, vector<8x512xf32>
    %15 = arith.truncf %10 : vector<8x128xf32> to vector<8x128xbf16>
    %c0_14 = arith.constant 0 : index
    %c0_15 = arith.constant 0 : index
    %16 = vector.load %arg3[%c0_14, %c0_15] : memref<128x512xbf16, #tpu.memory_space<vmem>>, vector<128x512xbf16>
    %cst_16 = arith.constant dense<0.000000e+00> : vector<8x512xf32>
    %17 = tpu.matmul %15, %16, %cst_16 {dimension_numbers = #tpu.dot_dimension_numbers<[1], [0], [0], [1], [0, 0, 1, 1], [], []>} : vector<8x128xbf16>, vector<128x512xbf16>, vector<8x512xf32> -> vector<8x512xf32>
    %18 = arith.addf %14, %17 : vector<8x512xf32>
    %19 = vector.extract_strided_slice %18 {offsets = [0, 0], sizes = [8, 384], strides = [1, 1]} : vector<8x512xf32> to vector<8x384xf32>
    %20 = arith.negf %19 : vector<8x384xf32>
    %21 = math.exp %20 : vector<8x384xf32>
    %cst_17 = arith.constant 1.000000e+00 : f32
    %22 = vector.broadcast %cst_17 : f32 to vector<8x384xf32>
    %23 = arith.addf %22, %21 : vector<8x384xf32>
    %24 = arith.divf %22, %23 : vector<8x384xf32>
    %25 = vector.extract_strided_slice %24 {offsets = [0, 0], sizes = [8, 128], strides = [1, 1]} : vector<8x384xf32> to vector<8x128xf32>
    %26 = vector.extract_strided_slice %24 {offsets = [0, 128], sizes = [8, 128], strides = [1, 1]} : vector<8x384xf32> to vector<8x128xf32>
    %27 = vector.extract_strided_slice %24 {offsets = [0, 256], sizes = [8, 128], strides = [1, 1]} : vector<8x384xf32> to vector<8x128xf32>
    %28 = vector.extract_strided_slice %18 {offsets = [0, 384], sizes = [8, 128], strides = [1, 1]} : vector<8x512xf32> to vector<8x128xf32>
    %29 = math.tanh %28 : vector<8x128xf32>
    %30 = arith.mulf %26, %11 : vector<8x128xf32>
    %31 = arith.mulf %25, %29 : vector<8x128xf32>
    %32 = arith.addf %30, %31 : vector<8x128xf32>
    %33 = math.tanh %32 : vector<8x128xf32>
    %34 = arith.mulf %27, %33 : vector<8x128xf32>
    %35 = arith.index_cast %12 : i32 to index
    %c0_18 = arith.constant 0 : index
    %36 = vector.load %arg11[%35, %c0_18] : memref<128x128xf32, #tpu.memory_space<vmem>>, vector<8x128xf32>
    tpu.vector_store %arg11[%35, %c0_18], %34 {strides = array<i32>} : memref<128x128xf32, #tpu.memory_space<vmem>>, vector<8x128xf32>,
    %c1_i32 = arith.constant 1 : i32
    %c8_i32_19 = arith.constant 8 : i32
    %37 = arith.muli %c1_i32, %c8_i32_19 : i32
    %38 = arith.index_cast %37 : i32 to index
    %c0_20 = arith.constant 0 : index
    %39 = vector.load %arg10[%38, %c0_20] : memref<128x512xf32, #tpu.memory_space<vmem>>, vector<8x512xf32>
    %40 = arith.truncf %34 : vector<8x128xf32> to vector<8x128xbf16>
    %c0_21 = arith.constant 0 : index
    %c0_22 = arith.constant 0 : index
    %41 = vector.load %arg3[%c0_21, %c0_22] : memref<128x512xbf16, #tpu.memory_space<vmem>>, vector<128x512xbf16>
    %cst_23 = arith.constant dense<0.000000e+00> : vector<8x512xf32>
    %42 = tpu.matmul %40, %41, %cst_23 {dimension_numbers = #tpu.dot_dimension_numbers<[1], [0], [0], [1], [0, 0, 1, 1], [], []>} : vector<8x128xbf16>, vector<128x512xbf16>, vector<8x512xf32> -> vector<8x512xf32>
    %43 = arith.addf %39, %42 : vector<8x512xf32>
    %44 = vector.extract_strided_slice %43 {offsets = [0, 0], sizes = [8, 384], strides = [1, 1]} : vector<8x512xf32> to vector<8x384xf32>
    %45 = arith.negf %44 : vector<8x384xf32>
    %46 = math.exp %45 : vector<8x384xf32>
    %cst_24 = arith.constant 1.000000e+00 : f32
    %47 = vector.broadcast %cst_24 : f32 to vector<8x384xf32>
    %48 = arith.addf %47, %46 : vector<8x384xf32>
    %49 = arith.divf %47, %48 : vector<8x384xf32>
    %50 = vector.extract_strided_slice %49 {offsets = [0, 0], sizes = [8, 128], strides = [1, 1]} : vector<8x384xf32> to vector<8x128xf32>
    %51 = vector.extract_strided_slice %49 {offsets = [0, 128], sizes = [8, 128], strides = [1, 1]} : vector<8x384xf32> to vector<8x128xf32>
    %52 = vector.extract_strided_slice %49 {offsets = [0, 256], sizes = [8, 128], strides = [1, 1]} : vector<8x384xf32> to vector<8x128xf32>
    %53 = vector.extract_strided_slice %43 {offsets = [0, 384], sizes = [8, 128], strides = [1, 1]} : vector<8x512xf32> to vector<8x128xf32>
    %54 = math.tanh %53 : vector<8x128xf32>
    %55 = arith.mulf %51, %32 : vector<8x128xf32>
    %56 = arith.mulf %50, %54 : vector<8x128xf32>
    %57 = arith.addf %55, %56 : vector<8x128xf32>
    %58 = math.tanh %57 : vector<8x128xf32>
    %59 = arith.mulf %52, %58 : vector<8x128xf32>
    %60 = arith.index_cast %37 : i32 to index
    %c0_25 = arith.constant 0 : index
    %61 = vector.load %arg11[%60, %c0_25] : memref<128x128xf32, #tpu.memory_space<vmem>>, vector<8x128xf32>
    tpu.vector_store %arg11[%60, %c0_25], %59 {strides = array<i32>} : memref<128x128xf32, #tpu.memory_space<vmem>>, vector<8x128xf32>,
    %c2_i32 = arith.constant 2 : i32
    %c8_i32_26 = arith.constant 8 : i32
    %62 = arith.muli %c2_i32, %c8_i32_26 : i32
    %63 = arith.index_cast %62 : i32 to index
    %c0_27 = arith.constant 0 : index
    %64 = vector.load %arg10[%63, %c0_27] : memref<128x512xf32, #tpu.memory_space<vmem>>, vector<8x512xf32>
    %65 = arith.truncf %59 : vector<8x128xf32> to vector<8x128xbf16>
    %c0_28 = arith.constant 0 : index
    %c0_29 = arith.constant 0 : index
    %66 = vector.load %arg3[%c0_28, %c0_29] : memref<128x512xbf16, #tpu.memory_space<vmem>>, vector<128x512xbf16>
    %cst_30 = arith.constant dense<0.000000e+00> : vector<8x512xf32>
    %67 = tpu.matmul %65, %66, %cst_30 {dimension_numbers = #tpu.dot_dimension_numbers<[1], [0], [0], [1], [0, 0, 1, 1], [], []>} : vector<8x128xbf16>, vector<128x512xbf16>, vector<8x512xf32> -> vector<8x512xf32>
    %68 = arith.addf %64, %67 : vector<8x512xf32>
    %69 = vector.extract_strided_slice %68 {offsets = [0, 0], sizes = [8, 384], strides = [1, 1]} : vector<8x512xf32> to vector<8x384xf32>
    %70 = arith.negf %69 : vector<8x384xf32>
    %71 = math.exp %70 : vector<8x384xf32>
    %cst_31 = arith.constant 1.000000e+00 : f32
    %72 = vector.broadcast %cst_31 : f32 to vector<8x384xf32>
    %73 = arith.addf %72, %71 : vector<8x384xf32>
    %74 = arith.divf %72, %73 : vector<8x384xf32>
    %75 = vector.extract_strided_slice %74 {offsets = [0, 0], sizes = [8, 128], strides = [1, 1]} : vector<8x384xf32> to vector<8x128xf32>
    %76 = vector.extract_strided_slice %74 {offsets = [0, 128], sizes = [8, 128], strides = [1, 1]} : vector<8x384xf32> to vector<8x128xf32>
    %77 = vector.extract_strided_slice %74 {offsets = [0, 256], sizes = [8, 128], strides = [1, 1]} : vector<8x384xf32> to vector<8x128xf32>
    %78 = vector.extract_strided_slice %68 {offsets = [0, 384], sizes = [8, 128], strides = [1, 1]} : vector<8x512xf32> to vector<8x128xf32>
    %79 = math.tanh %78 : vector<8x128xf32>
    %80 = arith.mulf %76, %57 : vector<8x128xf32>
    %81 = arith.mulf %75, %79 : vector<8x128xf32>
    %82 = arith.addf %80, %81 : vector<8x128xf32>
    %83 = math.tanh %82 : vector<8x128xf32>
    %84 = arith.mulf %77, %83 : vector<8x128xf32>
    %85 = arith.index_cast %62 : i32 to index
    %c0_32 = arith.constant 0 : index
    %86 = vector.load %arg11[%85, %c0_32] : memref<128x128xf32, #tpu.memory_space<vmem>>, vector<8x128xf32>
    tpu.vector_store %arg11[%85, %c0_32], %84 {strides = array<i32>} : memref<128x128xf32, #tpu.memory_space<vmem>>, vector<8x128xf32>,
    %c3_i32 = arith.constant 3 : i32
    %c8_i32_33 = arith.constant 8 : i32
    %87 = arith.muli %c3_i32, %c8_i32_33 : i32
    %88 = arith.index_cast %87 : i32 to index
    %c0_34 = arith.constant 0 : index
    %89 = vector.load %arg10[%88, %c0_34] : memref<128x512xf32, #tpu.memory_space<vmem>>, vector<8x512xf32>
    %90 = arith.truncf %84 : vector<8x128xf32> to vector<8x128xbf16>
    %c0_35 = arith.constant 0 : index
    %c0_36 = arith.constant 0 : index
    %91 = vector.load %arg3[%c0_35, %c0_36] : memref<128x512xbf16, #tpu.memory_space<vmem>>, vector<128x512xbf16>
    %cst_37 = arith.constant dense<0.000000e+00> : vector<8x512xf32>
    %92 = tpu.matmul %90, %91, %cst_37 {dimension_numbers = #tpu.dot_dimension_numbers<[1], [0], [0], [1], [0, 0, 1, 1], [], []>} : vector<8x128xbf16>, vector<128x512xbf16>, vector<8x512xf32> -> vector<8x512xf32>
    %93 = arith.addf %89, %92 : vector<8x512xf32>
    %94 = vector.extract_strided_slice %93 {offsets = [0, 0], sizes = [8, 384], strides = [1, 1]} : vector<8x512xf32> to vector<8x384xf32>
    %95 = arith.negf %94 : vector<8x384xf32>
    %96 = math.exp %95 : vector<8x384xf32>
    %cst_38 = arith.constant 1.000000e+00 : f32
    %97 = vector.broadcast %cst_38 : f32 to vector<8x384xf32>
    %98 = arith.addf %97, %96 : vector<8x384xf32>
    %99 = arith.divf %97, %98 : vector<8x384xf32>
    %100 = vector.extract_strided_slice %99 {offsets = [0, 0], sizes = [8, 128], strides = [1, 1]} : vector<8x384xf32> to vector<8x128xf32>
    %101 = vector.extract_strided_slice %99 {offsets = [0, 128], sizes = [8, 128], strides = [1, 1]} : vector<8x384xf32> to vector<8x128xf32>
    %102 = vector.extract_strided_slice %99 {offsets = [0, 256], sizes = [8, 128], strides = [1, 1]} : vector<8x384xf32> to vector<8x128xf32>
    %103 = vector.extract_strided_slice %93 {offsets = [0, 384], sizes = [8, 128], strides = [1, 1]} : vector<8x512xf32> to vector<8x128xf32>
    %104 = math.tanh %103 : vector<8x128xf32>
    %105 = arith.mulf %101, %82 : vector<8x128xf32>
    %106 = arith.mulf %100, %104 : vector<8x128xf32>
    %107 = arith.addf %105, %106 : vector<8x128xf32>
    %108 = math.tanh %107 : vector<8x128xf32>
    %109 = arith.mulf %102, %108 : vector<8x128xf32>
    %110 = arith.index_cast %87 : i32 to index
    %c0_39 = arith.constant 0 : index
    %111 = vector.load %arg11[%110, %c0_39] : memref<128x128xf32, #tpu.memory_space<vmem>>, vector<8x128xf32>
    tpu.vector_store %arg11[%110, %c0_39], %109 {strides = array<i32>} : memref<128x128xf32, #tpu.memory_space<vmem>>, vector<8x128xf32>,
    %c4_i32 = arith.constant 4 : i32
    %c8_i32_40 = arith.constant 8 : i32
    %112 = arith.muli %c4_i32, %c8_i32_40 : i32
    %113 = arith.index_cast %112 : i32 to index
    %c0_41 = arith.constant 0 : index
    %114 = vector.load %arg10[%113, %c0_41] : memref<128x512xf32, #tpu.memory_space<vmem>>, vector<8x512xf32>
    %115 = arith.truncf %109 : vector<8x128xf32> to vector<8x128xbf16>
    %c0_42 = arith.constant 0 : index
    %c0_43 = arith.constant 0 : index
    %116 = vector.load %arg3[%c0_42, %c0_43] : memref<128x512xbf16, #tpu.memory_space<vmem>>, vector<128x512xbf16>
    %cst_44 = arith.constant dense<0.000000e+00> : vector<8x512xf32>
    %117 = tpu.matmul %115, %116, %cst_44 {dimension_numbers = #tpu.dot_dimension_numbers<[1], [0], [0], [1], [0, 0, 1, 1], [], []>} : vector<8x128xbf16>, vector<128x512xbf16>, vector<8x512xf32> -> vector<8x512xf32>
    %118 = arith.addf %114, %117 : vector<8x512xf32>
    %119 = vector.extract_strided_slice %118 {offsets = [0, 0], sizes = [8, 384], strides = [1, 1]} : vector<8x512xf32> to vector<8x384xf32>
    %120 = arith.negf %119 : vector<8x384xf32>
    %121 = math.exp %120 : vector<8x384xf32>
    %cst_45 = arith.constant 1.000000e+00 : f32
    %122 = vector.broadcast %cst_45 : f32 to vector<8x384xf32>
    %123 = arith.addf %122, %121 : vector<8x384xf32>
    %124 = arith.divf %122, %123 : vector<8x384xf32>
    %125 = vector.extract_strided_slice %124 {offsets = [0, 0], sizes = [8, 128], strides = [1, 1]} : vector<8x384xf32> to vector<8x128xf32>
    %126 = vector.extract_strided_slice %124 {offsets = [0, 128], sizes = [8, 128], strides = [1, 1]} : vector<8x384xf32> to vector<8x128xf32>
    %127 = vector.extract_strided_slice %124 {offsets = [0, 256], sizes = [8, 128], strides = [1, 1]} : vector<8x384xf32> to vector<8x128xf32>
    %128 = vector.extract_strided_slice %118 {offsets = [0, 384], sizes = [8, 128], strides = [1, 1]} : vector<8x512xf32> to vector<8x128xf32>
    %129 = math.tanh %128 : vector<8x128xf32>
    %130 = arith.mulf %126, %107 : vector<8x128xf32>
    %131 = arith.mulf %125, %129 : vector<8x128xf32>
    %132 = arith.addf %130, %131 : vector<8x128xf32>
    %133 = math.tanh %132 : vector<8x128xf32>
    %134 = arith.mulf %127, %133 : vector<8x128xf32>
    %135 = arith.index_cast %112 : i32 to index
    %c0_46 = arith.constant 0 : index
    %136 = vector.load %arg11[%135, %c0_46] : memref<128x128xf32, #tpu.memory_space<vmem>>, vector<8x128xf32>
    tpu.vector_store %arg11[%135, %c0_46], %134 {strides = array<i32>} : memref<128x128xf32, #tpu.memory_space<vmem>>, vector<8x128xf32>,
    %c5_i32 = arith.constant 5 : i32
    %c8_i32_47 = arith.constant 8 : i32
    %137 = arith.muli %c5_i32, %c8_i32_47 : i32
    %138 = arith.index_cast %137 : i32 to index
    %c0_48 = arith.constant 0 : index
    %139 = vector.load %arg10[%138, %c0_48] : memref<128x512xf32, #tpu.memory_space<vmem>>, vector<8x512xf32>
    %140 = arith.truncf %134 : vector<8x128xf32> to vector<8x128xbf16>
    %c0_49 = arith.constant 0 : index
    %c0_50 = arith.constant 0 : index
    %141 = vector.load %arg3[%c0_49, %c0_50] : memref<128x512xbf16, #tpu.memory_space<vmem>>, vector<128x512xbf16>
    %cst_51 = arith.constant dense<0.000000e+00> : vector<8x512xf32>
    %142 = tpu.matmul %140, %141, %cst_51 {dimension_numbers = #tpu.dot_dimension_numbers<[1], [0], [0], [1], [0, 0, 1, 1], [], []>} : vector<8x128xbf16>, vector<128x512xbf16>, vector<8x512xf32> -> vector<8x512xf32>
    %143 = arith.addf %139, %142 : vector<8x512xf32>
    %144 = vector.extract_strided_slice %143 {offsets = [0, 0], sizes = [8, 384], strides = [1, 1]} : vector<8x512xf32> to vector<8x384xf32>
    %145 = arith.negf %144 : vector<8x384xf32>
    %146 = math.exp %145 : vector<8x384xf32>
    %cst_52 = arith.constant 1.000000e+00 : f32
    %147 = vector.broadcast %cst_52 : f32 to vector<8x384xf32>
    %148 = arith.addf %147, %146 : vector<8x384xf32>
    %149 = arith.divf %147, %148 : vector<8x384xf32>
    %150 = vector.extract_strided_slice %149 {offsets = [0, 0], sizes = [8, 128], strides = [1, 1]} : vector<8x384xf32> to vector<8x128xf32>
    %151 = vector.extract_strided_slice %149 {offsets = [0, 128], sizes = [8, 128], strides = [1, 1]} : vector<8x384xf32> to vector<8x128xf32>
    %152 = vector.extract_strided_slice %149 {offsets = [0, 256], sizes = [8, 128], strides = [1, 1]} : vector<8x384xf32> to vector<8x128xf32>
    %153 = vector.extract_strided_slice %143 {offsets = [0, 384], sizes = [8, 128], strides = [1, 1]} : vector<8x512xf32> to vector<8x128xf32>
    %154 = math.tanh %153 : vector<8x128xf32>
    %155 = arith.mulf %151, %132 : vector<8x128xf32>
    %156 = arith.mulf %150, %154 : vector<8x128xf32>
    %157 = arith.addf %155, %156 : vector<8x128xf32>
    %158 = math.tanh %157 : vector<8x128xf32>
    %159 = arith.mulf %152, %158 : vector<8x128xf32>
    %160 = arith.index_cast %137 : i32 to index
    %c0_53 = arith.constant 0 : index
    %161 = vector.load %arg11[%160, %c0_53] : memref<128x128xf32, #tpu.memory_space<vmem>>, vector<8x128xf32>
    tpu.vector_store %arg11[%160, %c0_53], %159 {strides = array<i32>} : memref<128x128xf32, #tpu.memory_space<vmem>>, vector<8x128xf32>,
    %c6_i32 = arith.constant 6 : i32
    %c8_i32_54 = arith.constant 8 : i32
    %162 = arith.muli %c6_i32, %c8_i32_54 : i32
    %163 = arith.index_cast %162 : i32 to index
    %c0_55 = arith.constant 0 : index
    %164 = vector.load %arg10[%163, %c0_55] : memref<128x512xf32, #tpu.memory_space<vmem>>, vector<8x512xf32>
    %165 = arith.truncf %159 : vector<8x128xf32> to vector<8x128xbf16>
    %c0_56 = arith.constant 0 : index
    %c0_57 = arith.constant 0 : index
    %166 = vector.load %arg3[%c0_56, %c0_57] : memref<128x512xbf16, #tpu.memory_space<vmem>>, vector<128x512xbf16>
    %cst_58 = arith.constant dense<0.000000e+00> : vector<8x512xf32>
    %167 = tpu.matmul %165, %166, %cst_58 {dimension_numbers = #tpu.dot_dimension_numbers<[1], [0], [0], [1], [0, 0, 1, 1], [], []>} : vector<8x128xbf16>, vector<128x512xbf16>, vector<8x512xf32> -> vector<8x512xf32>
    %168 = arith.addf %164, %167 : vector<8x512xf32>
    %169 = vector.extract_strided_slice %168 {offsets = [0, 0], sizes = [8, 384], strides = [1, 1]} : vector<8x512xf32> to vector<8x384xf32>
    %170 = arith.negf %169 : vector<8x384xf32>
    %171 = math.exp %170 : vector<8x384xf32>
    %cst_59 = arith.constant 1.000000e+00 : f32
    %172 = vector.broadcast %cst_59 : f32 to vector<8x384xf32>
    %173 = arith.addf %172, %171 : vector<8x384xf32>
    %174 = arith.divf %172, %173 : vector<8x384xf32>
    %175 = vector.extract_strided_slice %174 {offsets = [0, 0], sizes = [8, 128], strides = [1, 1]} : vector<8x384xf32> to vector<8x128xf32>
    %176 = vector.extract_strided_slice %174 {offsets = [0, 128], sizes = [8, 128], strides = [1, 1]} : vector<8x384xf32> to vector<8x128xf32>
    %177 = vector.extract_strided_slice %174 {offsets = [0, 256], sizes = [8, 128], strides = [1, 1]} : vector<8x384xf32> to vector<8x128xf32>
    %178 = vector.extract_strided_slice %168 {offsets = [0, 384], sizes = [8, 128], strides = [1, 1]} : vector<8x512xf32> to vector<8x128xf32>
    %179 = math.tanh %178 : vector<8x128xf32>
    %180 = arith.mulf %176, %157 : vector<8x128xf32>
    %181 = arith.mulf %175, %179 : vector<8x128xf32>
    %182 = arith.addf %180, %181 : vector<8x128xf32>
    %183 = math.tanh %182 : vector<8x128xf32>
    %184 = arith.mulf %177, %183 : vector<8x128xf32>
    %185 = arith.index_cast %162 : i32 to index
    %c0_60 = arith.constant 0 : index
    %186 = vector.load %arg11[%185, %c0_60] : memref<128x128xf32, #tpu.memory_space<vmem>>, vector<8x128xf32>
    tpu.vector_store %arg11[%185, %c0_60], %184 {strides = array<i32>} : memref<128x128xf32, #tpu.memory_space<vmem>>, vector<8x128xf32>,
    %c7_i32 = arith.constant 7 : i32
    %c8_i32_61 = arith.constant 8 : i32
    %187 = arith.muli %c7_i32, %c8_i32_61 : i32
    %188 = arith.index_cast %187 : i32 to index
    %c0_62 = arith.constant 0 : index
    %189 = vector.load %arg10[%188, %c0_62] : memref<128x512xf32, #tpu.memory_space<vmem>>, vector<8x512xf32>
    %190 = arith.truncf %184 : vector<8x128xf32> to vector<8x128xbf16>
    %c0_63 = arith.constant 0 : index
    %c0_64 = arith.constant 0 : index
    %191 = vector.load %arg3[%c0_63, %c0_64] : memref<128x512xbf16, #tpu.memory_space<vmem>>, vector<128x512xbf16>
    %cst_65 = arith.constant dense<0.000000e+00> : vector<8x512xf32>
    %192 = tpu.matmul %190, %191, %cst_65 {dimension_numbers = #tpu.dot_dimension_numbers<[1], [0], [0], [1], [0, 0, 1, 1], [], []>} : vector<8x128xbf16>, vector<128x512xbf16>, vector<8x512xf32> -> vector<8x512xf32>
    %193 = arith.addf %189, %192 : vector<8x512xf32>
    %194 = vector.extract_strided_slice %193 {offsets = [0, 0], sizes = [8, 384], strides = [1, 1]} : vector<8x512xf32> to vector<8x384xf32>
    %195 = arith.negf %194 : vector<8x384xf32>
    %196 = math.exp %195 : vector<8x384xf32>
    %cst_66 = arith.constant 1.000000e+00 : f32
    %197 = vector.broadcast %cst_66 : f32 to vector<8x384xf32>
    %198 = arith.addf %197, %196 : vector<8x384xf32>
    %199 = arith.divf %197, %198 : vector<8x384xf32>
    %200 = vector.extract_strided_slice %199 {offsets = [0, 0], sizes = [8, 128], strides = [1, 1]} : vector<8x384xf32> to vector<8x128xf32>
    %201 = vector.extract_strided_slice %199 {offsets = [0, 128], sizes = [8, 128], strides = [1, 1]} : vector<8x384xf32> to vector<8x128xf32>
    %202 = vector.extract_strided_slice %199 {offsets = [0, 256], sizes = [8, 128], strides = [1, 1]} : vector<8x384xf32> to vector<8x128xf32>
    %203 = vector.extract_strided_slice %193 {offsets = [0, 384], sizes = [8, 128], strides = [1, 1]} : vector<8x512xf32> to vector<8x128xf32>
    %204 = math.tanh %203 : vector<8x128xf32>
    %205 = arith.mulf %201, %182 : vector<8x128xf32>
    %206 = arith.mulf %200, %204 : vector<8x128xf32>
    %207 = arith.addf %205, %206 : vector<8x128xf32>
    %208 = math.tanh %207 : vector<8x128xf32>
    %209 = arith.mulf %202, %208 : vector<8x128xf32>
    %210 = arith.index_cast %187 : i32 to index
    %c0_67 = arith.constant 0 : index
    %211 = vector.load %arg11[%210, %c0_67] : memref<128x128xf32, #tpu.memory_space<vmem>>, vector<8x128xf32>
    tpu.vector_store %arg11[%210, %c0_67], %209 {strides = array<i32>} : memref<128x128xf32, #tpu.memory_space<vmem>>, vector<8x128xf32>,
    %c8_i32_68 = arith.constant 8 : i32
    %c8_i32_69 = arith.constant 8 : i32
    %212 = arith.muli %c8_i32_68, %c8_i32_69 : i32
    %213 = arith.index_cast %212 : i32 to index
    %c0_70 = arith.constant 0 : index
    %214 = vector.load %arg10[%213, %c0_70] : memref<128x512xf32, #tpu.memory_space<vmem>>, vector<8x512xf32>
    %215 = arith.truncf %209 : vector<8x128xf32> to vector<8x128xbf16>
    %c0_71 = arith.constant 0 : index
    %c0_72 = arith.constant 0 : index
    %216 = vector.load %arg3[%c0_71, %c0_72] : memref<128x512xbf16, #tpu.memory_space<vmem>>, vector<128x512xbf16>
    %cst_73 = arith.constant dense<0.000000e+00> : vector<8x512xf32>
    %217 = tpu.matmul %215, %216, %cst_73 {dimension_numbers = #tpu.dot_dimension_numbers<[1], [0], [0], [1], [0, 0, 1, 1], [], []>} : vector<8x128xbf16>, vector<128x512xbf16>, vector<8x512xf32> -> vector<8x512xf32>
    %218 = arith.addf %214, %217 : vector<8x512xf32>
    %219 = vector.extract_strided_slice %218 {offsets = [0, 0], sizes = [8, 384], strides = [1, 1]} : vector<8x512xf32> to vector<8x384xf32>
    %220 = arith.negf %219 : vector<8x384xf32>
    %221 = math.exp %220 : vector<8x384xf32>
    %cst_74 = arith.constant 1.000000e+00 : f32
    %222 = vector.broadcast %cst_74 : f32 to vector<8x384xf32>
    %223 = arith.addf %222, %221 : vector<8x384xf32>
    %224 = arith.divf %222, %223 : vector<8x384xf32>
    %225 = vector.extract_strided_slice %224 {offsets = [0, 0], sizes = [8, 128], strides = [1, 1]} : vector<8x384xf32> to vector<8x128xf32>
    %226 = vector.extract_strided_slice %224 {offsets = [0, 128], sizes = [8, 128], strides = [1, 1]} : vector<8x384xf32> to vector<8x128xf32>
    %227 = vector.extract_strided_slice %224 {offsets = [0, 256], sizes = [8, 128], strides = [1, 1]} : vector<8x384xf32> to vector<8x128xf32>
    %228 = vector.extract_strided_slice %218 {offsets = [0, 384], sizes = [8, 128], strides = [1, 1]} : vector<8x512xf32> to vector<8x128xf32>
    %229 = math.tanh %228 : vector<8x128xf32>
    %230 = arith.mulf %226, %207 : vector<8x128xf32>
    %231 = arith.mulf %225, %229 : vector<8x128xf32>
    %232 = arith.addf %230, %231 : vector<8x128xf32>
    %233 = math.tanh %232 : vector<8x128xf32>
    %234 = arith.mulf %227, %233 : vector<8x128xf32>
    %235 = arith.index_cast %212 : i32 to index
    %c0_75 = arith.constant 0 : index
    %236 = vector.load %arg11[%235, %c0_75] : memref<128x128xf32, #tpu.memory_space<vmem>>, vector<8x128xf32>
    tpu.vector_store %arg11[%235, %c0_75], %234 {strides = array<i32>} : memref<128x128xf32, #tpu.memory_space<vmem>>, vector<8x128xf32>,
    %c9_i32 = arith.constant 9 : i32
    %c8_i32_76 = arith.constant 8 : i32
    %237 = arith.muli %c9_i32, %c8_i32_76 : i32
    %238 = arith.index_cast %237 : i32 to index
    %c0_77 = arith.constant 0 : index
    %239 = vector.load %arg10[%238, %c0_77] : memref<128x512xf32, #tpu.memory_space<vmem>>, vector<8x512xf32>
    %240 = arith.truncf %234 : vector<8x128xf32> to vector<8x128xbf16>
    %c0_78 = arith.constant 0 : index
    %c0_79 = arith.constant 0 : index
    %241 = vector.load %arg3[%c0_78, %c0_79] : memref<128x512xbf16, #tpu.memory_space<vmem>>, vector<128x512xbf16>
    %cst_80 = arith.constant dense<0.000000e+00> : vector<8x512xf32>
    %242 = tpu.matmul %240, %241, %cst_80 {dimension_numbers = #tpu.dot_dimension_numbers<[1], [0], [0], [1], [0, 0, 1, 1], [], []>} : vector<8x128xbf16>, vector<128x512xbf16>, vector<8x512xf32> -> vector<8x512xf32>
    %243 = arith.addf %239, %242 : vector<8x512xf32>
    %244 = vector.extract_strided_slice %243 {offsets = [0, 0], sizes = [8, 384], strides = [1, 1]} : vector<8x512xf32> to vector<8x384xf32>
    %245 = arith.negf %244 : vector<8x384xf32>
    %246 = math.exp %245 : vector<8x384xf32>
    %cst_81 = arith.constant 1.000000e+00 : f32
    %247 = vector.broadcast %cst_81 : f32 to vector<8x384xf32>
    %248 = arith.addf %247, %246 : vector<8x384xf32>
    %249 = arith.divf %247, %248 : vector<8x384xf32>
    %250 = vector.extract_strided_slice %249 {offsets = [0, 0], sizes = [8, 128], strides = [1, 1]} : vector<8x384xf32> to vector<8x128xf32>
    %251 = vector.extract_strided_slice %249 {offsets = [0, 128], sizes = [8, 128], strides = [1, 1]} : vector<8x384xf32> to vector<8x128xf32>
    %252 = vector.extract_strided_slice %249 {offsets = [0, 256], sizes = [8, 128], strides = [1, 1]} : vector<8x384xf32> to vector<8x128xf32>
    %253 = vector.extract_strided_slice %243 {offsets = [0, 384], sizes = [8, 128], strides = [1, 1]} : vector<8x512xf32> to vector<8x128xf32>
    %254 = math.tanh %253 : vector<8x128xf32>
    %255 = arith.mulf %251, %232 : vector<8x128xf32>
    %256 = arith.mulf %250, %254 : vector<8x128xf32>
    %257 = arith.addf %255, %256 : vector<8x128xf32>
    %258 = math.tanh %257 : vector<8x128xf32>
    %259 = arith.mulf %252, %258 : vector<8x128xf32>
    %260 = arith.index_cast %237 : i32 to index
    %c0_82 = arith.constant 0 : index
    %261 = vector.load %arg11[%260, %c0_82] : memref<128x128xf32, #tpu.memory_space<vmem>>, vector<8x128xf32>
    tpu.vector_store %arg11[%260, %c0_82], %259 {strides = array<i32>} : memref<128x128xf32, #tpu.memory_space<vmem>>, vector<8x128xf32>,
    %c10_i32 = arith.constant 10 : i32
    %c8_i32_83 = arith.constant 8 : i32
    %262 = arith.muli %c10_i32, %c8_i32_83 : i32
    %263 = arith.index_cast %262 : i32 to index
    %c0_84 = arith.constant 0 : index
    %264 = vector.load %arg10[%263, %c0_84] : memref<128x512xf32, #tpu.memory_space<vmem>>, vector<8x512xf32>
    %265 = arith.truncf %259 : vector<8x128xf32> to vector<8x128xbf16>
    %c0_85 = arith.constant 0 : index
    %c0_86 = arith.constant 0 : index
    %266 = vector.load %arg3[%c0_85, %c0_86] : memref<128x512xbf16, #tpu.memory_space<vmem>>, vector<128x512xbf16>
    %cst_87 = arith.constant dense<0.000000e+00> : vector<8x512xf32>
    %267 = tpu.matmul %265, %266, %cst_87 {dimension_numbers = #tpu.dot_dimension_numbers<[1], [0], [0], [1], [0, 0, 1, 1], [], []>} : vector<8x128xbf16>, vector<128x512xbf16>, vector<8x512xf32> -> vector<8x512xf32>
    %268 = arith.addf %264, %267 : vector<8x512xf32>
    %269 = vector.extract_strided_slice %268 {offsets = [0, 0], sizes = [8, 384], strides = [1, 1]} : vector<8x512xf32> to vector<8x384xf32>
    %270 = arith.negf %269 : vector<8x384xf32>
    %271 = math.exp %270 : vector<8x384xf32>
    %cst_88 = arith.constant 1.000000e+00 : f32
    %272 = vector.broadcast %cst_88 : f32 to vector<8x384xf32>
    %273 = arith.addf %272, %271 : vector<8x384xf32>
    %274 = arith.divf %272, %273 : vector<8x384xf32>
    %275 = vector.extract_strided_slice %274 {offsets = [0, 0], sizes = [8, 128], strides = [1, 1]} : vector<8x384xf32> to vector<8x128xf32>
    %276 = vector.extract_strided_slice %274 {offsets = [0, 128], sizes = [8, 128], strides = [1, 1]} : vector<8x384xf32> to vector<8x128xf32>
    %277 = vector.extract_strided_slice %274 {offsets = [0, 256], sizes = [8, 128], strides = [1, 1]} : vector<8x384xf32> to vector<8x128xf32>
    %278 = vector.extract_strided_slice %268 {offsets = [0, 384], sizes = [8, 128], strides = [1, 1]} : vector<8x512xf32> to vector<8x128xf32>
    %279 = math.tanh %278 : vector<8x128xf32>
    %280 = arith.mulf %276, %257 : vector<8x128xf32>
    %281 = arith.mulf %275, %279 : vector<8x128xf32>
    %282 = arith.addf %280, %281 : vector<8x128xf32>
    %283 = math.tanh %282 : vector<8x128xf32>
    %284 = arith.mulf %277, %283 : vector<8x128xf32>
    %285 = arith.index_cast %262 : i32 to index
    %c0_89 = arith.constant 0 : index
    %286 = vector.load %arg11[%285, %c0_89] : memref<128x128xf32, #tpu.memory_space<vmem>>, vector<8x128xf32>
    tpu.vector_store %arg11[%285, %c0_89], %284 {strides = array<i32>} : memref<128x128xf32, #tpu.memory_space<vmem>>, vector<8x128xf32>,
    %c11_i32 = arith.constant 11 : i32
    %c8_i32_90 = arith.constant 8 : i32
    %287 = arith.muli %c11_i32, %c8_i32_90 : i32
    %288 = arith.index_cast %287 : i32 to index
    %c0_91 = arith.constant 0 : index
    %289 = vector.load %arg10[%288, %c0_91] : memref<128x512xf32, #tpu.memory_space<vmem>>, vector<8x512xf32>
    %290 = arith.truncf %284 : vector<8x128xf32> to vector<8x128xbf16>
    %c0_92 = arith.constant 0 : index
    %c0_93 = arith.constant 0 : index
    %291 = vector.load %arg3[%c0_92, %c0_93] : memref<128x512xbf16, #tpu.memory_space<vmem>>, vector<128x512xbf16>
    %cst_94 = arith.constant dense<0.000000e+00> : vector<8x512xf32>
    %292 = tpu.matmul %290, %291, %cst_94 {dimension_numbers = #tpu.dot_dimension_numbers<[1], [0], [0], [1], [0, 0, 1, 1], [], []>} : vector<8x128xbf16>, vector<128x512xbf16>, vector<8x512xf32> -> vector<8x512xf32>
    %293 = arith.addf %289, %292 : vector<8x512xf32>
    %294 = vector.extract_strided_slice %293 {offsets = [0, 0], sizes = [8, 384], strides = [1, 1]} : vector<8x512xf32> to vector<8x384xf32>
    %295 = arith.negf %294 : vector<8x384xf32>
    %296 = math.exp %295 : vector<8x384xf32>
    %cst_95 = arith.constant 1.000000e+00 : f32
    %297 = vector.broadcast %cst_95 : f32 to vector<8x384xf32>
    %298 = arith.addf %297, %296 : vector<8x384xf32>
    %299 = arith.divf %297, %298 : vector<8x384xf32>
    %300 = vector.extract_strided_slice %299 {offsets = [0, 0], sizes = [8, 128], strides = [1, 1]} : vector<8x384xf32> to vector<8x128xf32>
    %301 = vector.extract_strided_slice %299 {offsets = [0, 128], sizes = [8, 128], strides = [1, 1]} : vector<8x384xf32> to vector<8x128xf32>
    %302 = vector.extract_strided_slice %299 {offsets = [0, 256], sizes = [8, 128], strides = [1, 1]} : vector<8x384xf32> to vector<8x128xf32>
    %303 = vector.extract_strided_slice %293 {offsets = [0, 384], sizes = [8, 128], strides = [1, 1]} : vector<8x512xf32> to vector<8x128xf32>
    %304 = math.tanh %303 : vector<8x128xf32>
    %305 = arith.mulf %301, %282 : vector<8x128xf32>
    %306 = arith.mulf %300, %304 : vector<8x128xf32>
    %307 = arith.addf %305, %306 : vector<8x128xf32>
    %308 = math.tanh %307 : vector<8x128xf32>
    %309 = arith.mulf %302, %308 : vector<8x128xf32>
    %310 = arith.index_cast %287 : i32 to index
    %c0_96 = arith.constant 0 : index
    %311 = vector.load %arg11[%310, %c0_96] : memref<128x128xf32, #tpu.memory_space<vmem>>, vector<8x128xf32>
    tpu.vector_store %arg11[%310, %c0_96], %309 {strides = array<i32>} : memref<128x128xf32, #tpu.memory_space<vmem>>, vector<8x128xf32>,
    %c12_i32 = arith.constant 12 : i32
    %c8_i32_97 = arith.constant 8 : i32
    %312 = arith.muli %c12_i32, %c8_i32_97 : i32
    %313 = arith.index_cast %312 : i32 to index
    %c0_98 = arith.constant 0 : index
    %314 = vector.load %arg10[%313, %c0_98] : memref<128x512xf32, #tpu.memory_space<vmem>>, vector<8x512xf32>
    %315 = arith.truncf %309 : vector<8x128xf32> to vector<8x128xbf16>
    %c0_99 = arith.constant 0 : index
    %c0_100 = arith.constant 0 : index
    %316 = vector.load %arg3[%c0_99, %c0_100] : memref<128x512xbf16, #tpu.memory_space<vmem>>, vector<128x512xbf16>
    %cst_101 = arith.constant dense<0.000000e+00> : vector<8x512xf32>
    %317 = tpu.matmul %315, %316, %cst_101 {dimension_numbers = #tpu.dot_dimension_numbers<[1], [0], [0], [1], [0, 0, 1, 1], [], []>} : vector<8x128xbf16>, vector<128x512xbf16>, vector<8x512xf32> -> vector<8x512xf32>
    %318 = arith.addf %314, %317 : vector<8x512xf32>
    %319 = vector.extract_strided_slice %318 {offsets = [0, 0], sizes = [8, 384], strides = [1, 1]} : vector<8x512xf32> to vector<8x384xf32>
    %320 = arith.negf %319 : vector<8x384xf32>
    %321 = math.exp %320 : vector<8x384xf32>
    %cst_102 = arith.constant 1.000000e+00 : f32
    %322 = vector.broadcast %cst_102 : f32 to vector<8x384xf32>
    %323 = arith.addf %322, %321 : vector<8x384xf32>
    %324 = arith.divf %322, %323 : vector<8x384xf32>
    %325 = vector.extract_strided_slice %324 {offsets = [0, 0], sizes = [8, 128], strides = [1, 1]} : vector<8x384xf32> to vector<8x128xf32>
    %326 = vector.extract_strided_slice %324 {offsets = [0, 128], sizes = [8, 128], strides = [1, 1]} : vector<8x384xf32> to vector<8x128xf32>
    %327 = vector.extract_strided_slice %324 {offsets = [0, 256], sizes = [8, 128], strides = [1, 1]} : vector<8x384xf32> to vector<8x128xf32>
    %328 = vector.extract_strided_slice %318 {offsets = [0, 384], sizes = [8, 128], strides = [1, 1]} : vector<8x512xf32> to vector<8x128xf32>
    %329 = math.tanh %328 : vector<8x128xf32>
    %330 = arith.mulf %326, %307 : vector<8x128xf32>
    %331 = arith.mulf %325, %329 : vector<8x128xf32>
    %332 = arith.addf %330, %331 : vector<8x128xf32>
    %333 = math.tanh %332 : vector<8x128xf32>
    %334 = arith.mulf %327, %333 : vector<8x128xf32>
    %335 = arith.index_cast %312 : i32 to index
    %c0_103 = arith.constant 0 : index
    %336 = vector.load %arg11[%335, %c0_103] : memref<128x128xf32, #tpu.memory_space<vmem>>, vector<8x128xf32>
    tpu.vector_store %arg11[%335, %c0_103], %334 {strides = array<i32>} : memref<128x128xf32, #tpu.memory_space<vmem>>, vector<8x128xf32>,
    %c13_i32 = arith.constant 13 : i32
    %c8_i32_104 = arith.constant 8 : i32
    %337 = arith.muli %c13_i32, %c8_i32_104 : i32
    %338 = arith.index_cast %337 : i32 to index
    %c0_105 = arith.constant 0 : index
    %339 = vector.load %arg10[%338, %c0_105] : memref<128x512xf32, #tpu.memory_space<vmem>>, vector<8x512xf32>
    %340 = arith.truncf %334 : vector<8x128xf32> to vector<8x128xbf16>
    %c0_106 = arith.constant 0 : index
    %c0_107 = arith.constant 0 : index
    %341 = vector.load %arg3[%c0_106, %c0_107] : memref<128x512xbf16, #tpu.memory_space<vmem>>, vector<128x512xbf16>
    %cst_108 = arith.constant dense<0.000000e+00> : vector<8x512xf32>
    %342 = tpu.matmul %340, %341, %cst_108 {dimension_numbers = #tpu.dot_dimension_numbers<[1], [0], [0], [1], [0, 0, 1, 1], [], []>} : vector<8x128xbf16>, vector<128x512xbf16>, vector<8x512xf32> -> vector<8x512xf32>
    %343 = arith.addf %339, %342 : vector<8x512xf32>
    %344 = vector.extract_strided_slice %343 {offsets = [0, 0], sizes = [8, 384], strides = [1, 1]} : vector<8x512xf32> to vector<8x384xf32>
    %345 = arith.negf %344 : vector<8x384xf32>
    %346 = math.exp %345 : vector<8x384xf32>
    %cst_109 = arith.constant 1.000000e+00 : f32
    %347 = vector.broadcast %cst_109 : f32 to vector<8x384xf32>
    %348 = arith.addf %347, %346 : vector<8x384xf32>
    %349 = arith.divf %347, %348 : vector<8x384xf32>
    %350 = vector.extract_strided_slice %349 {offsets = [0, 0], sizes = [8, 128], strides = [1, 1]} : vector<8x384xf32> to vector<8x128xf32>
    %351 = vector.extract_strided_slice %349 {offsets = [0, 128], sizes = [8, 128], strides = [1, 1]} : vector<8x384xf32> to vector<8x128xf32>
    %352 = vector.extract_strided_slice %349 {offsets = [0, 256], sizes = [8, 128], strides = [1, 1]} : vector<8x384xf32> to vector<8x128xf32>
    %353 = vector.extract_strided_slice %343 {offsets = [0, 384], sizes = [8, 128], strides = [1, 1]} : vector<8x512xf32> to vector<8x128xf32>
    %354 = math.tanh %353 : vector<8x128xf32>
    %355 = arith.mulf %351, %332 : vector<8x128xf32>
    %356 = arith.mulf %350, %354 : vector<8x128xf32>
    %357 = arith.addf %355, %356 : vector<8x128xf32>
    %358 = math.tanh %357 : vector<8x128xf32>
    %359 = arith.mulf %352, %358 : vector<8x128xf32>
    %360 = arith.index_cast %337 : i32 to index
    %c0_110 = arith.constant 0 : index
    %361 = vector.load %arg11[%360, %c0_110] : memref<128x128xf32, #tpu.memory_space<vmem>>, vector<8x128xf32>
    tpu.vector_store %arg11[%360, %c0_110], %359 {strides = array<i32>} : memref<128x128xf32, #tpu.memory_space<vmem>>, vector<8x128xf32>,
    %c14_i32 = arith.constant 14 : i32
    %c8_i32_111 = arith.constant 8 : i32
    %362 = arith.muli %c14_i32, %c8_i32_111 : i32
    %363 = arith.index_cast %362 : i32 to index
    %c0_112 = arith.constant 0 : index
    %364 = vector.load %arg10[%363, %c0_112] : memref<128x512xf32, #tpu.memory_space<vmem>>, vector<8x512xf32>
    %365 = arith.truncf %359 : vector<8x128xf32> to vector<8x128xbf16>
    %c0_113 = arith.constant 0 : index
    %c0_114 = arith.constant 0 : index
    %366 = vector.load %arg3[%c0_113, %c0_114] : memref<128x512xbf16, #tpu.memory_space<vmem>>, vector<128x512xbf16>
    %cst_115 = arith.constant dense<0.000000e+00> : vector<8x512xf32>
    %367 = tpu.matmul %365, %366, %cst_115 {dimension_numbers = #tpu.dot_dimension_numbers<[1], [0], [0], [1], [0, 0, 1, 1], [], []>} : vector<8x128xbf16>, vector<128x512xbf16>, vector<8x512xf32> -> vector<8x512xf32>
    %368 = arith.addf %364, %367 : vector<8x512xf32>
    %369 = vector.extract_strided_slice %368 {offsets = [0, 0], sizes = [8, 384], strides = [1, 1]} : vector<8x512xf32> to vector<8x384xf32>
    %370 = arith.negf %369 : vector<8x384xf32>
    %371 = math.exp %370 : vector<8x384xf32>
    %cst_116 = arith.constant 1.000000e+00 : f32
    %372 = vector.broadcast %cst_116 : f32 to vector<8x384xf32>
    %373 = arith.addf %372, %371 : vector<8x384xf32>
    %374 = arith.divf %372, %373 : vector<8x384xf32>
    %375 = vector.extract_strided_slice %374 {offsets = [0, 0], sizes = [8, 128], strides = [1, 1]} : vector<8x384xf32> to vector<8x128xf32>
    %376 = vector.extract_strided_slice %374 {offsets = [0, 128], sizes = [8, 128], strides = [1, 1]} : vector<8x384xf32> to vector<8x128xf32>
    %377 = vector.extract_strided_slice %374 {offsets = [0, 256], sizes = [8, 128], strides = [1, 1]} : vector<8x384xf32> to vector<8x128xf32>
    %378 = vector.extract_strided_slice %368 {offsets = [0, 384], sizes = [8, 128], strides = [1, 1]} : vector<8x512xf32> to vector<8x128xf32>
    %379 = math.tanh %378 : vector<8x128xf32>
    %380 = arith.mulf %376, %357 : vector<8x128xf32>
    %381 = arith.mulf %375, %379 : vector<8x128xf32>
    %382 = arith.addf %380, %381 : vector<8x128xf32>
    %383 = math.tanh %382 : vector<8x128xf32>
    %384 = arith.mulf %377, %383 : vector<8x128xf32>
    %385 = arith.index_cast %362 : i32 to index
    %c0_117 = arith.constant 0 : index
    %386 = vector.load %arg11[%385, %c0_117] : memref<128x128xf32, #tpu.memory_space<vmem>>, vector<8x128xf32>
    tpu.vector_store %arg11[%385, %c0_117], %384 {strides = array<i32>} : memref<128x128xf32, #tpu.memory_space<vmem>>, vector<8x128xf32>,
    %c15_i32 = arith.constant 15 : i32
    %c8_i32_118 = arith.constant 8 : i32
    %387 = arith.muli %c15_i32, %c8_i32_118 : i32
    %388 = arith.index_cast %387 : i32 to index
    %c0_119 = arith.constant 0 : index
    %389 = vector.load %arg10[%388, %c0_119] : memref<128x512xf32, #tpu.memory_space<vmem>>, vector<8x512xf32>
    %390 = arith.truncf %384 : vector<8x128xf32> to vector<8x128xbf16>
    %c0_120 = arith.constant 0 : index
    %c0_121 = arith.constant 0 : index
    %391 = vector.load %arg3[%c0_120, %c0_121] : memref<128x512xbf16, #tpu.memory_space<vmem>>, vector<128x512xbf16>
    %cst_122 = arith.constant dense<0.000000e+00> : vector<8x512xf32>
    %392 = tpu.matmul %390, %391, %cst_122 {dimension_numbers = #tpu.dot_dimension_numbers<[1], [0], [0], [1], [0, 0, 1, 1], [], []>} : vector<8x128xbf16>, vector<128x512xbf16>, vector<8x512xf32> -> vector<8x512xf32>
    %393 = arith.addf %389, %392 : vector<8x512xf32>
    %394 = vector.extract_strided_slice %393 {offsets = [0, 0], sizes = [8, 384], strides = [1, 1]} : vector<8x512xf32> to vector<8x384xf32>
    %395 = arith.negf %394 : vector<8x384xf32>
    %396 = math.exp %395 : vector<8x384xf32>
    %cst_123 = arith.constant 1.000000e+00 : f32
    %397 = vector.broadcast %cst_123 : f32 to vector<8x384xf32>
    %398 = arith.addf %397, %396 : vector<8x384xf32>
    %399 = arith.divf %397, %398 : vector<8x384xf32>
    %400 = vector.extract_strided_slice %399 {offsets = [0, 0], sizes = [8, 128], strides = [1, 1]} : vector<8x384xf32> to vector<8x128xf32>
    %401 = vector.extract_strided_slice %399 {offsets = [0, 128], sizes = [8, 128], strides = [1, 1]} : vector<8x384xf32> to vector<8x128xf32>
    %402 = vector.extract_strided_slice %399 {offsets = [0, 256], sizes = [8, 128], strides = [1, 1]} : vector<8x384xf32> to vector<8x128xf32>
    %403 = vector.extract_strided_slice %393 {offsets = [0, 384], sizes = [8, 128], strides = [1, 1]} : vector<8x512xf32> to vector<8x128xf32>
    %404 = math.tanh %403 : vector<8x128xf32>
    %405 = arith.mulf %401, %382 : vector<8x128xf32>
    %406 = arith.mulf %400, %404 : vector<8x128xf32>
    %407 = arith.addf %405, %406 : vector<8x128xf32>
    %408 = math.tanh %407 : vector<8x128xf32>
    %409 = arith.mulf %402, %408 : vector<8x128xf32>
    %410 = arith.index_cast %387 : i32 to index
    %c0_124 = arith.constant 0 : index
    %411 = vector.load %arg11[%410, %c0_124] : memref<128x128xf32, #tpu.memory_space<vmem>>, vector<8x128xf32>
    tpu.vector_store %arg11[%410, %c0_124], %409 {strides = array<i32>} : memref<128x128xf32, #tpu.memory_space<vmem>>, vector<8x128xf32>,
    %c16_i32 = arith.constant 16 : i32
    %c0_125 = arith.constant 0 : index
    %c0_126 = arith.constant 0 : index
    %412 = vector.load %arg8[%c0_125, %c0_126] : memref<8x128xf32, #tpu.memory_space<vmem>>, vector<8x128xf32>
    tpu.vector_store %arg8[%c0_125, %c0_126], %409 {strides = array<i32>} : memref<8x128xf32, #tpu.memory_space<vmem>>, vector<8x128xf32>,
    %c0_127 = arith.constant 0 : index
    %c0_128 = arith.constant 0 : index
    %413 = vector.load %arg9[%c0_127, %c0_128] : memref<8x128xf32, #tpu.memory_space<vmem>>, vector<8x128xf32>
    tpu.vector_store %arg9[%c0_127, %c0_128], %407 {strides = array<i32>} : memref<8x128xf32, #tpu.memory_space<vmem>>, vector<8x128xf32>,
    %c0_129 = arith.constant 0 : index
    %c0_130 = arith.constant 0 : index
    %414 = vector.load %arg11[%c0_129, %c0_130] : memref<128x128xf32, #tpu.memory_space<vmem>>, vector<128x128xf32>
    %415 = arith.truncf %414 : vector<128x128xf32> to vector<128x128xbf16>
    %c0_131 = arith.constant 0 : index
    %c0_132 = arith.constant 0 : index
    %416 = vector.load %arg7[%c0_131, %c0_132] : memref<128x128xbf16, #tpu.memory_space<vmem>>, vector<128x128xbf16>
    tpu.vector_store %arg7[%c0_131, %c0_132], %415 {strides = array<i32>} : memref<128x128xbf16, #tpu.memory_space<vmem>>, vector<128x128xbf16>,
    return
  }
  func.func @transform_0(%arg0: i32) -> (i32, i32) {
    %c0_i32 = arith.constant 0 : i32
    %c0_i32_0 = arith.constant 0 : i32
    return %arg0, %c0_i32 : i32, i32
  }
  func.func @transform_1(%arg0: i32) -> (i32, i32) {
    %c0_i32 = arith.constant 0 : i32
    %c0_i32_0 = arith.constant 0 : i32
    %c0_i32_1 = arith.constant 0 : i32
    return %c0_i32, %c0_i32_0 : i32, i32
  }
  func.func @transform_2(%arg0: i32) -> (i32, i32) {
    %c0_i32 = arith.constant 0 : i32
    %c0_i32_0 = arith.constant 0 : i32
    %c0_i32_1 = arith.constant 0 : i32
    return %c0_i32, %c0_i32_0 : i32, i32
  }
  func.func @transform_3(%arg0: i32) -> (i32, i32) {
    %c0_i32 = arith.constant 0 : i32
    %c0_i32_0 = arith.constant 0 : i32
    %c0_i32_1 = arith.constant 0 : i32
    return %c0_i32, %c0_i32_0 : i32, i32
  }
  func.func @transform_4(%arg0: i32) -> (i32, i32) {
    %c0_i32 = arith.constant 0 : i32
    %c0_i32_0 = arith.constant 0 : i32
    %c0_i32_1 = arith.constant 0 : i32
    return %c0_i32, %c0_i32_0 : i32, i32
  }
  func.func @transform_5(%arg0: i32) -> (i32, i32) {
    %c0_i32 = arith.constant 0 : i32
    %c0_i32_0 = arith.constant 0 : i32
    %c0_i32_1 = arith.constant 0 : i32
    return %c0_i32, %c0_i32_0 : i32, i32
  }
  func.func @transform_6(%arg0: i32) -> (i32, i32) {
    %c0_i32 = arith.constant 0 : i32
    %c0_i32_0 = arith.constant 0 : i32
    return %arg0, %c0_i32 : i32, i32
  }
  func.func @transform_7(%arg0: i32) -> (i32, i32) {
    %c0_i32 = arith.constant 0 : i32
    %c0_i32_0 = arith.constant 0 : i32
    %c0_i32_1 = arith.constant 0 : i32
    return %c0_i32, %c0_i32_0 : i32, i32
  }
  func.func @transform_8(%arg0: i32) -> (i32, i32) {
    %c0_i32 = arith.constant 0 : i32
    %c0_i32_0 = arith.constant 0 : i32
    %c0_i32_1 = arith.constant 0 : i32
    return %c0_i32, %c0_i32_0 : i32, i32
  }
}

module attributes {stable_mosaic.version = 11 : i64} {
  func.func @_lstm_layer_kernel(%arg0: i32, %arg1: memref<128x128xbf16, #tpu.memory_space<vmem>>, %arg2: memref<128x512xbf16, #tpu.memory_space<vmem>>, %arg3: memref<128x512xbf16, #tpu.memory_space<vmem>>, %arg4: memref<1x512xf32, #tpu.memory_space<vmem>>, %arg5: memref<8x128xf32, #tpu.memory_space<vmem>>, %arg6: memref<8x128xf32, #tpu.memory_space<vmem>>, %arg7: memref<128x256xbf16, #tpu.memory_space<vmem>>, %arg8: memref<1x256xf32, #tpu.memory_space<vmem>>, %arg9: memref<128x128xbf16, #tpu.memory_space<vmem>>, %arg10: memref<8x128xf32, #tpu.memory_space<vmem>>, %arg11: memref<8x128xf32, #tpu.memory_space<vmem>>, %arg12: memref<8x256xf32, #tpu.memory_space<vmem>>, %arg13: memref<128x512xf32, #tpu.memory_space<vmem>>, %arg14: memref<128x128xf32, #tpu.memory_space<vmem>>) attributes {dimension_semantics = [#tpu.dimension_semantics<arbitrary>], iteration_bounds = array<i64: 1>, scalar_prefetch = 0 : i64, scratch_operands = 2 : i64, tpu.core_type = #tpu.core_type<tc>, window_params = [{transform_indices = @transform_0, window_bounds = array<i64: 128, 128>}, {pipeline_mode = #tpu.pipeline_mode<synchronous>, transform_indices = @transform_1, window_bounds = array<i64: 128, 512>}, {pipeline_mode = #tpu.pipeline_mode<synchronous>, transform_indices = @transform_2, window_bounds = array<i64: 128, 512>}, {pipeline_mode = #tpu.pipeline_mode<synchronous>, transform_indices = @transform_3, window_bounds = array<i64: 1, 512>}, {pipeline_mode = #tpu.pipeline_mode<synchronous>, transform_indices = @transform_4, window_bounds = array<i64: 8, 128>}, {pipeline_mode = #tpu.pipeline_mode<synchronous>, transform_indices = @transform_5, window_bounds = array<i64: 8, 128>}, {pipeline_mode = #tpu.pipeline_mode<synchronous>, transform_indices = @transform_6, window_bounds = array<i64: 128, 256>}, {pipeline_mode = #tpu.pipeline_mode<synchronous>, transform_indices = @transform_7, window_bounds = array<i64: 1, 256>}, {transform_indices = @transform_8, window_bounds = array<i64: 128, 128>}, {pipeline_mode = #tpu.pipeline_mode<synchronous>, transform_indices = @transform_9, window_bounds = array<i64: 8, 128>}, {pipeline_mode = #tpu.pipeline_mode<synchronous>, transform_indices = @transform_10, window_bounds = array<i64: 8, 128>}, {pipeline_mode = #tpu.pipeline_mode<synchronous>, transform_indices = @transform_11, window_bounds = array<i64: 8, 256>}]} {
    %c0 = arith.constant 0 : index
    %c0_0 = arith.constant 0 : index
    %0 = vector.load %arg1[%c0, %c0_0] : memref<128x128xbf16, #tpu.memory_space<vmem>>, vector<128x128xbf16>
    %c0_1 = arith.constant 0 : index
    %c0_2 = arith.constant 0 : index
    %1 = vector.load %arg2[%c0_1, %c0_2] : memref<128x512xbf16, #tpu.memory_space<vmem>>, vector<128x512xbf16>
    %cst = arith.constant dense<0.000000e+00> : vector<128x512xf32>
    %2 = tpu.matmul %0, %1, %cst {dimension_numbers = #tpu.dot_dimension_numbers<[1], [0], [0], [1], [0, 0, 1, 1], [], []>} : vector<128x128xbf16>, vector<128x512xbf16>, vector<128x512xf32> -> vector<128x512xf32>
    %c0_3 = arith.constant 0 : index
    %c0_4 = arith.constant 0 : index
    %3 = vector.load %arg4[%c0_3, %c0_4] : memref<1x512xf32, #tpu.memory_space<vmem>>, vector<1x512xf32>
    %4 = vector.broadcast %3 : vector<1x512xf32> to vector<128x512xf32>
    %5 = arith.addf %2, %4 : vector<128x512xf32>
    %c0_5 = arith.constant 0 : index
    %c0_6 = arith.constant 0 : index
    %6 = vector.load %arg13[%c0_5, %c0_6] : memref<128x512xf32, #tpu.memory_space<vmem>>, vector<128x512xf32>
    tpu.vector_store %arg13[%c0_5, %c0_6], %5 {strides = array<i32>} : memref<128x512xf32, #tpu.memory_space<vmem>>, vector<128x512xf32>,
    %c0_i32 = arith.constant 0 : i32
    %7 = arith.cmpi eq, %arg0, %c0_i32 : i32
    %8 = arith.extui %7 : i1 to i32
    %c0_i32_7 = arith.constant 0 : i32
    %9 = arith.cmpi ne, %8, %c0_i32_7 : i32
    scf.if %9 {
      %c0_135 = arith.constant 0 : index
      %c0_136 = arith.constant 0 : index
      %420 = vector.load %arg5[%c0_135, %c0_136] : memref<8x128xf32, #tpu.memory_space<vmem>>, vector<8x128xf32>
      %c0_137 = arith.constant 0 : index
      %c0_138 = arith.constant 0 : index
      %421 = vector.load %arg10[%c0_137, %c0_138] : memref<8x128xf32, #tpu.memory_space<vmem>>, vector<8x128xf32>
      tpu.vector_store %arg10[%c0_137, %c0_138], %420 {strides = array<i32>} : memref<8x128xf32, #tpu.memory_space<vmem>>, vector<8x128xf32>,
      %c0_139 = arith.constant 0 : index
      %c0_140 = arith.constant 0 : index
      %422 = vector.load %arg6[%c0_139, %c0_140] : memref<8x128xf32, #tpu.memory_space<vmem>>, vector<8x128xf32>
      %c0_141 = arith.constant 0 : index
      %c0_142 = arith.constant 0 : index
      %423 = vector.load %arg11[%c0_141, %c0_142] : memref<8x128xf32, #tpu.memory_space<vmem>>, vector<8x128xf32>
      tpu.vector_store %arg11[%c0_141, %c0_142], %422 {strides = array<i32>} : memref<8x128xf32, #tpu.memory_space<vmem>>, vector<8x128xf32>,
    } else {
    }
    %c0_8 = arith.constant 0 : index
    %c0_9 = arith.constant 0 : index
    %10 = vector.load %arg10[%c0_8, %c0_9] : memref<8x128xf32, #tpu.memory_space<vmem>>, vector<8x128xf32>
    %c0_10 = arith.constant 0 : index
    %c0_11 = arith.constant 0 : index
    %11 = vector.load %arg11[%c0_10, %c0_11] : memref<8x128xf32, #tpu.memory_space<vmem>>, vector<8x128xf32>
    %c0_i32_12 = arith.constant 0 : i32
    %c8_i32 = arith.constant 8 : i32
    %12 = arith.muli %c0_i32_12, %c8_i32 : i32
    %13 = arith.index_cast %12 : i32 to index
    %c0_13 = arith.constant 0 : index
    %14 = vector.load %arg13[%13, %c0_13] : memref<128x512xf32, #tpu.memory_space<vmem>>, vector<8x512xf32>
    %15 = arith.truncf %10 : vector<8x128xf32> to vector<8x128xbf16>
    %c0_14 = arith.constant 0 : index
    %c0_15 = arith.constant 0 : index
    %16 = vector.load %arg3[%c0_14, %c0_15] : memref<128x512xbf16, #tpu.memory_space<vmem>>, vector<128x512xbf16>
    %cst_16 = arith.constant dense<0.000000e+00> : vector<8x512xf32>
    %17 = tpu.matmul %15, %16, %cst_16 {dimension_numbers = #tpu.dot_dimension_numbers<[1], [0], [0], [1], [0, 0, 1, 1], [], []>} : vector<8x128xbf16>, vector<128x512xbf16>, vector<8x512xf32> -> vector<8x512xf32>
    %18 = arith.addf %14, %17 : vector<8x512xf32>
    %19 = vector.extract_strided_slice %18 {offsets = [0, 0], sizes = [8, 384], strides = [1, 1]} : vector<8x512xf32> to vector<8x384xf32>
    %20 = arith.negf %19 : vector<8x384xf32>
    %21 = math.exp %20 : vector<8x384xf32>
    %cst_17 = arith.constant 1.000000e+00 : f32
    %22 = vector.broadcast %cst_17 : f32 to vector<8x384xf32>
    %23 = arith.addf %22, %21 : vector<8x384xf32>
    %24 = arith.divf %22, %23 : vector<8x384xf32>
    %25 = vector.extract_strided_slice %24 {offsets = [0, 0], sizes = [8, 128], strides = [1, 1]} : vector<8x384xf32> to vector<8x128xf32>
    %26 = vector.extract_strided_slice %24 {offsets = [0, 128], sizes = [8, 128], strides = [1, 1]} : vector<8x384xf32> to vector<8x128xf32>
    %27 = vector.extract_strided_slice %24 {offsets = [0, 256], sizes = [8, 128], strides = [1, 1]} : vector<8x384xf32> to vector<8x128xf32>
    %28 = vector.extract_strided_slice %18 {offsets = [0, 384], sizes = [8, 128], strides = [1, 1]} : vector<8x512xf32> to vector<8x128xf32>
    %29 = math.tanh %28 : vector<8x128xf32>
    %30 = arith.mulf %26, %11 : vector<8x128xf32>
    %31 = arith.mulf %25, %29 : vector<8x128xf32>
    %32 = arith.addf %30, %31 : vector<8x128xf32>
    %33 = math.tanh %32 : vector<8x128xf32>
    %34 = arith.mulf %27, %33 : vector<8x128xf32>
    %35 = arith.index_cast %12 : i32 to index
    %c0_18 = arith.constant 0 : index
    %36 = vector.load %arg14[%35, %c0_18] : memref<128x128xf32, #tpu.memory_space<vmem>>, vector<8x128xf32>
    tpu.vector_store %arg14[%35, %c0_18], %34 {strides = array<i32>} : memref<128x128xf32, #tpu.memory_space<vmem>>, vector<8x128xf32>,
    %c1_i32 = arith.constant 1 : i32
    %c8_i32_19 = arith.constant 8 : i32
    %37 = arith.muli %c1_i32, %c8_i32_19 : i32
    %38 = arith.index_cast %37 : i32 to index
    %c0_20 = arith.constant 0 : index
    %39 = vector.load %arg13[%38, %c0_20] : memref<128x512xf32, #tpu.memory_space<vmem>>, vector<8x512xf32>
    %40 = arith.truncf %34 : vector<8x128xf32> to vector<8x128xbf16>
    %c0_21 = arith.constant 0 : index
    %c0_22 = arith.constant 0 : index
    %41 = vector.load %arg3[%c0_21, %c0_22] : memref<128x512xbf16, #tpu.memory_space<vmem>>, vector<128x512xbf16>
    %cst_23 = arith.constant dense<0.000000e+00> : vector<8x512xf32>
    %42 = tpu.matmul %40, %41, %cst_23 {dimension_numbers = #tpu.dot_dimension_numbers<[1], [0], [0], [1], [0, 0, 1, 1], [], []>} : vector<8x128xbf16>, vector<128x512xbf16>, vector<8x512xf32> -> vector<8x512xf32>
    %43 = arith.addf %39, %42 : vector<8x512xf32>
    %44 = vector.extract_strided_slice %43 {offsets = [0, 0], sizes = [8, 384], strides = [1, 1]} : vector<8x512xf32> to vector<8x384xf32>
    %45 = arith.negf %44 : vector<8x384xf32>
    %46 = math.exp %45 : vector<8x384xf32>
    %cst_24 = arith.constant 1.000000e+00 : f32
    %47 = vector.broadcast %cst_24 : f32 to vector<8x384xf32>
    %48 = arith.addf %47, %46 : vector<8x384xf32>
    %49 = arith.divf %47, %48 : vector<8x384xf32>
    %50 = vector.extract_strided_slice %49 {offsets = [0, 0], sizes = [8, 128], strides = [1, 1]} : vector<8x384xf32> to vector<8x128xf32>
    %51 = vector.extract_strided_slice %49 {offsets = [0, 128], sizes = [8, 128], strides = [1, 1]} : vector<8x384xf32> to vector<8x128xf32>
    %52 = vector.extract_strided_slice %49 {offsets = [0, 256], sizes = [8, 128], strides = [1, 1]} : vector<8x384xf32> to vector<8x128xf32>
    %53 = vector.extract_strided_slice %43 {offsets = [0, 384], sizes = [8, 128], strides = [1, 1]} : vector<8x512xf32> to vector<8x128xf32>
    %54 = math.tanh %53 : vector<8x128xf32>
    %55 = arith.mulf %51, %32 : vector<8x128xf32>
    %56 = arith.mulf %50, %54 : vector<8x128xf32>
    %57 = arith.addf %55, %56 : vector<8x128xf32>
    %58 = math.tanh %57 : vector<8x128xf32>
    %59 = arith.mulf %52, %58 : vector<8x128xf32>
    %60 = arith.index_cast %37 : i32 to index
    %c0_25 = arith.constant 0 : index
    %61 = vector.load %arg14[%60, %c0_25] : memref<128x128xf32, #tpu.memory_space<vmem>>, vector<8x128xf32>
    tpu.vector_store %arg14[%60, %c0_25], %59 {strides = array<i32>} : memref<128x128xf32, #tpu.memory_space<vmem>>, vector<8x128xf32>,
    %c2_i32 = arith.constant 2 : i32
    %c8_i32_26 = arith.constant 8 : i32
    %62 = arith.muli %c2_i32, %c8_i32_26 : i32
    %63 = arith.index_cast %62 : i32 to index
    %c0_27 = arith.constant 0 : index
    %64 = vector.load %arg13[%63, %c0_27] : memref<128x512xf32, #tpu.memory_space<vmem>>, vector<8x512xf32>
    %65 = arith.truncf %59 : vector<8x128xf32> to vector<8x128xbf16>
    %c0_28 = arith.constant 0 : index
    %c0_29 = arith.constant 0 : index
    %66 = vector.load %arg3[%c0_28, %c0_29] : memref<128x512xbf16, #tpu.memory_space<vmem>>, vector<128x512xbf16>
    %cst_30 = arith.constant dense<0.000000e+00> : vector<8x512xf32>
    %67 = tpu.matmul %65, %66, %cst_30 {dimension_numbers = #tpu.dot_dimension_numbers<[1], [0], [0], [1], [0, 0, 1, 1], [], []>} : vector<8x128xbf16>, vector<128x512xbf16>, vector<8x512xf32> -> vector<8x512xf32>
    %68 = arith.addf %64, %67 : vector<8x512xf32>
    %69 = vector.extract_strided_slice %68 {offsets = [0, 0], sizes = [8, 384], strides = [1, 1]} : vector<8x512xf32> to vector<8x384xf32>
    %70 = arith.negf %69 : vector<8x384xf32>
    %71 = math.exp %70 : vector<8x384xf32>
    %cst_31 = arith.constant 1.000000e+00 : f32
    %72 = vector.broadcast %cst_31 : f32 to vector<8x384xf32>
    %73 = arith.addf %72, %71 : vector<8x384xf32>
    %74 = arith.divf %72, %73 : vector<8x384xf32>
    %75 = vector.extract_strided_slice %74 {offsets = [0, 0], sizes = [8, 128], strides = [1, 1]} : vector<8x384xf32> to vector<8x128xf32>
    %76 = vector.extract_strided_slice %74 {offsets = [0, 128], sizes = [8, 128], strides = [1, 1]} : vector<8x384xf32> to vector<8x128xf32>
    %77 = vector.extract_strided_slice %74 {offsets = [0, 256], sizes = [8, 128], strides = [1, 1]} : vector<8x384xf32> to vector<8x128xf32>
    %78 = vector.extract_strided_slice %68 {offsets = [0, 384], sizes = [8, 128], strides = [1, 1]} : vector<8x512xf32> to vector<8x128xf32>
    %79 = math.tanh %78 : vector<8x128xf32>
    %80 = arith.mulf %76, %57 : vector<8x128xf32>
    %81 = arith.mulf %75, %79 : vector<8x128xf32>
    %82 = arith.addf %80, %81 : vector<8x128xf32>
    %83 = math.tanh %82 : vector<8x128xf32>
    %84 = arith.mulf %77, %83 : vector<8x128xf32>
    %85 = arith.index_cast %62 : i32 to index
    %c0_32 = arith.constant 0 : index
    %86 = vector.load %arg14[%85, %c0_32] : memref<128x128xf32, #tpu.memory_space<vmem>>, vector<8x128xf32>
    tpu.vector_store %arg14[%85, %c0_32], %84 {strides = array<i32>} : memref<128x128xf32, #tpu.memory_space<vmem>>, vector<8x128xf32>,
    %c3_i32 = arith.constant 3 : i32
    %c8_i32_33 = arith.constant 8 : i32
    %87 = arith.muli %c3_i32, %c8_i32_33 : i32
    %88 = arith.index_cast %87 : i32 to index
    %c0_34 = arith.constant 0 : index
    %89 = vector.load %arg13[%88, %c0_34] : memref<128x512xf32, #tpu.memory_space<vmem>>, vector<8x512xf32>
    %90 = arith.truncf %84 : vector<8x128xf32> to vector<8x128xbf16>
    %c0_35 = arith.constant 0 : index
    %c0_36 = arith.constant 0 : index
    %91 = vector.load %arg3[%c0_35, %c0_36] : memref<128x512xbf16, #tpu.memory_space<vmem>>, vector<128x512xbf16>
    %cst_37 = arith.constant dense<0.000000e+00> : vector<8x512xf32>
    %92 = tpu.matmul %90, %91, %cst_37 {dimension_numbers = #tpu.dot_dimension_numbers<[1], [0], [0], [1], [0, 0, 1, 1], [], []>} : vector<8x128xbf16>, vector<128x512xbf16>, vector<8x512xf32> -> vector<8x512xf32>
    %93 = arith.addf %89, %92 : vector<8x512xf32>
    %94 = vector.extract_strided_slice %93 {offsets = [0, 0], sizes = [8, 384], strides = [1, 1]} : vector<8x512xf32> to vector<8x384xf32>
    %95 = arith.negf %94 : vector<8x384xf32>
    %96 = math.exp %95 : vector<8x384xf32>
    %cst_38 = arith.constant 1.000000e+00 : f32
    %97 = vector.broadcast %cst_38 : f32 to vector<8x384xf32>
    %98 = arith.addf %97, %96 : vector<8x384xf32>
    %99 = arith.divf %97, %98 : vector<8x384xf32>
    %100 = vector.extract_strided_slice %99 {offsets = [0, 0], sizes = [8, 128], strides = [1, 1]} : vector<8x384xf32> to vector<8x128xf32>
    %101 = vector.extract_strided_slice %99 {offsets = [0, 128], sizes = [8, 128], strides = [1, 1]} : vector<8x384xf32> to vector<8x128xf32>
    %102 = vector.extract_strided_slice %99 {offsets = [0, 256], sizes = [8, 128], strides = [1, 1]} : vector<8x384xf32> to vector<8x128xf32>
    %103 = vector.extract_strided_slice %93 {offsets = [0, 384], sizes = [8, 128], strides = [1, 1]} : vector<8x512xf32> to vector<8x128xf32>
    %104 = math.tanh %103 : vector<8x128xf32>
    %105 = arith.mulf %101, %82 : vector<8x128xf32>
    %106 = arith.mulf %100, %104 : vector<8x128xf32>
    %107 = arith.addf %105, %106 : vector<8x128xf32>
    %108 = math.tanh %107 : vector<8x128xf32>
    %109 = arith.mulf %102, %108 : vector<8x128xf32>
    %110 = arith.index_cast %87 : i32 to index
    %c0_39 = arith.constant 0 : index
    %111 = vector.load %arg14[%110, %c0_39] : memref<128x128xf32, #tpu.memory_space<vmem>>, vector<8x128xf32>
    tpu.vector_store %arg14[%110, %c0_39], %109 {strides = array<i32>} : memref<128x128xf32, #tpu.memory_space<vmem>>, vector<8x128xf32>,
    %c4_i32 = arith.constant 4 : i32
    %c8_i32_40 = arith.constant 8 : i32
    %112 = arith.muli %c4_i32, %c8_i32_40 : i32
    %113 = arith.index_cast %112 : i32 to index
    %c0_41 = arith.constant 0 : index
    %114 = vector.load %arg13[%113, %c0_41] : memref<128x512xf32, #tpu.memory_space<vmem>>, vector<8x512xf32>
    %115 = arith.truncf %109 : vector<8x128xf32> to vector<8x128xbf16>
    %c0_42 = arith.constant 0 : index
    %c0_43 = arith.constant 0 : index
    %116 = vector.load %arg3[%c0_42, %c0_43] : memref<128x512xbf16, #tpu.memory_space<vmem>>, vector<128x512xbf16>
    %cst_44 = arith.constant dense<0.000000e+00> : vector<8x512xf32>
    %117 = tpu.matmul %115, %116, %cst_44 {dimension_numbers = #tpu.dot_dimension_numbers<[1], [0], [0], [1], [0, 0, 1, 1], [], []>} : vector<8x128xbf16>, vector<128x512xbf16>, vector<8x512xf32> -> vector<8x512xf32>
    %118 = arith.addf %114, %117 : vector<8x512xf32>
    %119 = vector.extract_strided_slice %118 {offsets = [0, 0], sizes = [8, 384], strides = [1, 1]} : vector<8x512xf32> to vector<8x384xf32>
    %120 = arith.negf %119 : vector<8x384xf32>
    %121 = math.exp %120 : vector<8x384xf32>
    %cst_45 = arith.constant 1.000000e+00 : f32
    %122 = vector.broadcast %cst_45 : f32 to vector<8x384xf32>
    %123 = arith.addf %122, %121 : vector<8x384xf32>
    %124 = arith.divf %122, %123 : vector<8x384xf32>
    %125 = vector.extract_strided_slice %124 {offsets = [0, 0], sizes = [8, 128], strides = [1, 1]} : vector<8x384xf32> to vector<8x128xf32>
    %126 = vector.extract_strided_slice %124 {offsets = [0, 128], sizes = [8, 128], strides = [1, 1]} : vector<8x384xf32> to vector<8x128xf32>
    %127 = vector.extract_strided_slice %124 {offsets = [0, 256], sizes = [8, 128], strides = [1, 1]} : vector<8x384xf32> to vector<8x128xf32>
    %128 = vector.extract_strided_slice %118 {offsets = [0, 384], sizes = [8, 128], strides = [1, 1]} : vector<8x512xf32> to vector<8x128xf32>
    %129 = math.tanh %128 : vector<8x128xf32>
    %130 = arith.mulf %126, %107 : vector<8x128xf32>
    %131 = arith.mulf %125, %129 : vector<8x128xf32>
    %132 = arith.addf %130, %131 : vector<8x128xf32>
    %133 = math.tanh %132 : vector<8x128xf32>
    %134 = arith.mulf %127, %133 : vector<8x128xf32>
    %135 = arith.index_cast %112 : i32 to index
    %c0_46 = arith.constant 0 : index
    %136 = vector.load %arg14[%135, %c0_46] : memref<128x128xf32, #tpu.memory_space<vmem>>, vector<8x128xf32>
    tpu.vector_store %arg14[%135, %c0_46], %134 {strides = array<i32>} : memref<128x128xf32, #tpu.memory_space<vmem>>, vector<8x128xf32>,
    %c5_i32 = arith.constant 5 : i32
    %c8_i32_47 = arith.constant 8 : i32
    %137 = arith.muli %c5_i32, %c8_i32_47 : i32
    %138 = arith.index_cast %137 : i32 to index
    %c0_48 = arith.constant 0 : index
    %139 = vector.load %arg13[%138, %c0_48] : memref<128x512xf32, #tpu.memory_space<vmem>>, vector<8x512xf32>
    %140 = arith.truncf %134 : vector<8x128xf32> to vector<8x128xbf16>
    %c0_49 = arith.constant 0 : index
    %c0_50 = arith.constant 0 : index
    %141 = vector.load %arg3[%c0_49, %c0_50] : memref<128x512xbf16, #tpu.memory_space<vmem>>, vector<128x512xbf16>
    %cst_51 = arith.constant dense<0.000000e+00> : vector<8x512xf32>
    %142 = tpu.matmul %140, %141, %cst_51 {dimension_numbers = #tpu.dot_dimension_numbers<[1], [0], [0], [1], [0, 0, 1, 1], [], []>} : vector<8x128xbf16>, vector<128x512xbf16>, vector<8x512xf32> -> vector<8x512xf32>
    %143 = arith.addf %139, %142 : vector<8x512xf32>
    %144 = vector.extract_strided_slice %143 {offsets = [0, 0], sizes = [8, 384], strides = [1, 1]} : vector<8x512xf32> to vector<8x384xf32>
    %145 = arith.negf %144 : vector<8x384xf32>
    %146 = math.exp %145 : vector<8x384xf32>
    %cst_52 = arith.constant 1.000000e+00 : f32
    %147 = vector.broadcast %cst_52 : f32 to vector<8x384xf32>
    %148 = arith.addf %147, %146 : vector<8x384xf32>
    %149 = arith.divf %147, %148 : vector<8x384xf32>
    %150 = vector.extract_strided_slice %149 {offsets = [0, 0], sizes = [8, 128], strides = [1, 1]} : vector<8x384xf32> to vector<8x128xf32>
    %151 = vector.extract_strided_slice %149 {offsets = [0, 128], sizes = [8, 128], strides = [1, 1]} : vector<8x384xf32> to vector<8x128xf32>
    %152 = vector.extract_strided_slice %149 {offsets = [0, 256], sizes = [8, 128], strides = [1, 1]} : vector<8x384xf32> to vector<8x128xf32>
    %153 = vector.extract_strided_slice %143 {offsets = [0, 384], sizes = [8, 128], strides = [1, 1]} : vector<8x512xf32> to vector<8x128xf32>
    %154 = math.tanh %153 : vector<8x128xf32>
    %155 = arith.mulf %151, %132 : vector<8x128xf32>
    %156 = arith.mulf %150, %154 : vector<8x128xf32>
    %157 = arith.addf %155, %156 : vector<8x128xf32>
    %158 = math.tanh %157 : vector<8x128xf32>
    %159 = arith.mulf %152, %158 : vector<8x128xf32>
    %160 = arith.index_cast %137 : i32 to index
    %c0_53 = arith.constant 0 : index
    %161 = vector.load %arg14[%160, %c0_53] : memref<128x128xf32, #tpu.memory_space<vmem>>, vector<8x128xf32>
    tpu.vector_store %arg14[%160, %c0_53], %159 {strides = array<i32>} : memref<128x128xf32, #tpu.memory_space<vmem>>, vector<8x128xf32>,
    %c6_i32 = arith.constant 6 : i32
    %c8_i32_54 = arith.constant 8 : i32
    %162 = arith.muli %c6_i32, %c8_i32_54 : i32
    %163 = arith.index_cast %162 : i32 to index
    %c0_55 = arith.constant 0 : index
    %164 = vector.load %arg13[%163, %c0_55] : memref<128x512xf32, #tpu.memory_space<vmem>>, vector<8x512xf32>
    %165 = arith.truncf %159 : vector<8x128xf32> to vector<8x128xbf16>
    %c0_56 = arith.constant 0 : index
    %c0_57 = arith.constant 0 : index
    %166 = vector.load %arg3[%c0_56, %c0_57] : memref<128x512xbf16, #tpu.memory_space<vmem>>, vector<128x512xbf16>
    %cst_58 = arith.constant dense<0.000000e+00> : vector<8x512xf32>
    %167 = tpu.matmul %165, %166, %cst_58 {dimension_numbers = #tpu.dot_dimension_numbers<[1], [0], [0], [1], [0, 0, 1, 1], [], []>} : vector<8x128xbf16>, vector<128x512xbf16>, vector<8x512xf32> -> vector<8x512xf32>
    %168 = arith.addf %164, %167 : vector<8x512xf32>
    %169 = vector.extract_strided_slice %168 {offsets = [0, 0], sizes = [8, 384], strides = [1, 1]} : vector<8x512xf32> to vector<8x384xf32>
    %170 = arith.negf %169 : vector<8x384xf32>
    %171 = math.exp %170 : vector<8x384xf32>
    %cst_59 = arith.constant 1.000000e+00 : f32
    %172 = vector.broadcast %cst_59 : f32 to vector<8x384xf32>
    %173 = arith.addf %172, %171 : vector<8x384xf32>
    %174 = arith.divf %172, %173 : vector<8x384xf32>
    %175 = vector.extract_strided_slice %174 {offsets = [0, 0], sizes = [8, 128], strides = [1, 1]} : vector<8x384xf32> to vector<8x128xf32>
    %176 = vector.extract_strided_slice %174 {offsets = [0, 128], sizes = [8, 128], strides = [1, 1]} : vector<8x384xf32> to vector<8x128xf32>
    %177 = vector.extract_strided_slice %174 {offsets = [0, 256], sizes = [8, 128], strides = [1, 1]} : vector<8x384xf32> to vector<8x128xf32>
    %178 = vector.extract_strided_slice %168 {offsets = [0, 384], sizes = [8, 128], strides = [1, 1]} : vector<8x512xf32> to vector<8x128xf32>
    %179 = math.tanh %178 : vector<8x128xf32>
    %180 = arith.mulf %176, %157 : vector<8x128xf32>
    %181 = arith.mulf %175, %179 : vector<8x128xf32>
    %182 = arith.addf %180, %181 : vector<8x128xf32>
    %183 = math.tanh %182 : vector<8x128xf32>
    %184 = arith.mulf %177, %183 : vector<8x128xf32>
    %185 = arith.index_cast %162 : i32 to index
    %c0_60 = arith.constant 0 : index
    %186 = vector.load %arg14[%185, %c0_60] : memref<128x128xf32, #tpu.memory_space<vmem>>, vector<8x128xf32>
    tpu.vector_store %arg14[%185, %c0_60], %184 {strides = array<i32>} : memref<128x128xf32, #tpu.memory_space<vmem>>, vector<8x128xf32>,
    %c7_i32 = arith.constant 7 : i32
    %c8_i32_61 = arith.constant 8 : i32
    %187 = arith.muli %c7_i32, %c8_i32_61 : i32
    %188 = arith.index_cast %187 : i32 to index
    %c0_62 = arith.constant 0 : index
    %189 = vector.load %arg13[%188, %c0_62] : memref<128x512xf32, #tpu.memory_space<vmem>>, vector<8x512xf32>
    %190 = arith.truncf %184 : vector<8x128xf32> to vector<8x128xbf16>
    %c0_63 = arith.constant 0 : index
    %c0_64 = arith.constant 0 : index
    %191 = vector.load %arg3[%c0_63, %c0_64] : memref<128x512xbf16, #tpu.memory_space<vmem>>, vector<128x512xbf16>
    %cst_65 = arith.constant dense<0.000000e+00> : vector<8x512xf32>
    %192 = tpu.matmul %190, %191, %cst_65 {dimension_numbers = #tpu.dot_dimension_numbers<[1], [0], [0], [1], [0, 0, 1, 1], [], []>} : vector<8x128xbf16>, vector<128x512xbf16>, vector<8x512xf32> -> vector<8x512xf32>
    %193 = arith.addf %189, %192 : vector<8x512xf32>
    %194 = vector.extract_strided_slice %193 {offsets = [0, 0], sizes = [8, 384], strides = [1, 1]} : vector<8x512xf32> to vector<8x384xf32>
    %195 = arith.negf %194 : vector<8x384xf32>
    %196 = math.exp %195 : vector<8x384xf32>
    %cst_66 = arith.constant 1.000000e+00 : f32
    %197 = vector.broadcast %cst_66 : f32 to vector<8x384xf32>
    %198 = arith.addf %197, %196 : vector<8x384xf32>
    %199 = arith.divf %197, %198 : vector<8x384xf32>
    %200 = vector.extract_strided_slice %199 {offsets = [0, 0], sizes = [8, 128], strides = [1, 1]} : vector<8x384xf32> to vector<8x128xf32>
    %201 = vector.extract_strided_slice %199 {offsets = [0, 128], sizes = [8, 128], strides = [1, 1]} : vector<8x384xf32> to vector<8x128xf32>
    %202 = vector.extract_strided_slice %199 {offsets = [0, 256], sizes = [8, 128], strides = [1, 1]} : vector<8x384xf32> to vector<8x128xf32>
    %203 = vector.extract_strided_slice %193 {offsets = [0, 384], sizes = [8, 128], strides = [1, 1]} : vector<8x512xf32> to vector<8x128xf32>
    %204 = math.tanh %203 : vector<8x128xf32>
    %205 = arith.mulf %201, %182 : vector<8x128xf32>
    %206 = arith.mulf %200, %204 : vector<8x128xf32>
    %207 = arith.addf %205, %206 : vector<8x128xf32>
    %208 = math.tanh %207 : vector<8x128xf32>
    %209 = arith.mulf %202, %208 : vector<8x128xf32>
    %210 = arith.index_cast %187 : i32 to index
    %c0_67 = arith.constant 0 : index
    %211 = vector.load %arg14[%210, %c0_67] : memref<128x128xf32, #tpu.memory_space<vmem>>, vector<8x128xf32>
    tpu.vector_store %arg14[%210, %c0_67], %209 {strides = array<i32>} : memref<128x128xf32, #tpu.memory_space<vmem>>, vector<8x128xf32>,
    %c8_i32_68 = arith.constant 8 : i32
    %c8_i32_69 = arith.constant 8 : i32
    %212 = arith.muli %c8_i32_68, %c8_i32_69 : i32
    %213 = arith.index_cast %212 : i32 to index
    %c0_70 = arith.constant 0 : index
    %214 = vector.load %arg13[%213, %c0_70] : memref<128x512xf32, #tpu.memory_space<vmem>>, vector<8x512xf32>
    %215 = arith.truncf %209 : vector<8x128xf32> to vector<8x128xbf16>
    %c0_71 = arith.constant 0 : index
    %c0_72 = arith.constant 0 : index
    %216 = vector.load %arg3[%c0_71, %c0_72] : memref<128x512xbf16, #tpu.memory_space<vmem>>, vector<128x512xbf16>
    %cst_73 = arith.constant dense<0.000000e+00> : vector<8x512xf32>
    %217 = tpu.matmul %215, %216, %cst_73 {dimension_numbers = #tpu.dot_dimension_numbers<[1], [0], [0], [1], [0, 0, 1, 1], [], []>} : vector<8x128xbf16>, vector<128x512xbf16>, vector<8x512xf32> -> vector<8x512xf32>
    %218 = arith.addf %214, %217 : vector<8x512xf32>
    %219 = vector.extract_strided_slice %218 {offsets = [0, 0], sizes = [8, 384], strides = [1, 1]} : vector<8x512xf32> to vector<8x384xf32>
    %220 = arith.negf %219 : vector<8x384xf32>
    %221 = math.exp %220 : vector<8x384xf32>
    %cst_74 = arith.constant 1.000000e+00 : f32
    %222 = vector.broadcast %cst_74 : f32 to vector<8x384xf32>
    %223 = arith.addf %222, %221 : vector<8x384xf32>
    %224 = arith.divf %222, %223 : vector<8x384xf32>
    %225 = vector.extract_strided_slice %224 {offsets = [0, 0], sizes = [8, 128], strides = [1, 1]} : vector<8x384xf32> to vector<8x128xf32>
    %226 = vector.extract_strided_slice %224 {offsets = [0, 128], sizes = [8, 128], strides = [1, 1]} : vector<8x384xf32> to vector<8x128xf32>
    %227 = vector.extract_strided_slice %224 {offsets = [0, 256], sizes = [8, 128], strides = [1, 1]} : vector<8x384xf32> to vector<8x128xf32>
    %228 = vector.extract_strided_slice %218 {offsets = [0, 384], sizes = [8, 128], strides = [1, 1]} : vector<8x512xf32> to vector<8x128xf32>
    %229 = math.tanh %228 : vector<8x128xf32>
    %230 = arith.mulf %226, %207 : vector<8x128xf32>
    %231 = arith.mulf %225, %229 : vector<8x128xf32>
    %232 = arith.addf %230, %231 : vector<8x128xf32>
    %233 = math.tanh %232 : vector<8x128xf32>
    %234 = arith.mulf %227, %233 : vector<8x128xf32>
    %235 = arith.index_cast %212 : i32 to index
    %c0_75 = arith.constant 0 : index
    %236 = vector.load %arg14[%235, %c0_75] : memref<128x128xf32, #tpu.memory_space<vmem>>, vector<8x128xf32>
    tpu.vector_store %arg14[%235, %c0_75], %234 {strides = array<i32>} : memref<128x128xf32, #tpu.memory_space<vmem>>, vector<8x128xf32>,
    %c9_i32 = arith.constant 9 : i32
    %c8_i32_76 = arith.constant 8 : i32
    %237 = arith.muli %c9_i32, %c8_i32_76 : i32
    %238 = arith.index_cast %237 : i32 to index
    %c0_77 = arith.constant 0 : index
    %239 = vector.load %arg13[%238, %c0_77] : memref<128x512xf32, #tpu.memory_space<vmem>>, vector<8x512xf32>
    %240 = arith.truncf %234 : vector<8x128xf32> to vector<8x128xbf16>
    %c0_78 = arith.constant 0 : index
    %c0_79 = arith.constant 0 : index
    %241 = vector.load %arg3[%c0_78, %c0_79] : memref<128x512xbf16, #tpu.memory_space<vmem>>, vector<128x512xbf16>
    %cst_80 = arith.constant dense<0.000000e+00> : vector<8x512xf32>
    %242 = tpu.matmul %240, %241, %cst_80 {dimension_numbers = #tpu.dot_dimension_numbers<[1], [0], [0], [1], [0, 0, 1, 1], [], []>} : vector<8x128xbf16>, vector<128x512xbf16>, vector<8x512xf32> -> vector<8x512xf32>
    %243 = arith.addf %239, %242 : vector<8x512xf32>
    %244 = vector.extract_strided_slice %243 {offsets = [0, 0], sizes = [8, 384], strides = [1, 1]} : vector<8x512xf32> to vector<8x384xf32>
    %245 = arith.negf %244 : vector<8x384xf32>
    %246 = math.exp %245 : vector<8x384xf32>
    %cst_81 = arith.constant 1.000000e+00 : f32
    %247 = vector.broadcast %cst_81 : f32 to vector<8x384xf32>
    %248 = arith.addf %247, %246 : vector<8x384xf32>
    %249 = arith.divf %247, %248 : vector<8x384xf32>
    %250 = vector.extract_strided_slice %249 {offsets = [0, 0], sizes = [8, 128], strides = [1, 1]} : vector<8x384xf32> to vector<8x128xf32>
    %251 = vector.extract_strided_slice %249 {offsets = [0, 128], sizes = [8, 128], strides = [1, 1]} : vector<8x384xf32> to vector<8x128xf32>
    %252 = vector.extract_strided_slice %249 {offsets = [0, 256], sizes = [8, 128], strides = [1, 1]} : vector<8x384xf32> to vector<8x128xf32>
    %253 = vector.extract_strided_slice %243 {offsets = [0, 384], sizes = [8, 128], strides = [1, 1]} : vector<8x512xf32> to vector<8x128xf32>
    %254 = math.tanh %253 : vector<8x128xf32>
    %255 = arith.mulf %251, %232 : vector<8x128xf32>
    %256 = arith.mulf %250, %254 : vector<8x128xf32>
    %257 = arith.addf %255, %256 : vector<8x128xf32>
    %258 = math.tanh %257 : vector<8x128xf32>
    %259 = arith.mulf %252, %258 : vector<8x128xf32>
    %260 = arith.index_cast %237 : i32 to index
    %c0_82 = arith.constant 0 : index
    %261 = vector.load %arg14[%260, %c0_82] : memref<128x128xf32, #tpu.memory_space<vmem>>, vector<8x128xf32>
    tpu.vector_store %arg14[%260, %c0_82], %259 {strides = array<i32>} : memref<128x128xf32, #tpu.memory_space<vmem>>, vector<8x128xf32>,
    %c10_i32 = arith.constant 10 : i32
    %c8_i32_83 = arith.constant 8 : i32
    %262 = arith.muli %c10_i32, %c8_i32_83 : i32
    %263 = arith.index_cast %262 : i32 to index
    %c0_84 = arith.constant 0 : index
    %264 = vector.load %arg13[%263, %c0_84] : memref<128x512xf32, #tpu.memory_space<vmem>>, vector<8x512xf32>
    %265 = arith.truncf %259 : vector<8x128xf32> to vector<8x128xbf16>
    %c0_85 = arith.constant 0 : index
    %c0_86 = arith.constant 0 : index
    %266 = vector.load %arg3[%c0_85, %c0_86] : memref<128x512xbf16, #tpu.memory_space<vmem>>, vector<128x512xbf16>
    %cst_87 = arith.constant dense<0.000000e+00> : vector<8x512xf32>
    %267 = tpu.matmul %265, %266, %cst_87 {dimension_numbers = #tpu.dot_dimension_numbers<[1], [0], [0], [1], [0, 0, 1, 1], [], []>} : vector<8x128xbf16>, vector<128x512xbf16>, vector<8x512xf32> -> vector<8x512xf32>
    %268 = arith.addf %264, %267 : vector<8x512xf32>
    %269 = vector.extract_strided_slice %268 {offsets = [0, 0], sizes = [8, 384], strides = [1, 1]} : vector<8x512xf32> to vector<8x384xf32>
    %270 = arith.negf %269 : vector<8x384xf32>
    %271 = math.exp %270 : vector<8x384xf32>
    %cst_88 = arith.constant 1.000000e+00 : f32
    %272 = vector.broadcast %cst_88 : f32 to vector<8x384xf32>
    %273 = arith.addf %272, %271 : vector<8x384xf32>
    %274 = arith.divf %272, %273 : vector<8x384xf32>
    %275 = vector.extract_strided_slice %274 {offsets = [0, 0], sizes = [8, 128], strides = [1, 1]} : vector<8x384xf32> to vector<8x128xf32>
    %276 = vector.extract_strided_slice %274 {offsets = [0, 128], sizes = [8, 128], strides = [1, 1]} : vector<8x384xf32> to vector<8x128xf32>
    %277 = vector.extract_strided_slice %274 {offsets = [0, 256], sizes = [8, 128], strides = [1, 1]} : vector<8x384xf32> to vector<8x128xf32>
    %278 = vector.extract_strided_slice %268 {offsets = [0, 384], sizes = [8, 128], strides = [1, 1]} : vector<8x512xf32> to vector<8x128xf32>
    %279 = math.tanh %278 : vector<8x128xf32>
    %280 = arith.mulf %276, %257 : vector<8x128xf32>
    %281 = arith.mulf %275, %279 : vector<8x128xf32>
    %282 = arith.addf %280, %281 : vector<8x128xf32>
    %283 = math.tanh %282 : vector<8x128xf32>
    %284 = arith.mulf %277, %283 : vector<8x128xf32>
    %285 = arith.index_cast %262 : i32 to index
    %c0_89 = arith.constant 0 : index
    %286 = vector.load %arg14[%285, %c0_89] : memref<128x128xf32, #tpu.memory_space<vmem>>, vector<8x128xf32>
    tpu.vector_store %arg14[%285, %c0_89], %284 {strides = array<i32>} : memref<128x128xf32, #tpu.memory_space<vmem>>, vector<8x128xf32>,
    %c11_i32 = arith.constant 11 : i32
    %c8_i32_90 = arith.constant 8 : i32
    %287 = arith.muli %c11_i32, %c8_i32_90 : i32
    %288 = arith.index_cast %287 : i32 to index
    %c0_91 = arith.constant 0 : index
    %289 = vector.load %arg13[%288, %c0_91] : memref<128x512xf32, #tpu.memory_space<vmem>>, vector<8x512xf32>
    %290 = arith.truncf %284 : vector<8x128xf32> to vector<8x128xbf16>
    %c0_92 = arith.constant 0 : index
    %c0_93 = arith.constant 0 : index
    %291 = vector.load %arg3[%c0_92, %c0_93] : memref<128x512xbf16, #tpu.memory_space<vmem>>, vector<128x512xbf16>
    %cst_94 = arith.constant dense<0.000000e+00> : vector<8x512xf32>
    %292 = tpu.matmul %290, %291, %cst_94 {dimension_numbers = #tpu.dot_dimension_numbers<[1], [0], [0], [1], [0, 0, 1, 1], [], []>} : vector<8x128xbf16>, vector<128x512xbf16>, vector<8x512xf32> -> vector<8x512xf32>
    %293 = arith.addf %289, %292 : vector<8x512xf32>
    %294 = vector.extract_strided_slice %293 {offsets = [0, 0], sizes = [8, 384], strides = [1, 1]} : vector<8x512xf32> to vector<8x384xf32>
    %295 = arith.negf %294 : vector<8x384xf32>
    %296 = math.exp %295 : vector<8x384xf32>
    %cst_95 = arith.constant 1.000000e+00 : f32
    %297 = vector.broadcast %cst_95 : f32 to vector<8x384xf32>
    %298 = arith.addf %297, %296 : vector<8x384xf32>
    %299 = arith.divf %297, %298 : vector<8x384xf32>
    %300 = vector.extract_strided_slice %299 {offsets = [0, 0], sizes = [8, 128], strides = [1, 1]} : vector<8x384xf32> to vector<8x128xf32>
    %301 = vector.extract_strided_slice %299 {offsets = [0, 128], sizes = [8, 128], strides = [1, 1]} : vector<8x384xf32> to vector<8x128xf32>
    %302 = vector.extract_strided_slice %299 {offsets = [0, 256], sizes = [8, 128], strides = [1, 1]} : vector<8x384xf32> to vector<8x128xf32>
    %303 = vector.extract_strided_slice %293 {offsets = [0, 384], sizes = [8, 128], strides = [1, 1]} : vector<8x512xf32> to vector<8x128xf32>
    %304 = math.tanh %303 : vector<8x128xf32>
    %305 = arith.mulf %301, %282 : vector<8x128xf32>
    %306 = arith.mulf %300, %304 : vector<8x128xf32>
    %307 = arith.addf %305, %306 : vector<8x128xf32>
    %308 = math.tanh %307 : vector<8x128xf32>
    %309 = arith.mulf %302, %308 : vector<8x128xf32>
    %310 = arith.index_cast %287 : i32 to index
    %c0_96 = arith.constant 0 : index
    %311 = vector.load %arg14[%310, %c0_96] : memref<128x128xf32, #tpu.memory_space<vmem>>, vector<8x128xf32>
    tpu.vector_store %arg14[%310, %c0_96], %309 {strides = array<i32>} : memref<128x128xf32, #tpu.memory_space<vmem>>, vector<8x128xf32>,
    %c12_i32 = arith.constant 12 : i32
    %c8_i32_97 = arith.constant 8 : i32
    %312 = arith.muli %c12_i32, %c8_i32_97 : i32
    %313 = arith.index_cast %312 : i32 to index
    %c0_98 = arith.constant 0 : index
    %314 = vector.load %arg13[%313, %c0_98] : memref<128x512xf32, #tpu.memory_space<vmem>>, vector<8x512xf32>
    %315 = arith.truncf %309 : vector<8x128xf32> to vector<8x128xbf16>
    %c0_99 = arith.constant 0 : index
    %c0_100 = arith.constant 0 : index
    %316 = vector.load %arg3[%c0_99, %c0_100] : memref<128x512xbf16, #tpu.memory_space<vmem>>, vector<128x512xbf16>
    %cst_101 = arith.constant dense<0.000000e+00> : vector<8x512xf32>
    %317 = tpu.matmul %315, %316, %cst_101 {dimension_numbers = #tpu.dot_dimension_numbers<[1], [0], [0], [1], [0, 0, 1, 1], [], []>} : vector<8x128xbf16>, vector<128x512xbf16>, vector<8x512xf32> -> vector<8x512xf32>
    %318 = arith.addf %314, %317 : vector<8x512xf32>
    %319 = vector.extract_strided_slice %318 {offsets = [0, 0], sizes = [8, 384], strides = [1, 1]} : vector<8x512xf32> to vector<8x384xf32>
    %320 = arith.negf %319 : vector<8x384xf32>
    %321 = math.exp %320 : vector<8x384xf32>
    %cst_102 = arith.constant 1.000000e+00 : f32
    %322 = vector.broadcast %cst_102 : f32 to vector<8x384xf32>
    %323 = arith.addf %322, %321 : vector<8x384xf32>
    %324 = arith.divf %322, %323 : vector<8x384xf32>
    %325 = vector.extract_strided_slice %324 {offsets = [0, 0], sizes = [8, 128], strides = [1, 1]} : vector<8x384xf32> to vector<8x128xf32>
    %326 = vector.extract_strided_slice %324 {offsets = [0, 128], sizes = [8, 128], strides = [1, 1]} : vector<8x384xf32> to vector<8x128xf32>
    %327 = vector.extract_strided_slice %324 {offsets = [0, 256], sizes = [8, 128], strides = [1, 1]} : vector<8x384xf32> to vector<8x128xf32>
    %328 = vector.extract_strided_slice %318 {offsets = [0, 384], sizes = [8, 128], strides = [1, 1]} : vector<8x512xf32> to vector<8x128xf32>
    %329 = math.tanh %328 : vector<8x128xf32>
    %330 = arith.mulf %326, %307 : vector<8x128xf32>
    %331 = arith.mulf %325, %329 : vector<8x128xf32>
    %332 = arith.addf %330, %331 : vector<8x128xf32>
    %333 = math.tanh %332 : vector<8x128xf32>
    %334 = arith.mulf %327, %333 : vector<8x128xf32>
    %335 = arith.index_cast %312 : i32 to index
    %c0_103 = arith.constant 0 : index
    %336 = vector.load %arg14[%335, %c0_103] : memref<128x128xf32, #tpu.memory_space<vmem>>, vector<8x128xf32>
    tpu.vector_store %arg14[%335, %c0_103], %334 {strides = array<i32>} : memref<128x128xf32, #tpu.memory_space<vmem>>, vector<8x128xf32>,
    %c13_i32 = arith.constant 13 : i32
    %c8_i32_104 = arith.constant 8 : i32
    %337 = arith.muli %c13_i32, %c8_i32_104 : i32
    %338 = arith.index_cast %337 : i32 to index
    %c0_105 = arith.constant 0 : index
    %339 = vector.load %arg13[%338, %c0_105] : memref<128x512xf32, #tpu.memory_space<vmem>>, vector<8x512xf32>
    %340 = arith.truncf %334 : vector<8x128xf32> to vector<8x128xbf16>
    %c0_106 = arith.constant 0 : index
    %c0_107 = arith.constant 0 : index
    %341 = vector.load %arg3[%c0_106, %c0_107] : memref<128x512xbf16, #tpu.memory_space<vmem>>, vector<128x512xbf16>
    %cst_108 = arith.constant dense<0.000000e+00> : vector<8x512xf32>
    %342 = tpu.matmul %340, %341, %cst_108 {dimension_numbers = #tpu.dot_dimension_numbers<[1], [0], [0], [1], [0, 0, 1, 1], [], []>} : vector<8x128xbf16>, vector<128x512xbf16>, vector<8x512xf32> -> vector<8x512xf32>
    %343 = arith.addf %339, %342 : vector<8x512xf32>
    %344 = vector.extract_strided_slice %343 {offsets = [0, 0], sizes = [8, 384], strides = [1, 1]} : vector<8x512xf32> to vector<8x384xf32>
    %345 = arith.negf %344 : vector<8x384xf32>
    %346 = math.exp %345 : vector<8x384xf32>
    %cst_109 = arith.constant 1.000000e+00 : f32
    %347 = vector.broadcast %cst_109 : f32 to vector<8x384xf32>
    %348 = arith.addf %347, %346 : vector<8x384xf32>
    %349 = arith.divf %347, %348 : vector<8x384xf32>
    %350 = vector.extract_strided_slice %349 {offsets = [0, 0], sizes = [8, 128], strides = [1, 1]} : vector<8x384xf32> to vector<8x128xf32>
    %351 = vector.extract_strided_slice %349 {offsets = [0, 128], sizes = [8, 128], strides = [1, 1]} : vector<8x384xf32> to vector<8x128xf32>
    %352 = vector.extract_strided_slice %349 {offsets = [0, 256], sizes = [8, 128], strides = [1, 1]} : vector<8x384xf32> to vector<8x128xf32>
    %353 = vector.extract_strided_slice %343 {offsets = [0, 384], sizes = [8, 128], strides = [1, 1]} : vector<8x512xf32> to vector<8x128xf32>
    %354 = math.tanh %353 : vector<8x128xf32>
    %355 = arith.mulf %351, %332 : vector<8x128xf32>
    %356 = arith.mulf %350, %354 : vector<8x128xf32>
    %357 = arith.addf %355, %356 : vector<8x128xf32>
    %358 = math.tanh %357 : vector<8x128xf32>
    %359 = arith.mulf %352, %358 : vector<8x128xf32>
    %360 = arith.index_cast %337 : i32 to index
    %c0_110 = arith.constant 0 : index
    %361 = vector.load %arg14[%360, %c0_110] : memref<128x128xf32, #tpu.memory_space<vmem>>, vector<8x128xf32>
    tpu.vector_store %arg14[%360, %c0_110], %359 {strides = array<i32>} : memref<128x128xf32, #tpu.memory_space<vmem>>, vector<8x128xf32>,
    %c14_i32 = arith.constant 14 : i32
    %c8_i32_111 = arith.constant 8 : i32
    %362 = arith.muli %c14_i32, %c8_i32_111 : i32
    %363 = arith.index_cast %362 : i32 to index
    %c0_112 = arith.constant 0 : index
    %364 = vector.load %arg13[%363, %c0_112] : memref<128x512xf32, #tpu.memory_space<vmem>>, vector<8x512xf32>
    %365 = arith.truncf %359 : vector<8x128xf32> to vector<8x128xbf16>
    %c0_113 = arith.constant 0 : index
    %c0_114 = arith.constant 0 : index
    %366 = vector.load %arg3[%c0_113, %c0_114] : memref<128x512xbf16, #tpu.memory_space<vmem>>, vector<128x512xbf16>
    %cst_115 = arith.constant dense<0.000000e+00> : vector<8x512xf32>
    %367 = tpu.matmul %365, %366, %cst_115 {dimension_numbers = #tpu.dot_dimension_numbers<[1], [0], [0], [1], [0, 0, 1, 1], [], []>} : vector<8x128xbf16>, vector<128x512xbf16>, vector<8x512xf32> -> vector<8x512xf32>
    %368 = arith.addf %364, %367 : vector<8x512xf32>
    %369 = vector.extract_strided_slice %368 {offsets = [0, 0], sizes = [8, 384], strides = [1, 1]} : vector<8x512xf32> to vector<8x384xf32>
    %370 = arith.negf %369 : vector<8x384xf32>
    %371 = math.exp %370 : vector<8x384xf32>
    %cst_116 = arith.constant 1.000000e+00 : f32
    %372 = vector.broadcast %cst_116 : f32 to vector<8x384xf32>
    %373 = arith.addf %372, %371 : vector<8x384xf32>
    %374 = arith.divf %372, %373 : vector<8x384xf32>
    %375 = vector.extract_strided_slice %374 {offsets = [0, 0], sizes = [8, 128], strides = [1, 1]} : vector<8x384xf32> to vector<8x128xf32>
    %376 = vector.extract_strided_slice %374 {offsets = [0, 128], sizes = [8, 128], strides = [1, 1]} : vector<8x384xf32> to vector<8x128xf32>
    %377 = vector.extract_strided_slice %374 {offsets = [0, 256], sizes = [8, 128], strides = [1, 1]} : vector<8x384xf32> to vector<8x128xf32>
    %378 = vector.extract_strided_slice %368 {offsets = [0, 384], sizes = [8, 128], strides = [1, 1]} : vector<8x512xf32> to vector<8x128xf32>
    %379 = math.tanh %378 : vector<8x128xf32>
    %380 = arith.mulf %376, %357 : vector<8x128xf32>
    %381 = arith.mulf %375, %379 : vector<8x128xf32>
    %382 = arith.addf %380, %381 : vector<8x128xf32>
    %383 = math.tanh %382 : vector<8x128xf32>
    %384 = arith.mulf %377, %383 : vector<8x128xf32>
    %385 = arith.index_cast %362 : i32 to index
    %c0_117 = arith.constant 0 : index
    %386 = vector.load %arg14[%385, %c0_117] : memref<128x128xf32, #tpu.memory_space<vmem>>, vector<8x128xf32>
    tpu.vector_store %arg14[%385, %c0_117], %384 {strides = array<i32>} : memref<128x128xf32, #tpu.memory_space<vmem>>, vector<8x128xf32>,
    %c15_i32 = arith.constant 15 : i32
    %c8_i32_118 = arith.constant 8 : i32
    %387 = arith.muli %c15_i32, %c8_i32_118 : i32
    %388 = arith.index_cast %387 : i32 to index
    %c0_119 = arith.constant 0 : index
    %389 = vector.load %arg13[%388, %c0_119] : memref<128x512xf32, #tpu.memory_space<vmem>>, vector<8x512xf32>
    %390 = arith.truncf %384 : vector<8x128xf32> to vector<8x128xbf16>
    %c0_120 = arith.constant 0 : index
    %c0_121 = arith.constant 0 : index
    %391 = vector.load %arg3[%c0_120, %c0_121] : memref<128x512xbf16, #tpu.memory_space<vmem>>, vector<128x512xbf16>
    %cst_122 = arith.constant dense<0.000000e+00> : vector<8x512xf32>
    %392 = tpu.matmul %390, %391, %cst_122 {dimension_numbers = #tpu.dot_dimension_numbers<[1], [0], [0], [1], [0, 0, 1, 1], [], []>} : vector<8x128xbf16>, vector<128x512xbf16>, vector<8x512xf32> -> vector<8x512xf32>
    %393 = arith.addf %389, %392 : vector<8x512xf32>
    %394 = vector.extract_strided_slice %393 {offsets = [0, 0], sizes = [8, 384], strides = [1, 1]} : vector<8x512xf32> to vector<8x384xf32>
    %395 = arith.negf %394 : vector<8x384xf32>
    %396 = math.exp %395 : vector<8x384xf32>
    %cst_123 = arith.constant 1.000000e+00 : f32
    %397 = vector.broadcast %cst_123 : f32 to vector<8x384xf32>
    %398 = arith.addf %397, %396 : vector<8x384xf32>
    %399 = arith.divf %397, %398 : vector<8x384xf32>
    %400 = vector.extract_strided_slice %399 {offsets = [0, 0], sizes = [8, 128], strides = [1, 1]} : vector<8x384xf32> to vector<8x128xf32>
    %401 = vector.extract_strided_slice %399 {offsets = [0, 128], sizes = [8, 128], strides = [1, 1]} : vector<8x384xf32> to vector<8x128xf32>
    %402 = vector.extract_strided_slice %399 {offsets = [0, 256], sizes = [8, 128], strides = [1, 1]} : vector<8x384xf32> to vector<8x128xf32>
    %403 = vector.extract_strided_slice %393 {offsets = [0, 384], sizes = [8, 128], strides = [1, 1]} : vector<8x512xf32> to vector<8x128xf32>
    %404 = math.tanh %403 : vector<8x128xf32>
    %405 = arith.mulf %401, %382 : vector<8x128xf32>
    %406 = arith.mulf %400, %404 : vector<8x128xf32>
    %407 = arith.addf %405, %406 : vector<8x128xf32>
    %408 = math.tanh %407 : vector<8x128xf32>
    %409 = arith.mulf %402, %408 : vector<8x128xf32>
    %410 = arith.index_cast %387 : i32 to index
    %c0_124 = arith.constant 0 : index
    %411 = vector.load %arg14[%410, %c0_124] : memref<128x128xf32, #tpu.memory_space<vmem>>, vector<8x128xf32>
    tpu.vector_store %arg14[%410, %c0_124], %409 {strides = array<i32>} : memref<128x128xf32, #tpu.memory_space<vmem>>, vector<8x128xf32>,
    %c16_i32 = arith.constant 16 : i32
    %c0_125 = arith.constant 0 : index
    %c0_126 = arith.constant 0 : index
    %412 = vector.load %arg10[%c0_125, %c0_126] : memref<8x128xf32, #tpu.memory_space<vmem>>, vector<8x128xf32>
    tpu.vector_store %arg10[%c0_125, %c0_126], %409 {strides = array<i32>} : memref<8x128xf32, #tpu.memory_space<vmem>>, vector<8x128xf32>,
    %c0_127 = arith.constant 0 : index
    %c0_128 = arith.constant 0 : index
    %413 = vector.load %arg11[%c0_127, %c0_128] : memref<8x128xf32, #tpu.memory_space<vmem>>, vector<8x128xf32>
    tpu.vector_store %arg11[%c0_127, %c0_128], %407 {strides = array<i32>} : memref<8x128xf32, #tpu.memory_space<vmem>>, vector<8x128xf32>,
    %c0_129 = arith.constant 0 : index
    %c0_130 = arith.constant 0 : index
    %414 = vector.load %arg14[%c0_129, %c0_130] : memref<128x128xf32, #tpu.memory_space<vmem>>, vector<128x128xf32>
    %415 = arith.truncf %414 : vector<128x128xf32> to vector<128x128xbf16>
    %c0_131 = arith.constant 0 : index
    %c0_132 = arith.constant 0 : index
    %416 = vector.load %arg9[%c0_131, %c0_132] : memref<128x128xbf16, #tpu.memory_space<vmem>>, vector<128x128xbf16>
    tpu.vector_store %arg9[%c0_131, %c0_132], %415 {strides = array<i32>} : memref<128x128xbf16, #tpu.memory_space<vmem>>, vector<128x128xbf16>,
    %c0_i32_133 = arith.constant 0 : i32
    %417 = arith.cmpi eq, %arg0, %c0_i32_133 : i32
    %418 = arith.extui %417 : i1 to i32
    %c0_i32_134 = arith.constant 0 : i32
    %419 = arith.cmpi ne, %418, %c0_i32_134 : i32
    scf.if %419 {
      %420 = arith.truncf %409 : vector<8x128xf32> to vector<8x128xbf16>
      %c0_135 = arith.constant 0 : index
      %c0_136 = arith.constant 0 : index
      %421 = vector.load %arg7[%c0_135, %c0_136] : memref<128x256xbf16, #tpu.memory_space<vmem>>, vector<128x256xbf16>
      %cst_137 = arith.constant dense<0.000000e+00> : vector<8x256xf32>
      %422 = tpu.matmul %420, %421, %cst_137 {dimension_numbers = #tpu.dot_dimension_numbers<[1], [0], [0], [1], [0, 0, 1, 1], [], []>} : vector<8x128xbf16>, vector<128x256xbf16>, vector<8x256xf32> -> vector<8x256xf32>
      %c0_138 = arith.constant 0 : index
      %c0_139 = arith.constant 0 : index
      %423 = vector.load %arg8[%c0_138, %c0_139] : memref<1x256xf32, #tpu.memory_space<vmem>>, vector<1x256xf32>
      %424 = vector.broadcast %423 : vector<1x256xf32> to vector<8x256xf32>
      %425 = arith.addf %422, %424 : vector<8x256xf32>
      %c0_140 = arith.constant 0 : index
      %c0_141 = arith.constant 0 : index
      %426 = vector.load %arg12[%c0_140, %c0_141] : memref<8x256xf32, #tpu.memory_space<vmem>>, vector<8x256xf32>
      tpu.vector_store %arg12[%c0_140, %c0_141], %425 {strides = array<i32>} : memref<8x256xf32, #tpu.memory_space<vmem>>, vector<8x256xf32>,
    } else {
    }
    return
  }
  func.func @transform_0(%arg0: i32) -> (i32, i32) {
    %c0_i32 = arith.constant 0 : i32
    %c0_i32_0 = arith.constant 0 : i32
    return %arg0, %c0_i32 : i32, i32
  }
  func.func @transform_1(%arg0: i32) -> (i32, i32) {
    %c0_i32 = arith.constant 0 : i32
    %c0_i32_0 = arith.constant 0 : i32
    %c0_i32_1 = arith.constant 0 : i32
    return %c0_i32, %c0_i32_0 : i32, i32
  }
  func.func @transform_2(%arg0: i32) -> (i32, i32) {
    %c0_i32 = arith.constant 0 : i32
    %c0_i32_0 = arith.constant 0 : i32
    %c0_i32_1 = arith.constant 0 : i32
    return %c0_i32, %c0_i32_0 : i32, i32
  }
  func.func @transform_3(%arg0: i32) -> (i32, i32) {
    %c0_i32 = arith.constant 0 : i32
    %c0_i32_0 = arith.constant 0 : i32
    %c0_i32_1 = arith.constant 0 : i32
    return %c0_i32, %c0_i32_0 : i32, i32
  }
  func.func @transform_4(%arg0: i32) -> (i32, i32) {
    %c0_i32 = arith.constant 0 : i32
    %c0_i32_0 = arith.constant 0 : i32
    %c0_i32_1 = arith.constant 0 : i32
    return %c0_i32, %c0_i32_0 : i32, i32
  }
  func.func @transform_5(%arg0: i32) -> (i32, i32) {
    %c0_i32 = arith.constant 0 : i32
    %c0_i32_0 = arith.constant 0 : i32
    %c0_i32_1 = arith.constant 0 : i32
    return %c0_i32, %c0_i32_0 : i32, i32
  }
  func.func @transform_6(%arg0: i32) -> (i32, i32) {
    %c0_i32 = arith.constant 0 : i32
    %c0_i32_0 = arith.constant 0 : i32
    %c0_i32_1 = arith.constant 0 : i32
    return %c0_i32, %c0_i32_0 : i32, i32
  }
  func.func @transform_7(%arg0: i32) -> (i32, i32) {
    %c0_i32 = arith.constant 0 : i32
    %c0_i32_0 = arith.constant 0 : i32
    %c0_i32_1 = arith.constant 0 : i32
    return %c0_i32, %c0_i32_0 : i32, i32
  }
  func.func @transform_8(%arg0: i32) -> (i32, i32) {
    %c0_i32 = arith.constant 0 : i32
    %c0_i32_0 = arith.constant 0 : i32
    return %arg0, %c0_i32 : i32, i32
  }
  func.func @transform_9(%arg0: i32) -> (i32, i32) {
    %c0_i32 = arith.constant 0 : i32
    %c0_i32_0 = arith.constant 0 : i32
    %c0_i32_1 = arith.constant 0 : i32
    return %c0_i32, %c0_i32_0 : i32, i32
  }
  func.func @transform_10(%arg0: i32) -> (i32, i32) {
    %c0_i32 = arith.constant 0 : i32
    %c0_i32_0 = arith.constant 0 : i32
    %c0_i32_1 = arith.constant 0 : i32
    return %c0_i32, %c0_i32_0 : i32, i32
  }
  func.func @transform_11(%arg0: i32) -> (i32, i32) {
    %c0_i32 = arith.constant 0 : i32
    %c0_i32_0 = arith.constant 0 : i32
    %c0_i32_1 = arith.constant 0 : i32
    return %c0_i32, %c0_i32_0 : i32, i32
  }
}

</mosaic_0001>

<llo_original>
// kernel: rnn_model_forward.3
$region0: #{rnn_model_forward.3}
  #allocation0 [shape = 'u32[]', space=smem, size = 0x4, offset = 0x4, fixed_abs, tag = 'smem constant byte address 0x4 - core index']
  #allocation1 [shape = 'u32[144,128]{1,0:T(1,128)}', space=vmem, size = 0x12000, scoped, tag = 'internal scratch']
  #allocation2 [shape = 'f32[128,512]{1,0:T(8,128)}', space=vmem, size = 0x40000, scoped, tag = 'scratch operand']
  #allocation3 [shape = 'f32[128,128]{1,0:T(8,128)}', space=vmem, size = 0x10000, scoped, tag = 'scratch operand']
  %s0 = inlined_call_operand.vmem [shape: bf16[128,128], index: 0, kind: input, shape index: {}]
  %s1 = inlined_call_operand.vmem [shape: bf16[128,512], index: 1, kind: input, shape index: {}]
  %s2 = inlined_call_operand.vmem [shape: bf16[128,512], index: 2, kind: input, shape index: {}]
  %s3 = inlined_call_operand.vmem [shape: f32[1,512], index: 3, kind: input, shape index: {}]
  %s4 = inlined_call_operand.vmem [shape: f32[8,128], index: 4, kind: input, shape index: {}]
  %s5 = inlined_call_operand.vmem [shape: f32[8,128], index: 5, kind: input, shape index: {}]
  %s6 = inlined_call_operand.vmem [shape: bf16[128,256], index: 6, kind: input, shape index: {}]
  %s7 = inlined_call_operand.vmem [shape: f32[1,256], index: 7, kind: input, shape index: {}]
  %s8 = inlined_call_operand.hbm [shape: bf16[128,128], index: 8, kind: output, shape index: {0}]
  %s9 = inlined_call_operand.vmem [shape: f32[8,128], index: 9, kind: output, shape index: {1}]
  %s10 = inlined_call_operand.vmem [shape: f32[8,128], index: 10, kind: output, shape index: {2}]
  %s11 = inlined_call_operand.hbm [shape: f32[8,256], index: 11, kind: output, shape index: {3}]
  %12 = xla_tuple %s8, %s9, %s10, %s11
  %s13 = sld [smem:[#allocation0]]
  $region74: #{rnn_model_forward.3} parent=0
    _
  %s15 = ssub.s32 1, %s13
  %s16 = scalar_select 0, %s15, %s13
  $region1: #{rnn_model_forward.3} parent=0
    #allocation4 [shape = 'u8[32768]{0}', space=vmem, size = 0x8000, scoped, tag = 'output window, operand 0, single buffered']
    #allocation5 [shape = 's32[1]{0}', space=sflag, size = 0x4, scoped, tag = 'scoped memory for rnn_model_forward.3']
    #allocation6 [shape = 'u8[8192]{0}', space=vmem, size = 0x2000, scoped, tag = 'output window, operand 3, single buffered']
    #allocation7 [shape = 's32[1]{0}', space=sflag, size = 0x4, scoped, tag = 'scoped memory for rnn_model_forward.3']
    %17 = vsyncpa [#allocation5], 0
    %18 = vsyncpa [#allocation7], 0
    // Predicated region
    $region2: #{rnn_model_forward.3} parent=1 // pred_check
      _
    $region3: #{rnn_model_forward.3} parent=1 // pred_check_branch
      %20 = sbr.rel (0) target = $region5
    $region4: #{rnn_model_forward.3} parent=1 // pred_region
      _
    $region5: #{rnn_model_forward.3} parent=1 // pred_fallthru
      _
    // Predicated region
    $region6: #{rnn_model_forward.3} parent=1 // pred_check
      _
    $region7: #{rnn_model_forward.3} parent=1 // pred_check_branch
      %22 = sbr.rel (0) target = $region9
    $region8: #{rnn_model_forward.3} parent=1 // pred_region
      _
    $region9: #{rnn_model_forward.3} parent=1 // pred_fallthru
      _
    // Predicated region
    $region10: #{rnn_model_forward.3} parent=1 // pred_check
      _
    $region11: #{rnn_model_forward.3} parent=1 // pred_check_branch
      %24 = sbr.rel (0) target = $region13
    $region12: #{rnn_model_forward.3} parent=1 // pred_region
      _
    $region13: #{rnn_model_forward.3} parent=1 // pred_fallthru
      _
    // Predicated region
    $region14: #{rnn_model_forward.3} parent=1 // pred_check
      _
    $region15: #{rnn_model_forward.3} parent=1 // pred_check_branch
      %26 = sbr.rel (0) target = $region17
    $region16: #{rnn_model_forward.3} parent=1 // pred_region
      _
    $region17: #{rnn_model_forward.3} parent=1 // pred_fallthru
      _
    // Predicated region
    $region18: #{rnn_model_forward.3} parent=1 // pred_check
      _
    $region19: #{rnn_model_forward.3} parent=1 // pred_check_branch
      %28 = sbr.rel (0) target = $region21
    $region20: #{rnn_model_forward.3} parent=1 // pred_region
      _
    $region21: #{rnn_model_forward.3} parent=1 // pred_fallthru
      _
    // Predicated region
    $region22: #{rnn_model_forward.3} parent=1 // pred_check
      _
    $region23: #{rnn_model_forward.3} parent=1 // pred_check_branch
      %30 = sbr.rel (0) target = $region25
    $region24: #{rnn_model_forward.3} parent=1 // pred_region
      _
    $region25: #{rnn_model_forward.3} parent=1 // pred_fallthru
      _
    // Predicated region
    $region26: #{rnn_model_forward.3} parent=1 // pred_check
      _
    $region27: #{rnn_model_forward.3} parent=1 // pred_check_branch
      %32 = sbr.rel (0) target = $region29
    $region28: #{rnn_model_forward.3} parent=1 // pred_region
      _
    $region29: #{rnn_model_forward.3} parent=1 // pred_fallthru
      _
    // Predicated region
    $region30: #{rnn_model_forward.3} parent=1 // pred_check
      _
    $region31: #{rnn_model_forward.3} parent=1 // pred_check_branch
      %34 = sbr.rel (0) target = $region33
    $region32: #{rnn_model_forward.3} parent=1 // pred_region
      _
    $region33: #{rnn_model_forward.3} parent=1 // pred_fallthru
      _
    %v36 = vld [vmem:[%s0] sm:$0xf]
    %v37 = vld [vmem:[%s0 + $0x4] sm:$0xf]
    %v38 = vld [vmem:[%s0 + $0x8] sm:$0xf]
    %v39 = vld [vmem:[%s0 + $0xc] sm:$0xf]
    %v40 = vld [vmem:[%s0 + $0x10] sm:$0xf]
    %v41 = vld [vmem:[%s0 + $0x14] sm:$0xf]
    %v42 = vld [vmem:[%s0 + $0x18] sm:$0xf]
    %v43 = vld [vmem:[%s0 + $0x1c] sm:$0xf]
    %v44 = vld [vmem:[%s0 + $0x20] sm:$0xf]
    %v45 = vld [vmem:[%s0 + $0x24] sm:$0xf]
    %v46 = vld [vmem:[%s0 + $0x28] sm:$0xf]
    %v47 = vld [vmem:[%s0 + $0x2c] sm:$0xf]
    %v48 = vld [vmem:[%s0 + $0x30] sm:$0xf]
    %v49 = vld [vmem:[%s0 + $0x34] sm:$0xf]
    %v50 = vld [vmem:[%s0 + $0x38] sm:$0xf]
    %v51 = vld [vmem:[%s0 + $0x3c] sm:$0xf]
    %v52 = vld [vmem:[%s1] sm:$0xff]
    %v53 = vld [vmem:[%s1 + $0x8] sm:$0xff]
    %v54 = vld [vmem:[%s1 + $0x10] sm:$0xff]
    %v55 = vld [vmem:[%s1 + $0x18] sm:$0xff]
    %v56 = vld [vmem:[%s1 + $0x20] sm:$0xff]
    %v57 = vld [vmem:[%s1 + $0x28] sm:$0xff]
    %v58 = vld [vmem:[%s1 + $0x30] sm:$0xff]
    %v59 = vld [vmem:[%s1 + $0x38] sm:$0xff]
    %v60 = vld [vmem:[%s1 + $0x40] sm:$0xff]
    %v61 = vld [vmem:[%s1 + $0x48] sm:$0xff]
    %v62 = vld [vmem:[%s1 + $0x50] sm:$0xff]
    %v63 = vld [vmem:[%s1 + $0x58] sm:$0xff]
    %v64 = vld [vmem:[%s1 + $0x60] sm:$0xff]
    %v65 = vld [vmem:[%s1 + $0x68] sm:$0xff]
    %v66 = vld [vmem:[%s1 + $0x70] sm:$0xff]
    %v67 = vld [vmem:[%s1 + $0x78] sm:$0xff]
    %v68 = vld [vmem:[%s1 + $0x80] sm:$0xff]
    %v69 = vld [vmem:[%s1 + $0x88] sm:$0xff]
    %v70 = vld [vmem:[%s1 + $0x90] sm:$0xff]
    %v71 = vld [vmem:[%s1 + $0x98] sm:$0xff]
    %v72 = vld [vmem:[%s1 + $0xa0] sm:$0xff]
    %v73 = vld [vmem:[%s1 + $0xa8] sm:$0xff]
    %v74 = vld [vmem:[%s1 + $0xb0] sm:$0xff]
    %v75 = vld [vmem:[%s1 + $0xb8] sm:$0xff]
    %v76 = vld [vmem:[%s1 + $0xc0] sm:$0xff]
    %v77 = vld [vmem:[%s1 + $0xc8] sm:$0xff]
    %v78 = vld [vmem:[%s1 + $0xd0] sm:$0xff]
    %v79 = vld [vmem:[%s1 + $0xd8] sm:$0xff]
    %v80 = vld [vmem:[%s1 + $0xe0] sm:$0xff]
    %v81 = vld [vmem:[%s1 + $0xe8] sm:$0xff]
    %v82 = vld [vmem:[%s1 + $0xf0] sm:$0xff]
    %v83 = vld [vmem:[%s1 + $0xf8] sm:$0xff]
    %v84 = vld [vmem:[%s3] sm:$0xf]
    %v86 = vlaneseq
    %v87 = vshrl.u32 %v86, 7
    %v88 = vsub.s32 0, %v87
    %v89 = vrot.slane %v84, %v88
    %v90 = vlaneseq
    %v91 = vshrl.u32 %v90, 7
    %v92 = vsub.s32 1, %v91
    %v93 = vrot.slane %v84, %v92
    %v94 = vlaneseq
    %v95 = vshrl.u32 %v94, 7
    %v96 = vsub.s32 2, %v95
    %v97 = vrot.slane %v84, %v96
    %v98 = vlaneseq
    %v99 = vshrl.u32 %v98, 7
    %v100 = vsub.s32 3, %v99
    %v101 = vrot.slane %v84, %v100
    %v122 = vunpack.c.l.b16 %v36
    %v123 = vunpack.c.l.b16 %v37
    %v124 = vunpack.c.l.b16 %v38
    %v125 = vunpack.c.l.b16 %v39
    %v126 = vunpack.c.l.b16 %v40
    %v127 = vunpack.c.l.b16 %v41
    %v128 = vunpack.c.l.b16 %v42
    %v129 = vunpack.c.l.b16 %v43
    %v130 = vunpack.c.l.b16 %v44
    %v131 = vunpack.c.l.b16 %v45
    %v132 = vunpack.c.l.b16 %v46
    %v133 = vunpack.c.l.b16 %v47
    %v134 = vunpack.c.l.b16 %v48
    %v135 = vunpack.c.l.b16 %v49
    %v136 = vunpack.c.l.b16 %v50
    %v137 = vunpack.c.l.b16 %v51
    %v138 = vpack.c.b16 %v123, %v122
    %v139 = vpack.c.b16 %v125, %v124
    %v140 = vpack.c.b16 %v127, %v126
    %v141 = vpack.c.b16 %v129, %v128
    %v142 = vpack.c.b16 %v131, %v130
    %v143 = vpack.c.b16 %v133, %v132
    %v144 = vpack.c.b16 %v135, %v134
    %v145 = vpack.c.b16 %v137, %v136
    %v186 = vunpack.c.l.b16 %v52
    %v187 = vunpack.c.h.b16 %v52
    %v188 = vunpack.c.l.b16 %v53
    %v189 = vunpack.c.h.b16 %v53
    %v190 = vunpack.c.l.b16 %v54
    %v191 = vunpack.c.h.b16 %v54
    %v192 = vunpack.c.l.b16 %v55
    %v193 = vunpack.c.h.b16 %v55
    %v194 = vunpack.c.l.b16 %v56
    %v195 = vunpack.c.h.b16 %v56
    %v196 = vunpack.c.l.b16 %v57
    %v197 = vunpack.c.h.b16 %v57
    %v198 = vunpack.c.l.b16 %v58
    %v199 = vunpack.c.h.b16 %v58
    %v200 = vunpack.c.l.b16 %v59
    %v201 = vunpack.c.h.b16 %v59
    %v202 = vunpack.c.l.b16 %v60
    %v203 = vunpack.c.h.b16 %v60
    %v204 = vunpack.c.l.b16 %v61
    %v205 = vunpack.c.h.b16 %v61
    %v206 = vunpack.c.l.b16 %v62
    %v207 = vunpack.c.h.b16 %v62
    %v208 = vunpack.c.l.b16 %v63
    %v209 = vunpack.c.h.b16 %v63
    %v210 = vunpack.c.l.b16 %v64
    %v211 = vunpack.c.h.b16 %v64
    %v212 = vunpack.c.l.b16 %v65
    %v213 = vunpack.c.h.b16 %v65
    %v214 = vunpack.c.l.b16 %v66
    %v215 = vunpack.c.h.b16 %v66
    %v216 = vunpack.c.l.b16 %v67
    %v217 = vunpack.c.h.b16 %v67
    %v218 = vunpack.c.l.b16 %v68
    %v219 = vunpack.c.h.b16 %v68
    %v220 = vunpack.c.l.b16 %v69
    %v221 = vunpack.c.h.b16 %v69
    %v222 = vunpack.c.l.b16 %v70
    %v223 = vunpack.c.h.b16 %v70
    %v224 = vunpack.c.l.b16 %v71
    %v225 = vunpack.c.h.b16 %v71
    %v226 = vunpack.c.l.b16 %v72
    %v227 = vunpack.c.h.b16 %v72
    %v228 = vunpack.c.l.b16 %v73
    %v229 = vunpack.c.h.b16 %v73
    %v230 = vunpack.c.l.b16 %v74
    %v231 = vunpack.c.h.b16 %v74
    %v232 = vunpack.c.l.b16 %v75
    %v233 = vunpack.c.h.b16 %v75
    %v234 = vunpack.c.l.b16 %v76
    %v235 = vunpack.c.h.b16 %v76
    %v236 = vunpack.c.l.b16 %v77
    %v237 = vunpack.c.h.b16 %v77
    %v238 = vunpack.c.l.b16 %v78
    %v239 = vunpack.c.h.b16 %v78
    %v240 = vunpack.c.l.b16 %v79
    %v241 = vunpack.c.h.b16 %v79
    %v242 = vunpack.c.l.b16 %v80
    %v243 = vunpack.c.h.b16 %v80
    %v244 = vunpack.c.l.b16 %v81
    %v245 = vunpack.c.h.b16 %v81
    %v246 = vunpack.c.l.b16 %v82
    %v247 = vunpack.c.h.b16 %v82
    %v248 = vunpack.c.l.b16 %v83
    %v249 = vunpack.c.h.b16 %v83
    %v250 = vpack.c.b16 %v190, %v186
    %v251 = vpack.c.b16 %v191, %v187
    %v252 = vpack.c.b16 %v192, %v188
    %v253 = vpack.c.b16 %v193, %v189
    %v254 = vpack.c.b16 %v198, %v194
    %v255 = vpack.c.b16 %v199, %v195
    %v256 = vpack.c.b16 %v200, %v196
    %v257 = vpack.c.b16 %v201, %v197
    %v258 = vpack.c.b16 %v206, %v202
    %v259 = vpack.c.b16 %v207, %v203
    %v260 = vpack.c.b16 %v208, %v204
    %v261 = vpack.c.b16 %v209, %v205
    %v262 = vpack.c.b16 %v214, %v210
    %v263 = vpack.c.b16 %v215, %v211
    %v264 = vpack.c.b16 %v216, %v212
    %v265 = vpack.c.b16 %v217, %v213
    %v266 = vpack.c.b16 %v222, %v218
    %v267 = vpack.c.b16 %v223, %v219
    %v268 = vpack.c.b16 %v224, %v220
    %v269 = vpack.c.b16 %v225, %v221
    %v270 = vpack.c.b16 %v230, %v226
    %v271 = vpack.c.b16 %v231, %v227
    %v272 = vpack.c.b16 %v232, %v228
    %v273 = vpack.c.b16 %v233, %v229
    %v274 = vpack.c.b16 %v238, %v234
    %v275 = vpack.c.b16 %v239, %v235
    %v276 = vpack.c.b16 %v240, %v236
    %v277 = vpack.c.b16 %v241, %v237
    %v278 = vpack.c.b16 %v246, %v242
    %v279 = vpack.c.b16 %v247, %v243
    %v280 = vpack.c.b16 %v248, %v244
    %v281 = vpack.c.b16 %v249, %v245
    %314 = vmatprep.subr.bf16.mxu0 %v279
    %315 = vmatpush1.bf16.msra.mxu0 %v278
    %316 = vmatprep.subr.bf16.mxu0 %v275
    %317 = vmatpush1.bf16.msra.mxu0 %v274
    %318 = vmatprep.subr.bf16.mxu0 %v271
    %319 = vmatpush1.bf16.msra.mxu0 %v270
    %320 = vmatprep.subr.bf16.mxu0 %v267
    %321 = vmatpush1.bf16.msra.mxu0 %v266
    %322 = vmatprep.subr.bf16.mxu0 %v263
    %323 = vmatpush1.bf16.msra.mxu0 %v262
    %324 = vmatprep.subr.bf16.mxu0 %v259
    %325 = vmatpush1.bf16.msra.mxu0 %v258
    %326 = vmatprep.subr.bf16.mxu0 %v255
    %327 = vmatpush1.bf16.msra.mxu0 %v254
    %328 = vmatprep.subr.bf16.mxu0 %v251
    %329 = vmatpush1.bf16.msra.mxu0 %v250
    %330 = vmatprep.subr.bf16.mxu0 0
    %331 = vmatpush2.bf16.msra.mxu0 0
    %332 = vmatprep.subr.bf16.mxu0 0
    %333 = vmatpush2.bf16.msra.mxu0 0
    %334 = vmatprep.subr.bf16.mxu0 0
    %335 = vmatpush2.bf16.msra.mxu0 0
    %336 = vmatprep.subr.bf16.mxu0 0
    %337 = vmatpush2.bf16.msra.mxu0 0
    %338 = vmatprep.subr.bf16.mxu0 0
    %339 = vmatpush2.bf16.msra.mxu0 0
    %340 = vmatprep.subr.bf16.mxu0 0
    %341 = vmatpush2.bf16.msra.mxu0 0
    %342 = vmatprep.subr.bf16.mxu0 0
    %343 = vmatpush2.bf16.msra.mxu0 0
    %344 = vmatprep.subr.bf16.mxu0 0
    %345 = vmatpush2.bf16.msra.mxu0 0
    %346 = vmatprep.mubr.bf16.mxu0 0
    %347 = vmatmul.mubr.bf16.gmra.mxu0 %v138
    %v348 = vpop.f32.mrf.mxu0
    %v349 = vadd.f32 %v89, %v348
    %v350 = vpop.f32.mrf.mxu0
    %v351 = vadd.f32 %v93, %v350
    %v352 = vpop.f32.mrf.mxu0
    %v353 = vadd.f32 %v89, %v352
    %v354 = vpop.f32.mrf.mxu0
    %v355 = vadd.f32 %v93, %v354
    %356 = vmatprep.mubr.bf16.mxu0 0
    %357 = vmatmul.mubr.bf16.gmra.mxu0 %v139
    %v358 = vpop.f32.mrf.mxu0
    %v359 = vadd.f32 %v89, %v358
    %v360 = vpop.f32.mrf.mxu0
    %v361 = vadd.f32 %v93, %v360
    %v362 = vpop.f32.mrf.mxu0
    %v363 = vadd.f32 %v89, %v362
    %v364 = vpop.f32.mrf.mxu0
    %v365 = vadd.f32 %v93, %v364
    %366 = vmatprep.mubr.bf16.mxu0 0
    %367 = vmatmul.mubr.bf16.gmra.mxu0 %v140
    %v368 = vpop.f32.mrf.mxu0
    %v369 = vadd.f32 %v89, %v368
    %v370 = vpop.f32.mrf.mxu0
    %v371 = vadd.f32 %v93, %v370
    %v372 = vpop.f32.mrf.mxu0
    %v373 = vadd.f32 %v89, %v372
    %v374 = vpop.f32.mrf.mxu0
    %v375 = vadd.f32 %v93, %v374
    %376 = vmatprep.mubr.bf16.mxu0 0
    %377 = vmatmul.mubr.bf16.gmra.mxu0 %v141
    %v378 = vpop.f32.mrf.mxu0
    %v379 = vadd.f32 %v89, %v378
    %v380 = vpop.f32.mrf.mxu0
    %v381 = vadd.f32 %v93, %v380
    %v382 = vpop.f32.mrf.mxu0
    %v383 = vadd.f32 %v89, %v382
    %v384 = vpop.f32.mrf.mxu0
    %v385 = vadd.f32 %v93, %v384
    %386 = vmatprep.mubr.bf16.mxu0 0
    %387 = vmatmul.mubr.bf16.gmra.mxu0 %v142
    %v388 = vpop.f32.mrf.mxu0
    %v389 = vadd.f32 %v89, %v388
    %v390 = vpop.f32.mrf.mxu0
    %v391 = vadd.f32 %v93, %v390
    %v392 = vpop.f32.mrf.mxu0
    %v393 = vadd.f32 %v89, %v392
    %v394 = vpop.f32.mrf.mxu0
    %v395 = vadd.f32 %v93, %v394
    %396 = vmatprep.mubr.bf16.mxu0 0
    %397 = vmatmul.mubr.bf16.gmra.mxu0 %v143
    %v398 = vpop.f32.mrf.mxu0
    %v399 = vadd.f32 %v89, %v398
    %v400 = vpop.f32.mrf.mxu0
    %v401 = vadd.f32 %v93, %v400
    %v402 = vpop.f32.mrf.mxu0
    %v403 = vadd.f32 %v89, %v402
    %v404 = vpop.f32.mrf.mxu0
    %v405 = vadd.f32 %v93, %v404
    %406 = vmatprep.mubr.bf16.mxu0 0
    %407 = vmatmul.mubr.bf16.gmra.mxu0 %v144
    %v408 = vpop.f32.mrf.mxu0
    %v409 = vadd.f32 %v89, %v408
    %v410 = vpop.f32.mrf.mxu0
    %v411 = vadd.f32 %v93, %v410
    %v412 = vpop.f32.mrf.mxu0
    %v413 = vadd.f32 %v89, %v412
    %v414 = vpop.f32.mrf.mxu0
    %v415 = vadd.f32 %v93, %v414
    %416 = vmatprep.mubr.bf16.mxu0 0
    %417 = vmatmul.mubr.bf16.gmra.mxu0 %v145
    %v418 = vpop.f32.mrf.mxu0
    %v419 = vadd.f32 %v89, %v418
    %v420 = vpop.f32.mrf.mxu0
    %v421 = vadd.f32 %v93, %v420
    %v422 = vpop.f32.mrf.mxu0
    %v423 = vadd.f32 %v89, %v422
    %v424 = vpop.f32.mrf.mxu0
    %v425 = vadd.f32 %v93, %v424
    %426 = vdwg.mxu0
    %427 = vmatprep.subr.bf16.mxu0 %v281
    %428 = vmatpush1.bf16.msra.mxu0 %v280
    %429 = vmatprep.subr.bf16.mxu0 %v277
    %430 = vmatpush1.bf16.msra.mxu0 %v276
    %431 = vmatprep.subr.bf16.mxu0 %v273
    %432 = vmatpush1.bf16.msra.mxu0 %v272
    %433 = vmatprep.subr.bf16.mxu0 %v269
    %434 = vmatpush1.bf16.msra.mxu0 %v268
    %435 = vmatprep.subr.bf16.mxu0 %v265
    %436 = vmatpush1.bf16.msra.mxu0 %v264
    %437 = vmatprep.subr.bf16.mxu0 %v261
    %438 = vmatpush1.bf16.msra.mxu0 %v260
    %439 = vmatprep.subr.bf16.mxu0 %v257
    %440 = vmatpush1.bf16.msra.mxu0 %v256
    %441 = vmatprep.subr.bf16.mxu0 %v253
    %442 = vmatpush1.bf16.msra.mxu0 %v252
    %443 = vmatprep.subr.bf16.mxu0 0
    %444 = vmatpush2.bf16.msra.mxu0 0
    %445 = vmatprep.subr.bf16.mxu0 0
    %446 = vmatpush2.bf16.msra.mxu0 0
    %447 = vmatprep.subr.bf16.mxu0 0
    %448 = vmatpush2.bf16.msra.mxu0 0
    %449 = vmatprep.subr.bf16.mxu0 0
    %450 = vmatpush2.bf16.msra.mxu0 0
    %451 = vmatprep.subr.bf16.mxu0 0
    %452 = vmatpush2.bf16.msra.mxu0 0
    %453 = vmatprep.subr.bf16.mxu0 0
    %454 = vmatpush2.bf16.msra.mxu0 0
    %455 = vmatprep.subr.bf16.mxu0 0
    %456 = vmatpush2.bf16.msra.mxu0 0
    %457 = vmatprep.subr.bf16.mxu0 0
    %458 = vmatpush2.bf16.msra.mxu0 0
    %459 = vmatprep.mubr.bf16.mxu0 0
    %460 = vmatmul.mubr.bf16.gmra.mxu0 %v138
    %v461 = vpop.f32.mrf.mxu0
    %v462 = vadd.f32 %v97, %v461
    %v463 = vpop.f32.mrf.mxu0
    %v464 = vadd.f32 %v101, %v463
    %v465 = vpop.f32.mrf.mxu0
    %v466 = vadd.f32 %v97, %v465
    %v467 = vpop.f32.mrf.mxu0
    %v468 = vadd.f32 %v101, %v467
    %469 = vmatprep.mubr.bf16.mxu0 0
    %470 = vmatmul.mubr.bf16.gmra.mxu0 %v139
    %v471 = vpop.f32.mrf.mxu0
    %v472 = vadd.f32 %v97, %v471
    %v473 = vpop.f32.mrf.mxu0
    %v474 = vadd.f32 %v101, %v473
    %v475 = vpop.f32.mrf.mxu0
    %v476 = vadd.f32 %v97, %v475
    %v477 = vpop.f32.mrf.mxu0
    %v478 = vadd.f32 %v101, %v477
    %479 = vmatprep.mubr.bf16.mxu0 0
    %480 = vmatmul.mubr.bf16.gmra.mxu0 %v140
    %v481 = vpop.f32.mrf.mxu0
    %v482 = vadd.f32 %v97, %v481
    %v483 = vpop.f32.mrf.mxu0
    %v484 = vadd.f32 %v101, %v483
    %v485 = vpop.f32.mrf.mxu0
    %v486 = vadd.f32 %v97, %v485
    %v487 = vpop.f32.mrf.mxu0
    %v488 = vadd.f32 %v101, %v487
    %489 = vmatprep.mubr.bf16.mxu0 0
    %490 = vmatmul.mubr.bf16.gmra.mxu0 %v141
    %v491 = vpop.f32.mrf.mxu0
    %v492 = vadd.f32 %v97, %v491
    %v493 = vpop.f32.mrf.mxu0
    %v494 = vadd.f32 %v101, %v493
    %v495 = vpop.f32.mrf.mxu0
    %v496 = vadd.f32 %v97, %v495
    %v497 = vpop.f32.mrf.mxu0
    %v498 = vadd.f32 %v101, %v497
    %499 = vmatprep.mubr.bf16.mxu0 0
    %500 = vmatmul.mubr.bf16.gmra.mxu0 %v142
    %v501 = vpop.f32.mrf.mxu0
    %v502 = vadd.f32 %v97, %v501
    %v503 = vpop.f32.mrf.mxu0
    %v504 = vadd.f32 %v101, %v503
    %v505 = vpop.f32.mrf.mxu0
    %v506 = vadd.f32 %v97, %v505
    %v507 = vpop.f32.mrf.mxu0
    %v508 = vadd.f32 %v101, %v507
    %509 = vmatprep.mubr.bf16.mxu0 0
    %510 = vmatmul.mubr.bf16.gmra.mxu0 %v143
    %v511 = vpop.f32.mrf.mxu0
    %v512 = vadd.f32 %v97, %v511
    %v513 = vpop.f32.mrf.mxu0
    %v514 = vadd.f32 %v101, %v513
    %v515 = vpop.f32.mrf.mxu0
    %v516 = vadd.f32 %v97, %v515
    %v517 = vpop.f32.mrf.mxu0
    %v518 = vadd.f32 %v101, %v517
    %519 = vmatprep.mubr.bf16.mxu0 0
    %520 = vmatmul.mubr.bf16.gmra.mxu0 %v144
    %v521 = vpop.f32.mrf.mxu0
    %v522 = vadd.f32 %v97, %v521
    %v523 = vpop.f32.mrf.mxu0
    %v524 = vadd.f32 %v101, %v523
    %v525 = vpop.f32.mrf.mxu0
    %v526 = vadd.f32 %v97, %v525
    %v527 = vpop.f32.mrf.mxu0
    %v528 = vadd.f32 %v101, %v527
    %529 = vmatprep.mubr.bf16.mxu0 0
    %530 = vmatmul.mubr.bf16.gmra.mxu0 %v145
    %v531 = vpop.f32.mrf.mxu0
    %v532 = vadd.f32 %v97, %v531
    %v533 = vpop.f32.mrf.mxu0
    %v534 = vadd.f32 %v101, %v533
    %v535 = vpop.f32.mrf.mxu0
    %v536 = vadd.f32 %v97, %v535
    %v537 = vpop.f32.mrf.mxu0
    %v538 = vadd.f32 %v101, %v537
    %539 = vdwg.mxu0
    %540 = vst [vmem:[#allocation2] sm:$0xff] %v349
    %541 = vst [vmem:[#allocation2 + $0x8] sm:$0xff] %v351
    %542 = vst [vmem:[#allocation2 + $0x10] sm:$0xff] %v462
    %543 = vst [vmem:[#allocation2 + $0x18] sm:$0xff] %v464
    %544 = vst [vmem:[#allocation2 + $0x20] sm:$0xff] %v353
    %545 = vst [vmem:[#allocation2 + $0x28] sm:$0xff] %v355
    %546 = vst [vmem:[#allocation2 + $0x30] sm:$0xff] %v466
    %547 = vst [vmem:[#allocation2 + $0x38] sm:$0xff] %v468
    %548 = vst [vmem:[#allocation2 + $0x40] sm:$0xff] %v359
    %549 = vst [vmem:[#allocation2 + $0x48] sm:$0xff] %v361
    %550 = vst [vmem:[#allocation2 + $0x50] sm:$0xff] %v472
    %551 = vst [vmem:[#allocation2 + $0x58] sm:$0xff] %v474
    %552 = vst [vmem:[#allocation2 + $0x60] sm:$0xff] %v363
    %553 = vst [vmem:[#allocation2 + $0x68] sm:$0xff] %v365
    %554 = vst [vmem:[#allocation2 + $0x70] sm:$0xff] %v476
    %555 = vst [vmem:[#allocation2 + $0x78] sm:$0xff] %v478
    %556 = vst [vmem:[#allocation2 + $0x80] sm:$0xff] %v369
    %557 = vst [vmem:[#allocation2 + $0x88] sm:$0xff] %v371
    %558 = vst [vmem:[#allocation2 + $0x90] sm:$0xff] %v482
    %559 = vst [vmem:[#allocation2 + $0x98] sm:$0xff] %v484
    %560 = vst [vmem:[#allocation2 + $0xa0] sm:$0xff] %v373
    %561 = vst [vmem:[#allocation2 + $0xa8] sm:$0xff] %v375
    %562 = vst [vmem:[#allocation2 + $0xb0] sm:$0xff] %v486
    %563 = vst [vmem:[#allocation2 + $0xb8] sm:$0xff] %v488
    %564 = vst [vmem:[#allocation2 + $0xc0] sm:$0xff] %v379
    %565 = vst [vmem:[#allocation2 + $0xc8] sm:$0xff] %v381
    %566 = vst [vmem:[#allocation2 + $0xd0] sm:$0xff] %v492
    %567 = vst [vmem:[#allocation2 + $0xd8] sm:$0xff] %v494
    %568 = vst [vmem:[#allocation2 + $0xe0] sm:$0xff] %v383
    %569 = vst [vmem:[#allocation2 + $0xe8] sm:$0xff] %v385
    %570 = vst [vmem:[#allocation2 + $0xf0] sm:$0xff] %v496
    %571 = vst [vmem:[#allocation2 + $0xf8] sm:$0xff] %v498
    %572 = vst [vmem:[#allocation2 + $0x100] sm:$0xff] %v389
    %573 = vst [vmem:[#allocation2 + $0x108] sm:$0xff] %v391
    %574 = vst [vmem:[#allocation2 + $0x110] sm:$0xff] %v502
    %575 = vst [vmem:[#allocation2 + $0x118] sm:$0xff] %v504
    %576 = vst [vmem:[#allocation2 + $0x120] sm:$0xff] %v393
    %577 = vst [vmem:[#allocation2 + $0x128] sm:$0xff] %v395
    %578 = vst [vmem:[#allocation2 + $0x130] sm:$0xff] %v506
    %579 = vst [vmem:[#allocation2 + $0x138] sm:$0xff] %v508
    %580 = vst [vmem:[#allocation2 + $0x140] sm:$0xff] %v399
    %581 = vst [vmem:[#allocation2 + $0x148] sm:$0xff] %v401
    %582 = vst [vmem:[#allocation2 + $0x150] sm:$0xff] %v512
    %583 = vst [vmem:[#allocation2 + $0x158] sm:$0xff] %v514
    %584 = vst [vmem:[#allocation2 + $0x160] sm:$0xff] %v403
    %585 = vst [vmem:[#allocation2 + $0x168] sm:$0xff] %v405
    %586 = vst [vmem:[#allocation2 + $0x170] sm:$0xff] %v516
    %587 = vst [vmem:[#allocation2 + $0x178] sm:$0xff] %v518
    %588 = vst [vmem:[#allocation2 + $0x180] sm:$0xff] %v409
    %589 = vst [vmem:[#allocation2 + $0x188] sm:$0xff] %v411
    %590 = vst [vmem:[#allocation2 + $0x190] sm:$0xff] %v522
    %591 = vst [vmem:[#allocation2 + $0x198] sm:$0xff] %v524
    %592 = vst [vmem:[#allocation2 + $0x1a0] sm:$0xff] %v413
    %593 = vst [vmem:[#allocation2 + $0x1a8] sm:$0xff] %v415
    %594 = vst [vmem:[#allocation2 + $0x1b0] sm:$0xff] %v526
    %595 = vst [vmem:[#allocation2 + $0x1b8] sm:$0xff] %v528
    %596 = vst [vmem:[#allocation2 + $0x1c0] sm:$0xff] %v419
    %597 = vst [vmem:[#allocation2 + $0x1c8] sm:$0xff] %v421
    %598 = vst [vmem:[#allocation2 + $0x1d0] sm:$0xff] %v532
    %599 = vst [vmem:[#allocation2 + $0x1d8] sm:$0xff] %v534
    %600 = vst [vmem:[#allocation2 + $0x1e0] sm:$0xff] %v423
    %601 = vst [vmem:[#allocation2 + $0x1e8] sm:$0xff] %v425
    %602 = vst [vmem:[#allocation2 + $0x1f0] sm:$0xff] %v536
    %603 = vst [vmem:[#allocation2 + $0x1f8] sm:$0xff] %v538
    %p604 = scmp.eq.s32.totalorder 0, 0
    // Predicated region
    $region34: #{rnn_model_forward.3} parent=1 // pred_check
      %p605 = pneg %p604
    $region35: #{rnn_model_forward.3} parent=1 // pred_check_branch
      %607 = sbr.rel (%p605) target = $region37
    $region36: #{rnn_model_forward.3} parent=1 // pred_region
      %v608 = vld [vmem:[%s4] sm:$0xff]
      %609 = vst [vmem:[%s9] sm:$0xff] %v608
      %v610 = vld [vmem:[%s5] sm:$0xff]
      %611 = vst [vmem:[%s10] sm:$0xff] %v610
    $region37: #{rnn_model_forward.3} parent=1 // pred_fallthru
      _
    %v612 = vld [vmem:[%s9] sm:$0xff]
    %v613 = vld [vmem:[%s10] sm:$0xff]
    %v614 = vld [vmem:[#allocation2] sm:$0xff]
    %v615 = vld [vmem:[#allocation2 + $0x8] sm:$0xff]
    %v616 = vld [vmem:[#allocation2 + $0x10] sm:$0xff]
    %v617 = vld [vmem:[#allocation2 + $0x18] sm:$0xff]
    %v618 = vpack.c.bf16 %v612, %v612
    %v619 = vld [vmem:[%s2] sm:$0xff]
    %v620 = vld [vmem:[%s2 + $0x8] sm:$0xff]
    %v621 = vld [vmem:[%s2 + $0x10] sm:$0xff]
    %v622 = vld [vmem:[%s2 + $0x18] sm:$0xff]
    %v623 = vld [vmem:[%s2 + $0x20] sm:$0xff]
    %v624 = vld [vmem:[%s2 + $0x28] sm:$0xff]
    %v625 = vld [vmem:[%s2 + $0x30] sm:$0xff]
    %v626 = vld [vmem:[%s2 + $0x38] sm:$0xff]
    %v627 = vld [vmem:[%s2 + $0x40] sm:$0xff]
    %v628 = vld [vmem:[%s2 + $0x48] sm:$0xff]
    %v629 = vld [vmem:[%s2 + $0x50] sm:$0xff]
    %v630 = vld [vmem:[%s2 + $0x58] sm:$0xff]
    %v631 = vld [vmem:[%s2 + $0x60] sm:$0xff]
    %v632 = vld [vmem:[%s2 + $0x68] sm:$0xff]
    %v633 = vld [vmem:[%s2 + $0x70] sm:$0xff]
    %v634 = vld [vmem:[%s2 + $0x78] sm:$0xff]
    %v635 = vld [vmem:[%s2 + $0x80] sm:$0xff]
    %v636 = vld [vmem:[%s2 + $0x88] sm:$0xff]
    %v637 = vld [vmem:[%s2 + $0x90] sm:$0xff]
    %v638 = vld [vmem:[%s2 + $0x98] sm:$0xff]
    %v639 = vld [vmem:[%s2 + $0xa0] sm:$0xff]
    %v640 = vld [vmem:[%s2 + $0xa8] sm:$0xff]
    %v641 = vld [vmem:[%s2 + $0xb0] sm:$0xff]
    %v642 = vld [vmem:[%s2 + $0xb8] sm:$0xff]
    %v643 = vld [vmem:[%s2 + $0xc0] sm:$0xff]
    %v644 = vld [vmem:[%s2 + $0xc8] sm:$0xff]
    %v645 = vld [vmem:[%s2 + $0xd0] sm:$0xff]
    %v646 = vld [vmem:[%s2 + $0xd8] sm:$0xff]
    %v647 = vld [vmem:[%s2 + $0xe0] sm:$0xff]
    %v648 = vld [vmem:[%s2 + $0xe8] sm:$0xff]
    %v649 = vld [vmem:[%s2 + $0xf0] sm:$0xff]
    %v650 = vld [vmem:[%s2 + $0xf8] sm:$0xff]
    %v683 = vunpack.c.l.b16 %v619
    %v684 = vunpack.c.h.b16 %v619
    %v685 = vunpack.c.l.b16 %v620
    %v686 = vunpack.c.h.b16 %v620
    %v687 = vunpack.c.l.b16 %v621
    %v688 = vunpack.c.h.b16 %v621
    %v689 = vunpack.c.l.b16 %v622
    %v690 = vunpack.c.h.b16 %v622
    %v691 = vunpack.c.l.b16 %v623
    %v692 = vunpack.c.h.b16 %v623
    %v693 = vunpack.c.l.b16 %v624
    %v694 = vunpack.c.h.b16 %v624
    %v695 = vunpack.c.l.b16 %v625
    %v696 = vunpack.c.h.b16 %v625
    %v697 = vunpack.c.l.b16 %v626
    %v698 = vunpack.c.h.b16 %v626
    %v699 = vunpack.c.l.b16 %v627
    %v700 = vunpack.c.h.b16 %v627
    %v701 = vunpack.c.l.b16 %v628
    %v702 = vunpack.c.h.b16 %v628
    %v703 = vunpack.c.l.b16 %v629
    %v704 = vunpack.c.h.b16 %v629
    %v705 = vunpack.c.l.b16 %v630
    %v706 = vunpack.c.h.b16 %v630
    %v707 = vunpack.c.l.b16 %v631
    %v708 = vunpack.c.h.b16 %v631
    %v709 = vunpack.c.l.b16 %v632
    %v710 = vunpack.c.h.b16 %v632
    %v711 = vunpack.c.l.b16 %v633
    %v712 = vunpack.c.h.b16 %v633
    %v713 = vunpack.c.l.b16 %v634
    %v714 = vunpack.c.h.b16 %v634
    %v715 = vunpack.c.l.b16 %v635
    %v716 = vunpack.c.h.b16 %v635
    %v717 = vunpack.c.l.b16 %v636
    %v718 = vunpack.c.h.b16 %v636
    %v719 = vunpack.c.l.b16 %v637
    %v720 = vunpack.c.h.b16 %v637
    %v721 = vunpack.c.l.b16 %v638
    %v722 = vunpack.c.h.b16 %v638
    %v723 = vunpack.c.l.b16 %v639
    %v724 = vunpack.c.h.b16 %v639
    %v725 = vunpack.c.l.b16 %v640
    %v726 = vunpack.c.h.b16 %v640
    %v727 = vunpack.c.l.b16 %v641
    %v728 = vunpack.c.h.b16 %v641
    %v729 = vunpack.c.l.b16 %v642
    %v730 = vunpack.c.h.b16 %v642
    %v731 = vunpack.c.l.b16 %v643
    %v732 = vunpack.c.h.b16 %v643
    %v733 = vunpack.c.l.b16 %v644
    %v734 = vunpack.c.h.b16 %v644
    %v735 = vunpack.c.l.b16 %v645
    %v736 = vunpack.c.h.b16 %v645
    %v737 = vunpack.c.l.b16 %v646
    %v738 = vunpack.c.h.b16 %v646
    %v739 = vunpack.c.l.b16 %v647
    %v740 = vunpack.c.h.b16 %v647
    %v741 = vunpack.c.l.b16 %v648
    %v742 = vunpack.c.h.b16 %v648
    %v743 = vunpack.c.l.b16 %v649
    %v744 = vunpack.c.h.b16 %v649
    %v745 = vunpack.c.l.b16 %v650
    %v746 = vunpack.c.h.b16 %v650
    %v747 = vpack.c.b16 %v687, %v683
    %v748 = vpack.c.b16 %v688, %v684
    %v749 = vpack.c.b16 %v689, %v685
    %v750 = vpack.c.b16 %v690, %v686
    %v751 = vpack.c.b16 %v695, %v691
    %v752 = vpack.c.b16 %v696, %v692
    %v753 = vpack.c.b16 %v697, %v693
    %v754 = vpack.c.b16 %v698, %v694
    %v755 = vpack.c.b16 %v703, %v699
    %v756 = vpack.c.b16 %v704, %v700
    %v757 = vpack.c.b16 %v705, %v701
    %v758 = vpack.c.b16 %v706, %v702
    %v759 = vpack.c.b16 %v711, %v707
    %v760 = vpack.c.b16 %v712, %v708
    %v761 = vpack.c.b16 %v713, %v709
    %v762 = vpack.c.b16 %v714, %v710
    %v763 = vpack.c.b16 %v719, %v715
    %v764 = vpack.c.b16 %v720, %v716
    %v765 = vpack.c.b16 %v721, %v717
    %v766 = vpack.c.b16 %v722, %v718
    %v767 = vpack.c.b16 %v727, %v723
    %v768 = vpack.c.b16 %v728, %v724
    %v769 = vpack.c.b16 %v729, %v725
    %v770 = vpack.c.b16 %v730, %v726
    %v771 = vpack.c.b16 %v735, %v731
    %v772 = vpack.c.b16 %v736, %v732
    %v773 = vpack.c.b16 %v737, %v733
    %v774 = vpack.c.b16 %v738, %v734
    %v775 = vpack.c.b16 %v743, %v739
    %v776 = vpack.c.b16 %v744, %v740
    %v777 = vpack.c.b16 %v745, %v741
    %v778 = vpack.c.b16 %v746, %v742
    %811 = vmatprep.subr.bf16.mxu0 %v776
    %812 = vmatpush1.bf16.msra.mxu0 %v775
    %813 = vmatprep.subr.bf16.mxu0 %v772
    %814 = vmatpush1.bf16.msra.mxu0 %v771
    %815 = vmatprep.subr.bf16.mxu0 %v768
    %816 = vmatpush1.bf16.msra.mxu0 %v767
    %817 = vmatprep.subr.bf16.mxu0 %v764
    %818 = vmatpush1.bf16.msra.mxu0 %v763
    %819 = vmatprep.subr.bf16.mxu0 %v760
    %820 = vmatpush1.bf16.msra.mxu0 %v759
    %821 = vmatprep.subr.bf16.mxu0 %v756
    %822 = vmatpush1.bf16.msra.mxu0 %v755
    %823 = vmatprep.subr.bf16.mxu0 %v752
    %824 = vmatpush1.bf16.msra.mxu0 %v751
    %825 = vmatprep.subr.bf16.mxu0 %v748
    %826 = vmatpush1.bf16.msra.mxu0 %v747
    %827 = vmatprep.subr.bf16.mxu0 0
    %828 = vmatpush2.bf16.msra.mxu0 0
    %829 = vmatprep.subr.bf16.mxu0 0
    %830 = vmatpush2.bf16.msra.mxu0 0
    %831 = vmatprep.subr.bf16.mxu0 0
    %832 = vmatpush2.bf16.msra.mxu0 0
    %833 = vmatprep.subr.bf16.mxu0 0
    %834 = vmatpush2.bf16.msra.mxu0 0
    %835 = vmatprep.subr.bf16.mxu0 0
    %836 = vmatpush2.bf16.msra.mxu0 0
    %837 = vmatprep.subr.bf16.mxu0 0
    %838 = vmatpush2.bf16.msra.mxu0 0
    %839 = vmatprep.subr.bf16.mxu0 0
    %840 = vmatpush2.bf16.msra.mxu0 0
    %841 = vmatprep.subr.bf16.mxu0 0
    %842 = vmatpush2.bf16.msra.mxu0 0
    %843 = vmatprep.mubr.bf16.mxu0 0
    %844 = vmatmul.mubr.bf16.gmra.mxu0 %v618
    %v845 = vpop.f32.mrf.mxu0
    %v846 = vadd.f32 0.0, %v845
    %v847 = vpop.f32.mrf.mxu0
    %v848 = vadd.f32 0.0, %v847
    %v849 = vpop.f32.mrf.mxu0
    %v850 = vpop.f32.mrf.mxu0
    %851 = vdwg.mxu0
    %852 = vmatprep.subr.bf16.mxu0 %v778
    %853 = vmatpush1.bf16.msra.mxu0 %v777
    %854 = vmatprep.subr.bf16.mxu0 %v774
    %855 = vmatpush1.bf16.msra.mxu0 %v773
    %856 = vmatprep.subr.bf16.mxu0 %v770
    %857 = vmatpush1.bf16.msra.mxu0 %v769
    %858 = vmatprep.subr.bf16.mxu0 %v766
    %859 = vmatpush1.bf16.msra.mxu0 %v765
    %860 = vmatprep.subr.bf16.mxu0 %v762
    %861 = vmatpush1.bf16.msra.mxu0 %v761
    %862 = vmatprep.subr.bf16.mxu0 %v758
    %863 = vmatpush1.bf16.msra.mxu0 %v757
    %864 = vmatprep.subr.bf16.mxu0 %v754
    %865 = vmatpush1.bf16.msra.mxu0 %v753
    %866 = vmatprep.subr.bf16.mxu0 %v750
    %867 = vmatpush1.bf16.msra.mxu0 %v749
    %868 = vmatprep.subr.bf16.mxu0 0
    %869 = vmatpush2.bf16.msra.mxu0 0
    %870 = vmatprep.subr.bf16.mxu0 0
    %871 = vmatpush2.bf16.msra.mxu0 0
    %872 = vmatprep.subr.bf16.mxu0 0
    %873 = vmatpush2.bf16.msra.mxu0 0
    %874 = vmatprep.subr.bf16.mxu0 0
    %875 = vmatpush2.bf16.msra.mxu0 0
    %876 = vmatprep.subr.bf16.mxu0 0
    %877 = vmatpush2.bf16.msra.mxu0 0
    %878 = vmatprep.subr.bf16.mxu0 0
    %879 = vmatpush2.bf16.msra.mxu0 0
    %880 = vmatprep.subr.bf16.mxu0 0
    %881 = vmatpush2.bf16.msra.mxu0 0
    %882 = vmatprep.subr.bf16.mxu0 0
    %883 = vmatpush2.bf16.msra.mxu0 0
    %884 = vmatprep.mubr.bf16.mxu0 0
    %885 = vmatmul.mubr.bf16.gmra.mxu0 %v618
    %v886 = vpop.f32.mrf.mxu0
    %v887 = vadd.f32 0.0, %v886
    %v888 = vpop.f32.mrf.mxu0
    %v889 = vadd.f32 0.0, %v888
    %v890 = vpop.f32.mrf.mxu0
    %v891 = vpop.f32.mrf.mxu0
    %892 = vdwg.mxu0
    %v893 = vadd.f32 %v614, %v846
    %v894 = vadd.f32 %v615, %v848
    %v895 = vadd.f32 %v616, %v887
    %v896 = vadd.f32 %v617, %v889
    %v897 = vxor.u32 %v893, 2147483648
    %v898 = vxor.u32 %v894, 2147483648
    %v899 = vxor.u32 %v895, 2147483648
    %v900 = vmul.f32 %v897, 1.442695
    %v901 = vpow.pop %v900
    %v902 = vmul.f32 %v898, 1.442695
    %v903 = vpow.pop %v902
    %v904 = vmul.f32 %v899, 1.442695
    %v905 = vpow.pop %v904
    %v906 = vadd.f32 %v901, 1.0
    %v907 = vadd.f32 %v903, 1.0
    %v908 = vadd.f32 %v905, 1.0
    %v909 = vrcp.pop %v906
    %v910 = vmul.f32 1.0, %v909
    %v911 = vrcp.pop %v907
    %v912 = vmul.f32 1.0, %v911
    %v913 = vrcp.pop %v908
    %v914 = vmul.f32 1.0, %v913
    %v915 = vtanh.pop %v896
    %v916 = vmul.f32 %v912, %v613
    %v917 = vmul.f32 %v910, %v915
    %v918 = vadd.f32 %v916, %v917
    %v919 = vtanh.pop %v918
    %v920 = vmul.f32 %v914, %v919
    %921 = vst [vmem:[#allocation3] sm:$0xff] %v920
    %v922 = vld [vmem:[#allocation2 + $0x20] sm:$0xff]
    %v923 = vld [vmem:[#allocation2 + $0x28] sm:$0xff]
    %v924 = vld [vmem:[#allocation2 + $0x30] sm:$0xff]
    %v925 = vld [vmem:[#allocation2 + $0x38] sm:$0xff]
    %v926 = vpack.c.bf16 %v920, %v920
    %v927 = vld [vmem:[%s2] sm:$0xff]
    %v928 = vld [vmem:[%s2 + $0x8] sm:$0xff]
    %v929 = vld [vmem:[%s2 + $0x10] sm:$0xff]
    %v930 = vld [vmem:[%s2 + $0x18] sm:$0xff]
    %v931 = vld [vmem:[%s2 + $0x20] sm:$0xff]
    %v932 = vld [vmem:[%s2 + $0x28] sm:$0xff]
    %v933 = vld [vmem:[%s2 + $0x30] sm:$0xff]
    %v934 = vld [vmem:[%s2 + $0x38] sm:$0xff]
    %v935 = vld [vmem:[%s2 + $0x40] sm:$0xff]
    %v936 = vld [vmem:[%s2 + $0x48] sm:$0xff]
    %v937 = vld [vmem:[%s2 + $0x50] sm:$0xff]
    %v938 = vld [vmem:[%s2 + $0x58] sm:$0xff]
    %v939 = vld [vmem:[%s2 + $0x60] sm:$0xff]
    %v940 = vld [vmem:[%s2 + $0x68] sm:$0xff]
    %v941 = vld [vmem:[%s2 + $0x70] sm:$0xff]
    %v942 = vld [vmem:[%s2 + $0x78] sm:$0xff]
    %v943 = vld [vmem:[%s2 + $0x80] sm:$0xff]
    %v944 = vld [vmem:[%s2 + $0x88] sm:$0xff]
    %v945 = vld [vmem:[%s2 + $0x90] sm:$0xff]
    %v946 = vld [vmem:[%s2 + $0x98] sm:$0xff]
    %v947 = vld [vmem:[%s2 + $0xa0] sm:$0xff]
    %v948 = vld [vmem:[%s2 + $0xa8] sm:$0xff]
    %v949 = vld [vmem:[%s2 + $0xb0] sm:$0xff]
    %v950 = vld [vmem:[%s2 + $0xb8] sm:$0xff]
    %v951 = vld [vmem:[%s2 + $0xc0] sm:$0xff]
    %v952 = vld [vmem:[%s2 + $0xc8] sm:$0xff]
    %v953 = vld [vmem:[%s2 + $0xd0] sm:$0xff]
    %v954 = vld [vmem:[%s2 + $0xd8] sm:$0xff]
    %v955 = vld [vmem:[%s2 + $0xe0] sm:$0xff]
    %v956 = vld [vmem:[%s2 + $0xe8] sm:$0xff]
    %v957 = vld [vmem:[%s2 + $0xf0] sm:$0xff]
    %v958 = vld [vmem:[%s2 + $0xf8] sm:$0xff]
    %v991 = vunpack.c.l.b16 %v927
    %v992 = vunpack.c.h.b16 %v927
    %v993 = vunpack.c.l.b16 %v928
    %v994 = vunpack.c.h.b16 %v928
    %v995 = vunpack.c.l.b16 %v929
    %v996 = vunpack.c.h.b16 %v929
    %v997 = vunpack.c.l.b16 %v930
    %v998 = vunpack.c.h.b16 %v930
    %v999 = vunpack.c.l.b16 %v931
    %v1000 = vunpack.c.h.b16 %v931
    %v1001 = vunpack.c.l.b16 %v932
    %v1002 = vunpack.c.h.b16 %v932
    %v1003 = vunpack.c.l.b16 %v933
    %v1004 = vunpack.c.h.b16 %v933
    %v1005 = vunpack.c.l.b16 %v934
    %v1006 = vunpack.c.h.b16 %v934
    %v1007 = vunpack.c.l.b16 %v935
    %v1008 = vunpack.c.h.b16 %v935
    %v1009 = vunpack.c.l.b16 %v936
    %v1010 = vunpack.c.h.b16 %v936
    %v1011 = vunpack.c.l.b16 %v937
    %v1012 = vunpack.c.h.b16 %v937
    %v1013 = vunpack.c.l.b16 %v938
    %v1014 = vunpack.c.h.b16 %v938
    %v1015 = vunpack.c.l.b16 %v939
    %v1016 = vunpack.c.h.b16 %v939
    %v1017 = vunpack.c.l.b16 %v940
    %v1018 = vunpack.c.h.b16 %v940
    %v1019 = vunpack.c.l.b16 %v941
    %v1020 = vunpack.c.h.b16 %v941
    %v1021 = vunpack.c.l.b16 %v942
    %v1022 = vunpack.c.h.b16 %v942
    %v1023 = vunpack.c.l.b16 %v943
    %v1024 = vunpack.c.h.b16 %v943
    %v1025 = vunpack.c.l.b16 %v944
    %v1026 = vunpack.c.h.b16 %v944
    %v1027 = vunpack.c.l.b16 %v945
    %v1028 = vunpack.c.h.b16 %v945
    %v1029 = vunpack.c.l.b16 %v946
    %v1030 = vunpack.c.h.b16 %v946
    %v1031 = vunpack.c.l.b16 %v947
    %v1032 = vunpack.c.h.b16 %v947
    %v1033 = vunpack.c.l.b16 %v948
    %v1034 = vunpack.c.h.b16 %v948
    %v1035 = vunpack.c.l.b16 %v949
    %v1036 = vunpack.c.h.b16 %v949
    %v1037 = vunpack.c.l.b16 %v950
    %v1038 = vunpack.c.h.b16 %v950
    %v1039 = vunpack.c.l.b16 %v951
    %v1040 = vunpack.c.h.b16 %v951
    %v1041 = vunpack.c.l.b16 %v952
    %v1042 = vunpack.c.h.b16 %v952
    %v1043 = vunpack.c.l.b16 %v953
    %v1044 = vunpack.c.h.b16 %v953
    %v1045 = vunpack.c.l.b16 %v954
    %v1046 = vunpack.c.h.b16 %v954
    %v1047 = vunpack.c.l.b16 %v955
    %v1048 = vunpack.c.h.b16 %v955
    %v1049 = vunpack.c.l.b16 %v956
    %v1050 = vunpack.c.h.b16 %v956
    %v1051 = vunpack.c.l.b16 %v957
    %v1052 = vunpack.c.h.b16 %v957
    %v1053 = vunpack.c.l.b16 %v958
    %v1054 = vunpack.c.h.b16 %v958
    %v1055 = vpack.c.b16 %v995, %v991
    %v1056 = vpack.c.b16 %v996, %v992
    %v1057 = vpack.c.b16 %v997, %v993
    %v1058 = vpack.c.b16 %v998, %v994
    %v1059 = vpack.c.b16 %v1003, %v999
    %v1060 = vpack.c.b16 %v1004, %v1000
    %v1061 = vpack.c.b16 %v1005, %v1001
    %v1062 = vpack.c.b16 %v1006, %v1002
    %v1063 = vpack.c.b16 %v1011, %v1007
    %v1064 = vpack.c.b16 %v1012, %v1008
    %v1065 = vpack.c.b16 %v1013, %v1009
    %v1066 = vpack.c.b16 %v1014, %v1010
    %v1067 = vpack.c.b16 %v1019, %v1015
    %v1068 = vpack.c.b16 %v1020, %v1016
    %v1069 = vpack.c.b16 %v1021, %v1017
    %v1070 = vpack.c.b16 %v1022, %v1018
    %v1071 = vpack.c.b16 %v1027, %v1023
    %v1072 = vpack.c.b16 %v1028, %v1024
    %v1073 = vpack.c.b16 %v1029, %v1025
    %v1074 = vpack.c.b16 %v1030, %v1026
    %v1075 = vpack.c.b16 %v1035, %v1031
    %v1076 = vpack.c.b16 %v1036, %v1032
    %v1077 = vpack.c.b16 %v1037, %v1033
    %v1078 = vpack.c.b16 %v1038, %v1034
    %v1079 = vpack.c.b16 %v1043, %v1039
    %v1080 = vpack.c.b16 %v1044, %v1040
    %v1081 = vpack.c.b16 %v1045, %v1041
    %v1082 = vpack.c.b16 %v1046, %v1042
    %v1083 = vpack.c.b16 %v1051, %v1047
    %v1084 = vpack.c.b16 %v1052, %v1048
    %v1085 = vpack.c.b16 %v1053, %v1049
    %v1086 = vpack.c.b16 %v1054, %v1050
    %1119 = vmatprep.subr.bf16.mxu0 %v1084
    %1120 = vmatpush1.bf16.msra.mxu0 %v1083
    %1121 = vmatprep.subr.bf16.mxu0 %v1080
    %1122 = vmatpush1.bf16.msra.mxu0 %v1079
    %1123 = vmatprep.subr.bf16.mxu0 %v1076
    %1124 = vmatpush1.bf16.msra.mxu0 %v1075
    %1125 = vmatprep.subr.bf16.mxu0 %v1072
    %1126 = vmatpush1.bf16.msra.mxu0 %v1071
    %1127 = vmatprep.subr.bf16.mxu0 %v1068
    %1128 = vmatpush1.bf16.msra.mxu0 %v1067
    %1129 = vmatprep.subr.bf16.mxu0 %v1064
    %1130 = vmatpush1.bf16.msra.mxu0 %v1063
    %1131 = vmatprep.subr.bf16.mxu0 %v1060
    %1132 = vmatpush1.bf16.msra.mxu0 %v1059
    %1133 = vmatprep.subr.bf16.mxu0 %v1056
    %1134 = vmatpush1.bf16.msra.mxu0 %v1055
    %1135 = vmatprep.subr.bf16.mxu0 0
    %1136 = vmatpush2.bf16.msra.mxu0 0
    %1137 = vmatprep.subr.bf16.mxu0 0
    %1138 = vmatpush2.bf16.msra.mxu0 0
    %1139 = vmatprep.subr.bf16.mxu0 0
    %1140 = vmatpush2.bf16.msra.mxu0 0
    %1141 = vmatprep.subr.bf16.mxu0 0
    %1142 = vmatpush2.bf16.msra.mxu0 0
    %1143 = vmatprep.subr.bf16.mxu0 0
    %1144 = vmatpush2.bf16.msra.mxu0 0
    %1145 = vmatprep.subr.bf16.mxu0 0
    %1146 = vmatpush2.bf16.msra.mxu0 0
    %1147 = vmatprep.subr.bf16.mxu0 0
    %1148 = vmatpush2.bf16.msra.mxu0 0
    %1149 = vmatprep.subr.bf16.mxu0 0
    %1150 = vmatpush2.bf16.msra.mxu0 0
    %1151 = vmatprep.mubr.bf16.mxu0 0
    %1152 = vmatmul.mubr.bf16.gmra.mxu0 %v926
    %v1153 = vpop.f32.mrf.mxu0
    %v1154 = vadd.f32 0.0, %v1153
    %v1155 = vpop.f32.mrf.mxu0
    %v1156 = vadd.f32 0.0, %v1155
    %v1157 = vpop.f32.mrf.mxu0
    %v1158 = vpop.f32.mrf.mxu0
    %1159 = vdwg.mxu0
    %1160 = vmatprep.subr.bf16.mxu0 %v1086
    %1161 = vmatpush1.bf16.msra.mxu0 %v1085
    %1162 = vmatprep.subr.bf16.mxu0 %v1082
    %1163 = vmatpush1.bf16.msra.mxu0 %v1081
    %1164 = vmatprep.subr.bf16.mxu0 %v1078
    %1165 = vmatpush1.bf16.msra.mxu0 %v1077
    %1166 = vmatprep.subr.bf16.mxu0 %v1074
    %1167 = vmatpush1.bf16.msra.mxu0 %v1073
    %1168 = vmatprep.subr.bf16.mxu0 %v1070
    %1169 = vmatpush1.bf16.msra.mxu0 %v1069
    %1170 = vmatprep.subr.bf16.mxu0 %v1066
    %1171 = vmatpush1.bf16.msra.mxu0 %v1065
    %1172 = vmatprep.subr.bf16.mxu0 %v1062
    %1173 = vmatpush1.bf16.msra.mxu0 %v1061
    %1174 = vmatprep.subr.bf16.mxu0 %v1058
    %1175 = vmatpush1.bf16.msra.mxu0 %v1057
    %1176 = vmatprep.subr.bf16.mxu0 0
    %1177 = vmatpush2.bf16.msra.mxu0 0
    %1178 = vmatprep.subr.bf16.mxu0 0
    %1179 = vmatpush2.bf16.msra.mxu0 0
    %1180 = vmatprep.subr.bf16.mxu0 0
    %1181 = vmatpush2.bf16.msra.mxu0 0
    %1182 = vmatprep.subr.bf16.mxu0 0
    %1183 = vmatpush2.bf16.msra.mxu0 0
    %1184 = vmatprep.subr.bf16.mxu0 0
    %1185 = vmatpush2.bf16.msra.mxu0 0
    %1186 = vmatprep.subr.bf16.mxu0 0
    %1187 = vmatpush2.bf16.msra.mxu0 0
    %1188 = vmatprep.subr.bf16.mxu0 0
    %1189 = vmatpush2.bf16.msra.mxu0 0
    %1190 = vmatprep.subr.bf16.mxu0 0
    %1191 = vmatpush2.bf16.msra.mxu0 0
    %1192 = vmatprep.mubr.bf16.mxu0 0
    %1193 = vmatmul.mubr.bf16.gmra.mxu0 %v926
    %v1194 = vpop.f32.mrf.mxu0
    %v1195 = vadd.f32 0.0, %v1194
    %v1196 = vpop.f32.mrf.mxu0
    %v1197 = vadd.f32 0.0, %v1196
    %v1198 = vpop.f32.mrf.mxu0
    %v1199 = vpop.f32.mrf.mxu0
    %1200 = vdwg.mxu0
    %v1201 = vadd.f32 %v922, %v1154
    %v1202 = vadd.f32 %v923, %v1156
    %v1203 = vadd.f32 %v924, %v1195
    %v1204 = vadd.f32 %v925, %v1197
    %v1205 = vxor.u32 %v1201, 2147483648
    %v1206 = vxor.u32 %v1202, 2147483648
    %v1207 = vxor.u32 %v1203, 2147483648
    %v1208 = vmul.f32 %v1205, 1.442695
    %v1209 = vpow.pop %v1208
    %v1210 = vmul.f32 %v1206, 1.442695
    %v1211 = vpow.pop %v1210
    %v1212 = vmul.f32 %v1207, 1.442695
    %v1213 = vpow.pop %v1212
    %v1214 = vadd.f32 %v1209, 1.0
    %v1215 = vadd.f32 %v1211, 1.0
    %v1216 = vadd.f32 %v1213, 1.0
    %v1217 = vrcp.pop %v1214
    %v1218 = vmul.f32 1.0, %v1217
    %v1219 = vrcp.pop %v1215
    %v1220 = vmul.f32 1.0, %v1219
    %v1221 = vrcp.pop %v1216
    %v1222 = vmul.f32 1.0, %v1221
    %v1223 = vtanh.pop %v1204
    %v1224 = vmul.f32 %v1220, %v918
    %v1225 = vmul.f32 %v1218, %v1223
    %v1226 = vadd.f32 %v1224, %v1225
    %v1227 = vtanh.pop %v1226
    %v1228 = vmul.f32 %v1222, %v1227
    %1229 = vst [vmem:[#allocation3 + $0x8] sm:$0xff] %v1228
    %v1230 = vld [vmem:[#allocation2 + $0x40] sm:$0xff]
    %v1231 = vld [vmem:[#allocation2 + $0x48] sm:$0xff]
    %v1232 = vld [vmem:[#allocation2 + $0x50] sm:$0xff]
    %v1233 = vld [vmem:[#allocation2 + $0x58] sm:$0xff]
    %v1234 = vpack.c.bf16 %v1228, %v1228
    %v1235 = vld [vmem:[%s2] sm:$0xff]
    %v1236 = vld [vmem:[%s2 + $0x8] sm:$0xff]
    %v1237 = vld [vmem:[%s2 + $0x10] sm:$0xff]
    %v1238 = vld [vmem:[%s2 + $0x18] sm:$0xff]
    %v1239 = vld [vmem:[%s2 + $0x20] sm:$0xff]
    %v1240 = vld [vmem:[%s2 + $0x28] sm:$0xff]
    %v1241 = vld [vmem:[%s2 + $0x30] sm:$0xff]
    %v1242 = vld [vmem:[%s2 + $0x38] sm:$0xff]
    %v1243 = vld [vmem:[%s2 + $0x40] sm:$0xff]
    %v1244 = vld [vmem:[%s2 + $0x48] sm:$0xff]
    %v1245 = vld [vmem:[%s2 + $0x50] sm:$0xff]
    %v1246 = vld [vmem:[%s2 + $0x58] sm:$0xff]
    %v1247 = vld [vmem:[%s2 + $0x60] sm:$0xff]
    %v1248 = vld [vmem:[%s2 + $0x68] sm:$0xff]
    %v1249 = vld [vmem:[%s2 + $0x70] sm:$0xff]
    %v1250 = vld [vmem:[%s2 + $0x78] sm:$0xff]
    %v1251 = vld [vmem:[%s2 + $0x80] sm:$0xff]
    %v1252 = vld [vmem:[%s2 + $0x88] sm:$0xff]
    %v1253 = vld [vmem:[%s2 + $0x90] sm:$0xff]
    %v1254 = vld [vmem:[%s2 + $0x98] sm:$0xff]
    %v1255 = vld [vmem:[%s2 + $0xa0] sm:$0xff]
    %v1256 = vld [vmem:[%s2 + $0xa8] sm:$0xff]
    %v1257 = vld [vmem:[%s2 + $0xb0] sm:$0xff]
    %v1258 = vld [vmem:[%s2 + $0xb8] sm:$0xff]
    %v1259 = vld [vmem:[%s2 + $0xc0] sm:$0xff]
    %v1260 = vld [vmem:[%s2 + $0xc8] sm:$0xff]
    %v1261 = vld [vmem:[%s2 + $0xd0] sm:$0xff]
    %v1262 = vld [vmem:[%s2 + $0xd8] sm:$0xff]
    %v1263 = vld [vmem:[%s2 + $0xe0] sm:$0xff]
    %v1264 = vld [vmem:[%s2 + $0xe8] sm:$0xff]
    %v1265 = vld [vmem:[%s2 + $0xf0] sm:$0xff]
    %v1266 = vld [vmem:[%s2 + $0xf8] sm:$0xff]
    %v1299 = vunpack.c.l.b16 %v1235
    %v1300 = vunpack.c.h.b16 %v1235
    %v1301 = vunpack.c.l.b16 %v1236
    %v1302 = vunpack.c.h.b16 %v1236
    %v1303 = vunpack.c.l.b16 %v1237
    %v1304 = vunpack.c.h.b16 %v1237
    %v1305 = vunpack.c.l.b16 %v1238
    %v1306 = vunpack.c.h.b16 %v1238
    %v1307 = vunpack.c.l.b16 %v1239
    %v1308 = vunpack.c.h.b16 %v1239
    %v1309 = vunpack.c.l.b16 %v1240
    %v1310 = vunpack.c.h.b16 %v1240
    %v1311 = vunpack.c.l.b16 %v1241
    %v1312 = vunpack.c.h.b16 %v1241
    %v1313 = vunpack.c.l.b16 %v1242
    %v1314 = vunpack.c.h.b16 %v1242
    %v1315 = vunpack.c.l.b16 %v1243
    %v1316 = vunpack.c.h.b16 %v1243
    %v1317 = vunpack.c.l.b16 %v1244
    %v1318 = vunpack.c.h.b16 %v1244
    %v1319 = vunpack.c.l.b16 %v1245
    %v1320 = vunpack.c.h.b16 %v1245
    %v1321 = vunpack.c.l.b16 %v1246
    %v1322 = vunpack.c.h.b16 %v1246
    %v1323 = vunpack.c.l.b16 %v1247
    %v1324 = vunpack.c.h.b16 %v1247
    %v1325 = vunpack.c.l.b16 %v1248
    %v1326 = vunpack.c.h.b16 %v1248
    %v1327 = vunpack.c.l.b16 %v1249
    %v1328 = vunpack.c.h.b16 %v1249
    %v1329 = vunpack.c.l.b16 %v1250
    %v1330 = vunpack.c.h.b16 %v1250
    %v1331 = vunpack.c.l.b16 %v1251
    %v1332 = vunpack.c.h.b16 %v1251
    %v1333 = vunpack.c.l.b16 %v1252
    %v1334 = vunpack.c.h.b16 %v1252
    %v1335 = vunpack.c.l.b16 %v1253
    %v1336 = vunpack.c.h.b16 %v1253
    %v1337 = vunpack.c.l.b16 %v1254
    %v1338 = vunpack.c.h.b16 %v1254
    %v1339 = vunpack.c.l.b16 %v1255
    %v1340 = vunpack.c.h.b16 %v1255
    %v1341 = vunpack.c.l.b16 %v1256
    %v1342 = vunpack.c.h.b16 %v1256
    %v1343 = vunpack.c.l.b16 %v1257
    %v1344 = vunpack.c.h.b16 %v1257
    %v1345 = vunpack.c.l.b16 %v1258
    %v1346 = vunpack.c.h.b16 %v1258
    %v1347 = vunpack.c.l.b16 %v1259
    %v1348 = vunpack.c.h.b16 %v1259
    %v1349 = vunpack.c.l.b16 %v1260
    %v1350 = vunpack.c.h.b16 %v1260
    %v1351 = vunpack.c.l.b16 %v1261
    %v1352 = vunpack.c.h.b16 %v1261
    %v1353 = vunpack.c.l.b16 %v1262
    %v1354 = vunpack.c.h.b16 %v1262
    %v1355 = vunpack.c.l.b16 %v1263
    %v1356 = vunpack.c.h.b16 %v1263
    %v1357 = vunpack.c.l.b16 %v1264
    %v1358 = vunpack.c.h.b16 %v1264
    %v1359 = vunpack.c.l.b16 %v1265
    %v1360 = vunpack.c.h.b16 %v1265
    %v1361 = vunpack.c.l.b16 %v1266
    %v1362 = vunpack.c.h.b16 %v1266
    %v1363 = vpack.c.b16 %v1303, %v1299
    %v1364 = vpack.c.b16 %v1304, %v1300
    %v1365 = vpack.c.b16 %v1305, %v1301
    %v1366 = vpack.c.b16 %v1306, %v1302
    %v1367 = vpack.c.b16 %v1311, %v1307
    %v1368 = vpack.c.b16 %v1312, %v1308
    %v1369 = vpack.c.b16 %v1313, %v1309
    %v1370 = vpack.c.b16 %v1314, %v1310
    %v1371 = vpack.c.b16 %v1319, %v1315
    %v1372 = vpack.c.b16 %v1320, %v1316
    %v1373 = vpack.c.b16 %v1321, %v1317
    %v1374 = vpack.c.b16 %v1322, %v1318
    %v1375 = vpack.c.b16 %v1327, %v1323
    %v1376 = vpack.c.b16 %v1328, %v1324
    %v1377 = vpack.c.b16 %v1329, %v1325
    %v1378 = vpack.c.b16 %v1330, %v1326
    %v1379 = vpack.c.b16 %v1335, %v1331
    %v1380 = vpack.c.b16 %v1336, %v1332
    %v1381 = vpack.c.b16 %v1337, %v1333
    %v1382 = vpack.c.b16 %v1338, %v1334
    %v1383 = vpack.c.b16 %v1343, %v1339
    %v1384 = vpack.c.b16 %v1344, %v1340
    %v1385 = vpack.c.b16 %v1345, %v1341
    %v1386 = vpack.c.b16 %v1346, %v1342
    %v1387 = vpack.c.b16 %v1351, %v1347
    %v1388 = vpack.c.b16 %v1352, %v1348
    %v1389 = vpack.c.b16 %v1353, %v1349
    %v1390 = vpack.c.b16 %v1354, %v1350
    %v1391 = vpack.c.b16 %v1359, %v1355
    %v1392 = vpack.c.b16 %v1360, %v1356
    %v1393 = vpack.c.b16 %v1361, %v1357
    %v1394 = vpack.c.b16 %v1362, %v1358
    %1427 = vmatprep.subr.bf16.mxu0 %v1392
    %1428 = vmatpush1.bf16.msra.mxu0 %v1391
    %1429 = vmatprep.subr.bf16.mxu0 %v1388
    %1430 = vmatpush1.bf16.msra.mxu0 %v1387
    %1431 = vmatprep.subr.bf16.mxu0 %v1384
    %1432 = vmatpush1.bf16.msra.mxu0 %v1383
    %1433 = vmatprep.subr.bf16.mxu0 %v1380
    %1434 = vmatpush1.bf16.msra.mxu0 %v1379
    %1435 = vmatprep.subr.bf16.mxu0 %v1376
    %1436 = vmatpush1.bf16.msra.mxu0 %v1375
    %1437 = vmatprep.subr.bf16.mxu0 %v1372
    %1438 = vmatpush1.bf16.msra.mxu0 %v1371
    %1439 = vmatprep.subr.bf16.mxu0 %v1368
    %1440 = vmatpush1.bf16.msra.mxu0 %v1367
    %1441 = vmatprep.subr.bf16.mxu0 %v1364
    %1442 = vmatpush1.bf16.msra.mxu0 %v1363
    %1443 = vmatprep.subr.bf16.mxu0 0
    %1444 = vmatpush2.bf16.msra.mxu0 0
    %1445 = vmatprep.subr.bf16.mxu0 0
    %1446 = vmatpush2.bf16.msra.mxu0 0
    %1447 = vmatprep.subr.bf16.mxu0 0
    %1448 = vmatpush2.bf16.msra.mxu0 0
    %1449 = vmatprep.subr.bf16.mxu0 0
    %1450 = vmatpush2.bf16.msra.mxu0 0
    %1451 = vmatprep.subr.bf16.mxu0 0
    %1452 = vmatpush2.bf16.msra.mxu0 0
    %1453 = vmatprep.subr.bf16.mxu0 0
    %1454 = vmatpush2.bf16.msra.mxu0 0
    %1455 = vmatprep.subr.bf16.mxu0 0
    %1456 = vmatpush2.bf16.msra.mxu0 0
    %1457 = vmatprep.subr.bf16.mxu0 0
    %1458 = vmatpush2.bf16.msra.mxu0 0
    %1459 = vmatprep.mubr.bf16.mxu0 0
    %1460 = vmatmul.mubr.bf16.gmra.mxu0 %v1234
    %v1461 = vpop.f32.mrf.mxu0
    %v1462 = vadd.f32 0.0, %v1461
    %v1463 = vpop.f32.mrf.mxu0
    %v1464 = vadd.f32 0.0, %v1463
    %v1465 = vpop.f32.mrf.mxu0
    %v1466 = vpop.f32.mrf.mxu0
    %1467 = vdwg.mxu0
    %1468 = vmatprep.subr.bf16.mxu0 %v1394
    %1469 = vmatpush1.bf16.msra.mxu0 %v1393
    %1470 = vmatprep.subr.bf16.mxu0 %v1390
    %1471 = vmatpush1.bf16.msra.mxu0 %v1389
    %1472 = vmatprep.subr.bf16.mxu0 %v1386
    %1473 = vmatpush1.bf16.msra.mxu0 %v1385
    %1474 = vmatprep.subr.bf16.mxu0 %v1382
    %1475 = vmatpush1.bf16.msra.mxu0 %v1381
    %1476 = vmatprep.subr.bf16.mxu0 %v1378
    %1477 = vmatpush1.bf16.msra.mxu0 %v1377
    %1478 = vmatprep.subr.bf16.mxu0 %v1374
    %1479 = vmatpush1.bf16.msra.mxu0 %v1373
    %1480 = vmatprep.subr.bf16.mxu0 %v1370
    %1481 = vmatpush1.bf16.msra.mxu0 %v1369
    %1482 = vmatprep.subr.bf16.mxu0 %v1366
    %1483 = vmatpush1.bf16.msra.mxu0 %v1365
    %1484 = vmatprep.subr.bf16.mxu0 0
    %1485 = vmatpush2.bf16.msra.mxu0 0
    %1486 = vmatprep.subr.bf16.mxu0 0
    %1487 = vmatpush2.bf16.msra.mxu0 0
    %1488 = vmatprep.subr.bf16.mxu0 0
    %1489 = vmatpush2.bf16.msra.mxu0 0
    %1490 = vmatprep.subr.bf16.mxu0 0
    %1491 = vmatpush2.bf16.msra.mxu0 0
    %1492 = vmatprep.subr.bf16.mxu0 0
    %1493 = vmatpush2.bf16.msra.mxu0 0
    %1494 = vmatprep.subr.bf16.mxu0 0
    %1495 = vmatpush2.bf16.msra.mxu0 0
    %1496 = vmatprep.subr.bf16.mxu0 0
    %1497 = vmatpush2.bf16.msra.mxu0 0
    %1498 = vmatprep.subr.bf16.mxu0 0
    %1499 = vmatpush2.bf16.msra.mxu0 0
    %1500 = vmatprep.mubr.bf16.mxu0 0
    %1501 = vmatmul.mubr.bf16.gmra.mxu0 %v1234
    %v1502 = vpop.f32.mrf.mxu0
    %v1503 = vadd.f32 0.0, %v1502
    %v1504 = vpop.f32.mrf.mxu0
    %v1505 = vadd.f32 0.0, %v1504
    %v1506 = vpop.f32.mrf.mxu0
    %v1507 = vpop.f32.mrf.mxu0
    %1508 = vdwg.mxu0
    %v1509 = vadd.f32 %v1230, %v1462
    %v1510 = vadd.f32 %v1231, %v1464
    %v1511 = vadd.f32 %v1232, %v1503
    %v1512 = vadd.f32 %v1233, %v1505
    %v1513 = vxor.u32 %v1509, 2147483648
    %v1514 = vxor.u32 %v1510, 2147483648
    %v1515 = vxor.u32 %v1511, 2147483648
    %v1516 = vmul.f32 %v1513, 1.442695
    %v1517 = vpow.pop %v1516
    %v1518 = vmul.f32 %v1514, 1.442695
    %v1519 = vpow.pop %v1518
    %v1520 = vmul.f32 %v1515, 1.442695
    %v1521 = vpow.pop %v1520
    %v1522 = vadd.f32 %v1517, 1.0
    %v1523 = vadd.f32 %v1519, 1.0
    %v1524 = vadd.f32 %v1521, 1.0
    %v1525 = vrcp.pop %v1522
    %v1526 = vmul.f32 1.0, %v1525
    %v1527 = vrcp.pop %v1523
    %v1528 = vmul.f32 1.0, %v1527
    %v1529 = vrcp.pop %v1524
    %v1530 = vmul.f32 1.0, %v1529
    %v1531 = vtanh.pop %v1512
    %v1532 = vmul.f32 %v1528, %v1226
    %v1533 = vmul.f32 %v1526, %v1531
    %v1534 = vadd.f32 %v1532, %v1533
    %v1535 = vtanh.pop %v1534
    %v1536 = vmul.f32 %v1530, %v1535
    %1537 = vst [vmem:[#allocation3 + $0x10] sm:$0xff] %v1536
    %v1538 = vld [vmem:[#allocation2 + $0x60] sm:$0xff]
    %v1539 = vld [vmem:[#allocation2 + $0x68] sm:$0xff]
    %v1540 = vld [vmem:[#allocation2 + $0x70] sm:$0xff]
    %v1541 = vld [vmem:[#allocation2 + $0x78] sm:$0xff]
    %v1542 = vpack.c.bf16 %v1536, %v1536
    %v1543 = vld [vmem:[%s2] sm:$0xff]
    %v1544 = vld [vmem:[%s2 + $0x8] sm:$0xff]
    %v1545 = vld [vmem:[%s2 + $0x10] sm:$0xff]
    %v1546 = vld [vmem:[%s2 + $0x18] sm:$0xff]
    %v1547 = vld [vmem:[%s2 + $0x20] sm:$0xff]
    %v1548 = vld [vmem:[%s2 + $0x28] sm:$0xff]
    %v1549 = vld [vmem:[%s2 + $0x30] sm:$0xff]
    %v1550 = vld [vmem:[%s2 + $0x38] sm:$0xff]
    %v1551 = vld [vmem:[%s2 + $0x40] sm:$0xff]
    %v1552 = vld [vmem:[%s2 + $0x48] sm:$0xff]
    %v1553 = vld [vmem:[%s2 + $0x50] sm:$0xff]
    %v1554 = vld [vmem:[%s2 + $0x58] sm:$0xff]
    %v1555 = vld [vmem:[%s2 + $0x60] sm:$0xff]
    %v1556 = vld [vmem:[%s2 + $0x68] sm:$0xff]
    %v1557 = vld [vmem:[%s2 + $0x70] sm:$0xff]
    %v1558 = vld [vmem:[%s2 + $0x78] sm:$0xff]
    %v1559 = vld [vmem:[%s2 + $0x80] sm:$0xff]
    %v1560 = vld [vmem:[%s2 + $0x88] sm:$0xff]
    %v1561 = vld [vmem:[%s2 + $0x90] sm:$0xff]
    %v1562 = vld [vmem:[%s2 + $0x98] sm:$0xff]
    %v1563 = vld [vmem:[%s2 + $0xa0] sm:$0xff]
    %v1564 = vld [vmem:[%s2 + $0xa8] sm:$0xff]
    %v1565 = vld [vmem:[%s2 + $0xb0] sm:$0xff]
    %v1566 = vld [vmem:[%s2 + $0xb8] sm:$0xff]
    %v1567 = vld [vmem:[%s2 + $0xc0] sm:$0xff]
    %v1568 = vld [vmem:[%s2 + $0xc8] sm:$0xff]
    %v1569 = vld [vmem:[%s2 + $0xd0] sm:$0xff]
    %v1570 = vld [vmem:[%s2 + $0xd8] sm:$0xff]
    %v1571 = vld [vmem:[%s2 + $0xe0] sm:$0xff]
    %v1572 = vld [vmem:[%s2 + $0xe8] sm:$0xff]
    %v1573 = vld [vmem:[%s2 + $0xf0] sm:$0xff]
    %v1574 = vld [vmem:[%s2 + $0xf8] sm:$0xff]
    %v1607 = vunpack.c.l.b16 %v1543
    %v1608 = vunpack.c.h.b16 %v1543
    %v1609 = vunpack.c.l.b16 %v1544
    %v1610 = vunpack.c.h.b16 %v1544
    %v1611 = vunpack.c.l.b16 %v1545
    %v1612 = vunpack.c.h.b16 %v1545
    %v1613 = vunpack.c.l.b16 %v1546
    %v1614 = vunpack.c.h.b16 %v1546
    %v1615 = vunpack.c.l.b16 %v1547
    %v1616 = vunpack.c.h.b16 %v1547
    %v1617 = vunpack.c.l.b16 %v1548
    %v1618 = vunpack.c.h.b16 %v1548
    %v1619 = vunpack.c.l.b16 %v1549
    %v1620 = vunpack.c.h.b16 %v1549
    %v1621 = vunpack.c.l.b16 %v1550
    %v1622 = vunpack.c.h.b16 %v1550
    %v1623 = vunpack.c.l.b16 %v1551
    %v1624 = vunpack.c.h.b16 %v1551
    %v1625 = vunpack.c.l.b16 %v1552
    %v1626 = vunpack.c.h.b16 %v1552
    %v1627 = vunpack.c.l.b16 %v1553
    %v1628 = vunpack.c.h.b16 %v1553
    %v1629 = vunpack.c.l.b16 %v1554
    %v1630 = vunpack.c.h.b16 %v1554
    %v1631 = vunpack.c.l.b16 %v1555
    %v1632 = vunpack.c.h.b16 %v1555
    %v1633 = vunpack.c.l.b16 %v1556
    %v1634 = vunpack.c.h.b16 %v1556
    %v1635 = vunpack.c.l.b16 %v1557
    %v1636 = vunpack.c.h.b16 %v1557
    %v1637 = vunpack.c.l.b16 %v1558
    %v1638 = vunpack.c.h.b16 %v1558
    %v1639 = vunpack.c.l.b16 %v1559
    %v1640 = vunpack.c.h.b16 %v1559
    %v1641 = vunpack.c.l.b16 %v1560
    %v1642 = vunpack.c.h.b16 %v1560
    %v1643 = vunpack.c.l.b16 %v1561
    %v1644 = vunpack.c.h.b16 %v1561
    %v1645 = vunpack.c.l.b16 %v1562
    %v1646 = vunpack.c.h.b16 %v1562
    %v1647 = vunpack.c.l.b16 %v1563
    %v1648 = vunpack.c.h.b16 %v1563
    %v1649 = vunpack.c.l.b16 %v1564
    %v1650 = vunpack.c.h.b16 %v1564
    %v1651 = vunpack.c.l.b16 %v1565
    %v1652 = vunpack.c.h.b16 %v1565
    %v1653 = vunpack.c.l.b16 %v1566
    %v1654 = vunpack.c.h.b16 %v1566
    %v1655 = vunpack.c.l.b16 %v1567
    %v1656 = vunpack.c.h.b16 %v1567
    %v1657 = vunpack.c.l.b16 %v1568
    %v1658 = vunpack.c.h.b16 %v1568
    %v1659 = vunpack.c.l.b16 %v1569
    %v1660 = vunpack.c.h.b16 %v1569
    %v1661 = vunpack.c.l.b16 %v1570
    %v1662 = vunpack.c.h.b16 %v1570
    %v1663 = vunpack.c.l.b16 %v1571
    %v1664 = vunpack.c.h.b16 %v1571
    %v1665 = vunpack.c.l.b16 %v1572
    %v1666 = vunpack.c.h.b16 %v1572
    %v1667 = vunpack.c.l.b16 %v1573
    %v1668 = vunpack.c.h.b16 %v1573
    %v1669 = vunpack.c.l.b16 %v1574
    %v1670 = vunpack.c.h.b16 %v1574
    %v1671 = vpack.c.b16 %v1611, %v1607
    %v1672 = vpack.c.b16 %v1612, %v1608
    %v1673 = vpack.c.b16 %v1613, %v1609
    %v1674 = vpack.c.b16 %v1614, %v1610
    %v1675 = vpack.c.b16 %v1619, %v1615
    %v1676 = vpack.c.b16 %v1620, %v1616
    %v1677 = vpack.c.b16 %v1621, %v1617
    %v1678 = vpack.c.b16 %v1622, %v1618
    %v1679 = vpack.c.b16 %v1627, %v1623
    %v1680 = vpack.c.b16 %v1628, %v1624
    %v1681 = vpack.c.b16 %v1629, %v1625
    %v1682 = vpack.c.b16 %v1630, %v1626
    %v1683 = vpack.c.b16 %v1635, %v1631
    %v1684 = vpack.c.b16 %v1636, %v1632
    %v1685 = vpack.c.b16 %v1637, %v1633
    %v1686 = vpack.c.b16 %v1638, %v1634
    %v1687 = vpack.c.b16 %v1643, %v1639
    %v1688 = vpack.c.b16 %v1644, %v1640
    %v1689 = vpack.c.b16 %v1645, %v1641
    %v1690 = vpack.c.b16 %v1646, %v1642
    %v1691 = vpack.c.b16 %v1651, %v1647
    %v1692 = vpack.c.b16 %v1652, %v1648
    %v1693 = vpack.c.b16 %v1653, %v1649
    %v1694 = vpack.c.b16 %v1654, %v1650
    %v1695 = vpack.c.b16 %v1659, %v1655
    %v1696 = vpack.c.b16 %v1660, %v1656
    %v1697 = vpack.c.b16 %v1661, %v1657
    %v1698 = vpack.c.b16 %v1662, %v1658
    %v1699 = vpack.c.b16 %v1667, %v1663
    %v1700 = vpack.c.b16 %v1668, %v1664
    %v1701 = vpack.c.b16 %v1669, %v1665
    %v1702 = vpack.c.b16 %v1670, %v1666
    %1735 = vmatprep.subr.bf16.mxu0 %v1700
    %1736 = vmatpush1.bf16.msra.mxu0 %v1699
    %1737 = vmatprep.subr.bf16.mxu0 %v1696
    %1738 = vmatpush1.bf16.msra.mxu0 %v1695
    %1739 = vmatprep.subr.bf16.mxu0 %v1692
    %1740 = vmatpush1.bf16.msra.mxu0 %v1691
    %1741 = vmatprep.subr.bf16.mxu0 %v1688
    %1742 = vmatpush1.bf16.msra.mxu0 %v1687
    %1743 = vmatprep.subr.bf16.mxu0 %v1684
    %1744 = vmatpush1.bf16.msra.mxu0 %v1683
    %1745 = vmatprep.subr.bf16.mxu0 %v1680
    %1746 = vmatpush1.bf16.msra.mxu0 %v1679
    %1747 = vmatprep.subr.bf16.mxu0 %v1676
    %1748 = vmatpush1.bf16.msra.mxu0 %v1675
    %1749 = vmatprep.subr.bf16.mxu0 %v1672
    %1750 = vmatpush1.bf16.msra.mxu0 %v1671
    %1751 = vmatprep.subr.bf16.mxu0 0
    %1752 = vmatpush2.bf16.msra.mxu0 0
    %1753 = vmatprep.subr.bf16.mxu0 0
    %1754 = vmatpush2.bf16.msra.mxu0 0
    %1755 = vmatprep.subr.bf16.mxu0 0
    %1756 = vmatpush2.bf16.msra.mxu0 0
    %1757 = vmatprep.subr.bf16.mxu0 0
    %1758 = vmatpush2.bf16.msra.mxu0 0
    %1759 = vmatprep.subr.bf16.mxu0 0
    %1760 = vmatpush2.bf16.msra.mxu0 0
    %1761 = vmatprep.subr.bf16.mxu0 0
    %1762 = vmatpush2.bf16.msra.mxu0 0
    %1763 = vmatprep.subr.bf16.mxu0 0
    %1764 = vmatpush2.bf16.msra.mxu0 0
    %1765 = vmatprep.subr.bf16.mxu0 0
    %1766 = vmatpush2.bf16.msra.mxu0 0
    %1767 = vmatprep.mubr.bf16.mxu0 0
    %1768 = vmatmul.mubr.bf16.gmra.mxu0 %v1542
    %v1769 = vpop.f32.mrf.mxu0
    %v1770 = vadd.f32 0.0, %v1769
    %v1771 = vpop.f32.mrf.mxu0
    %v1772 = vadd.f32 0.0, %v1771
    %v1773 = vpop.f32.mrf.mxu0
    %v1774 = vpop.f32.mrf.mxu0
    %1775 = vdwg.mxu0
    %1776 = vmatprep.subr.bf16.mxu0 %v1702
    %1777 = vmatpush1.bf16.msra.mxu0 %v1701
    %1778 = vmatprep.subr.bf16.mxu0 %v1698
    %1779 = vmatpush1.bf16.msra.mxu0 %v1697
    %1780 = vmatprep.subr.bf16.mxu0 %v1694
    %1781 = vmatpush1.bf16.msra.mxu0 %v1693
    %1782 = vmatprep.subr.bf16.mxu0 %v1690
    %1783 = vmatpush1.bf16.msra.mxu0 %v1689
    %1784 = vmatprep.subr.bf16.mxu0 %v1686
    %1785 = vmatpush1.bf16.msra.mxu0 %v1685
    %1786 = vmatprep.subr.bf16.mxu0 %v1682
    %1787 = vmatpush1.bf16.msra.mxu0 %v1681
    %1788 = vmatprep.subr.bf16.mxu0 %v1678
    %1789 = vmatpush1.bf16.msra.mxu0 %v1677
    %1790 = vmatprep.subr.bf16.mxu0 %v1674
    %1791 = vmatpush1.bf16.msra.mxu0 %v1673
    %1792 = vmatprep.subr.bf16.mxu0 0
    %1793 = vmatpush2.bf16.msra.mxu0 0
    %1794 = vmatprep.subr.bf16.mxu0 0
    %1795 = vmatpush2.bf16.msra.mxu0 0
    %1796 = vmatprep.subr.bf16.mxu0 0
    %1797 = vmatpush2.bf16.msra.mxu0 0
    %1798 = vmatprep.subr.bf16.mxu0 0
    %1799 = vmatpush2.bf16.msra.mxu0 0
    %1800 = vmatprep.subr.bf16.mxu0 0
    %1801 = vmatpush2.bf16.msra.mxu0 0
    %1802 = vmatprep.subr.bf16.mxu0 0
    %1803 = vmatpush2.bf16.msra.mxu0 0
    %1804 = vmatprep.subr.bf16.mxu0 0
    %1805 = vmatpush2.bf16.msra.mxu0 0
    %1806 = vmatprep.subr.bf16.mxu0 0
    %1807 = vmatpush2.bf16.msra.mxu0 0
    %1808 = vmatprep.mubr.bf16.mxu0 0
    %1809 = vmatmul.mubr.bf16.gmra.mxu0 %v1542
    %v1810 = vpop.f32.mrf.mxu0
    %v1811 = vadd.f32 0.0, %v1810
    %v1812 = vpop.f32.mrf.mxu0
    %v1813 = vadd.f32 0.0, %v1812
    %v1814 = vpop.f32.mrf.mxu0
    %v1815 = vpop.f32.mrf.mxu0
    %1816 = vdwg.mxu0
    %v1817 = vadd.f32 %v1538, %v1770
    %v1818 = vadd.f32 %v1539, %v1772
    %v1819 = vadd.f32 %v1540, %v1811
    %v1820 = vadd.f32 %v1541, %v1813
    %v1821 = vxor.u32 %v1817, 2147483648
    %v1822 = vxor.u32 %v1818, 2147483648
    %v1823 = vxor.u32 %v1819, 2147483648
    %v1824 = vmul.f32 %v1821, 1.442695
    %v1825 = vpow.pop %v1824
    %v1826 = vmul.f32 %v1822, 1.442695
    %v1827 = vpow.pop %v1826
    %v1828 = vmul.f32 %v1823, 1.442695
    %v1829 = vpow.pop %v1828
    %v1830 = vadd.f32 %v1825, 1.0
    %v1831 = vadd.f32 %v1827, 1.0
    %v1832 = vadd.f32 %v1829, 1.0
    %v1833 = vrcp.pop %v1830
    %v1834 = vmul.f32 1.0, %v1833
    %v1835 = vrcp.pop %v1831
    %v1836 = vmul.f32 1.0, %v1835
    %v1837 = vrcp.pop %v1832
    %v1838 = vmul.f32 1.0, %v1837
    %v1839 = vtanh.pop %v1820
    %v1840 = vmul.f32 %v1836, %v1534
    %v1841 = vmul.f32 %v1834, %v1839
    %v1842 = vadd.f32 %v1840, %v1841
    %v1843 = vtanh.pop %v1842
    %v1844 = vmul.f32 %v1838, %v1843
    %1845 = vst [vmem:[#allocation3 + $0x18] sm:$0xff] %v1844
    %v1846 = vld [vmem:[#allocation2 + $0x80] sm:$0xff]
    %v1847 = vld [vmem:[#allocation2 + $0x88] sm:$0xff]
    %v1848 = vld [vmem:[#allocation2 + $0x90] sm:$0xff]
    %v1849 = vld [vmem:[#allocation2 + $0x98] sm:$0xff]
    %v1850 = vpack.c.bf16 %v1844, %v1844
    %v1851 = vld [vmem:[%s2] sm:$0xff]
    %v1852 = vld [vmem:[%s2 + $0x8] sm:$0xff]
    %v1853 = vld [vmem:[%s2 + $0x10] sm:$0xff]
    %v1854 = vld [vmem:[%s2 + $0x18] sm:$0xff]
    %v1855 = vld [vmem:[%s2 + $0x20] sm:$0xff]
    %v1856 = vld [vmem:[%s2 + $0x28] sm:$0xff]
    %v1857 = vld [vmem:[%s2 + $0x30] sm:$0xff]
    %v1858 = vld [vmem:[%s2 + $0x38] sm:$0xff]
    %v1859 = vld [vmem:[%s2 + $0x40] sm:$0xff]
    %v1860 = vld [vmem:[%s2 + $0x48] sm:$0xff]
    %v1861 = vld [vmem:[%s2 + $0x50] sm:$0xff]
    %v1862 = vld [vmem:[%s2 + $0x58] sm:$0xff]
    %v1863 = vld [vmem:[%s2 + $0x60] sm:$0xff]
    %v1864 = vld [vmem:[%s2 + $0x68] sm:$0xff]
    %v1865 = vld [vmem:[%s2 + $0x70] sm:$0xff]
    %v1866 = vld [vmem:[%s2 + $0x78] sm:$0xff]
    %v1867 = vld [vmem:[%s2 + $0x80] sm:$0xff]
    %v1868 = vld [vmem:[%s2 + $0x88] sm:$0xff]
    %v1869 = vld [vmem:[%s2 + $0x90] sm:$0xff]
    %v1870 = vld [vmem:[%s2 + $0x98] sm:$0xff]
    %v1871 = vld [vmem:[%s2 + $0xa0] sm:$0xff]
    %v1872 = vld [vmem:[%s2 + $0xa8] sm:$0xff]
    %v1873 = vld [vmem:[%s2 + $0xb0] sm:$0xff]
    %v1874 = vld [vmem:[%s2 + $0xb8] sm:$0xff]
    %v1875 = vld [vmem:[%s2 + $0xc0] sm:$0xff]
    %v1876 = vld [vmem:[%s2 + $0xc8] sm:$0xff]
    %v1877 = vld [vmem:[%s2 + $0xd0] sm:$0xff]
    %v1878 = vld [vmem:[%s2 + $0xd8] sm:$0xff]
    %v1879 = vld [vmem:[%s2 + $0xe0] sm:$0xff]
    %v1880 = vld [vmem:[%s2 + $0xe8] sm:$0xff]
    %v1881 = vld [vmem:[%s2 + $0xf0] sm:$0xff]
    %v1882 = vld [vmem:[%s2 + $0xf8] sm:$0xff]
    %v1915 = vunpack.c.l.b16 %v1851
    %v1916 = vunpack.c.h.b16 %v1851
    %v1917 = vunpack.c.l.b16 %v1852
    %v1918 = vunpack.c.h.b16 %v1852
    %v1919 = vunpack.c.l.b16 %v1853
    %v1920 = vunpack.c.h.b16 %v1853
    %v1921 = vunpack.c.l.b16 %v1854
    %v1922 = vunpack.c.h.b16 %v1854
    %v1923 = vunpack.c.l.b16 %v1855
    %v1924 = vunpack.c.h.b16 %v1855
    %v1925 = vunpack.c.l.b16 %v1856
    %v1926 = vunpack.c.h.b16 %v1856
    %v1927 = vunpack.c.l.b16 %v1857
    %v1928 = vunpack.c.h.b16 %v1857
    %v1929 = vunpack.c.l.b16 %v1858
    %v1930 = vunpack.c.h.b16 %v1858
    %v1931 = vunpack.c.l.b16 %v1859
    %v1932 = vunpack.c.h.b16 %v1859
    %v1933 = vunpack.c.l.b16 %v1860
    %v1934 = vunpack.c.h.b16 %v1860
    %v1935 = vunpack.c.l.b16 %v1861
    %v1936 = vunpack.c.h.b16 %v1861
    %v1937 = vunpack.c.l.b16 %v1862
    %v1938 = vunpack.c.h.b16 %v1862
    %v1939 = vunpack.c.l.b16 %v1863
    %v1940 = vunpack.c.h.b16 %v1863
    %v1941 = vunpack.c.l.b16 %v1864
    %v1942 = vunpack.c.h.b16 %v1864
    %v1943 = vunpack.c.l.b16 %v1865
    %v1944 = vunpack.c.h.b16 %v1865
    %v1945 = vunpack.c.l.b16 %v1866
    %v1946 = vunpack.c.h.b16 %v1866
    %v1947 = vunpack.c.l.b16 %v1867
    %v1948 = vunpack.c.h.b16 %v1867
    %v1949 = vunpack.c.l.b16 %v1868
    %v1950 = vunpack.c.h.b16 %v1868
    %v1951 = vunpack.c.l.b16 %v1869
    %v1952 = vunpack.c.h.b16 %v1869
    %v1953 = vunpack.c.l.b16 %v1870
    %v1954 = vunpack.c.h.b16 %v1870
    %v1955 = vunpack.c.l.b16 %v1871
    %v1956 = vunpack.c.h.b16 %v1871
    %v1957 = vunpack.c.l.b16 %v1872
    %v1958 = vunpack.c.h.b16 %v1872
    %v1959 = vunpack.c.l.b16 %v1873
    %v1960 = vunpack.c.h.b16 %v1873
    %v1961 = vunpack.c.l.b16 %v1874
    %v1962 = vunpack.c.h.b16 %v1874
    %v1963 = vunpack.c.l.b16 %v1875
    %v1964 = vunpack.c.h.b16 %v1875
    %v1965 = vunpack.c.l.b16 %v1876
    %v1966 = vunpack.c.h.b16 %v1876
    %v1967 = vunpack.c.l.b16 %v1877
    %v1968 = vunpack.c.h.b16 %v1877
    %v1969 = vunpack.c.l.b16 %v1878
    %v1970 = vunpack.c.h.b16 %v1878
    %v1971 = vunpack.c.l.b16 %v1879
    %v1972 = vunpack.c.h.b16 %v1879
    %v1973 = vunpack.c.l.b16 %v1880
    %v1974 = vunpack.c.h.b16 %v1880
    %v1975 = vunpack.c.l.b16 %v1881
    %v1976 = vunpack.c.h.b16 %v1881
    %v1977 = vunpack.c.l.b16 %v1882
    %v1978 = vunpack.c.h.b16 %v1882
    %v1979 = vpack.c.b16 %v1919, %v1915
    %v1980 = vpack.c.b16 %v1920, %v1916
    %v1981 = vpack.c.b16 %v1921, %v1917
    %v1982 = vpack.c.b16 %v1922, %v1918
    %v1983 = vpack.c.b16 %v1927, %v1923
    %v1984 = vpack.c.b16 %v1928, %v1924
    %v1985 = vpack.c.b16 %v1929, %v1925
    %v1986 = vpack.c.b16 %v1930, %v1926
    %v1987 = vpack.c.b16 %v1935, %v1931
    %v1988 = vpack.c.b16 %v1936, %v1932
    %v1989 = vpack.c.b16 %v1937, %v1933
    %v1990 = vpack.c.b16 %v1938, %v1934
    %v1991 = vpack.c.b16 %v1943, %v1939
    %v1992 = vpack.c.b16 %v1944, %v1940
    %v1993 = vpack.c.b16 %v1945, %v1941
    %v1994 = vpack.c.b16 %v1946, %v1942
    %v1995 = vpack.c.b16 %v1951, %v1947
    %v1996 = vpack.c.b16 %v1952, %v1948
    %v1997 = vpack.c.b16 %v1953, %v1949
    %v1998 = vpack.c.b16 %v1954, %v1950
    %v1999 = vpack.c.b16 %v1959, %v1955
    %v2000 = vpack.c.b16 %v1960, %v1956
    %v2001 = vpack.c.b16 %v1961, %v1957
    %v2002 = vpack.c.b16 %v1962, %v1958
    %v2003 = vpack.c.b16 %v1967, %v1963
    %v2004 = vpack.c.b16 %v1968, %v1964
    %v2005 = vpack.c.b16 %v1969, %v1965
    %v2006 = vpack.c.b16 %v1970, %v1966
    %v2007 = vpack.c.b16 %v1975, %v1971
    %v2008 = vpack.c.b16 %v1976, %v1972
    %v2009 = vpack.c.b16 %v1977, %v1973
    %v2010 = vpack.c.b16 %v1978, %v1974
    %2043 = vmatprep.subr.bf16.mxu0 %v2008
    %2044 = vmatpush1.bf16.msra.mxu0 %v2007
    %2045 = vmatprep.subr.bf16.mxu0 %v2004
    %2046 = vmatpush1.bf16.msra.mxu0 %v2003
    %2047 = vmatprep.subr.bf16.mxu0 %v2000
    %2048 = vmatpush1.bf16.msra.mxu0 %v1999
    %2049 = vmatprep.subr.bf16.mxu0 %v1996
    %2050 = vmatpush1.bf16.msra.mxu0 %v1995
    %2051 = vmatprep.subr.bf16.mxu0 %v1992
    %2052 = vmatpush1.bf16.msra.mxu0 %v1991
    %2053 = vmatprep.subr.bf16.mxu0 %v1988
    %2054 = vmatpush1.bf16.msra.mxu0 %v1987
    %2055 = vmatprep.subr.bf16.mxu0 %v1984
    %2056 = vmatpush1.bf16.msra.mxu0 %v1983
    %2057 = vmatprep.subr.bf16.mxu0 %v1980
    %2058 = vmatpush1.bf16.msra.mxu0 %v1979
    %2059 = vmatprep.subr.bf16.mxu0 0
    %2060 = vmatpush2.bf16.msra.mxu0 0
    %2061 = vmatprep.subr.bf16.mxu0 0
    %2062 = vmatpush2.bf16.msra.mxu0 0
    %2063 = vmatprep.subr.bf16.mxu0 0
    %2064 = vmatpush2.bf16.msra.mxu0 0
    %2065 = vmatprep.subr.bf16.mxu0 0
    %2066 = vmatpush2.bf16.msra.mxu0 0
    %2067 = vmatprep.subr.bf16.mxu0 0
    %2068 = vmatpush2.bf16.msra.mxu0 0
    %2069 = vmatprep.subr.bf16.mxu0 0
    %2070 = vmatpush2.bf16.msra.mxu0 0
    %2071 = vmatprep.subr.bf16.mxu0 0
    %2072 = vmatpush2.bf16.msra.mxu0 0
    %2073 = vmatprep.subr.bf16.mxu0 0
    %2074 = vmatpush2.bf16.msra.mxu0 0
    %2075 = vmatprep.mubr.bf16.mxu0 0
    %2076 = vmatmul.mubr.bf16.gmra.mxu0 %v1850
    %v2077 = vpop.f32.mrf.mxu0
    %v2078 = vadd.f32 0.0, %v2077
    %v2079 = vpop.f32.mrf.mxu0
    %v2080 = vadd.f32 0.0, %v2079
    %v2081 = vpop.f32.mrf.mxu0
    %v2082 = vpop.f32.mrf.mxu0
    %2083 = vdwg.mxu0
    %2084 = vmatprep.subr.bf16.mxu0 %v2010
    %2085 = vmatpush1.bf16.msra.mxu0 %v2009
    %2086 = vmatprep.subr.bf16.mxu0 %v2006
    %2087 = vmatpush1.bf16.msra.mxu0 %v2005
    %2088 = vmatprep.subr.bf16.mxu0 %v2002
    %2089 = vmatpush1.bf16.msra.mxu0 %v2001
    %2090 = vmatprep.subr.bf16.mxu0 %v1998
    %2091 = vmatpush1.bf16.msra.mxu0 %v1997
    %2092 = vmatprep.subr.bf16.mxu0 %v1994
    %2093 = vmatpush1.bf16.msra.mxu0 %v1993
    %2094 = vmatprep.subr.bf16.mxu0 %v1990
    %2095 = vmatpush1.bf16.msra.mxu0 %v1989
    %2096 = vmatprep.subr.bf16.mxu0 %v1986
    %2097 = vmatpush1.bf16.msra.mxu0 %v1985
    %2098 = vmatprep.subr.bf16.mxu0 %v1982
    %2099 = vmatpush1.bf16.msra.mxu0 %v1981
    %2100 = vmatprep.subr.bf16.mxu0 0
    %2101 = vmatpush2.bf16.msra.mxu0 0
    %2102 = vmatprep.subr.bf16.mxu0 0
    %2103 = vmatpush2.bf16.msra.mxu0 0
    %2104 = vmatprep.subr.bf16.mxu0 0
    %2105 = vmatpush2.bf16.msra.mxu0 0
    %2106 = vmatprep.subr.bf16.mxu0 0
    %2107 = vmatpush2.bf16.msra.mxu0 0
    %2108 = vmatprep.subr.bf16.mxu0 0
    %2109 = vmatpush2.bf16.msra.mxu0 0
    %2110 = vmatprep.subr.bf16.mxu0 0
    %2111 = vmatpush2.bf16.msra.mxu0 0
    %2112 = vmatprep.subr.bf16.mxu0 0
    %2113 = vmatpush2.bf16.msra.mxu0 0
    %2114 = vmatprep.subr.bf16.mxu0 0
    %2115 = vmatpush2.bf16.msra.mxu0 0
    %2116 = vmatprep.mubr.bf16.mxu0 0
    %2117 = vmatmul.mubr.bf16.gmra.mxu0 %v1850
    %v2118 = vpop.f32.mrf.mxu0
    %v2119 = vadd.f32 0.0, %v2118
    %v2120 = vpop.f32.mrf.mxu0
    %v2121 = vadd.f32 0.0, %v2120
    %v2122 = vpop.f32.mrf.mxu0
    %v2123 = vpop.f32.mrf.mxu0
    %2124 = vdwg.mxu0
    %v2125 = vadd.f32 %v1846, %v2078
    %v2126 = vadd.f32 %v1847, %v2080
    %v2127 = vadd.f32 %v1848, %v2119
    %v2128 = vadd.f32 %v1849, %v2121
    %v2129 = vxor.u32 %v2125, 2147483648
    %v2130 = vxor.u32 %v2126, 2147483648
    %v2131 = vxor.u32 %v2127, 2147483648
    %v2132 = vmul.f32 %v2129, 1.442695
    %v2133 = vpow.pop %v2132
    %v2134 = vmul.f32 %v2130, 1.442695
    %v2135 = vpow.pop %v2134
    %v2136 = vmul.f32 %v2131, 1.442695
    %v2137 = vpow.pop %v2136
    %v2138 = vadd.f32 %v2133, 1.0
    %v2139 = vadd.f32 %v2135, 1.0
    %v2140 = vadd.f32 %v2137, 1.0
    %v2141 = vrcp.pop %v2138
    %v2142 = vmul.f32 1.0, %v2141
    %v2143 = vrcp.pop %v2139
    %v2144 = vmul.f32 1.0, %v2143
    %v2145 = vrcp.pop %v2140
    %v2146 = vmul.f32 1.0, %v2145
    %v2147 = vtanh.pop %v2128
    %v2148 = vmul.f32 %v2144, %v1842
    %v2149 = vmul.f32 %v2142, %v2147
    %v2150 = vadd.f32 %v2148, %v2149
    %v2151 = vtanh.pop %v2150
    %v2152 = vmul.f32 %v2146, %v2151
    %2153 = vst [vmem:[#allocation3 + $0x20] sm:$0xff] %v2152
    %v2154 = vld [vmem:[#allocation2 + $0xa0] sm:$0xff]
    %v2155 = vld [vmem:[#allocation2 + $0xa8] sm:$0xff]
    %v2156 = vld [vmem:[#allocation2 + $0xb0] sm:$0xff]
    %v2157 = vld [vmem:[#allocation2 + $0xb8] sm:$0xff]
    %v2158 = vpack.c.bf16 %v2152, %v2152
    %v2159 = vld [vmem:[%s2] sm:$0xff]
    %v2160 = vld [vmem:[%s2 + $0x8] sm:$0xff]
    %v2161 = vld [vmem:[%s2 + $0x10] sm:$0xff]
    %v2162 = vld [vmem:[%s2 + $0x18] sm:$0xff]
    %v2163 = vld [vmem:[%s2 + $0x20] sm:$0xff]
    %v2164 = vld [vmem:[%s2 + $0x28] sm:$0xff]
    %v2165 = vld [vmem:[%s2 + $0x30] sm:$0xff]
    %v2166 = vld [vmem:[%s2 + $0x38] sm:$0xff]
    %v2167 = vld [vmem:[%s2 + $0x40] sm:$0xff]
    %v2168 = vld [vmem:[%s2 + $0x48] sm:$0xff]
    %v2169 = vld [vmem:[%s2 + $0x50] sm:$0xff]
    %v2170 = vld [vmem:[%s2 + $0x58] sm:$0xff]
    %v2171 = vld [vmem:[%s2 + $0x60] sm:$0xff]
    %v2172 = vld [vmem:[%s2 + $0x68] sm:$0xff]
    %v2173 = vld [vmem:[%s2 + $0x70] sm:$0xff]
    %v2174 = vld [vmem:[%s2 + $0x78] sm:$0xff]
    %v2175 = vld [vmem:[%s2 + $0x80] sm:$0xff]
    %v2176 = vld [vmem:[%s2 + $0x88] sm:$0xff]
    %v2177 = vld [vmem:[%s2 + $0x90] sm:$0xff]
    %v2178 = vld [vmem:[%s2 + $0x98] sm:$0xff]
    %v2179 = vld [vmem:[%s2 + $0xa0] sm:$0xff]
    %v2180 = vld [vmem:[%s2 + $0xa8] sm:$0xff]
    %v2181 = vld [vmem:[%s2 + $0xb0] sm:$0xff]
    %v2182 = vld [vmem:[%s2 + $0xb8] sm:$0xff]
    %v2183 = vld [vmem:[%s2 + $0xc0] sm:$0xff]
    %v2184 = vld [vmem:[%s2 + $0xc8] sm:$0xff]
    %v2185 = vld [vmem:[%s2 + $0xd0] sm:$0xff]
    %v2186 = vld [vmem:[%s2 + $0xd8] sm:$0xff]
    %v2187 = vld [vmem:[%s2 + $0xe0] sm:$0xff]
    %v2188 = vld [vmem:[%s2 + $0xe8] sm:$0xff]
    %v2189 = vld [vmem:[%s2 + $0xf0] sm:$0xff]
    %v2190 = vld [vmem:[%s2 + $0xf8] sm:$0xff]
    %v2223 = vunpack.c.l.b16 %v2159
    %v2224 = vunpack.c.h.b16 %v2159
    %v2225 = vunpack.c.l.b16 %v2160
    %v2226 = vunpack.c.h.b16 %v2160
    %v2227 = vunpack.c.l.b16 %v2161
    %v2228 = vunpack.c.h.b16 %v2161
    %v2229 = vunpack.c.l.b16 %v2162
    %v2230 = vunpack.c.h.b16 %v2162
    %v2231 = vunpack.c.l.b16 %v2163
    %v2232 = vunpack.c.h.b16 %v2163
    %v2233 = vunpack.c.l.b16 %v2164
    %v2234 = vunpack.c.h.b16 %v2164
    %v2235 = vunpack.c.l.b16 %v2165
    %v2236 = vunpack.c.h.b16 %v2165
    %v2237 = vunpack.c.l.b16 %v2166
    %v2238 = vunpack.c.h.b16 %v2166
    %v2239 = vunpack.c.l.b16 %v2167
    %v2240 = vunpack.c.h.b16 %v2167
    %v2241 = vunpack.c.l.b16 %v2168
    %v2242 = vunpack.c.h.b16 %v2168
    %v2243 = vunpack.c.l.b16 %v2169
    %v2244 = vunpack.c.h.b16 %v2169
    %v2245 = vunpack.c.l.b16 %v2170
    %v2246 = vunpack.c.h.b16 %v2170
    %v2247 = vunpack.c.l.b16 %v2171
    %v2248 = vunpack.c.h.b16 %v2171
    %v2249 = vunpack.c.l.b16 %v2172
    %v2250 = vunpack.c.h.b16 %v2172
    %v2251 = vunpack.c.l.b16 %v2173
    %v2252 = vunpack.c.h.b16 %v2173
    %v2253 = vunpack.c.l.b16 %v2174
    %v2254 = vunpack.c.h.b16 %v2174
    %v2255 = vunpack.c.l.b16 %v2175
    %v2256 = vunpack.c.h.b16 %v2175
    %v2257 = vunpack.c.l.b16 %v2176
    %v2258 = vunpack.c.h.b16 %v2176
    %v2259 = vunpack.c.l.b16 %v2177
    %v2260 = vunpack.c.h.b16 %v2177
    %v2261 = vunpack.c.l.b16 %v2178
    %v2262 = vunpack.c.h.b16 %v2178
    %v2263 = vunpack.c.l.b16 %v2179
    %v2264 = vunpack.c.h.b16 %v2179
    %v2265 = vunpack.c.l.b16 %v2180
    %v2266 = vunpack.c.h.b16 %v2180
    %v2267 = vunpack.c.l.b16 %v2181
    %v2268 = vunpack.c.h.b16 %v2181
    %v2269 = vunpack.c.l.b16 %v2182
    %v2270 = vunpack.c.h.b16 %v2182
    %v2271 = vunpack.c.l.b16 %v2183
    %v2272 = vunpack.c.h.b16 %v2183
    %v2273 = vunpack.c.l.b16 %v2184
    %v2274 = vunpack.c.h.b16 %v2184
    %v2275 = vunpack.c.l.b16 %v2185
    %v2276 = vunpack.c.h.b16 %v2185
    %v2277 = vunpack.c.l.b16 %v2186
    %v2278 = vunpack.c.h.b16 %v2186
    %v2279 = vunpack.c.l.b16 %v2187
    %v2280 = vunpack.c.h.b16 %v2187
    %v2281 = vunpack.c.l.b16 %v2188
    %v2282 = vunpack.c.h.b16 %v2188
    %v2283 = vunpack.c.l.b16 %v2189
    %v2284 = vunpack.c.h.b16 %v2189
    %v2285 = vunpack.c.l.b16 %v2190
    %v2286 = vunpack.c.h.b16 %v2190
    %v2287 = vpack.c.b16 %v2227, %v2223
    %v2288 = vpack.c.b16 %v2228, %v2224
    %v2289 = vpack.c.b16 %v2229, %v2225
    %v2290 = vpack.c.b16 %v2230, %v2226
    %v2291 = vpack.c.b16 %v2235, %v2231
    %v2292 = vpack.c.b16 %v2236, %v2232
    %v2293 = vpack.c.b16 %v2237, %v2233
    %v2294 = vpack.c.b16 %v2238, %v2234
    %v2295 = vpack.c.b16 %v2243, %v2239
    %v2296 = vpack.c.b16 %v2244, %v2240
    %v2297 = vpack.c.b16 %v2245, %v2241
    %v2298 = vpack.c.b16 %v2246, %v2242
    %v2299 = vpack.c.b16 %v2251, %v2247
    %v2300 = vpack.c.b16 %v2252, %v2248
    %v2301 = vpack.c.b16 %v2253, %v2249
    %v2302 = vpack.c.b16 %v2254, %v2250
    %v2303 = vpack.c.b16 %v2259, %v2255
    %v2304 = vpack.c.b16 %v2260, %v2256
    %v2305 = vpack.c.b16 %v2261, %v2257
    %v2306 = vpack.c.b16 %v2262, %v2258
    %v2307 = vpack.c.b16 %v2267, %v2263
    %v2308 = vpack.c.b16 %v2268, %v2264
    %v2309 = vpack.c.b16 %v2269, %v2265
    %v2310 = vpack.c.b16 %v2270, %v2266
    %v2311 = vpack.c.b16 %v2275, %v2271
    %v2312 = vpack.c.b16 %v2276, %v2272
    %v2313 = vpack.c.b16 %v2277, %v2273
    %v2314 = vpack.c.b16 %v2278, %v2274
    %v2315 = vpack.c.b16 %v2283, %v2279
    %v2316 = vpack.c.b16 %v2284, %v2280
    %v2317 = vpack.c.b16 %v2285, %v2281
    %v2318 = vpack.c.b16 %v2286, %v2282
    %2351 = vmatprep.subr.bf16.mxu0 %v2316
    %2352 = vmatpush1.bf16.msra.mxu0 %v2315
    %2353 = vmatprep.subr.bf16.mxu0 %v2312
    %2354 = vmatpush1.bf16.msra.mxu0 %v2311
    %2355 = vmatprep.subr.bf16.mxu0 %v2308
    %2356 = vmatpush1.bf16.msra.mxu0 %v2307
    %2357 = vmatprep.subr.bf16.mxu0 %v2304
    %2358 = vmatpush1.bf16.msra.mxu0 %v2303
    %2359 = vmatprep.subr.bf16.mxu0 %v2300
    %2360 = vmatpush1.bf16.msra.mxu0 %v2299
    %2361 = vmatprep.subr.bf16.mxu0 %v2296
    %2362 = vmatpush1.bf16.msra.mxu0 %v2295
    %2363 = vmatprep.subr.bf16.mxu0 %v2292
    %2364 = vmatpush1.bf16.msra.mxu0 %v2291
    %2365 = vmatprep.subr.bf16.mxu0 %v2288
    %2366 = vmatpush1.bf16.msra.mxu0 %v2287
    %2367 = vmatprep.subr.bf16.mxu0 0
    %2368 = vmatpush2.bf16.msra.mxu0 0
    %2369 = vmatprep.subr.bf16.mxu0 0
    %2370 = vmatpush2.bf16.msra.mxu0 0
    %2371 = vmatprep.subr.bf16.mxu0 0
    %2372 = vmatpush2.bf16.msra.mxu0 0
    %2373 = vmatprep.subr.bf16.mxu0 0
    %2374 = vmatpush2.bf16.msra.mxu0 0
    %2375 = vmatprep.subr.bf16.mxu0 0
    %2376 = vmatpush2.bf16.msra.mxu0 0
    %2377 = vmatprep.subr.bf16.mxu0 0
    %2378 = vmatpush2.bf16.msra.mxu0 0
    %2379 = vmatprep.subr.bf16.mxu0 0
    %2380 = vmatpush2.bf16.msra.mxu0 0
    %2381 = vmatprep.subr.bf16.mxu0 0
    %2382 = vmatpush2.bf16.msra.mxu0 0
    %2383 = vmatprep.mubr.bf16.mxu0 0
    %2384 = vmatmul.mubr.bf16.gmra.mxu0 %v2158
    %v2385 = vpop.f32.mrf.mxu0
    %v2386 = vadd.f32 0.0, %v2385
    %v2387 = vpop.f32.mrf.mxu0
    %v2388 = vadd.f32 0.0, %v2387
    %v2389 = vpop.f32.mrf.mxu0
    %v2390 = vpop.f32.mrf.mxu0
    %2391 = vdwg.mxu0
    %2392 = vmatprep.subr.bf16.mxu0 %v2318
    %2393 = vmatpush1.bf16.msra.mxu0 %v2317
    %2394 = vmatprep.subr.bf16.mxu0 %v2314
    %2395 = vmatpush1.bf16.msra.mxu0 %v2313
    %2396 = vmatprep.subr.bf16.mxu0 %v2310
    %2397 = vmatpush1.bf16.msra.mxu0 %v2309
    %2398 = vmatprep.subr.bf16.mxu0 %v2306
    %2399 = vmatpush1.bf16.msra.mxu0 %v2305
    %2400 = vmatprep.subr.bf16.mxu0 %v2302
    %2401 = vmatpush1.bf16.msra.mxu0 %v2301
    %2402 = vmatprep.subr.bf16.mxu0 %v2298
    %2403 = vmatpush1.bf16.msra.mxu0 %v2297
    %2404 = vmatprep.subr.bf16.mxu0 %v2294
    %2405 = vmatpush1.bf16.msra.mxu0 %v2293
    %2406 = vmatprep.subr.bf16.mxu0 %v2290
    %2407 = vmatpush1.bf16.msra.mxu0 %v2289
    %2408 = vmatprep.subr.bf16.mxu0 0
    %2409 = vmatpush2.bf16.msra.mxu0 0
    %2410 = vmatprep.subr.bf16.mxu0 0
    %2411 = vmatpush2.bf16.msra.mxu0 0
    %2412 = vmatprep.subr.bf16.mxu0 0
    %2413 = vmatpush2.bf16.msra.mxu0 0
    %2414 = vmatprep.subr.bf16.mxu0 0
    %2415 = vmatpush2.bf16.msra.mxu0 0
    %2416 = vmatprep.subr.bf16.mxu0 0
    %2417 = vmatpush2.bf16.msra.mxu0 0
    %2418 = vmatprep.subr.bf16.mxu0 0
    %2419 = vmatpush2.bf16.msra.mxu0 0
    %2420 = vmatprep.subr.bf16.mxu0 0
    %2421 = vmatpush2.bf16.msra.mxu0 0
    %2422 = vmatprep.subr.bf16.mxu0 0
    %2423 = vmatpush2.bf16.msra.mxu0 0
    %2424 = vmatprep.mubr.bf16.mxu0 0
    %2425 = vmatmul.mubr.bf16.gmra.mxu0 %v2158
    %v2426 = vpop.f32.mrf.mxu0
    %v2427 = vadd.f32 0.0, %v2426
    %v2428 = vpop.f32.mrf.mxu0
    %v2429 = vadd.f32 0.0, %v2428
    %v2430 = vpop.f32.mrf.mxu0
    %v2431 = vpop.f32.mrf.mxu0
    %2432 = vdwg.mxu0
    %v2433 = vadd.f32 %v2154, %v2386
    %v2434 = vadd.f32 %v2155, %v2388
    %v2435 = vadd.f32 %v2156, %v2427
    %v2436 = vadd.f32 %v2157, %v2429
    %v2437 = vxor.u32 %v2433, 2147483648
    %v2438 = vxor.u32 %v2434, 2147483648
    %v2439 = vxor.u32 %v2435, 2147483648
    %v2440 = vmul.f32 %v2437, 1.442695
    %v2441 = vpow.pop %v2440
    %v2442 = vmul.f32 %v2438, 1.442695
    %v2443 = vpow.pop %v2442
    %v2444 = vmul.f32 %v2439, 1.442695
    %v2445 = vpow.pop %v2444
    %v2446 = vadd.f32 %v2441, 1.0
    %v2447 = vadd.f32 %v2443, 1.0
    %v2448 = vadd.f32 %v2445, 1.0
    %v2449 = vrcp.pop %v2446
    %v2450 = vmul.f32 1.0, %v2449
    %v2451 = vrcp.pop %v2447
    %v2452 = vmul.f32 1.0, %v2451
    %v2453 = vrcp.pop %v2448
    %v2454 = vmul.f32 1.0, %v2453
    %v2455 = vtanh.pop %v2436
    %v2456 = vmul.f32 %v2452, %v2150
    %v2457 = vmul.f32 %v2450, %v2455
    %v2458 = vadd.f32 %v2456, %v2457
    %v2459 = vtanh.pop %v2458
    %v2460 = vmul.f32 %v2454, %v2459
    %2461 = vst [vmem:[#allocation3 + $0x28] sm:$0xff] %v2460
    %v2462 = vld [vmem:[#allocation2 + $0xc0] sm:$0xff]
    %v2463 = vld [vmem:[#allocation2 + $0xc8] sm:$0xff]
    %v2464 = vld [vmem:[#allocation2 + $0xd0] sm:$0xff]
    %v2465 = vld [vmem:[#allocation2 + $0xd8] sm:$0xff]
    %v2466 = vpack.c.bf16 %v2460, %v2460
    %v2467 = vld [vmem:[%s2] sm:$0xff]
    %v2468 = vld [vmem:[%s2 + $0x8] sm:$0xff]
    %v2469 = vld [vmem:[%s2 + $0x10] sm:$0xff]
    %v2470 = vld [vmem:[%s2 + $0x18] sm:$0xff]
    %v2471 = vld [vmem:[%s2 + $0x20] sm:$0xff]
    %v2472 = vld [vmem:[%s2 + $0x28] sm:$0xff]
    %v2473 = vld [vmem:[%s2 + $0x30] sm:$0xff]
    %v2474 = vld [vmem:[%s2 + $0x38] sm:$0xff]
    %v2475 = vld [vmem:[%s2 + $0x40] sm:$0xff]
    %v2476 = vld [vmem:[%s2 + $0x48] sm:$0xff]
    %v2477 = vld [vmem:[%s2 + $0x50] sm:$0xff]
    %v2478 = vld [vmem:[%s2 + $0x58] sm:$0xff]
    %v2479 = vld [vmem:[%s2 + $0x60] sm:$0xff]
    %v2480 = vld [vmem:[%s2 + $0x68] sm:$0xff]
    %v2481 = vld [vmem:[%s2 + $0x70] sm:$0xff]
    %v2482 = vld [vmem:[%s2 + $0x78] sm:$0xff]
    %v2483 = vld [vmem:[%s2 + $0x80] sm:$0xff]
    %v2484 = vld [vmem:[%s2 + $0x88] sm:$0xff]
    %v2485 = vld [vmem:[%s2 + $0x90] sm:$0xff]
    %v2486 = vld [vmem:[%s2 + $0x98] sm:$0xff]
    %v2487 = vld [vmem:[%s2 + $0xa0] sm:$0xff]
    %v2488 = vld [vmem:[%s2 + $0xa8] sm:$0xff]
    %v2489 = vld [vmem:[%s2 + $0xb0] sm:$0xff]
    %v2490 = vld [vmem:[%s2 + $0xb8] sm:$0xff]
    %v2491 = vld [vmem:[%s2 + $0xc0] sm:$0xff]
    %v2492 = vld [vmem:[%s2 + $0xc8] sm:$0xff]
    %v2493 = vld [vmem:[%s2 + $0xd0] sm:$0xff]
    %v2494 = vld [vmem:[%s2 + $0xd8] sm:$0xff]
    %v2495 = vld [vmem:[%s2 + $0xe0] sm:$0xff]
    %v2496 = vld [vmem:[%s2 + $0xe8] sm:$0xff]
    %v2497 = vld [vmem:[%s2 + $0xf0] sm:$0xff]
    %v2498 = vld [vmem:[%s2 + $0xf8] sm:$0xff]
    %v2531 = vunpack.c.l.b16 %v2467
    %v2532 = vunpack.c.h.b16 %v2467
    %v2533 = vunpack.c.l.b16 %v2468
    %v2534 = vunpack.c.h.b16 %v2468
    %v2535 = vunpack.c.l.b16 %v2469
    %v2536 = vunpack.c.h.b16 %v2469
    %v2537 = vunpack.c.l.b16 %v2470
    %v2538 = vunpack.c.h.b16 %v2470
    %v2539 = vunpack.c.l.b16 %v2471
    %v2540 = vunpack.c.h.b16 %v2471
    %v2541 = vunpack.c.l.b16 %v2472
    %v2542 = vunpack.c.h.b16 %v2472
    %v2543 = vunpack.c.l.b16 %v2473
    %v2544 = vunpack.c.h.b16 %v2473
    %v2545 = vunpack.c.l.b16 %v2474
    %v2546 = vunpack.c.h.b16 %v2474
    %v2547 = vunpack.c.l.b16 %v2475
    %v2548 = vunpack.c.h.b16 %v2475
    %v2549 = vunpack.c.l.b16 %v2476
    %v2550 = vunpack.c.h.b16 %v2476
    %v2551 = vunpack.c.l.b16 %v2477
    %v2552 = vunpack.c.h.b16 %v2477
    %v2553 = vunpack.c.l.b16 %v2478
    %v2554 = vunpack.c.h.b16 %v2478
    %v2555 = vunpack.c.l.b16 %v2479
    %v2556 = vunpack.c.h.b16 %v2479
    %v2557 = vunpack.c.l.b16 %v2480
    %v2558 = vunpack.c.h.b16 %v2480
    %v2559 = vunpack.c.l.b16 %v2481
    %v2560 = vunpack.c.h.b16 %v2481
    %v2561 = vunpack.c.l.b16 %v2482
    %v2562 = vunpack.c.h.b16 %v2482
    %v2563 = vunpack.c.l.b16 %v2483
    %v2564 = vunpack.c.h.b16 %v2483
    %v2565 = vunpack.c.l.b16 %v2484
    %v2566 = vunpack.c.h.b16 %v2484
    %v2567 = vunpack.c.l.b16 %v2485
    %v2568 = vunpack.c.h.b16 %v2485
    %v2569 = vunpack.c.l.b16 %v2486
    %v2570 = vunpack.c.h.b16 %v2486
    %v2571 = vunpack.c.l.b16 %v2487
    %v2572 = vunpack.c.h.b16 %v2487
    %v2573 = vunpack.c.l.b16 %v2488
    %v2574 = vunpack.c.h.b16 %v2488
    %v2575 = vunpack.c.l.b16 %v2489
    %v2576 = vunpack.c.h.b16 %v2489
    %v2577 = vunpack.c.l.b16 %v2490
    %v2578 = vunpack.c.h.b16 %v2490
    %v2579 = vunpack.c.l.b16 %v2491
    %v2580 = vunpack.c.h.b16 %v2491
    %v2581 = vunpack.c.l.b16 %v2492
    %v2582 = vunpack.c.h.b16 %v2492
    %v2583 = vunpack.c.l.b16 %v2493
    %v2584 = vunpack.c.h.b16 %v2493
    %v2585 = vunpack.c.l.b16 %v2494
    %v2586 = vunpack.c.h.b16 %v2494
    %v2587 = vunpack.c.l.b16 %v2495
    %v2588 = vunpack.c.h.b16 %v2495
    %v2589 = vunpack.c.l.b16 %v2496
    %v2590 = vunpack.c.h.b16 %v2496
    %v2591 = vunpack.c.l.b16 %v2497
    %v2592 = vunpack.c.h.b16 %v2497
    %v2593 = vunpack.c.l.b16 %v2498
    %v2594 = vunpack.c.h.b16 %v2498
    %v2595 = vpack.c.b16 %v2535, %v2531
    %v2596 = vpack.c.b16 %v2536, %v2532
    %v2597 = vpack.c.b16 %v2537, %v2533
    %v2598 = vpack.c.b16 %v2538, %v2534
    %v2599 = vpack.c.b16 %v2543, %v2539
    %v2600 = vpack.c.b16 %v2544, %v2540
    %v2601 = vpack.c.b16 %v2545, %v2541
    %v2602 = vpack.c.b16 %v2546, %v2542
    %v2603 = vpack.c.b16 %v2551, %v2547
    %v2604 = vpack.c.b16 %v2552, %v2548
    %v2605 = vpack.c.b16 %v2553, %v2549
    %v2606 = vpack.c.b16 %v2554, %v2550
    %v2607 = vpack.c.b16 %v2559, %v2555
    %v2608 = vpack.c.b16 %v2560, %v2556
    %v2609 = vpack.c.b16 %v2561, %v2557
    %v2610 = vpack.c.b16 %v2562, %v2558
    %v2611 = vpack.c.b16 %v2567, %v2563
    %v2612 = vpack.c.b16 %v2568, %v2564
    %v2613 = vpack.c.b16 %v2569, %v2565
    %v2614 = vpack.c.b16 %v2570, %v2566
    %v2615 = vpack.c.b16 %v2575, %v2571
    %v2616 = vpack.c.b16 %v2576, %v2572
    %v2617 = vpack.c.b16 %v2577, %v2573
    %v2618 = vpack.c.b16 %v2578, %v2574
    %v2619 = vpack.c.b16 %v2583, %v2579
    %v2620 = vpack.c.b16 %v2584, %v2580
    %v2621 = vpack.c.b16 %v2585, %v2581
    %v2622 = vpack.c.b16 %v2586, %v2582
    %v2623 = vpack.c.b16 %v2591, %v2587
    %v2624 = vpack.c.b16 %v2592, %v2588
    %v2625 = vpack.c.b16 %v2593, %v2589
    %v2626 = vpack.c.b16 %v2594, %v2590
    %2659 = vmatprep.subr.bf16.mxu0 %v2624
    %2660 = vmatpush1.bf16.msra.mxu0 %v2623
    %2661 = vmatprep.subr.bf16.mxu0 %v2620
    %2662 = vmatpush1.bf16.msra.mxu0 %v2619
    %2663 = vmatprep.subr.bf16.mxu0 %v2616
    %2664 = vmatpush1.bf16.msra.mxu0 %v2615
    %2665 = vmatprep.subr.bf16.mxu0 %v2612
    %2666 = vmatpush1.bf16.msra.mxu0 %v2611
    %2667 = vmatprep.subr.bf16.mxu0 %v2608
    %2668 = vmatpush1.bf16.msra.mxu0 %v2607
    %2669 = vmatprep.subr.bf16.mxu0 %v2604
    %2670 = vmatpush1.bf16.msra.mxu0 %v2603
    %2671 = vmatprep.subr.bf16.mxu0 %v2600
    %2672 = vmatpush1.bf16.msra.mxu0 %v2599
    %2673 = vmatprep.subr.bf16.mxu0 %v2596
    %2674 = vmatpush1.bf16.msra.mxu0 %v2595
    %2675 = vmatprep.subr.bf16.mxu0 0
    %2676 = vmatpush2.bf16.msra.mxu0 0
    %2677 = vmatprep.subr.bf16.mxu0 0
    %2678 = vmatpush2.bf16.msra.mxu0 0
    %2679 = vmatprep.subr.bf16.mxu0 0
    %2680 = vmatpush2.bf16.msra.mxu0 0
    %2681 = vmatprep.subr.bf16.mxu0 0
    %2682 = vmatpush2.bf16.msra.mxu0 0
    %2683 = vmatprep.subr.bf16.mxu0 0
    %2684 = vmatpush2.bf16.msra.mxu0 0
    %2685 = vmatprep.subr.bf16.mxu0 0
    %2686 = vmatpush2.bf16.msra.mxu0 0
    %2687 = vmatprep.subr.bf16.mxu0 0
    %2688 = vmatpush2.bf16.msra.mxu0 0
    %2689 = vmatprep.subr.bf16.mxu0 0
    %2690 = vmatpush2.bf16.msra.mxu0 0
    %2691 = vmatprep.mubr.bf16.mxu0 0
    %2692 = vmatmul.mubr.bf16.gmra.mxu0 %v2466
    %v2693 = vpop.f32.mrf.mxu0
    %v2694 = vadd.f32 0.0, %v2693
    %v2695 = vpop.f32.mrf.mxu0
    %v2696 = vadd.f32 0.0, %v2695
    %v2697 = vpop.f32.mrf.mxu0
    %v2698 = vpop.f32.mrf.mxu0
    %2699 = vdwg.mxu0
    %2700 = vmatprep.subr.bf16.mxu0 %v2626
    %2701 = vmatpush1.bf16.msra.mxu0 %v2625
    %2702 = vmatprep.subr.bf16.mxu0 %v2622
    %2703 = vmatpush1.bf16.msra.mxu0 %v2621
    %2704 = vmatprep.subr.bf16.mxu0 %v2618
    %2705 = vmatpush1.bf16.msra.mxu0 %v2617
    %2706 = vmatprep.subr.bf16.mxu0 %v2614
    %2707 = vmatpush1.bf16.msra.mxu0 %v2613
    %2708 = vmatprep.subr.bf16.mxu0 %v2610
    %2709 = vmatpush1.bf16.msra.mxu0 %v2609
    %2710 = vmatprep.subr.bf16.mxu0 %v2606
    %2711 = vmatpush1.bf16.msra.mxu0 %v2605
    %2712 = vmatprep.subr.bf16.mxu0 %v2602
    %2713 = vmatpush1.bf16.msra.mxu0 %v2601
    %2714 = vmatprep.subr.bf16.mxu0 %v2598
    %2715 = vmatpush1.bf16.msra.mxu0 %v2597
    %2716 = vmatprep.subr.bf16.mxu0 0
    %2717 = vmatpush2.bf16.msra.mxu0 0
    %2718 = vmatprep.subr.bf16.mxu0 0
    %2719 = vmatpush2.bf16.msra.mxu0 0
    %2720 = vmatprep.subr.bf16.mxu0 0
    %2721 = vmatpush2.bf16.msra.mxu0 0
    %2722 = vmatprep.subr.bf16.mxu0 0
    %2723 = vmatpush2.bf16.msra.mxu0 0
    %2724 = vmatprep.subr.bf16.mxu0 0
    %2725 = vmatpush2.bf16.msra.mxu0 0
    %2726 = vmatprep.subr.bf16.mxu0 0
    %2727 = vmatpush2.bf16.msra.mxu0 0
    %2728 = vmatprep.subr.bf16.mxu0 0
    %2729 = vmatpush2.bf16.msra.mxu0 0
    %2730 = vmatprep.subr.bf16.mxu0 0
    %2731 = vmatpush2.bf16.msra.mxu0 0
    %2732 = vmatprep.mubr.bf16.mxu0 0
    %2733 = vmatmul.mubr.bf16.gmra.mxu0 %v2466
    %v2734 = vpop.f32.mrf.mxu0
    %v2735 = vadd.f32 0.0, %v2734
    %v2736 = vpop.f32.mrf.mxu0
    %v2737 = vadd.f32 0.0, %v2736
    %v2738 = vpop.f32.mrf.mxu0
    %v2739 = vpop.f32.mrf.mxu0
    %2740 = vdwg.mxu0
    %v2741 = vadd.f32 %v2462, %v2694
    %v2742 = vadd.f32 %v2463, %v2696
    %v2743 = vadd.f32 %v2464, %v2735
    %v2744 = vadd.f32 %v2465, %v2737
    %v2745 = vxor.u32 %v2741, 2147483648
    %v2746 = vxor.u32 %v2742, 2147483648
    %v2747 = vxor.u32 %v2743, 2147483648
    %v2748 = vmul.f32 %v2745, 1.442695
    %v2749 = vpow.pop %v2748
    %v2750 = vmul.f32 %v2746, 1.442695
    %v2751 = vpow.pop %v2750
    %v2752 = vmul.f32 %v2747, 1.442695
    %v2753 = vpow.pop %v2752
    %v2754 = vadd.f32 %v2749, 1.0
    %v2755 = vadd.f32 %v2751, 1.0
    %v2756 = vadd.f32 %v2753, 1.0
    %v2757 = vrcp.pop %v2754
    %v2758 = vmul.f32 1.0, %v2757
    %v2759 = vrcp.pop %v2755
    %v2760 = vmul.f32 1.0, %v2759
    %v2761 = vrcp.pop %v2756
    %v2762 = vmul.f32 1.0, %v2761
    %v2763 = vtanh.pop %v2744
    %v2764 = vmul.f32 %v2760, %v2458
    %v2765 = vmul.f32 %v2758, %v2763
    %v2766 = vadd.f32 %v2764, %v2765
    %v2767 = vtanh.pop %v2766
    %v2768 = vmul.f32 %v2762, %v2767
    %2769 = vst [vmem:[#allocation3 + $0x30] sm:$0xff] %v2768
    %v2770 = vld [vmem:[#allocation2 + $0xe0] sm:$0xff]
    %v2771 = vld [vmem:[#allocation2 + $0xe8] sm:$0xff]
    %v2772 = vld [vmem:[#allocation2 + $0xf0] sm:$0xff]
    %v2773 = vld [vmem:[#allocation2 + $0xf8] sm:$0xff]
    %v2774 = vpack.c.bf16 %v2768, %v2768
    %v2775 = vld [vmem:[%s2] sm:$0xff]
    %v2776 = vld [vmem:[%s2 + $0x8] sm:$0xff]
    %v2777 = vld [vmem:[%s2 + $0x10] sm:$0xff]
    %v2778 = vld [vmem:[%s2 + $0x18] sm:$0xff]
    %v2779 = vld [vmem:[%s2 + $0x20] sm:$0xff]
    %v2780 = vld [vmem:[%s2 + $0x28] sm:$0xff]
    %v2781 = vld [vmem:[%s2 + $0x30] sm:$0xff]
    %v2782 = vld [vmem:[%s2 + $0x38] sm:$0xff]
    %v2783 = vld [vmem:[%s2 + $0x40] sm:$0xff]
    %v2784 = vld [vmem:[%s2 + $0x48] sm:$0xff]
    %v2785 = vld [vmem:[%s2 + $0x50] sm:$0xff]
    %v2786 = vld [vmem:[%s2 + $0x58] sm:$0xff]
    %v2787 = vld [vmem:[%s2 + $0x60] sm:$0xff]
    %v2788 = vld [vmem:[%s2 + $0x68] sm:$0xff]
    %v2789 = vld [vmem:[%s2 + $0x70] sm:$0xff]
    %v2790 = vld [vmem:[%s2 + $0x78] sm:$0xff]
    %v2791 = vld [vmem:[%s2 + $0x80] sm:$0xff]
    %v2792 = vld [vmem:[%s2 + $0x88] sm:$0xff]
    %v2793 = vld [vmem:[%s2 + $0x90] sm:$0xff]
    %v2794 = vld [vmem:[%s2 + $0x98] sm:$0xff]
    %v2795 = vld [vmem:[%s2 + $0xa0] sm:$0xff]
    %v2796 = vld [vmem:[%s2 + $0xa8] sm:$0xff]
    %v2797 = vld [vmem:[%s2 + $0xb0] sm:$0xff]
    %v2798 = vld [vmem:[%s2 + $0xb8] sm:$0xff]
    %v2799 = vld [vmem:[%s2 + $0xc0] sm:$0xff]
    %v2800 = vld [vmem:[%s2 + $0xc8] sm:$0xff]
    %v2801 = vld [vmem:[%s2 + $0xd0] sm:$0xff]
    %v2802 = vld [vmem:[%s2 + $0xd8] sm:$0xff]
    %v2803 = vld [vmem:[%s2 + $0xe0] sm:$0xff]
    %v2804 = vld [vmem:[%s2 + $0xe8] sm:$0xff]
    %v2805 = vld [vmem:[%s2 + $0xf0] sm:$0xff]
    %v2806 = vld [vmem:[%s2 + $0xf8] sm:$0xff]
    %v2839 = vunpack.c.l.b16 %v2775
    %v2840 = vunpack.c.h.b16 %v2775
    %v2841 = vunpack.c.l.b16 %v2776
    %v2842 = vunpack.c.h.b16 %v2776
    %v2843 = vunpack.c.l.b16 %v2777
    %v2844 = vunpack.c.h.b16 %v2777
    %v2845 = vunpack.c.l.b16 %v2778
    %v2846 = vunpack.c.h.b16 %v2778
    %v2847 = vunpack.c.l.b16 %v2779
    %v2848 = vunpack.c.h.b16 %v2779
    %v2849 = vunpack.c.l.b16 %v2780
    %v2850 = vunpack.c.h.b16 %v2780
    %v2851 = vunpack.c.l.b16 %v2781
    %v2852 = vunpack.c.h.b16 %v2781
    %v2853 = vunpack.c.l.b16 %v2782
    %v2854 = vunpack.c.h.b16 %v2782
    %v2855 = vunpack.c.l.b16 %v2783
    %v2856 = vunpack.c.h.b16 %v2783
    %v2857 = vunpack.c.l.b16 %v2784
    %v2858 = vunpack.c.h.b16 %v2784
    %v2859 = vunpack.c.l.b16 %v2785
    %v2860 = vunpack.c.h.b16 %v2785
    %v2861 = vunpack.c.l.b16 %v2786
    %v2862 = vunpack.c.h.b16 %v2786
    %v2863 = vunpack.c.l.b16 %v2787
    %v2864 = vunpack.c.h.b16 %v2787
    %v2865 = vunpack.c.l.b16 %v2788
    %v2866 = vunpack.c.h.b16 %v2788
    %v2867 = vunpack.c.l.b16 %v2789
    %v2868 = vunpack.c.h.b16 %v2789
    %v2869 = vunpack.c.l.b16 %v2790
    %v2870 = vunpack.c.h.b16 %v2790
    %v2871 = vunpack.c.l.b16 %v2791
    %v2872 = vunpack.c.h.b16 %v2791
    %v2873 = vunpack.c.l.b16 %v2792
    %v2874 = vunpack.c.h.b16 %v2792
    %v2875 = vunpack.c.l.b16 %v2793
    %v2876 = vunpack.c.h.b16 %v2793
    %v2877 = vunpack.c.l.b16 %v2794
    %v2878 = vunpack.c.h.b16 %v2794
    %v2879 = vunpack.c.l.b16 %v2795
    %v2880 = vunpack.c.h.b16 %v2795
    %v2881 = vunpack.c.l.b16 %v2796
    %v2882 = vunpack.c.h.b16 %v2796
    %v2883 = vunpack.c.l.b16 %v2797
    %v2884 = vunpack.c.h.b16 %v2797
    %v2885 = vunpack.c.l.b16 %v2798
    %v2886 = vunpack.c.h.b16 %v2798
    %v2887 = vunpack.c.l.b16 %v2799
    %v2888 = vunpack.c.h.b16 %v2799
    %v2889 = vunpack.c.l.b16 %v2800
    %v2890 = vunpack.c.h.b16 %v2800
    %v2891 = vunpack.c.l.b16 %v2801
    %v2892 = vunpack.c.h.b16 %v2801
    %v2893 = vunpack.c.l.b16 %v2802
    %v2894 = vunpack.c.h.b16 %v2802
    %v2895 = vunpack.c.l.b16 %v2803
    %v2896 = vunpack.c.h.b16 %v2803
    %v2897 = vunpack.c.l.b16 %v2804
    %v2898 = vunpack.c.h.b16 %v2804
    %v2899 = vunpack.c.l.b16 %v2805
    %v2900 = vunpack.c.h.b16 %v2805
    %v2901 = vunpack.c.l.b16 %v2806
    %v2902 = vunpack.c.h.b16 %v2806
    %v2903 = vpack.c.b16 %v2843, %v2839
    %v2904 = vpack.c.b16 %v2844, %v2840
    %v2905 = vpack.c.b16 %v2845, %v2841
    %v2906 = vpack.c.b16 %v2846, %v2842
    %v2907 = vpack.c.b16 %v2851, %v2847
    %v2908 = vpack.c.b16 %v2852, %v2848
    %v2909 = vpack.c.b16 %v2853, %v2849
    %v2910 = vpack.c.b16 %v2854, %v2850
    %v2911 = vpack.c.b16 %v2859, %v2855
    %v2912 = vpack.c.b16 %v2860, %v2856
    %v2913 = vpack.c.b16 %v2861, %v2857
    %v2914 = vpack.c.b16 %v2862, %v2858
    %v2915 = vpack.c.b16 %v2867, %v2863
    %v2916 = vpack.c.b16 %v2868, %v2864
    %v2917 = vpack.c.b16 %v2869, %v2865
    %v2918 = vpack.c.b16 %v2870, %v2866
    %v2919 = vpack.c.b16 %v2875, %v2871
    %v2920 = vpack.c.b16 %v2876, %v2872
    %v2921 = vpack.c.b16 %v2877, %v2873
    %v2922 = vpack.c.b16 %v2878, %v2874
    %v2923 = vpack.c.b16 %v2883, %v2879
    %v2924 = vpack.c.b16 %v2884, %v2880
    %v2925 = vpack.c.b16 %v2885, %v2881
    %v2926 = vpack.c.b16 %v2886, %v2882
    %v2927 = vpack.c.b16 %v2891, %v2887
    %v2928 = vpack.c.b16 %v2892, %v2888
    %v2929 = vpack.c.b16 %v2893, %v2889
    %v2930 = vpack.c.b16 %v2894, %v2890
    %v2931 = vpack.c.b16 %v2899, %v2895
    %v2932 = vpack.c.b16 %v2900, %v2896
    %v2933 = vpack.c.b16 %v2901, %v2897
    %v2934 = vpack.c.b16 %v2902, %v2898
    %2967 = vmatprep.subr.bf16.mxu0 %v2932
    %2968 = vmatpush1.bf16.msra.mxu0 %v2931
    %2969 = vmatprep.subr.bf16.mxu0 %v2928
    %2970 = vmatpush1.bf16.msra.mxu0 %v2927
    %2971 = vmatprep.subr.bf16.mxu0 %v2924
    %2972 = vmatpush1.bf16.msra.mxu0 %v2923
    %2973 = vmatprep.subr.bf16.mxu0 %v2920
    %2974 = vmatpush1.bf16.msra.mxu0 %v2919
    %2975 = vmatprep.subr.bf16.mxu0 %v2916
    %2976 = vmatpush1.bf16.msra.mxu0 %v2915
    %2977 = vmatprep.subr.bf16.mxu0 %v2912
    %2978 = vmatpush1.bf16.msra.mxu0 %v2911
    %2979 = vmatprep.subr.bf16.mxu0 %v2908
    %2980 = vmatpush1.bf16.msra.mxu0 %v2907
    %2981 = vmatprep.subr.bf16.mxu0 %v2904
    %2982 = vmatpush1.bf16.msra.mxu0 %v2903
    %2983 = vmatprep.subr.bf16.mxu0 0
    %2984 = vmatpush2.bf16.msra.mxu0 0
    %2985 = vmatprep.subr.bf16.mxu0 0
    %2986 = vmatpush2.bf16.msra.mxu0 0
    %2987 = vmatprep.subr.bf16.mxu0 0
    %2988 = vmatpush2.bf16.msra.mxu0 0
    %2989 = vmatprep.subr.bf16.mxu0 0
    %2990 = vmatpush2.bf16.msra.mxu0 0
    %2991 = vmatprep.subr.bf16.mxu0 0
    %2992 = vmatpush2.bf16.msra.mxu0 0
    %2993 = vmatprep.subr.bf16.mxu0 0
    %2994 = vmatpush2.bf16.msra.mxu0 0
    %2995 = vmatprep.subr.bf16.mxu0 0
    %2996 = vmatpush2.bf16.msra.mxu0 0
    %2997 = vmatprep.subr.bf16.mxu0 0
    %2998 = vmatpush2.bf16.msra.mxu0 0
    %2999 = vmatprep.mubr.bf16.mxu0 0
    %3000 = vmatmul.mubr.bf16.gmra.mxu0 %v2774
    %v3001 = vpop.f32.mrf.mxu0
    %v3002 = vadd.f32 0.0, %v3001
    %v3003 = vpop.f32.mrf.mxu0
    %v3004 = vadd.f32 0.0, %v3003
    %v3005 = vpop.f32.mrf.mxu0
    %v3006 = vpop.f32.mrf.mxu0
    %3007 = vdwg.mxu0
    %3008 = vmatprep.subr.bf16.mxu0 %v2934
    %3009 = vmatpush1.bf16.msra.mxu0 %v2933
    %3010 = vmatprep.subr.bf16.mxu0 %v2930
    %3011 = vmatpush1.bf16.msra.mxu0 %v2929
    %3012 = vmatprep.subr.bf16.mxu0 %v2926
    %3013 = vmatpush1.bf16.msra.mxu0 %v2925
    %3014 = vmatprep.subr.bf16.mxu0 %v2922
    %3015 = vmatpush1.bf16.msra.mxu0 %v2921
    %3016 = vmatprep.subr.bf16.mxu0 %v2918
    %3017 = vmatpush1.bf16.msra.mxu0 %v2917
    %3018 = vmatprep.subr.bf16.mxu0 %v2914
    %3019 = vmatpush1.bf16.msra.mxu0 %v2913
    %3020 = vmatprep.subr.bf16.mxu0 %v2910
    %3021 = vmatpush1.bf16.msra.mxu0 %v2909
    %3022 = vmatprep.subr.bf16.mxu0 %v2906
    %3023 = vmatpush1.bf16.msra.mxu0 %v2905
    %3024 = vmatprep.subr.bf16.mxu0 0
    %3025 = vmatpush2.bf16.msra.mxu0 0
    %3026 = vmatprep.subr.bf16.mxu0 0
    %3027 = vmatpush2.bf16.msra.mxu0 0
    %3028 = vmatprep.subr.bf16.mxu0 0
    %3029 = vmatpush2.bf16.msra.mxu0 0
    %3030 = vmatprep.subr.bf16.mxu0 0
    %3031 = vmatpush2.bf16.msra.mxu0 0
    %3032 = vmatprep.subr.bf16.mxu0 0
    %3033 = vmatpush2.bf16.msra.mxu0 0
    %3034 = vmatprep.subr.bf16.mxu0 0
    %3035 = vmatpush2.bf16.msra.mxu0 0
    %3036 = vmatprep.subr.bf16.mxu0 0
    %3037 = vmatpush2.bf16.msra.mxu0 0
    %3038 = vmatprep.subr.bf16.mxu0 0
    %3039 = vmatpush2.bf16.msra.mxu0 0
    %3040 = vmatprep.mubr.bf16.mxu0 0
    %3041 = vmatmul.mubr.bf16.gmra.mxu0 %v2774
    %v3042 = vpop.f32.mrf.mxu0
    %v3043 = vadd.f32 0.0, %v3042
    %v3044 = vpop.f32.mrf.mxu0
    %v3045 = vadd.f32 0.0, %v3044
    %v3046 = vpop.f32.mrf.mxu0
    %v3047 = vpop.f32.mrf.mxu0
    %3048 = vdwg.mxu0
    %v3049 = vadd.f32 %v2770, %v3002
    %v3050 = vadd.f32 %v2771, %v3004
    %v3051 = vadd.f32 %v2772, %v3043
    %v3052 = vadd.f32 %v2773, %v3045
    %v3053 = vxor.u32 %v3049, 2147483648
    %v3054 = vxor.u32 %v3050, 2147483648
    %v3055 = vxor.u32 %v3051, 2147483648
    %v3056 = vmul.f32 %v3053, 1.442695
    %v3057 = vpow.pop %v3056
    %v3058 = vmul.f32 %v3054, 1.442695
    %v3059 = vpow.pop %v3058
    %v3060 = vmul.f32 %v3055, 1.442695
    %v3061 = vpow.pop %v3060
    %v3062 = vadd.f32 %v3057, 1.0
    %v3063 = vadd.f32 %v3059, 1.0
    %v3064 = vadd.f32 %v3061, 1.0
    %v3065 = vrcp.pop %v3062
    %v3066 = vmul.f32 1.0, %v3065
    %v3067 = vrcp.pop %v3063
    %v3068 = vmul.f32 1.0, %v3067
    %v3069 = vrcp.pop %v3064
    %v3070 = vmul.f32 1.0, %v3069
    %v3071 = vtanh.pop %v3052
    %v3072 = vmul.f32 %v3068, %v2766
    %v3073 = vmul.f32 %v3066, %v3071
    %v3074 = vadd.f32 %v3072, %v3073
    %v3075 = vtanh.pop %v3074
    %v3076 = vmul.f32 %v3070, %v3075
    %3077 = vst [vmem:[#allocation3 + $0x38] sm:$0xff] %v3076
    %v3078 = vld [vmem:[#allocation2 + $0x100] sm:$0xff]
    %v3079 = vld [vmem:[#allocation2 + $0x108] sm:$0xff]
    %v3080 = vld [vmem:[#allocation2 + $0x110] sm:$0xff]
    %v3081 = vld [vmem:[#allocation2 + $0x118] sm:$0xff]
    %v3082 = vpack.c.bf16 %v3076, %v3076
    %v3083 = vld [vmem:[%s2] sm:$0xff]
    %v3084 = vld [vmem:[%s2 + $0x8] sm:$0xff]
    %v3085 = vld [vmem:[%s2 + $0x10] sm:$0xff]
    %v3086 = vld [vmem:[%s2 + $0x18] sm:$0xff]
    %v3087 = vld [vmem:[%s2 + $0x20] sm:$0xff]
    %v3088 = vld [vmem:[%s2 + $0x28] sm:$0xff]
    %v3089 = vld [vmem:[%s2 + $0x30] sm:$0xff]
    %v3090 = vld [vmem:[%s2 + $0x38] sm:$0xff]
    %v3091 = vld [vmem:[%s2 + $0x40] sm:$0xff]
    %v3092 = vld [vmem:[%s2 + $0x48] sm:$0xff]
    %v3093 = vld [vmem:[%s2 + $0x50] sm:$0xff]
    %v3094 = vld [vmem:[%s2 + $0x58] sm:$0xff]
    %v3095 = vld [vmem:[%s2 + $0x60] sm:$0xff]
    %v3096 = vld [vmem:[%s2 + $0x68] sm:$0xff]
    %v3097 = vld [vmem:[%s2 + $0x70] sm:$0xff]
    %v3098 = vld [vmem:[%s2 + $0x78] sm:$0xff]
    %v3099 = vld [vmem:[%s2 + $0x80] sm:$0xff]
    %v3100 = vld [vmem:[%s2 + $0x88] sm:$0xff]
    %v3101 = vld [vmem:[%s2 + $0x90] sm:$0xff]
    %v3102 = vld [vmem:[%s2 + $0x98] sm:$0xff]
    %v3103 = vld [vmem:[%s2 + $0xa0] sm:$0xff]
    %v3104 = vld [vmem:[%s2 + $0xa8] sm:$0xff]
    %v3105 = vld [vmem:[%s2 + $0xb0] sm:$0xff]
    %v3106 = vld [vmem:[%s2 + $0xb8] sm:$0xff]
    %v3107 = vld [vmem:[%s2 + $0xc0] sm:$0xff]
    %v3108 = vld [vmem:[%s2 + $0xc8] sm:$0xff]
    %v3109 = vld [vmem:[%s2 + $0xd0] sm:$0xff]
    %v3110 = vld [vmem:[%s2 + $0xd8] sm:$0xff]
    %v3111 = vld [vmem:[%s2 + $0xe0] sm:$0xff]
    %v3112 = vld [vmem:[%s2 + $0xe8] sm:$0xff]
    %v3113 = vld [vmem:[%s2 + $0xf0] sm:$0xff]
    %v3114 = vld [vmem:[%s2 + $0xf8] sm:$0xff]
    %v3147 = vunpack.c.l.b16 %v3083
    %v3148 = vunpack.c.h.b16 %v3083
    %v3149 = vunpack.c.l.b16 %v3084
    %v3150 = vunpack.c.h.b16 %v3084
    %v3151 = vunpack.c.l.b16 %v3085
    %v3152 = vunpack.c.h.b16 %v3085
    %v3153 = vunpack.c.l.b16 %v3086
    %v3154 = vunpack.c.h.b16 %v3086
    %v3155 = vunpack.c.l.b16 %v3087
    %v3156 = vunpack.c.h.b16 %v3087
    %v3157 = vunpack.c.l.b16 %v3088
    %v3158 = vunpack.c.h.b16 %v3088
    %v3159 = vunpack.c.l.b16 %v3089
    %v3160 = vunpack.c.h.b16 %v3089
    %v3161 = vunpack.c.l.b16 %v3090
    %v3162 = vunpack.c.h.b16 %v3090
    %v3163 = vunpack.c.l.b16 %v3091
    %v3164 = vunpack.c.h.b16 %v3091
    %v3165 = vunpack.c.l.b16 %v3092
    %v3166 = vunpack.c.h.b16 %v3092
    %v3167 = vunpack.c.l.b16 %v3093
    %v3168 = vunpack.c.h.b16 %v3093
    %v3169 = vunpack.c.l.b16 %v3094
    %v3170 = vunpack.c.h.b16 %v3094
    %v3171 = vunpack.c.l.b16 %v3095
    %v3172 = vunpack.c.h.b16 %v3095
    %v3173 = vunpack.c.l.b16 %v3096
    %v3174 = vunpack.c.h.b16 %v3096
    %v3175 = vunpack.c.l.b16 %v3097
    %v3176 = vunpack.c.h.b16 %v3097
    %v3177 = vunpack.c.l.b16 %v3098
    %v3178 = vunpack.c.h.b16 %v3098
    %v3179 = vunpack.c.l.b16 %v3099
    %v3180 = vunpack.c.h.b16 %v3099
    %v3181 = vunpack.c.l.b16 %v3100
    %v3182 = vunpack.c.h.b16 %v3100
    %v3183 = vunpack.c.l.b16 %v3101
    %v3184 = vunpack.c.h.b16 %v3101
    %v3185 = vunpack.c.l.b16 %v3102
    %v3186 = vunpack.c.h.b16 %v3102
    %v3187 = vunpack.c.l.b16 %v3103
    %v3188 = vunpack.c.h.b16 %v3103
    %v3189 = vunpack.c.l.b16 %v3104
    %v3190 = vunpack.c.h.b16 %v3104
    %v3191 = vunpack.c.l.b16 %v3105
    %v3192 = vunpack.c.h.b16 %v3105
    %v3193 = vunpack.c.l.b16 %v3106
    %v3194 = vunpack.c.h.b16 %v3106
    %v3195 = vunpack.c.l.b16 %v3107
    %v3196 = vunpack.c.h.b16 %v3107
    %v3197 = vunpack.c.l.b16 %v3108
    %v3198 = vunpack.c.h.b16 %v3108
    %v3199 = vunpack.c.l.b16 %v3109
    %v3200 = vunpack.c.h.b16 %v3109
    %v3201 = vunpack.c.l.b16 %v3110
    %v3202 = vunpack.c.h.b16 %v3110
    %v3203 = vunpack.c.l.b16 %v3111
    %v3204 = vunpack.c.h.b16 %v3111
    %v3205 = vunpack.c.l.b16 %v3112
    %v3206 = vunpack.c.h.b16 %v3112
    %v3207 = vunpack.c.l.b16 %v3113
    %v3208 = vunpack.c.h.b16 %v3113
    %v3209 = vunpack.c.l.b16 %v3114
    %v3210 = vunpack.c.h.b16 %v3114
    %v3211 = vpack.c.b16 %v3151, %v3147
    %v3212 = vpack.c.b16 %v3152, %v3148
    %v3213 = vpack.c.b16 %v3153, %v3149
    %v3214 = vpack.c.b16 %v3154, %v3150
    %v3215 = vpack.c.b16 %v3159, %v3155
    %v3216 = vpack.c.b16 %v3160, %v3156
    %v3217 = vpack.c.b16 %v3161, %v3157
    %v3218 = vpack.c.b16 %v3162, %v3158
    %v3219 = vpack.c.b16 %v3167, %v3163
    %v3220 = vpack.c.b16 %v3168, %v3164
    %v3221 = vpack.c.b16 %v3169, %v3165
    %v3222 = vpack.c.b16 %v3170, %v3166
    %v3223 = vpack.c.b16 %v3175, %v3171
    %v3224 = vpack.c.b16 %v3176, %v3172
    %v3225 = vpack.c.b16 %v3177, %v3173
    %v3226 = vpack.c.b16 %v3178, %v3174
    %v3227 = vpack.c.b16 %v3183, %v3179
    %v3228 = vpack.c.b16 %v3184, %v3180
    %v3229 = vpack.c.b16 %v3185, %v3181
    %v3230 = vpack.c.b16 %v3186, %v3182
    %v3231 = vpack.c.b16 %v3191, %v3187
    %v3232 = vpack.c.b16 %v3192, %v3188
    %v3233 = vpack.c.b16 %v3193, %v3189
    %v3234 = vpack.c.b16 %v3194, %v3190
    %v3235 = vpack.c.b16 %v3199, %v3195
    %v3236 = vpack.c.b16 %v3200, %v3196
    %v3237 = vpack.c.b16 %v3201, %v3197
    %v3238 = vpack.c.b16 %v3202, %v3198
    %v3239 = vpack.c.b16 %v3207, %v3203
    %v3240 = vpack.c.b16 %v3208, %v3204
    %v3241 = vpack.c.b16 %v3209, %v3205
    %v3242 = vpack.c.b16 %v3210, %v3206
    %3275 = vmatprep.subr.bf16.mxu0 %v3240
    %3276 = vmatpush1.bf16.msra.mxu0 %v3239
    %3277 = vmatprep.subr.bf16.mxu0 %v3236
    %3278 = vmatpush1.bf16.msra.mxu0 %v3235
    %3279 = vmatprep.subr.bf16.mxu0 %v3232
    %3280 = vmatpush1.bf16.msra.mxu0 %v3231
    %3281 = vmatprep.subr.bf16.mxu0 %v3228
    %3282 = vmatpush1.bf16.msra.mxu0 %v3227
    %3283 = vmatprep.subr.bf16.mxu0 %v3224
    %3284 = vmatpush1.bf16.msra.mxu0 %v3223
    %3285 = vmatprep.subr.bf16.mxu0 %v3220
    %3286 = vmatpush1.bf16.msra.mxu0 %v3219
    %3287 = vmatprep.subr.bf16.mxu0 %v3216
    %3288 = vmatpush1.bf16.msra.mxu0 %v3215
    %3289 = vmatprep.subr.bf16.mxu0 %v3212
    %3290 = vmatpush1.bf16.msra.mxu0 %v3211
    %3291 = vmatprep.subr.bf16.mxu0 0
    %3292 = vmatpush2.bf16.msra.mxu0 0
    %3293 = vmatprep.subr.bf16.mxu0 0
    %3294 = vmatpush2.bf16.msra.mxu0 0
    %3295 = vmatprep.subr.bf16.mxu0 0
    %3296 = vmatpush2.bf16.msra.mxu0 0
    %3297 = vmatprep.subr.bf16.mxu0 0
    %3298 = vmatpush2.bf16.msra.mxu0 0
    %3299 = vmatprep.subr.bf16.mxu0 0
    %3300 = vmatpush2.bf16.msra.mxu0 0
    %3301 = vmatprep.subr.bf16.mxu0 0
    %3302 = vmatpush2.bf16.msra.mxu0 0
    %3303 = vmatprep.subr.bf16.mxu0 0
    %3304 = vmatpush2.bf16.msra.mxu0 0
    %3305 = vmatprep.subr.bf16.mxu0 0
    %3306 = vmatpush2.bf16.msra.mxu0 0
    %3307 = vmatprep.mubr.bf16.mxu0 0
    %3308 = vmatmul.mubr.bf16.gmra.mxu0 %v3082
    %v3309 = vpop.f32.mrf.mxu0
    %v3310 = vadd.f32 0.0, %v3309
    %v3311 = vpop.f32.mrf.mxu0
    %v3312 = vadd.f32 0.0, %v3311
    %v3313 = vpop.f32.mrf.mxu0
    %v3314 = vpop.f32.mrf.mxu0
    %3315 = vdwg.mxu0
    %3316 = vmatprep.subr.bf16.mxu0 %v3242
    %3317 = vmatpush1.bf16.msra.mxu0 %v3241
    %3318 = vmatprep.subr.bf16.mxu0 %v3238
    %3319 = vmatpush1.bf16.msra.mxu0 %v3237
    %3320 = vmatprep.subr.bf16.mxu0 %v3234
    %3321 = vmatpush1.bf16.msra.mxu0 %v3233
    %3322 = vmatprep.subr.bf16.mxu0 %v3230
    %3323 = vmatpush1.bf16.msra.mxu0 %v3229
    %3324 = vmatprep.subr.bf16.mxu0 %v3226
    %3325 = vmatpush1.bf16.msra.mxu0 %v3225
    %3326 = vmatprep.subr.bf16.mxu0 %v3222
    %3327 = vmatpush1.bf16.msra.mxu0 %v3221
    %3328 = vmatprep.subr.bf16.mxu0 %v3218
    %3329 = vmatpush1.bf16.msra.mxu0 %v3217
    %3330 = vmatprep.subr.bf16.mxu0 %v3214
    %3331 = vmatpush1.bf16.msra.mxu0 %v3213
    %3332 = vmatprep.subr.bf16.mxu0 0
    %3333 = vmatpush2.bf16.msra.mxu0 0
    %3334 = vmatprep.subr.bf16.mxu0 0
    %3335 = vmatpush2.bf16.msra.mxu0 0
    %3336 = vmatprep.subr.bf16.mxu0 0
    %3337 = vmatpush2.bf16.msra.mxu0 0
    %3338 = vmatprep.subr.bf16.mxu0 0
    %3339 = vmatpush2.bf16.msra.mxu0 0
    %3340 = vmatprep.subr.bf16.mxu0 0
    %3341 = vmatpush2.bf16.msra.mxu0 0
    %3342 = vmatprep.subr.bf16.mxu0 0
    %3343 = vmatpush2.bf16.msra.mxu0 0
    %3344 = vmatprep.subr.bf16.mxu0 0
    %3345 = vmatpush2.bf16.msra.mxu0 0
    %3346 = vmatprep.subr.bf16.mxu0 0
    %3347 = vmatpush2.bf16.msra.mxu0 0
    %3348 = vmatprep.mubr.bf16.mxu0 0
    %3349 = vmatmul.mubr.bf16.gmra.mxu0 %v3082
    %v3350 = vpop.f32.mrf.mxu0
    %v3351 = vadd.f32 0.0, %v3350
    %v3352 = vpop.f32.mrf.mxu0
    %v3353 = vadd.f32 0.0, %v3352
    %v3354 = vpop.f32.mrf.mxu0
    %v3355 = vpop.f32.mrf.mxu0
    %3356 = vdwg.mxu0
    %v3357 = vadd.f32 %v3078, %v3310
    %v3358 = vadd.f32 %v3079, %v3312
    %v3359 = vadd.f32 %v3080, %v3351
    %v3360 = vadd.f32 %v3081, %v3353
    %v3361 = vxor.u32 %v3357, 2147483648
    %v3362 = vxor.u32 %v3358, 2147483648
    %v3363 = vxor.u32 %v3359, 2147483648
    %v3364 = vmul.f32 %v3361, 1.442695
    %v3365 = vpow.pop %v3364
    %v3366 = vmul.f32 %v3362, 1.442695
    %v3367 = vpow.pop %v3366
    %v3368 = vmul.f32 %v3363, 1.442695
    %v3369 = vpow.pop %v3368
    %v3370 = vadd.f32 %v3365, 1.0
    %v3371 = vadd.f32 %v3367, 1.0
    %v3372 = vadd.f32 %v3369, 1.0
    %v3373 = vrcp.pop %v3370
    %v3374 = vmul.f32 1.0, %v3373
    %v3375 = vrcp.pop %v3371
    %v3376 = vmul.f32 1.0, %v3375
    %v3377 = vrcp.pop %v3372
    %v3378 = vmul.f32 1.0, %v3377
    %v3379 = vtanh.pop %v3360
    %v3380 = vmul.f32 %v3376, %v3074
    %v3381 = vmul.f32 %v3374, %v3379
    %v3382 = vadd.f32 %v3380, %v3381
    %v3383 = vtanh.pop %v3382
    %v3384 = vmul.f32 %v3378, %v3383
    %3385 = vst [vmem:[#allocation3 + $0x40] sm:$0xff] %v3384
    %v3386 = vld [vmem:[#allocation2 + $0x120] sm:$0xff]
    %v3387 = vld [vmem:[#allocation2 + $0x128] sm:$0xff]
    %v3388 = vld [vmem:[#allocation2 + $0x130] sm:$0xff]
    %v3389 = vld [vmem:[#allocation2 + $0x138] sm:$0xff]
    %v3390 = vpack.c.bf16 %v3384, %v3384
    %v3391 = vld [vmem:[%s2] sm:$0xff]
    %v3392 = vld [vmem:[%s2 + $0x8] sm:$0xff]
    %v3393 = vld [vmem:[%s2 + $0x10] sm:$0xff]
    %v3394 = vld [vmem:[%s2 + $0x18] sm:$0xff]
    %v3395 = vld [vmem:[%s2 + $0x20] sm:$0xff]
    %v3396 = vld [vmem:[%s2 + $0x28] sm:$0xff]
    %v3397 = vld [vmem:[%s2 + $0x30] sm:$0xff]
    %v3398 = vld [vmem:[%s2 + $0x38] sm:$0xff]
    %v3399 = vld [vmem:[%s2 + $0x40] sm:$0xff]
    %v3400 = vld [vmem:[%s2 + $0x48] sm:$0xff]
    %v3401 = vld [vmem:[%s2 + $0x50] sm:$0xff]
    %v3402 = vld [vmem:[%s2 + $0x58] sm:$0xff]
    %v3403 = vld [vmem:[%s2 + $0x60] sm:$0xff]
    %v3404 = vld [vmem:[%s2 + $0x68] sm:$0xff]
    %v3405 = vld [vmem:[%s2 + $0x70] sm:$0xff]
    %v3406 = vld [vmem:[%s2 + $0x78] sm:$0xff]
    %v3407 = vld [vmem:[%s2 + $0x80] sm:$0xff]
    %v3408 = vld [vmem:[%s2 + $0x88] sm:$0xff]
    %v3409 = vld [vmem:[%s2 + $0x90] sm:$0xff]
    %v3410 = vld [vmem:[%s2 + $0x98] sm:$0xff]
    %v3411 = vld [vmem:[%s2 + $0xa0] sm:$0xff]
    %v3412 = vld [vmem:[%s2 + $0xa8] sm:$0xff]
    %v3413 = vld [vmem:[%s2 + $0xb0] sm:$0xff]
    %v3414 = vld [vmem:[%s2 + $0xb8] sm:$0xff]
    %v3415 = vld [vmem:[%s2 + $0xc0] sm:$0xff]
    %v3416 = vld [vmem:[%s2 + $0xc8] sm:$0xff]
    %v3417 = vld [vmem:[%s2 + $0xd0] sm:$0xff]
    %v3418 = vld [vmem:[%s2 + $0xd8] sm:$0xff]
    %v3419 = vld [vmem:[%s2 + $0xe0] sm:$0xff]
    %v3420 = vld [vmem:[%s2 + $0xe8] sm:$0xff]
    %v3421 = vld [vmem:[%s2 + $0xf0] sm:$0xff]
    %v3422 = vld [vmem:[%s2 + $0xf8] sm:$0xff]
    %v3455 = vunpack.c.l.b16 %v3391
    %v3456 = vunpack.c.h.b16 %v3391
    %v3457 = vunpack.c.l.b16 %v3392
    %v3458 = vunpack.c.h.b16 %v3392
    %v3459 = vunpack.c.l.b16 %v3393
    %v3460 = vunpack.c.h.b16 %v3393
    %v3461 = vunpack.c.l.b16 %v3394
    %v3462 = vunpack.c.h.b16 %v3394
    %v3463 = vunpack.c.l.b16 %v3395
    %v3464 = vunpack.c.h.b16 %v3395
    %v3465 = vunpack.c.l.b16 %v3396
    %v3466 = vunpack.c.h.b16 %v3396
    %v3467 = vunpack.c.l.b16 %v3397
    %v3468 = vunpack.c.h.b16 %v3397
    %v3469 = vunpack.c.l.b16 %v3398
    %v3470 = vunpack.c.h.b16 %v3398
    %v3471 = vunpack.c.l.b16 %v3399
    %v3472 = vunpack.c.h.b16 %v3399
    %v3473 = vunpack.c.l.b16 %v3400
    %v3474 = vunpack.c.h.b16 %v3400
    %v3475 = vunpack.c.l.b16 %v3401
    %v3476 = vunpack.c.h.b16 %v3401
    %v3477 = vunpack.c.l.b16 %v3402
    %v3478 = vunpack.c.h.b16 %v3402
    %v3479 = vunpack.c.l.b16 %v3403
    %v3480 = vunpack.c.h.b16 %v3403
    %v3481 = vunpack.c.l.b16 %v3404
    %v3482 = vunpack.c.h.b16 %v3404
    %v3483 = vunpack.c.l.b16 %v3405
    %v3484 = vunpack.c.h.b16 %v3405
    %v3485 = vunpack.c.l.b16 %v3406
    %v3486 = vunpack.c.h.b16 %v3406
    %v3487 = vunpack.c.l.b16 %v3407
    %v3488 = vunpack.c.h.b16 %v3407
    %v3489 = vunpack.c.l.b16 %v3408
    %v3490 = vunpack.c.h.b16 %v3408
    %v3491 = vunpack.c.l.b16 %v3409
    %v3492 = vunpack.c.h.b16 %v3409
    %v3493 = vunpack.c.l.b16 %v3410
    %v3494 = vunpack.c.h.b16 %v3410
    %v3495 = vunpack.c.l.b16 %v3411
    %v3496 = vunpack.c.h.b16 %v3411
    %v3497 = vunpack.c.l.b16 %v3412
    %v3498 = vunpack.c.h.b16 %v3412
    %v3499 = vunpack.c.l.b16 %v3413
    %v3500 = vunpack.c.h.b16 %v3413
    %v3501 = vunpack.c.l.b16 %v3414
    %v3502 = vunpack.c.h.b16 %v3414
    %v3503 = vunpack.c.l.b16 %v3415
    %v3504 = vunpack.c.h.b16 %v3415
    %v3505 = vunpack.c.l.b16 %v3416
    %v3506 = vunpack.c.h.b16 %v3416
    %v3507 = vunpack.c.l.b16 %v3417
    %v3508 = vunpack.c.h.b16 %v3417
    %v3509 = vunpack.c.l.b16 %v3418
    %v3510 = vunpack.c.h.b16 %v3418
    %v3511 = vunpack.c.l.b16 %v3419
    %v3512 = vunpack.c.h.b16 %v3419
    %v3513 = vunpack.c.l.b16 %v3420
    %v3514 = vunpack.c.h.b16 %v3420
    %v3515 = vunpack.c.l.b16 %v3421
    %v3516 = vunpack.c.h.b16 %v3421
    %v3517 = vunpack.c.l.b16 %v3422
    %v3518 = vunpack.c.h.b16 %v3422
    %v3519 = vpack.c.b16 %v3459, %v3455
    %v3520 = vpack.c.b16 %v3460, %v3456
    %v3521 = vpack.c.b16 %v3461, %v3457
    %v3522 = vpack.c.b16 %v3462, %v3458
    %v3523 = vpack.c.b16 %v3467, %v3463
    %v3524 = vpack.c.b16 %v3468, %v3464
    %v3525 = vpack.c.b16 %v3469, %v3465
    %v3526 = vpack.c.b16 %v3470, %v3466
    %v3527 = vpack.c.b16 %v3475, %v3471
    %v3528 = vpack.c.b16 %v3476, %v3472
    %v3529 = vpack.c.b16 %v3477, %v3473
    %v3530 = vpack.c.b16 %v3478, %v3474
    %v3531 = vpack.c.b16 %v3483, %v3479
    %v3532 = vpack.c.b16 %v3484, %v3480
    %v3533 = vpack.c.b16 %v3485, %v3481
    %v3534 = vpack.c.b16 %v3486, %v3482
    %v3535 = vpack.c.b16 %v3491, %v3487
    %v3536 = vpack.c.b16 %v3492, %v3488
    %v3537 = vpack.c.b16 %v3493, %v3489
    %v3538 = vpack.c.b16 %v3494, %v3490
    %v3539 = vpack.c.b16 %v3499, %v3495
    %v3540 = vpack.c.b16 %v3500, %v3496
    %v3541 = vpack.c.b16 %v3501, %v3497
    %v3542 = vpack.c.b16 %v3502, %v3498
    %v3543 = vpack.c.b16 %v3507, %v3503
    %v3544 = vpack.c.b16 %v3508, %v3504
    %v3545 = vpack.c.b16 %v3509, %v3505
    %v3546 = vpack.c.b16 %v3510, %v3506
    %v3547 = vpack.c.b16 %v3515, %v3511
    %v3548 = vpack.c.b16 %v3516, %v3512
    %v3549 = vpack.c.b16 %v3517, %v3513
    %v3550 = vpack.c.b16 %v3518, %v3514
    %3583 = vmatprep.subr.bf16.mxu0 %v3548
    %3584 = vmatpush1.bf16.msra.mxu0 %v3547
    %3585 = vmatprep.subr.bf16.mxu0 %v3544
    %3586 = vmatpush1.bf16.msra.mxu0 %v3543
    %3587 = vmatprep.subr.bf16.mxu0 %v3540
    %3588 = vmatpush1.bf16.msra.mxu0 %v3539
    %3589 = vmatprep.subr.bf16.mxu0 %v3536
    %3590 = vmatpush1.bf16.msra.mxu0 %v3535
    %3591 = vmatprep.subr.bf16.mxu0 %v3532
    %3592 = vmatpush1.bf16.msra.mxu0 %v3531
    %3593 = vmatprep.subr.bf16.mxu0 %v3528
    %3594 = vmatpush1.bf16.msra.mxu0 %v3527
    %3595 = vmatprep.subr.bf16.mxu0 %v3524
    %3596 = vmatpush1.bf16.msra.mxu0 %v3523
    %3597 = vmatprep.subr.bf16.mxu0 %v3520
    %3598 = vmatpush1.bf16.msra.mxu0 %v3519
    %3599 = vmatprep.subr.bf16.mxu0 0
    %3600 = vmatpush2.bf16.msra.mxu0 0
    %3601 = vmatprep.subr.bf16.mxu0 0
    %3602 = vmatpush2.bf16.msra.mxu0 0
    %3603 = vmatprep.subr.bf16.mxu0 0
    %3604 = vmatpush2.bf16.msra.mxu0 0
    %3605 = vmatprep.subr.bf16.mxu0 0
    %3606 = vmatpush2.bf16.msra.mxu0 0
    %3607 = vmatprep.subr.bf16.mxu0 0
    %3608 = vmatpush2.bf16.msra.mxu0 0
    %3609 = vmatprep.subr.bf16.mxu0 0
    %3610 = vmatpush2.bf16.msra.mxu0 0
    %3611 = vmatprep.subr.bf16.mxu0 0
    %3612 = vmatpush2.bf16.msra.mxu0 0
    %3613 = vmatprep.subr.bf16.mxu0 0
    %3614 = vmatpush2.bf16.msra.mxu0 0
    %3615 = vmatprep.mubr.bf16.mxu0 0
    %3616 = vmatmul.mubr.bf16.gmra.mxu0 %v3390
    %v3617 = vpop.f32.mrf.mxu0
    %v3618 = vadd.f32 0.0, %v3617
    %v3619 = vpop.f32.mrf.mxu0
    %v3620 = vadd.f32 0.0, %v3619
    %v3621 = vpop.f32.mrf.mxu0
    %v3622 = vpop.f32.mrf.mxu0
    %3623 = vdwg.mxu0
    %3624 = vmatprep.subr.bf16.mxu0 %v3550
    %3625 = vmatpush1.bf16.msra.mxu0 %v3549
    %3626 = vmatprep.subr.bf16.mxu0 %v3546
    %3627 = vmatpush1.bf16.msra.mxu0 %v3545
    %3628 = vmatprep.subr.bf16.mxu0 %v3542
    %3629 = vmatpush1.bf16.msra.mxu0 %v3541
    %3630 = vmatprep.subr.bf16.mxu0 %v3538
    %3631 = vmatpush1.bf16.msra.mxu0 %v3537
    %3632 = vmatprep.subr.bf16.mxu0 %v3534
    %3633 = vmatpush1.bf16.msra.mxu0 %v3533
    %3634 = vmatprep.subr.bf16.mxu0 %v3530
    %3635 = vmatpush1.bf16.msra.mxu0 %v3529
    %3636 = vmatprep.subr.bf16.mxu0 %v3526
    %3637 = vmatpush1.bf16.msra.mxu0 %v3525
    %3638 = vmatprep.subr.bf16.mxu0 %v3522
    %3639 = vmatpush1.bf16.msra.mxu0 %v3521
    %3640 = vmatprep.subr.bf16.mxu0 0
    %3641 = vmatpush2.bf16.msra.mxu0 0
    %3642 = vmatprep.subr.bf16.mxu0 0
    %3643 = vmatpush2.bf16.msra.mxu0 0
    %3644 = vmatprep.subr.bf16.mxu0 0
    %3645 = vmatpush2.bf16.msra.mxu0 0
    %3646 = vmatprep.subr.bf16.mxu0 0
    %3647 = vmatpush2.bf16.msra.mxu0 0
    %3648 = vmatprep.subr.bf16.mxu0 0
    %3649 = vmatpush2.bf16.msra.mxu0 0
    %3650 = vmatprep.subr.bf16.mxu0 0
    %3651 = vmatpush2.bf16.msra.mxu0 0
    %3652 = vmatprep.subr.bf16.mxu0 0
    %3653 = vmatpush2.bf16.msra.mxu0 0
    %3654 = vmatprep.subr.bf16.mxu0 0
    %3655 = vmatpush2.bf16.msra.mxu0 0
    %3656 = vmatprep.mubr.bf16.mxu0 0
    %3657 = vmatmul.mubr.bf16.gmra.mxu0 %v3390
    %v3658 = vpop.f32.mrf.mxu0
    %v3659 = vadd.f32 0.0, %v3658
    %v3660 = vpop.f32.mrf.mxu0
    %v3661 = vadd.f32 0.0, %v3660
    %v3662 = vpop.f32.mrf.mxu0
    %v3663 = vpop.f32.mrf.mxu0
    %3664 = vdwg.mxu0
    %v3665 = vadd.f32 %v3386, %v3618
    %v3666 = vadd.f32 %v3387, %v3620
    %v3667 = vadd.f32 %v3388, %v3659
    %v3668 = vadd.f32 %v3389, %v3661
    %v3669 = vxor.u32 %v3665, 2147483648
    %v3670 = vxor.u32 %v3666, 2147483648
    %v3671 = vxor.u32 %v3667, 2147483648
    %v3672 = vmul.f32 %v3669, 1.442695
    %v3673 = vpow.pop %v3672
    %v3674 = vmul.f32 %v3670, 1.442695
    %v3675 = vpow.pop %v3674
    %v3676 = vmul.f32 %v3671, 1.442695
    %v3677 = vpow.pop %v3676
    %v3678 = vadd.f32 %v3673, 1.0
    %v3679 = vadd.f32 %v3675, 1.0
    %v3680 = vadd.f32 %v3677, 1.0
    %v3681 = vrcp.pop %v3678
    %v3682 = vmul.f32 1.0, %v3681
    %v3683 = vrcp.pop %v3679
    %v3684 = vmul.f32 1.0, %v3683
    %v3685 = vrcp.pop %v3680
    %v3686 = vmul.f32 1.0, %v3685
    %v3687 = vtanh.pop %v3668
    %v3688 = vmul.f32 %v3684, %v3382
    %v3689 = vmul.f32 %v3682, %v3687
    %v3690 = vadd.f32 %v3688, %v3689
    %v3691 = vtanh.pop %v3690
    %v3692 = vmul.f32 %v3686, %v3691
    %3693 = vst [vmem:[#allocation3 + $0x48] sm:$0xff] %v3692
    %v3694 = vld [vmem:[#allocation2 + $0x140] sm:$0xff]
    %v3695 = vld [vmem:[#allocation2 + $0x148] sm:$0xff]
    %v3696 = vld [vmem:[#allocation2 + $0x150] sm:$0xff]
    %v3697 = vld [vmem:[#allocation2 + $0x158] sm:$0xff]
    %v3698 = vpack.c.bf16 %v3692, %v3692
    %v3699 = vld [vmem:[%s2] sm:$0xff]
    %v3700 = vld [vmem:[%s2 + $0x8] sm:$0xff]
    %v3701 = vld [vmem:[%s2 + $0x10] sm:$0xff]
    %v3702 = vld [vmem:[%s2 + $0x18] sm:$0xff]
    %v3703 = vld [vmem:[%s2 + $0x20] sm:$0xff]
    %v3704 = vld [vmem:[%s2 + $0x28] sm:$0xff]
    %v3705 = vld [vmem:[%s2 + $0x30] sm:$0xff]
    %v3706 = vld [vmem:[%s2 + $0x38] sm:$0xff]
    %v3707 = vld [vmem:[%s2 + $0x40] sm:$0xff]
    %v3708 = vld [vmem:[%s2 + $0x48] sm:$0xff]
    %v3709 = vld [vmem:[%s2 + $0x50] sm:$0xff]
    %v3710 = vld [vmem:[%s2 + $0x58] sm:$0xff]
    %v3711 = vld [vmem:[%s2 + $0x60] sm:$0xff]
    %v3712 = vld [vmem:[%s2 + $0x68] sm:$0xff]
    %v3713 = vld [vmem:[%s2 + $0x70] sm:$0xff]
    %v3714 = vld [vmem:[%s2 + $0x78] sm:$0xff]
    %v3715 = vld [vmem:[%s2 + $0x80] sm:$0xff]
    %v3716 = vld [vmem:[%s2 + $0x88] sm:$0xff]
    %v3717 = vld [vmem:[%s2 + $0x90] sm:$0xff]
    %v3718 = vld [vmem:[%s2 + $0x98] sm:$0xff]
    %v3719 = vld [vmem:[%s2 + $0xa0] sm:$0xff]
    %v3720 = vld [vmem:[%s2 + $0xa8] sm:$0xff]
    %v3721 = vld [vmem:[%s2 + $0xb0] sm:$0xff]
    %v3722 = vld [vmem:[%s2 + $0xb8] sm:$0xff]
    %v3723 = vld [vmem:[%s2 + $0xc0] sm:$0xff]
    %v3724 = vld [vmem:[%s2 + $0xc8] sm:$0xff]
    %v3725 = vld [vmem:[%s2 + $0xd0] sm:$0xff]
    %v3726 = vld [vmem:[%s2 + $0xd8] sm:$0xff]
    %v3727 = vld [vmem:[%s2 + $0xe0] sm:$0xff]
    %v3728 = vld [vmem:[%s2 + $0xe8] sm:$0xff]
    %v3729 = vld [vmem:[%s2 + $0xf0] sm:$0xff]
    %v3730 = vld [vmem:[%s2 + $0xf8] sm:$0xff]
    %v3763 = vunpack.c.l.b16 %v3699
    %v3764 = vunpack.c.h.b16 %v3699
    %v3765 = vunpack.c.l.b16 %v3700
    %v3766 = vunpack.c.h.b16 %v3700
    %v3767 = vunpack.c.l.b16 %v3701
    %v3768 = vunpack.c.h.b16 %v3701
    %v3769 = vunpack.c.l.b16 %v3702
    %v3770 = vunpack.c.h.b16 %v3702
    %v3771 = vunpack.c.l.b16 %v3703
    %v3772 = vunpack.c.h.b16 %v3703
    %v3773 = vunpack.c.l.b16 %v3704
    %v3774 = vunpack.c.h.b16 %v3704
    %v3775 = vunpack.c.l.b16 %v3705
    %v3776 = vunpack.c.h.b16 %v3705
    %v3777 = vunpack.c.l.b16 %v3706
    %v3778 = vunpack.c.h.b16 %v3706
    %v3779 = vunpack.c.l.b16 %v3707
    %v3780 = vunpack.c.h.b16 %v3707
    %v3781 = vunpack.c.l.b16 %v3708
    %v3782 = vunpack.c.h.b16 %v3708
    %v3783 = vunpack.c.l.b16 %v3709
    %v3784 = vunpack.c.h.b16 %v3709
    %v3785 = vunpack.c.l.b16 %v3710
    %v3786 = vunpack.c.h.b16 %v3710
    %v3787 = vunpack.c.l.b16 %v3711
    %v3788 = vunpack.c.h.b16 %v3711
    %v3789 = vunpack.c.l.b16 %v3712
    %v3790 = vunpack.c.h.b16 %v3712
    %v3791 = vunpack.c.l.b16 %v3713
    %v3792 = vunpack.c.h.b16 %v3713
    %v3793 = vunpack.c.l.b16 %v3714
    %v3794 = vunpack.c.h.b16 %v3714
    %v3795 = vunpack.c.l.b16 %v3715
    %v3796 = vunpack.c.h.b16 %v3715
    %v3797 = vunpack.c.l.b16 %v3716
    %v3798 = vunpack.c.h.b16 %v3716
    %v3799 = vunpack.c.l.b16 %v3717
    %v3800 = vunpack.c.h.b16 %v3717
    %v3801 = vunpack.c.l.b16 %v3718
    %v3802 = vunpack.c.h.b16 %v3718
    %v3803 = vunpack.c.l.b16 %v3719
    %v3804 = vunpack.c.h.b16 %v3719
    %v3805 = vunpack.c.l.b16 %v3720
    %v3806 = vunpack.c.h.b16 %v3720
    %v3807 = vunpack.c.l.b16 %v3721
    %v3808 = vunpack.c.h.b16 %v3721
    %v3809 = vunpack.c.l.b16 %v3722
    %v3810 = vunpack.c.h.b16 %v3722
    %v3811 = vunpack.c.l.b16 %v3723
    %v3812 = vunpack.c.h.b16 %v3723
    %v3813 = vunpack.c.l.b16 %v3724
    %v3814 = vunpack.c.h.b16 %v3724
    %v3815 = vunpack.c.l.b16 %v3725
    %v3816 = vunpack.c.h.b16 %v3725
    %v3817 = vunpack.c.l.b16 %v3726
    %v3818 = vunpack.c.h.b16 %v3726
    %v3819 = vunpack.c.l.b16 %v3727
    %v3820 = vunpack.c.h.b16 %v3727
    %v3821 = vunpack.c.l.b16 %v3728
    %v3822 = vunpack.c.h.b16 %v3728
    %v3823 = vunpack.c.l.b16 %v3729
    %v3824 = vunpack.c.h.b16 %v3729
    %v3825 = vunpack.c.l.b16 %v3730
    %v3826 = vunpack.c.h.b16 %v3730
    %v3827 = vpack.c.b16 %v3767, %v3763
    %v3828 = vpack.c.b16 %v3768, %v3764
    %v3829 = vpack.c.b16 %v3769, %v3765
    %v3830 = vpack.c.b16 %v3770, %v3766
    %v3831 = vpack.c.b16 %v3775, %v3771
    %v3832 = vpack.c.b16 %v3776, %v3772
    %v3833 = vpack.c.b16 %v3777, %v3773
    %v3834 = vpack.c.b16 %v3778, %v3774
    %v3835 = vpack.c.b16 %v3783, %v3779
    %v3836 = vpack.c.b16 %v3784, %v3780
    %v3837 = vpack.c.b16 %v3785, %v3781
    %v3838 = vpack.c.b16 %v3786, %v3782
    %v3839 = vpack.c.b16 %v3791, %v3787
    %v3840 = vpack.c.b16 %v3792, %v3788
    %v3841 = vpack.c.b16 %v3793, %v3789
    %v3842 = vpack.c.b16 %v3794, %v3790
    %v3843 = vpack.c.b16 %v3799, %v3795
    %v3844 = vpack.c.b16 %v3800, %v3796
    %v3845 = vpack.c.b16 %v3801, %v3797
    %v3846 = vpack.c.b16 %v3802, %v3798
    %v3847 = vpack.c.b16 %v3807, %v3803
    %v3848 = vpack.c.b16 %v3808, %v3804
    %v3849 = vpack.c.b16 %v3809, %v3805
    %v3850 = vpack.c.b16 %v3810, %v3806
    %v3851 = vpack.c.b16 %v3815, %v3811
    %v3852 = vpack.c.b16 %v3816, %v3812
    %v3853 = vpack.c.b16 %v3817, %v3813
    %v3854 = vpack.c.b16 %v3818, %v3814
    %v3855 = vpack.c.b16 %v3823, %v3819
    %v3856 = vpack.c.b16 %v3824, %v3820
    %v3857 = vpack.c.b16 %v3825, %v3821
    %v3858 = vpack.c.b16 %v3826, %v3822
    %3891 = vmatprep.subr.bf16.mxu0 %v3856
    %3892 = vmatpush1.bf16.msra.mxu0 %v3855
    %3893 = vmatprep.subr.bf16.mxu0 %v3852
    %3894 = vmatpush1.bf16.msra.mxu0 %v3851
    %3895 = vmatprep.subr.bf16.mxu0 %v3848
    %3896 = vmatpush1.bf16.msra.mxu0 %v3847
    %3897 = vmatprep.subr.bf16.mxu0 %v3844
    %3898 = vmatpush1.bf16.msra.mxu0 %v3843
    %3899 = vmatprep.subr.bf16.mxu0 %v3840
    %3900 = vmatpush1.bf16.msra.mxu0 %v3839
    %3901 = vmatprep.subr.bf16.mxu0 %v3836
    %3902 = vmatpush1.bf16.msra.mxu0 %v3835
    %3903 = vmatprep.subr.bf16.mxu0 %v3832
    %3904 = vmatpush1.bf16.msra.mxu0 %v3831
    %3905 = vmatprep.subr.bf16.mxu0 %v3828
    %3906 = vmatpush1.bf16.msra.mxu0 %v3827
    %3907 = vmatprep.subr.bf16.mxu0 0
    %3908 = vmatpush2.bf16.msra.mxu0 0
    %3909 = vmatprep.subr.bf16.mxu0 0
    %3910 = vmatpush2.bf16.msra.mxu0 0
    %3911 = vmatprep.subr.bf16.mxu0 0
    %3912 = vmatpush2.bf16.msra.mxu0 0
    %3913 = vmatprep.subr.bf16.mxu0 0
    %3914 = vmatpush2.bf16.msra.mxu0 0
    %3915 = vmatprep.subr.bf16.mxu0 0
    %3916 = vmatpush2.bf16.msra.mxu0 0
    %3917 = vmatprep.subr.bf16.mxu0 0
    %3918 = vmatpush2.bf16.msra.mxu0 0
    %3919 = vmatprep.subr.bf16.mxu0 0
    %3920 = vmatpush2.bf16.msra.mxu0 0
    %3921 = vmatprep.subr.bf16.mxu0 0
    %3922 = vmatpush2.bf16.msra.mxu0 0
    %3923 = vmatprep.mubr.bf16.mxu0 0
    %3924 = vmatmul.mubr.bf16.gmra.mxu0 %v3698
    %v3925 = vpop.f32.mrf.mxu0
    %v3926 = vadd.f32 0.0, %v3925
    %v3927 = vpop.f32.mrf.mxu0
    %v3928 = vadd.f32 0.0, %v3927
    %v3929 = vpop.f32.mrf.mxu0
    %v3930 = vpop.f32.mrf.mxu0
    %3931 = vdwg.mxu0
    %3932 = vmatprep.subr.bf16.mxu0 %v3858
    %3933 = vmatpush1.bf16.msra.mxu0 %v3857
    %3934 = vmatprep.subr.bf16.mxu0 %v3854
    %3935 = vmatpush1.bf16.msra.mxu0 %v3853
    %3936 = vmatprep.subr.bf16.mxu0 %v3850
    %3937 = vmatpush1.bf16.msra.mxu0 %v3849
    %3938 = vmatprep.subr.bf16.mxu0 %v3846
    %3939 = vmatpush1.bf16.msra.mxu0 %v3845
    %3940 = vmatprep.subr.bf16.mxu0 %v3842
    %3941 = vmatpush1.bf16.msra.mxu0 %v3841
    %3942 = vmatprep.subr.bf16.mxu0 %v3838
    %3943 = vmatpush1.bf16.msra.mxu0 %v3837
    %3944 = vmatprep.subr.bf16.mxu0 %v3834
    %3945 = vmatpush1.bf16.msra.mxu0 %v3833
    %3946 = vmatprep.subr.bf16.mxu0 %v3830
    %3947 = vmatpush1.bf16.msra.mxu0 %v3829
    %3948 = vmatprep.subr.bf16.mxu0 0
    %3949 = vmatpush2.bf16.msra.mxu0 0
    %3950 = vmatprep.subr.bf16.mxu0 0
    %3951 = vmatpush2.bf16.msra.mxu0 0
    %3952 = vmatprep.subr.bf16.mxu0 0
    %3953 = vmatpush2.bf16.msra.mxu0 0
    %3954 = vmatprep.subr.bf16.mxu0 0
    %3955 = vmatpush2.bf16.msra.mxu0 0
    %3956 = vmatprep.subr.bf16.mxu0 0
    %3957 = vmatpush2.bf16.msra.mxu0 0
    %3958 = vmatprep.subr.bf16.mxu0 0
    %3959 = vmatpush2.bf16.msra.mxu0 0
    %3960 = vmatprep.subr.bf16.mxu0 0
    %3961 = vmatpush2.bf16.msra.mxu0 0
    %3962 = vmatprep.subr.bf16.mxu0 0
    %3963 = vmatpush2.bf16.msra.mxu0 0
    %3964 = vmatprep.mubr.bf16.mxu0 0
    %3965 = vmatmul.mubr.bf16.gmra.mxu0 %v3698
    %v3966 = vpop.f32.mrf.mxu0
    %v3967 = vadd.f32 0.0, %v3966
    %v3968 = vpop.f32.mrf.mxu0
    %v3969 = vadd.f32 0.0, %v3968
    %v3970 = vpop.f32.mrf.mxu0
    %v3971 = vpop.f32.mrf.mxu0
    %3972 = vdwg.mxu0
    %v3973 = vadd.f32 %v3694, %v3926
    %v3974 = vadd.f32 %v3695, %v3928
    %v3975 = vadd.f32 %v3696, %v3967
    %v3976 = vadd.f32 %v3697, %v3969
    %v3977 = vxor.u32 %v3973, 2147483648
    %v3978 = vxor.u32 %v3974, 2147483648
    %v3979 = vxor.u32 %v3975, 2147483648
    %v3980 = vmul.f32 %v3977, 1.442695
    %v3981 = vpow.pop %v3980
    %v3982 = vmul.f32 %v3978, 1.442695
    %v3983 = vpow.pop %v3982
    %v3984 = vmul.f32 %v3979, 1.442695
    %v3985 = vpow.pop %v3984
    %v3986 = vadd.f32 %v3981, 1.0
    %v3987 = vadd.f32 %v3983, 1.0
    %v3988 = vadd.f32 %v3985, 1.0
    %v3989 = vrcp.pop %v3986
    %v3990 = vmul.f32 1.0, %v3989
    %v3991 = vrcp.pop %v3987
    %v3992 = vmul.f32 1.0, %v3991
    %v3993 = vrcp.pop %v3988
    %v3994 = vmul.f32 1.0, %v3993
    %v3995 = vtanh.pop %v3976
    %v3996 = vmul.f32 %v3992, %v3690
    %v3997 = vmul.f32 %v3990, %v3995
    %v3998 = vadd.f32 %v3996, %v3997
    %v3999 = vtanh.pop %v3998
    %v4000 = vmul.f32 %v3994, %v3999
    %4001 = vst [vmem:[#allocation3 + $0x50] sm:$0xff] %v4000
    %v4002 = vld [vmem:[#allocation2 + $0x160] sm:$0xff]
    %v4003 = vld [vmem:[#allocation2 + $0x168] sm:$0xff]
    %v4004 = vld [vmem:[#allocation2 + $0x170] sm:$0xff]
    %v4005 = vld [vmem:[#allocation2 + $0x178] sm:$0xff]
    %v4006 = vpack.c.bf16 %v4000, %v4000
    %v4007 = vld [vmem:[%s2] sm:$0xff]
    %v4008 = vld [vmem:[%s2 + $0x8] sm:$0xff]
    %v4009 = vld [vmem:[%s2 + $0x10] sm:$0xff]
    %v4010 = vld [vmem:[%s2 + $0x18] sm:$0xff]
    %v4011 = vld [vmem:[%s2 + $0x20] sm:$0xff]
    %v4012 = vld [vmem:[%s2 + $0x28] sm:$0xff]
    %v4013 = vld [vmem:[%s2 + $0x30] sm:$0xff]
    %v4014 = vld [vmem:[%s2 + $0x38] sm:$0xff]
    %v4015 = vld [vmem:[%s2 + $0x40] sm:$0xff]
    %v4016 = vld [vmem:[%s2 + $0x48] sm:$0xff]
    %v4017 = vld [vmem:[%s2 + $0x50] sm:$0xff]
    %v4018 = vld [vmem:[%s2 + $0x58] sm:$0xff]
    %v4019 = vld [vmem:[%s2 + $0x60] sm:$0xff]
    %v4020 = vld [vmem:[%s2 + $0x68] sm:$0xff]
    %v4021 = vld [vmem:[%s2 + $0x70] sm:$0xff]
    %v4022 = vld [vmem:[%s2 + $0x78] sm:$0xff]
    %v4023 = vld [vmem:[%s2 + $0x80] sm:$0xff]
    %v4024 = vld [vmem:[%s2 + $0x88] sm:$0xff]
    %v4025 = vld [vmem:[%s2 + $0x90] sm:$0xff]
    %v4026 = vld [vmem:[%s2 + $0x98] sm:$0xff]
    %v4027 = vld [vmem:[%s2 + $0xa0] sm:$0xff]
    %v4028 = vld [vmem:[%s2 + $0xa8] sm:$0xff]
    %v4029 = vld [vmem:[%s2 + $0xb0] sm:$0xff]
    %v4030 = vld [vmem:[%s2 + $0xb8] sm:$0xff]
    %v4031 = vld [vmem:[%s2 + $0xc0] sm:$0xff]
    %v4032 = vld [vmem:[%s2 + $0xc8] sm:$0xff]
    %v4033 = vld [vmem:[%s2 + $0xd0] sm:$0xff]
    %v4034 = vld [vmem:[%s2 + $0xd8] sm:$0xff]
    %v4035 = vld [vmem:[%s2 + $0xe0] sm:$0xff]
    %v4036 = vld [vmem:[%s2 + $0xe8] sm:$0xff]
    %v4037 = vld [vmem:[%s2 + $0xf0] sm:$0xff]
    %v4038 = vld [vmem:[%s2 + $0xf8] sm:$0xff]
    %v4071 = vunpack.c.l.b16 %v4007
    %v4072 = vunpack.c.h.b16 %v4007
    %v4073 = vunpack.c.l.b16 %v4008
    %v4074 = vunpack.c.h.b16 %v4008
    %v4075 = vunpack.c.l.b16 %v4009
    %v4076 = vunpack.c.h.b16 %v4009
    %v4077 = vunpack.c.l.b16 %v4010
    %v4078 = vunpack.c.h.b16 %v4010
    %v4079 = vunpack.c.l.b16 %v4011
    %v4080 = vunpack.c.h.b16 %v4011
    %v4081 = vunpack.c.l.b16 %v4012
    %v4082 = vunpack.c.h.b16 %v4012
    %v4083 = vunpack.c.l.b16 %v4013
    %v4084 = vunpack.c.h.b16 %v4013
    %v4085 = vunpack.c.l.b16 %v4014
    %v4086 = vunpack.c.h.b16 %v4014
    %v4087 = vunpack.c.l.b16 %v4015
    %v4088 = vunpack.c.h.b16 %v4015
    %v4089 = vunpack.c.l.b16 %v4016
    %v4090 = vunpack.c.h.b16 %v4016
    %v4091 = vunpack.c.l.b16 %v4017
    %v4092 = vunpack.c.h.b16 %v4017
    %v4093 = vunpack.c.l.b16 %v4018
    %v4094 = vunpack.c.h.b16 %v4018
    %v4095 = vunpack.c.l.b16 %v4019
    %v4096 = vunpack.c.h.b16 %v4019
    %v4097 = vunpack.c.l.b16 %v4020
    %v4098 = vunpack.c.h.b16 %v4020
    %v4099 = vunpack.c.l.b16 %v4021
    %v4100 = vunpack.c.h.b16 %v4021
    %v4101 = vunpack.c.l.b16 %v4022
    %v4102 = vunpack.c.h.b16 %v4022
    %v4103 = vunpack.c.l.b16 %v4023
    %v4104 = vunpack.c.h.b16 %v4023
    %v4105 = vunpack.c.l.b16 %v4024
    %v4106 = vunpack.c.h.b16 %v4024
    %v4107 = vunpack.c.l.b16 %v4025
    %v4108 = vunpack.c.h.b16 %v4025
    %v4109 = vunpack.c.l.b16 %v4026
    %v4110 = vunpack.c.h.b16 %v4026
    %v4111 = vunpack.c.l.b16 %v4027
    %v4112 = vunpack.c.h.b16 %v4027
    %v4113 = vunpack.c.l.b16 %v4028
    %v4114 = vunpack.c.h.b16 %v4028
    %v4115 = vunpack.c.l.b16 %v4029
    %v4116 = vunpack.c.h.b16 %v4029
    %v4117 = vunpack.c.l.b16 %v4030
    %v4118 = vunpack.c.h.b16 %v4030
    %v4119 = vunpack.c.l.b16 %v4031
    %v4120 = vunpack.c.h.b16 %v4031
    %v4121 = vunpack.c.l.b16 %v4032
    %v4122 = vunpack.c.h.b16 %v4032
    %v4123 = vunpack.c.l.b16 %v4033
    %v4124 = vunpack.c.h.b16 %v4033
    %v4125 = vunpack.c.l.b16 %v4034
    %v4126 = vunpack.c.h.b16 %v4034
    %v4127 = vunpack.c.l.b16 %v4035
    %v4128 = vunpack.c.h.b16 %v4035
    %v4129 = vunpack.c.l.b16 %v4036
    %v4130 = vunpack.c.h.b16 %v4036
    %v4131 = vunpack.c.l.b16 %v4037
    %v4132 = vunpack.c.h.b16 %v4037
    %v4133 = vunpack.c.l.b16 %v4038
    %v4134 = vunpack.c.h.b16 %v4038
    %v4135 = vpack.c.b16 %v4075, %v4071
    %v4136 = vpack.c.b16 %v4076, %v4072
    %v4137 = vpack.c.b16 %v4077, %v4073
    %v4138 = vpack.c.b16 %v4078, %v4074
    %v4139 = vpack.c.b16 %v4083, %v4079
    %v4140 = vpack.c.b16 %v4084, %v4080
    %v4141 = vpack.c.b16 %v4085, %v4081
    %v4142 = vpack.c.b16 %v4086, %v4082
    %v4143 = vpack.c.b16 %v4091, %v4087
    %v4144 = vpack.c.b16 %v4092, %v4088
    %v4145 = vpack.c.b16 %v4093, %v4089
    %v4146 = vpack.c.b16 %v4094, %v4090
    %v4147 = vpack.c.b16 %v4099, %v4095
    %v4148 = vpack.c.b16 %v4100, %v4096
    %v4149 = vpack.c.b16 %v4101, %v4097
    %v4150 = vpack.c.b16 %v4102, %v4098
    %v4151 = vpack.c.b16 %v4107, %v4103
    %v4152 = vpack.c.b16 %v4108, %v4104
    %v4153 = vpack.c.b16 %v4109, %v4105
    %v4154 = vpack.c.b16 %v4110, %v4106
    %v4155 = vpack.c.b16 %v4115, %v4111
    %v4156 = vpack.c.b16 %v4116, %v4112
    %v4157 = vpack.c.b16 %v4117, %v4113
    %v4158 = vpack.c.b16 %v4118, %v4114
    %v4159 = vpack.c.b16 %v4123, %v4119
    %v4160 = vpack.c.b16 %v4124, %v4120
    %v4161 = vpack.c.b16 %v4125, %v4121
    %v4162 = vpack.c.b16 %v4126, %v4122
    %v4163 = vpack.c.b16 %v4131, %v4127
    %v4164 = vpack.c.b16 %v4132, %v4128
    %v4165 = vpack.c.b16 %v4133, %v4129
    %v4166 = vpack.c.b16 %v4134, %v4130
    %4199 = vmatprep.subr.bf16.mxu0 %v4164
    %4200 = vmatpush1.bf16.msra.mxu0 %v4163
    %4201 = vmatprep.subr.bf16.mxu0 %v4160
    %4202 = vmatpush1.bf16.msra.mxu0 %v4159
    %4203 = vmatprep.subr.bf16.mxu0 %v4156
    %4204 = vmatpush1.bf16.msra.mxu0 %v4155
    %4205 = vmatprep.subr.bf16.mxu0 %v4152
    %4206 = vmatpush1.bf16.msra.mxu0 %v4151
    %4207 = vmatprep.subr.bf16.mxu0 %v4148
    %4208 = vmatpush1.bf16.msra.mxu0 %v4147
    %4209 = vmatprep.subr.bf16.mxu0 %v4144
    %4210 = vmatpush1.bf16.msra.mxu0 %v4143
    %4211 = vmatprep.subr.bf16.mxu0 %v4140
    %4212 = vmatpush1.bf16.msra.mxu0 %v4139
    %4213 = vmatprep.subr.bf16.mxu0 %v4136
    %4214 = vmatpush1.bf16.msra.mxu0 %v4135
    %4215 = vmatprep.subr.bf16.mxu0 0
    %4216 = vmatpush2.bf16.msra.mxu0 0
    %4217 = vmatprep.subr.bf16.mxu0 0
    %4218 = vmatpush2.bf16.msra.mxu0 0
    %4219 = vmatprep.subr.bf16.mxu0 0
    %4220 = vmatpush2.bf16.msra.mxu0 0
    %4221 = vmatprep.subr.bf16.mxu0 0
    %4222 = vmatpush2.bf16.msra.mxu0 0
    %4223 = vmatprep.subr.bf16.mxu0 0
    %4224 = vmatpush2.bf16.msra.mxu0 0
    %4225 = vmatprep.subr.bf16.mxu0 0
    %4226 = vmatpush2.bf16.msra.mxu0 0
    %4227 = vmatprep.subr.bf16.mxu0 0
    %4228 = vmatpush2.bf16.msra.mxu0 0
    %4229 = vmatprep.subr.bf16.mxu0 0
    %4230 = vmatpush2.bf16.msra.mxu0 0
    %4231 = vmatprep.mubr.bf16.mxu0 0
    %4232 = vmatmul.mubr.bf16.gmra.mxu0 %v4006
    %v4233 = vpop.f32.mrf.mxu0
    %v4234 = vadd.f32 0.0, %v4233
    %v4235 = vpop.f32.mrf.mxu0
    %v4236 = vadd.f32 0.0, %v4235
    %v4237 = vpop.f32.mrf.mxu0
    %v4238 = vpop.f32.mrf.mxu0
    %4239 = vdwg.mxu0
    %4240 = vmatprep.subr.bf16.mxu0 %v4166
    %4241 = vmatpush1.bf16.msra.mxu0 %v4165
    %4242 = vmatprep.subr.bf16.mxu0 %v4162
    %4243 = vmatpush1.bf16.msra.mxu0 %v4161
    %4244 = vmatprep.subr.bf16.mxu0 %v4158
    %4245 = vmatpush1.bf16.msra.mxu0 %v4157
    %4246 = vmatprep.subr.bf16.mxu0 %v4154
    %4247 = vmatpush1.bf16.msra.mxu0 %v4153
    %4248 = vmatprep.subr.bf16.mxu0 %v4150
    %4249 = vmatpush1.bf16.msra.mxu0 %v4149
    %4250 = vmatprep.subr.bf16.mxu0 %v4146
    %4251 = vmatpush1.bf16.msra.mxu0 %v4145
    %4252 = vmatprep.subr.bf16.mxu0 %v4142
    %4253 = vmatpush1.bf16.msra.mxu0 %v4141
    %4254 = vmatprep.subr.bf16.mxu0 %v4138
    %4255 = vmatpush1.bf16.msra.mxu0 %v4137
    %4256 = vmatprep.subr.bf16.mxu0 0
    %4257 = vmatpush2.bf16.msra.mxu0 0
    %4258 = vmatprep.subr.bf16.mxu0 0
    %4259 = vmatpush2.bf16.msra.mxu0 0
    %4260 = vmatprep.subr.bf16.mxu0 0
    %4261 = vmatpush2.bf16.msra.mxu0 0
    %4262 = vmatprep.subr.bf16.mxu0 0
    %4263 = vmatpush2.bf16.msra.mxu0 0
    %4264 = vmatprep.subr.bf16.mxu0 0
    %4265 = vmatpush2.bf16.msra.mxu0 0
    %4266 = vmatprep.subr.bf16.mxu0 0
    %4267 = vmatpush2.bf16.msra.mxu0 0
    %4268 = vmatprep.subr.bf16.mxu0 0
    %4269 = vmatpush2.bf16.msra.mxu0 0
    %4270 = vmatprep.subr.bf16.mxu0 0
    %4271 = vmatpush2.bf16.msra.mxu0 0
    %4272 = vmatprep.mubr.bf16.mxu0 0
    %4273 = vmatmul.mubr.bf16.gmra.mxu0 %v4006
    %v4274 = vpop.f32.mrf.mxu0
    %v4275 = vadd.f32 0.0, %v4274
    %v4276 = vpop.f32.mrf.mxu0
    %v4277 = vadd.f32 0.0, %v4276
    %v4278 = vpop.f32.mrf.mxu0
    %v4279 = vpop.f32.mrf.mxu0
    %4280 = vdwg.mxu0
    %v4281 = vadd.f32 %v4002, %v4234
    %v4282 = vadd.f32 %v4003, %v4236
    %v4283 = vadd.f32 %v4004, %v4275
    %v4284 = vadd.f32 %v4005, %v4277
    %v4285 = vxor.u32 %v4281, 2147483648
    %v4286 = vxor.u32 %v4282, 2147483648
    %v4287 = vxor.u32 %v4283, 2147483648
    %v4288 = vmul.f32 %v4285, 1.442695
    %v4289 = vpow.pop %v4288
    %v4290 = vmul.f32 %v4286, 1.442695
    %v4291 = vpow.pop %v4290
    %v4292 = vmul.f32 %v4287, 1.442695
    %v4293 = vpow.pop %v4292
    %v4294 = vadd.f32 %v4289, 1.0
    %v4295 = vadd.f32 %v4291, 1.0
    %v4296 = vadd.f32 %v4293, 1.0
    %v4297 = vrcp.pop %v4294
    %v4298 = vmul.f32 1.0, %v4297
    %v4299 = vrcp.pop %v4295
    %v4300 = vmul.f32 1.0, %v4299
    %v4301 = vrcp.pop %v4296
    %v4302 = vmul.f32 1.0, %v4301
    %v4303 = vtanh.pop %v4284
    %v4304 = vmul.f32 %v4300, %v3998
    %v4305 = vmul.f32 %v4298, %v4303
    %v4306 = vadd.f32 %v4304, %v4305
    %v4307 = vtanh.pop %v4306
    %v4308 = vmul.f32 %v4302, %v4307
    %4309 = vst [vmem:[#allocation3 + $0x58] sm:$0xff] %v4308
    %v4310 = vld [vmem:[#allocation2 + $0x180] sm:$0xff]
    %v4311 = vld [vmem:[#allocation2 + $0x188] sm:$0xff]
    %v4312 = vld [vmem:[#allocation2 + $0x190] sm:$0xff]
    %v4313 = vld [vmem:[#allocation2 + $0x198] sm:$0xff]
    %v4314 = vpack.c.bf16 %v4308, %v4308
    %v4315 = vld [vmem:[%s2] sm:$0xff]
    %v4316 = vld [vmem:[%s2 + $0x8] sm:$0xff]
    %v4317 = vld [vmem:[%s2 + $0x10] sm:$0xff]
    %v4318 = vld [vmem:[%s2 + $0x18] sm:$0xff]
    %v4319 = vld [vmem:[%s2 + $0x20] sm:$0xff]
    %v4320 = vld [vmem:[%s2 + $0x28] sm:$0xff]
    %v4321 = vld [vmem:[%s2 + $0x30] sm:$0xff]
    %v4322 = vld [vmem:[%s2 + $0x38] sm:$0xff]
    %v4323 = vld [vmem:[%s2 + $0x40] sm:$0xff]
    %v4324 = vld [vmem:[%s2 + $0x48] sm:$0xff]
    %v4325 = vld [vmem:[%s2 + $0x50] sm:$0xff]
    %v4326 = vld [vmem:[%s2 + $0x58] sm:$0xff]
    %v4327 = vld [vmem:[%s2 + $0x60] sm:$0xff]
    %v4328 = vld [vmem:[%s2 + $0x68] sm:$0xff]
    %v4329 = vld [vmem:[%s2 + $0x70] sm:$0xff]
    %v4330 = vld [vmem:[%s2 + $0x78] sm:$0xff]
    %v4331 = vld [vmem:[%s2 + $0x80] sm:$0xff]
    %v4332 = vld [vmem:[%s2 + $0x88] sm:$0xff]
    %v4333 = vld [vmem:[%s2 + $0x90] sm:$0xff]
    %v4334 = vld [vmem:[%s2 + $0x98] sm:$0xff]
    %v4335 = vld [vmem:[%s2 + $0xa0] sm:$0xff]
    %v4336 = vld [vmem:[%s2 + $0xa8] sm:$0xff]
    %v4337 = vld [vmem:[%s2 + $0xb0] sm:$0xff]
    %v4338 = vld [vmem:[%s2 + $0xb8] sm:$0xff]
    %v4339 = vld [vmem:[%s2 + $0xc0] sm:$0xff]
    %v4340 = vld [vmem:[%s2 + $0xc8] sm:$0xff]
    %v4341 = vld [vmem:[%s2 + $0xd0] sm:$0xff]
    %v4342 = vld [vmem:[%s2 + $0xd8] sm:$0xff]
    %v4343 = vld [vmem:[%s2 + $0xe0] sm:$0xff]
    %v4344 = vld [vmem:[%s2 + $0xe8] sm:$0xff]
    %v4345 = vld [vmem:[%s2 + $0xf0] sm:$0xff]
    %v4346 = vld [vmem:[%s2 + $0xf8] sm:$0xff]
    %v4379 = vunpack.c.l.b16 %v4315
    %v4380 = vunpack.c.h.b16 %v4315
    %v4381 = vunpack.c.l.b16 %v4316
    %v4382 = vunpack.c.h.b16 %v4316
    %v4383 = vunpack.c.l.b16 %v4317
    %v4384 = vunpack.c.h.b16 %v4317
    %v4385 = vunpack.c.l.b16 %v4318
    %v4386 = vunpack.c.h.b16 %v4318
    %v4387 = vunpack.c.l.b16 %v4319
    %v4388 = vunpack.c.h.b16 %v4319
    %v4389 = vunpack.c.l.b16 %v4320
    %v4390 = vunpack.c.h.b16 %v4320
    %v4391 = vunpack.c.l.b16 %v4321
    %v4392 = vunpack.c.h.b16 %v4321
    %v4393 = vunpack.c.l.b16 %v4322
    %v4394 = vunpack.c.h.b16 %v4322
    %v4395 = vunpack.c.l.b16 %v4323
    %v4396 = vunpack.c.h.b16 %v4323
    %v4397 = vunpack.c.l.b16 %v4324
    %v4398 = vunpack.c.h.b16 %v4324
    %v4399 = vunpack.c.l.b16 %v4325
    %v4400 = vunpack.c.h.b16 %v4325
    %v4401 = vunpack.c.l.b16 %v4326
    %v4402 = vunpack.c.h.b16 %v4326
    %v4403 = vunpack.c.l.b16 %v4327
    %v4404 = vunpack.c.h.b16 %v4327
    %v4405 = vunpack.c.l.b16 %v4328
    %v4406 = vunpack.c.h.b16 %v4328
    %v4407 = vunpack.c.l.b16 %v4329
    %v4408 = vunpack.c.h.b16 %v4329
    %v4409 = vunpack.c.l.b16 %v4330
    %v4410 = vunpack.c.h.b16 %v4330
    %v4411 = vunpack.c.l.b16 %v4331
    %v4412 = vunpack.c.h.b16 %v4331
    %v4413 = vunpack.c.l.b16 %v4332
    %v4414 = vunpack.c.h.b16 %v4332
    %v4415 = vunpack.c.l.b16 %v4333
    %v4416 = vunpack.c.h.b16 %v4333
    %v4417 = vunpack.c.l.b16 %v4334
    %v4418 = vunpack.c.h.b16 %v4334
    %v4419 = vunpack.c.l.b16 %v4335
    %v4420 = vunpack.c.h.b16 %v4335
    %v4421 = vunpack.c.l.b16 %v4336
    %v4422 = vunpack.c.h.b16 %v4336
    %v4423 = vunpack.c.l.b16 %v4337
    %v4424 = vunpack.c.h.b16 %v4337
    %v4425 = vunpack.c.l.b16 %v4338
    %v4426 = vunpack.c.h.b16 %v4338
    %v4427 = vunpack.c.l.b16 %v4339
    %v4428 = vunpack.c.h.b16 %v4339
    %v4429 = vunpack.c.l.b16 %v4340
    %v4430 = vunpack.c.h.b16 %v4340
    %v4431 = vunpack.c.l.b16 %v4341
    %v4432 = vunpack.c.h.b16 %v4341
    %v4433 = vunpack.c.l.b16 %v4342
    %v4434 = vunpack.c.h.b16 %v4342
    %v4435 = vunpack.c.l.b16 %v4343
    %v4436 = vunpack.c.h.b16 %v4343
    %v4437 = vunpack.c.l.b16 %v4344
    %v4438 = vunpack.c.h.b16 %v4344
    %v4439 = vunpack.c.l.b16 %v4345
    %v4440 = vunpack.c.h.b16 %v4345
    %v4441 = vunpack.c.l.b16 %v4346
    %v4442 = vunpack.c.h.b16 %v4346
    %v4443 = vpack.c.b16 %v4383, %v4379
    %v4444 = vpack.c.b16 %v4384, %v4380
    %v4445 = vpack.c.b16 %v4385, %v4381
    %v4446 = vpack.c.b16 %v4386, %v4382
    %v4447 = vpack.c.b16 %v4391, %v4387
    %v4448 = vpack.c.b16 %v4392, %v4388
    %v4449 = vpack.c.b16 %v4393, %v4389
    %v4450 = vpack.c.b16 %v4394, %v4390
    %v4451 = vpack.c.b16 %v4399, %v4395
    %v4452 = vpack.c.b16 %v4400, %v4396
    %v4453 = vpack.c.b16 %v4401, %v4397
    %v4454 = vpack.c.b16 %v4402, %v4398
    %v4455 = vpack.c.b16 %v4407, %v4403
    %v4456 = vpack.c.b16 %v4408, %v4404
    %v4457 = vpack.c.b16 %v4409, %v4405
    %v4458 = vpack.c.b16 %v4410, %v4406
    %v4459 = vpack.c.b16 %v4415, %v4411
    %v4460 = vpack.c.b16 %v4416, %v4412
    %v4461 = vpack.c.b16 %v4417, %v4413
    %v4462 = vpack.c.b16 %v4418, %v4414
    %v4463 = vpack.c.b16 %v4423, %v4419
    %v4464 = vpack.c.b16 %v4424, %v4420
    %v4465 = vpack.c.b16 %v4425, %v4421
    %v4466 = vpack.c.b16 %v4426, %v4422
    %v4467 = vpack.c.b16 %v4431, %v4427
    %v4468 = vpack.c.b16 %v4432, %v4428
    %v4469 = vpack.c.b16 %v4433, %v4429
    %v4470 = vpack.c.b16 %v4434, %v4430
    %v4471 = vpack.c.b16 %v4439, %v4435
    %v4472 = vpack.c.b16 %v4440, %v4436
    %v4473 = vpack.c.b16 %v4441, %v4437
    %v4474 = vpack.c.b16 %v4442, %v4438
    %4507 = vmatprep.subr.bf16.mxu0 %v4472
    %4508 = vmatpush1.bf16.msra.mxu0 %v4471
    %4509 = vmatprep.subr.bf16.mxu0 %v4468
    %4510 = vmatpush1.bf16.msra.mxu0 %v4467
    %4511 = vmatprep.subr.bf16.mxu0 %v4464
    %4512 = vmatpush1.bf16.msra.mxu0 %v4463
    %4513 = vmatprep.subr.bf16.mxu0 %v4460
    %4514 = vmatpush1.bf16.msra.mxu0 %v4459
    %4515 = vmatprep.subr.bf16.mxu0 %v4456
    %4516 = vmatpush1.bf16.msra.mxu0 %v4455
    %4517 = vmatprep.subr.bf16.mxu0 %v4452
    %4518 = vmatpush1.bf16.msra.mxu0 %v4451
    %4519 = vmatprep.subr.bf16.mxu0 %v4448
    %4520 = vmatpush1.bf16.msra.mxu0 %v4447
    %4521 = vmatprep.subr.bf16.mxu0 %v4444
    %4522 = vmatpush1.bf16.msra.mxu0 %v4443
    %4523 = vmatprep.subr.bf16.mxu0 0
    %4524 = vmatpush2.bf16.msra.mxu0 0
    %4525 = vmatprep.subr.bf16.mxu0 0
    %4526 = vmatpush2.bf16.msra.mxu0 0
    %4527 = vmatprep.subr.bf16.mxu0 0
    %4528 = vmatpush2.bf16.msra.mxu0 0
    %4529 = vmatprep.subr.bf16.mxu0 0
    %4530 = vmatpush2.bf16.msra.mxu0 0
    %4531 = vmatprep.subr.bf16.mxu0 0
    %4532 = vmatpush2.bf16.msra.mxu0 0
    %4533 = vmatprep.subr.bf16.mxu0 0
    %4534 = vmatpush2.bf16.msra.mxu0 0
    %4535 = vmatprep.subr.bf16.mxu0 0
    %4536 = vmatpush2.bf16.msra.mxu0 0
    %4537 = vmatprep.subr.bf16.mxu0 0
    %4538 = vmatpush2.bf16.msra.mxu0 0
    %4539 = vmatprep.mubr.bf16.mxu0 0
    %4540 = vmatmul.mubr.bf16.gmra.mxu0 %v4314
    %v4541 = vpop.f32.mrf.mxu0
    %v4542 = vadd.f32 0.0, %v4541
    %v4543 = vpop.f32.mrf.mxu0
    %v4544 = vadd.f32 0.0, %v4543
    %v4545 = vpop.f32.mrf.mxu0
    %v4546 = vpop.f32.mrf.mxu0
    %4547 = vdwg.mxu0
    %4548 = vmatprep.subr.bf16.mxu0 %v4474
    %4549 = vmatpush1.bf16.msra.mxu0 %v4473
    %4550 = vmatprep.subr.bf16.mxu0 %v4470
    %4551 = vmatpush1.bf16.msra.mxu0 %v4469
    %4552 = vmatprep.subr.bf16.mxu0 %v4466
    %4553 = vmatpush1.bf16.msra.mxu0 %v4465
    %4554 = vmatprep.subr.bf16.mxu0 %v4462
    %4555 = vmatpush1.bf16.msra.mxu0 %v4461
    %4556 = vmatprep.subr.bf16.mxu0 %v4458
    %4557 = vmatpush1.bf16.msra.mxu0 %v4457
    %4558 = vmatprep.subr.bf16.mxu0 %v4454
    %4559 = vmatpush1.bf16.msra.mxu0 %v4453
    %4560 = vmatprep.subr.bf16.mxu0 %v4450
    %4561 = vmatpush1.bf16.msra.mxu0 %v4449
    %4562 = vmatprep.subr.bf16.mxu0 %v4446
    %4563 = vmatpush1.bf16.msra.mxu0 %v4445
    %4564 = vmatprep.subr.bf16.mxu0 0
    %4565 = vmatpush2.bf16.msra.mxu0 0
    %4566 = vmatprep.subr.bf16.mxu0 0
    %4567 = vmatpush2.bf16.msra.mxu0 0
    %4568 = vmatprep.subr.bf16.mxu0 0
    %4569 = vmatpush2.bf16.msra.mxu0 0
    %4570 = vmatprep.subr.bf16.mxu0 0
    %4571 = vmatpush2.bf16.msra.mxu0 0
    %4572 = vmatprep.subr.bf16.mxu0 0
    %4573 = vmatpush2.bf16.msra.mxu0 0
    %4574 = vmatprep.subr.bf16.mxu0 0
    %4575 = vmatpush2.bf16.msra.mxu0 0
    %4576 = vmatprep.subr.bf16.mxu0 0
    %4577 = vmatpush2.bf16.msra.mxu0 0
    %4578 = vmatprep.subr.bf16.mxu0 0
    %4579 = vmatpush2.bf16.msra.mxu0 0
    %4580 = vmatprep.mubr.bf16.mxu0 0
    %4581 = vmatmul.mubr.bf16.gmra.mxu0 %v4314
    %v4582 = vpop.f32.mrf.mxu0
    %v4583 = vadd.f32 0.0, %v4582
    %v4584 = vpop.f32.mrf.mxu0
    %v4585 = vadd.f32 0.0, %v4584
    %v4586 = vpop.f32.mrf.mxu0
    %v4587 = vpop.f32.mrf.mxu0
    %4588 = vdwg.mxu0
    %v4589 = vadd.f32 %v4310, %v4542
    %v4590 = vadd.f32 %v4311, %v4544
    %v4591 = vadd.f32 %v4312, %v4583
    %v4592 = vadd.f32 %v4313, %v4585
    %v4593 = vxor.u32 %v4589, 2147483648
    %v4594 = vxor.u32 %v4590, 2147483648
    %v4595 = vxor.u32 %v4591, 2147483648
    %v4596 = vmul.f32 %v4593, 1.442695
    %v4597 = vpow.pop %v4596
    %v4598 = vmul.f32 %v4594, 1.442695
    %v4599 = vpow.pop %v4598
    %v4600 = vmul.f32 %v4595, 1.442695
    %v4601 = vpow.pop %v4600
    %v4602 = vadd.f32 %v4597, 1.0
    %v4603 = vadd.f32 %v4599, 1.0
    %v4604 = vadd.f32 %v4601, 1.0
    %v4605 = vrcp.pop %v4602
    %v4606 = vmul.f32 1.0, %v4605
    %v4607 = vrcp.pop %v4603
    %v4608 = vmul.f32 1.0, %v4607
    %v4609 = vrcp.pop %v4604
    %v4610 = vmul.f32 1.0, %v4609
    %v4611 = vtanh.pop %v4592
    %v4612 = vmul.f32 %v4608, %v4306
    %v4613 = vmul.f32 %v4606, %v4611
    %v4614 = vadd.f32 %v4612, %v4613
    %v4615 = vtanh.pop %v4614
    %v4616 = vmul.f32 %v4610, %v4615
    %4617 = vst [vmem:[#allocation3 + $0x60] sm:$0xff] %v4616
    %v4618 = vld [vmem:[#allocation2 + $0x1a0] sm:$0xff]
    %v4619 = vld [vmem:[#allocation2 + $0x1a8] sm:$0xff]
    %v4620 = vld [vmem:[#allocation2 + $0x1b0] sm:$0xff]
    %v4621 = vld [vmem:[#allocation2 + $0x1b8] sm:$0xff]
    %v4622 = vpack.c.bf16 %v4616, %v4616
    %v4623 = vld [vmem:[%s2] sm:$0xff]
    %v4624 = vld [vmem:[%s2 + $0x8] sm:$0xff]
    %v4625 = vld [vmem:[%s2 + $0x10] sm:$0xff]
    %v4626 = vld [vmem:[%s2 + $0x18] sm:$0xff]
    %v4627 = vld [vmem:[%s2 + $0x20] sm:$0xff]
    %v4628 = vld [vmem:[%s2 + $0x28] sm:$0xff]
    %v4629 = vld [vmem:[%s2 + $0x30] sm:$0xff]
    %v4630 = vld [vmem:[%s2 + $0x38] sm:$0xff]
    %v4631 = vld [vmem:[%s2 + $0x40] sm:$0xff]
    %v4632 = vld [vmem:[%s2 + $0x48] sm:$0xff]
    %v4633 = vld [vmem:[%s2 + $0x50] sm:$0xff]
    %v4634 = vld [vmem:[%s2 + $0x58] sm:$0xff]
    %v4635 = vld [vmem:[%s2 + $0x60] sm:$0xff]
    %v4636 = vld [vmem:[%s2 + $0x68] sm:$0xff]
    %v4637 = vld [vmem:[%s2 + $0x70] sm:$0xff]
    %v4638 = vld [vmem:[%s2 + $0x78] sm:$0xff]
    %v4639 = vld [vmem:[%s2 + $0x80] sm:$0xff]
    %v4640 = vld [vmem:[%s2 + $0x88] sm:$0xff]
    %v4641 = vld [vmem:[%s2 + $0x90] sm:$0xff]
    %v4642 = vld [vmem:[%s2 + $0x98] sm:$0xff]
    %v4643 = vld [vmem:[%s2 + $0xa0] sm:$0xff]
    %v4644 = vld [vmem:[%s2 + $0xa8] sm:$0xff]
    %v4645 = vld [vmem:[%s2 + $0xb0] sm:$0xff]
    %v4646 = vld [vmem:[%s2 + $0xb8] sm:$0xff]
    %v4647 = vld [vmem:[%s2 + $0xc0] sm:$0xff]
    %v4648 = vld [vmem:[%s2 + $0xc8] sm:$0xff]
    %v4649 = vld [vmem:[%s2 + $0xd0] sm:$0xff]
    %v4650 = vld [vmem:[%s2 + $0xd8] sm:$0xff]
    %v4651 = vld [vmem:[%s2 + $0xe0] sm:$0xff]
    %v4652 = vld [vmem:[%s2 + $0xe8] sm:$0xff]
    %v4653 = vld [vmem:[%s2 + $0xf0] sm:$0xff]
    %v4654 = vld [vmem:[%s2 + $0xf8] sm:$0xff]
    %v4687 = vunpack.c.l.b16 %v4623
    %v4688 = vunpack.c.h.b16 %v4623
    %v4689 = vunpack.c.l.b16 %v4624
    %v4690 = vunpack.c.h.b16 %v4624
    %v4691 = vunpack.c.l.b16 %v4625
    %v4692 = vunpack.c.h.b16 %v4625
    %v4693 = vunpack.c.l.b16 %v4626
    %v4694 = vunpack.c.h.b16 %v4626
    %v4695 = vunpack.c.l.b16 %v4627
    %v4696 = vunpack.c.h.b16 %v4627
    %v4697 = vunpack.c.l.b16 %v4628
    %v4698 = vunpack.c.h.b16 %v4628
    %v4699 = vunpack.c.l.b16 %v4629
    %v4700 = vunpack.c.h.b16 %v4629
    %v4701 = vunpack.c.l.b16 %v4630
    %v4702 = vunpack.c.h.b16 %v4630
    %v4703 = vunpack.c.l.b16 %v4631
    %v4704 = vunpack.c.h.b16 %v4631
    %v4705 = vunpack.c.l.b16 %v4632
    %v4706 = vunpack.c.h.b16 %v4632
    %v4707 = vunpack.c.l.b16 %v4633
    %v4708 = vunpack.c.h.b16 %v4633
    %v4709 = vunpack.c.l.b16 %v4634
    %v4710 = vunpack.c.h.b16 %v4634
    %v4711 = vunpack.c.l.b16 %v4635
    %v4712 = vunpack.c.h.b16 %v4635
    %v4713 = vunpack.c.l.b16 %v4636
    %v4714 = vunpack.c.h.b16 %v4636
    %v4715 = vunpack.c.l.b16 %v4637
    %v4716 = vunpack.c.h.b16 %v4637
    %v4717 = vunpack.c.l.b16 %v4638
    %v4718 = vunpack.c.h.b16 %v4638
    %v4719 = vunpack.c.l.b16 %v4639
    %v4720 = vunpack.c.h.b16 %v4639
    %v4721 = vunpack.c.l.b16 %v4640
    %v4722 = vunpack.c.h.b16 %v4640
    %v4723 = vunpack.c.l.b16 %v4641
    %v4724 = vunpack.c.h.b16 %v4641
    %v4725 = vunpack.c.l.b16 %v4642
    %v4726 = vunpack.c.h.b16 %v4642
    %v4727 = vunpack.c.l.b16 %v4643
    %v4728 = vunpack.c.h.b16 %v4643
    %v4729 = vunpack.c.l.b16 %v4644
    %v4730 = vunpack.c.h.b16 %v4644
    %v4731 = vunpack.c.l.b16 %v4645
    %v4732 = vunpack.c.h.b16 %v4645
    %v4733 = vunpack.c.l.b16 %v4646
    %v4734 = vunpack.c.h.b16 %v4646
    %v4735 = vunpack.c.l.b16 %v4647
    %v4736 = vunpack.c.h.b16 %v4647
    %v4737 = vunpack.c.l.b16 %v4648
    %v4738 = vunpack.c.h.b16 %v4648
    %v4739 = vunpack.c.l.b16 %v4649
    %v4740 = vunpack.c.h.b16 %v4649
    %v4741 = vunpack.c.l.b16 %v4650
    %v4742 = vunpack.c.h.b16 %v4650
    %v4743 = vunpack.c.l.b16 %v4651
    %v4744 = vunpack.c.h.b16 %v4651
    %v4745 = vunpack.c.l.b16 %v4652
    %v4746 = vunpack.c.h.b16 %v4652
    %v4747 = vunpack.c.l.b16 %v4653
    %v4748 = vunpack.c.h.b16 %v4653
    %v4749 = vunpack.c.l.b16 %v4654
    %v4750 = vunpack.c.h.b16 %v4654
    %v4751 = vpack.c.b16 %v4691, %v4687
    %v4752 = vpack.c.b16 %v4692, %v4688
    %v4753 = vpack.c.b16 %v4693, %v4689
    %v4754 = vpack.c.b16 %v4694, %v4690
    %v4755 = vpack.c.b16 %v4699, %v4695
    %v4756 = vpack.c.b16 %v4700, %v4696
    %v4757 = vpack.c.b16 %v4701, %v4697
    %v4758 = vpack.c.b16 %v4702, %v4698
    %v4759 = vpack.c.b16 %v4707, %v4703
    %v4760 = vpack.c.b16 %v4708, %v4704
    %v4761 = vpack.c.b16 %v4709, %v4705
    %v4762 = vpack.c.b16 %v4710, %v4706
    %v4763 = vpack.c.b16 %v4715, %v4711
    %v4764 = vpack.c.b16 %v4716, %v4712
    %v4765 = vpack.c.b16 %v4717, %v4713
    %v4766 = vpack.c.b16 %v4718, %v4714
    %v4767 = vpack.c.b16 %v4723, %v4719
    %v4768 = vpack.c.b16 %v4724, %v4720
    %v4769 = vpack.c.b16 %v4725, %v4721
    %v4770 = vpack.c.b16 %v4726, %v4722
    %v4771 = vpack.c.b16 %v4731, %v4727
    %v4772 = vpack.c.b16 %v4732, %v4728
    %v4773 = vpack.c.b16 %v4733, %v4729
    %v4774 = vpack.c.b16 %v4734, %v4730
    %v4775 = vpack.c.b16 %v4739, %v4735
    %v4776 = vpack.c.b16 %v4740, %v4736
    %v4777 = vpack.c.b16 %v4741, %v4737
    %v4778 = vpack.c.b16 %v4742, %v4738
    %v4779 = vpack.c.b16 %v4747, %v4743
    %v4780 = vpack.c.b16 %v4748, %v4744
    %v4781 = vpack.c.b16 %v4749, %v4745
    %v4782 = vpack.c.b16 %v4750, %v4746
    %4815 = vmatprep.subr.bf16.mxu0 %v4780
    %4816 = vmatpush1.bf16.msra.mxu0 %v4779
    %4817 = vmatprep.subr.bf16.mxu0 %v4776
    %4818 = vmatpush1.bf16.msra.mxu0 %v4775
    %4819 = vmatprep.subr.bf16.mxu0 %v4772
    %4820 = vmatpush1.bf16.msra.mxu0 %v4771
    %4821 = vmatprep.subr.bf16.mxu0 %v4768
    %4822 = vmatpush1.bf16.msra.mxu0 %v4767
    %4823 = vmatprep.subr.bf16.mxu0 %v4764
    %4824 = vmatpush1.bf16.msra.mxu0 %v4763
    %4825 = vmatprep.subr.bf16.mxu0 %v4760
    %4826 = vmatpush1.bf16.msra.mxu0 %v4759
    %4827 = vmatprep.subr.bf16.mxu0 %v4756
    %4828 = vmatpush1.bf16.msra.mxu0 %v4755
    %4829 = vmatprep.subr.bf16.mxu0 %v4752
    %4830 = vmatpush1.bf16.msra.mxu0 %v4751
    %4831 = vmatprep.subr.bf16.mxu0 0
    %4832 = vmatpush2.bf16.msra.mxu0 0
    %4833 = vmatprep.subr.bf16.mxu0 0
    %4834 = vmatpush2.bf16.msra.mxu0 0
    %4835 = vmatprep.subr.bf16.mxu0 0
    %4836 = vmatpush2.bf16.msra.mxu0 0
    %4837 = vmatprep.subr.bf16.mxu0 0
    %4838 = vmatpush2.bf16.msra.mxu0 0
    %4839 = vmatprep.subr.bf16.mxu0 0
    %4840 = vmatpush2.bf16.msra.mxu0 0
    %4841 = vmatprep.subr.bf16.mxu0 0
    %4842 = vmatpush2.bf16.msra.mxu0 0
    %4843 = vmatprep.subr.bf16.mxu0 0
    %4844 = vmatpush2.bf16.msra.mxu0 0
    %4845 = vmatprep.subr.bf16.mxu0 0
    %4846 = vmatpush2.bf16.msra.mxu0 0
    %4847 = vmatprep.mubr.bf16.mxu0 0
    %4848 = vmatmul.mubr.bf16.gmra.mxu0 %v4622
    %v4849 = vpop.f32.mrf.mxu0
    %v4850 = vadd.f32 0.0, %v4849
    %v4851 = vpop.f32.mrf.mxu0
    %v4852 = vadd.f32 0.0, %v4851
    %v4853 = vpop.f32.mrf.mxu0
    %v4854 = vpop.f32.mrf.mxu0
    %4855 = vdwg.mxu0
    %4856 = vmatprep.subr.bf16.mxu0 %v4782
    %4857 = vmatpush1.bf16.msra.mxu0 %v4781
    %4858 = vmatprep.subr.bf16.mxu0 %v4778
    %4859 = vmatpush1.bf16.msra.mxu0 %v4777
    %4860 = vmatprep.subr.bf16.mxu0 %v4774
    %4861 = vmatpush1.bf16.msra.mxu0 %v4773
    %4862 = vmatprep.subr.bf16.mxu0 %v4770
    %4863 = vmatpush1.bf16.msra.mxu0 %v4769
    %4864 = vmatprep.subr.bf16.mxu0 %v4766
    %4865 = vmatpush1.bf16.msra.mxu0 %v4765
    %4866 = vmatprep.subr.bf16.mxu0 %v4762
    %4867 = vmatpush1.bf16.msra.mxu0 %v4761
    %4868 = vmatprep.subr.bf16.mxu0 %v4758
    %4869 = vmatpush1.bf16.msra.mxu0 %v4757
    %4870 = vmatprep.subr.bf16.mxu0 %v4754
    %4871 = vmatpush1.bf16.msra.mxu0 %v4753
    %4872 = vmatprep.subr.bf16.mxu0 0
    %4873 = vmatpush2.bf16.msra.mxu0 0
    %4874 = vmatprep.subr.bf16.mxu0 0
    %4875 = vmatpush2.bf16.msra.mxu0 0
    %4876 = vmatprep.subr.bf16.mxu0 0
    %4877 = vmatpush2.bf16.msra.mxu0 0
    %4878 = vmatprep.subr.bf16.mxu0 0
    %4879 = vmatpush2.bf16.msra.mxu0 0
    %4880 = vmatprep.subr.bf16.mxu0 0
    %4881 = vmatpush2.bf16.msra.mxu0 0
    %4882 = vmatprep.subr.bf16.mxu0 0
    %4883 = vmatpush2.bf16.msra.mxu0 0
    %4884 = vmatprep.subr.bf16.mxu0 0
    %4885 = vmatpush2.bf16.msra.mxu0 0
    %4886 = vmatprep.subr.bf16.mxu0 0
    %4887 = vmatpush2.bf16.msra.mxu0 0
    %4888 = vmatprep.mubr.bf16.mxu0 0
    %4889 = vmatmul.mubr.bf16.gmra.mxu0 %v4622
    %v4890 = vpop.f32.mrf.mxu0
    %v4891 = vadd.f32 0.0, %v4890
    %v4892 = vpop.f32.mrf.mxu0
    %v4893 = vadd.f32 0.0, %v4892
    %v4894 = vpop.f32.mrf.mxu0
    %v4895 = vpop.f32.mrf.mxu0
    %4896 = vdwg.mxu0
    %v4897 = vadd.f32 %v4618, %v4850
    %v4898 = vadd.f32 %v4619, %v4852
    %v4899 = vadd.f32 %v4620, %v4891
    %v4900 = vadd.f32 %v4621, %v4893
    %v4901 = vxor.u32 %v4897, 2147483648
    %v4902 = vxor.u32 %v4898, 2147483648
    %v4903 = vxor.u32 %v4899, 2147483648
    %v4904 = vmul.f32 %v4901, 1.442695
    %v4905 = vpow.pop %v4904
    %v4906 = vmul.f32 %v4902, 1.442695
    %v4907 = vpow.pop %v4906
    %v4908 = vmul.f32 %v4903, 1.442695
    %v4909 = vpow.pop %v4908
    %v4910 = vadd.f32 %v4905, 1.0
    %v4911 = vadd.f32 %v4907, 1.0
    %v4912 = vadd.f32 %v4909, 1.0
    %v4913 = vrcp.pop %v4910
    %v4914 = vmul.f32 1.0, %v4913
    %v4915 = vrcp.pop %v4911
    %v4916 = vmul.f32 1.0, %v4915
    %v4917 = vrcp.pop %v4912
    %v4918 = vmul.f32 1.0, %v4917
    %v4919 = vtanh.pop %v4900
    %v4920 = vmul.f32 %v4916, %v4614
    %v4921 = vmul.f32 %v4914, %v4919
    %v4922 = vadd.f32 %v4920, %v4921
    %v4923 = vtanh.pop %v4922
    %v4924 = vmul.f32 %v4918, %v4923
    %4925 = vst [vmem:[#allocation3 + $0x68] sm:$0xff] %v4924
    %v4926 = vld [vmem:[#allocation2 + $0x1c0] sm:$0xff]
    %v4927 = vld [vmem:[#allocation2 + $0x1c8] sm:$0xff]
    %v4928 = vld [vmem:[#allocation2 + $0x1d0] sm:$0xff]
    %v4929 = vld [vmem:[#allocation2 + $0x1d8] sm:$0xff]
    %v4930 = vpack.c.bf16 %v4924, %v4924
    %v4931 = vld [vmem:[%s2] sm:$0xff]
    %v4932 = vld [vmem:[%s2 + $0x8] sm:$0xff]
    %v4933 = vld [vmem:[%s2 + $0x10] sm:$0xff]
    %v4934 = vld [vmem:[%s2 + $0x18] sm:$0xff]
    %v4935 = vld [vmem:[%s2 + $0x20] sm:$0xff]
    %v4936 = vld [vmem:[%s2 + $0x28] sm:$0xff]
    %v4937 = vld [vmem:[%s2 + $0x30] sm:$0xff]
    %v4938 = vld [vmem:[%s2 + $0x38] sm:$0xff]
    %v4939 = vld [vmem:[%s2 + $0x40] sm:$0xff]
    %v4940 = vld [vmem:[%s2 + $0x48] sm:$0xff]
    %v4941 = vld [vmem:[%s2 + $0x50] sm:$0xff]
    %v4942 = vld [vmem:[%s2 + $0x58] sm:$0xff]
    %v4943 = vld [vmem:[%s2 + $0x60] sm:$0xff]
    %v4944 = vld [vmem:[%s2 + $0x68] sm:$0xff]
    %v4945 = vld [vmem:[%s2 + $0x70] sm:$0xff]
    %v4946 = vld [vmem:[%s2 + $0x78] sm:$0xff]
    %v4947 = vld [vmem:[%s2 + $0x80] sm:$0xff]
    %v4948 = vld [vmem:[%s2 + $0x88] sm:$0xff]
    %v4949 = vld [vmem:[%s2 + $0x90] sm:$0xff]
    %v4950 = vld [vmem:[%s2 + $0x98] sm:$0xff]
    %v4951 = vld [vmem:[%s2 + $0xa0] sm:$0xff]
    %v4952 = vld [vmem:[%s2 + $0xa8] sm:$0xff]
    %v4953 = vld [vmem:[%s2 + $0xb0] sm:$0xff]
    %v4954 = vld [vmem:[%s2 + $0xb8] sm:$0xff]
    %v4955 = vld [vmem:[%s2 + $0xc0] sm:$0xff]
    %v4956 = vld [vmem:[%s2 + $0xc8] sm:$0xff]
    %v4957 = vld [vmem:[%s2 + $0xd0] sm:$0xff]
    %v4958 = vld [vmem:[%s2 + $0xd8] sm:$0xff]
    %v4959 = vld [vmem:[%s2 + $0xe0] sm:$0xff]
    %v4960 = vld [vmem:[%s2 + $0xe8] sm:$0xff]
    %v4961 = vld [vmem:[%s2 + $0xf0] sm:$0xff]
    %v4962 = vld [vmem:[%s2 + $0xf8] sm:$0xff]
    %v4995 = vunpack.c.l.b16 %v4931
    %v4996 = vunpack.c.h.b16 %v4931
    %v4997 = vunpack.c.l.b16 %v4932
    %v4998 = vunpack.c.h.b16 %v4932
    %v4999 = vunpack.c.l.b16 %v4933
    %v5000 = vunpack.c.h.b16 %v4933
    %v5001 = vunpack.c.l.b16 %v4934
    %v5002 = vunpack.c.h.b16 %v4934
    %v5003 = vunpack.c.l.b16 %v4935
    %v5004 = vunpack.c.h.b16 %v4935
    %v5005 = vunpack.c.l.b16 %v4936
    %v5006 = vunpack.c.h.b16 %v4936
    %v5007 = vunpack.c.l.b16 %v4937
    %v5008 = vunpack.c.h.b16 %v4937
    %v5009 = vunpack.c.l.b16 %v4938
    %v5010 = vunpack.c.h.b16 %v4938
    %v5011 = vunpack.c.l.b16 %v4939
    %v5012 = vunpack.c.h.b16 %v4939
    %v5013 = vunpack.c.l.b16 %v4940
    %v5014 = vunpack.c.h.b16 %v4940
    %v5015 = vunpack.c.l.b16 %v4941
    %v5016 = vunpack.c.h.b16 %v4941
    %v5017 = vunpack.c.l.b16 %v4942
    %v5018 = vunpack.c.h.b16 %v4942
    %v5019 = vunpack.c.l.b16 %v4943
    %v5020 = vunpack.c.h.b16 %v4943
    %v5021 = vunpack.c.l.b16 %v4944
    %v5022 = vunpack.c.h.b16 %v4944
    %v5023 = vunpack.c.l.b16 %v4945
    %v5024 = vunpack.c.h.b16 %v4945
    %v5025 = vunpack.c.l.b16 %v4946
    %v5026 = vunpack.c.h.b16 %v4946
    %v5027 = vunpack.c.l.b16 %v4947
    %v5028 = vunpack.c.h.b16 %v4947
    %v5029 = vunpack.c.l.b16 %v4948
    %v5030 = vunpack.c.h.b16 %v4948
    %v5031 = vunpack.c.l.b16 %v4949
    %v5032 = vunpack.c.h.b16 %v4949
    %v5033 = vunpack.c.l.b16 %v4950
    %v5034 = vunpack.c.h.b16 %v4950
    %v5035 = vunpack.c.l.b16 %v4951
    %v5036 = vunpack.c.h.b16 %v4951
    %v5037 = vunpack.c.l.b16 %v4952
    %v5038 = vunpack.c.h.b16 %v4952
    %v5039 = vunpack.c.l.b16 %v4953
    %v5040 = vunpack.c.h.b16 %v4953
    %v5041 = vunpack.c.l.b16 %v4954
    %v5042 = vunpack.c.h.b16 %v4954
    %v5043 = vunpack.c.l.b16 %v4955
    %v5044 = vunpack.c.h.b16 %v4955
    %v5045 = vunpack.c.l.b16 %v4956
    %v5046 = vunpack.c.h.b16 %v4956
    %v5047 = vunpack.c.l.b16 %v4957
    %v5048 = vunpack.c.h.b16 %v4957
    %v5049 = vunpack.c.l.b16 %v4958
    %v5050 = vunpack.c.h.b16 %v4958
    %v5051 = vunpack.c.l.b16 %v4959
    %v5052 = vunpack.c.h.b16 %v4959
    %v5053 = vunpack.c.l.b16 %v4960
    %v5054 = vunpack.c.h.b16 %v4960
    %v5055 = vunpack.c.l.b16 %v4961
    %v5056 = vunpack.c.h.b16 %v4961
    %v5057 = vunpack.c.l.b16 %v4962
    %v5058 = vunpack.c.h.b16 %v4962
    %v5059 = vpack.c.b16 %v4999, %v4995
    %v5060 = vpack.c.b16 %v5000, %v4996
    %v5061 = vpack.c.b16 %v5001, %v4997
    %v5062 = vpack.c.b16 %v5002, %v4998
    %v5063 = vpack.c.b16 %v5007, %v5003
    %v5064 = vpack.c.b16 %v5008, %v5004
    %v5065 = vpack.c.b16 %v5009, %v5005
    %v5066 = vpack.c.b16 %v5010, %v5006
    %v5067 = vpack.c.b16 %v5015, %v5011
    %v5068 = vpack.c.b16 %v5016, %v5012
    %v5069 = vpack.c.b16 %v5017, %v5013
    %v5070 = vpack.c.b16 %v5018, %v5014
    %v5071 = vpack.c.b16 %v5023, %v5019
    %v5072 = vpack.c.b16 %v5024, %v5020
    %v5073 = vpack.c.b16 %v5025, %v5021
    %v5074 = vpack.c.b16 %v5026, %v5022
    %v5075 = vpack.c.b16 %v5031, %v5027
    %v5076 = vpack.c.b16 %v5032, %v5028
    %v5077 = vpack.c.b16 %v5033, %v5029
    %v5078 = vpack.c.b16 %v5034, %v5030
    %v5079 = vpack.c.b16 %v5039, %v5035
    %v5080 = vpack.c.b16 %v5040, %v5036
    %v5081 = vpack.c.b16 %v5041, %v5037
    %v5082 = vpack.c.b16 %v5042, %v5038
    %v5083 = vpack.c.b16 %v5047, %v5043
    %v5084 = vpack.c.b16 %v5048, %v5044
    %v5085 = vpack.c.b16 %v5049, %v5045
    %v5086 = vpack.c.b16 %v5050, %v5046
    %v5087 = vpack.c.b16 %v5055, %v5051
    %v5088 = vpack.c.b16 %v5056, %v5052
    %v5089 = vpack.c.b16 %v5057, %v5053
    %v5090 = vpack.c.b16 %v5058, %v5054
    %5123 = vmatprep.subr.bf16.mxu0 %v5088
    %5124 = vmatpush1.bf16.msra.mxu0 %v5087
    %5125 = vmatprep.subr.bf16.mxu0 %v5084
    %5126 = vmatpush1.bf16.msra.mxu0 %v5083
    %5127 = vmatprep.subr.bf16.mxu0 %v5080
    %5128 = vmatpush1.bf16.msra.mxu0 %v5079
    %5129 = vmatprep.subr.bf16.mxu0 %v5076
    %5130 = vmatpush1.bf16.msra.mxu0 %v5075
    %5131 = vmatprep.subr.bf16.mxu0 %v5072
    %5132 = vmatpush1.bf16.msra.mxu0 %v5071
    %5133 = vmatprep.subr.bf16.mxu0 %v5068
    %5134 = vmatpush1.bf16.msra.mxu0 %v5067
    %5135 = vmatprep.subr.bf16.mxu0 %v5064
    %5136 = vmatpush1.bf16.msra.mxu0 %v5063
    %5137 = vmatprep.subr.bf16.mxu0 %v5060
    %5138 = vmatpush1.bf16.msra.mxu0 %v5059
    %5139 = vmatprep.subr.bf16.mxu0 0
    %5140 = vmatpush2.bf16.msra.mxu0 0
    %5141 = vmatprep.subr.bf16.mxu0 0
    %5142 = vmatpush2.bf16.msra.mxu0 0
    %5143 = vmatprep.subr.bf16.mxu0 0
    %5144 = vmatpush2.bf16.msra.mxu0 0
    %5145 = vmatprep.subr.bf16.mxu0 0
    %5146 = vmatpush2.bf16.msra.mxu0 0
    %5147 = vmatprep.subr.bf16.mxu0 0
    %5148 = vmatpush2.bf16.msra.mxu0 0
    %5149 = vmatprep.subr.bf16.mxu0 0
    %5150 = vmatpush2.bf16.msra.mxu0 0
    %5151 = vmatprep.subr.bf16.mxu0 0
    %5152 = vmatpush2.bf16.msra.mxu0 0
    %5153 = vmatprep.subr.bf16.mxu0 0
    %5154 = vmatpush2.bf16.msra.mxu0 0
    %5155 = vmatprep.mubr.bf16.mxu0 0
    %5156 = vmatmul.mubr.bf16.gmra.mxu0 %v4930
    %v5157 = vpop.f32.mrf.mxu0
    %v5158 = vadd.f32 0.0, %v5157
    %v5159 = vpop.f32.mrf.mxu0
    %v5160 = vadd.f32 0.0, %v5159
    %v5161 = vpop.f32.mrf.mxu0
    %v5162 = vpop.f32.mrf.mxu0
    %5163 = vdwg.mxu0
    %5164 = vmatprep.subr.bf16.mxu0 %v5090
    %5165 = vmatpush1.bf16.msra.mxu0 %v5089
    %5166 = vmatprep.subr.bf16.mxu0 %v5086
    %5167 = vmatpush1.bf16.msra.mxu0 %v5085
    %5168 = vmatprep.subr.bf16.mxu0 %v5082
    %5169 = vmatpush1.bf16.msra.mxu0 %v5081
    %5170 = vmatprep.subr.bf16.mxu0 %v5078
    %5171 = vmatpush1.bf16.msra.mxu0 %v5077
    %5172 = vmatprep.subr.bf16.mxu0 %v5074
    %5173 = vmatpush1.bf16.msra.mxu0 %v5073
    %5174 = vmatprep.subr.bf16.mxu0 %v5070
    %5175 = vmatpush1.bf16.msra.mxu0 %v5069
    %5176 = vmatprep.subr.bf16.mxu0 %v5066
    %5177 = vmatpush1.bf16.msra.mxu0 %v5065
    %5178 = vmatprep.subr.bf16.mxu0 %v5062
    %5179 = vmatpush1.bf16.msra.mxu0 %v5061
    %5180 = vmatprep.subr.bf16.mxu0 0
    %5181 = vmatpush2.bf16.msra.mxu0 0
    %5182 = vmatprep.subr.bf16.mxu0 0
    %5183 = vmatpush2.bf16.msra.mxu0 0
    %5184 = vmatprep.subr.bf16.mxu0 0
    %5185 = vmatpush2.bf16.msra.mxu0 0
    %5186 = vmatprep.subr.bf16.mxu0 0
    %5187 = vmatpush2.bf16.msra.mxu0 0
    %5188 = vmatprep.subr.bf16.mxu0 0
    %5189 = vmatpush2.bf16.msra.mxu0 0
    %5190 = vmatprep.subr.bf16.mxu0 0
    %5191 = vmatpush2.bf16.msra.mxu0 0
    %5192 = vmatprep.subr.bf16.mxu0 0
    %5193 = vmatpush2.bf16.msra.mxu0 0
    %5194 = vmatprep.subr.bf16.mxu0 0
    %5195 = vmatpush2.bf16.msra.mxu0 0
    %5196 = vmatprep.mubr.bf16.mxu0 0
    %5197 = vmatmul.mubr.bf16.gmra.mxu0 %v4930
    %v5198 = vpop.f32.mrf.mxu0
    %v5199 = vadd.f32 0.0, %v5198
    %v5200 = vpop.f32.mrf.mxu0
    %v5201 = vadd.f32 0.0, %v5200
    %v5202 = vpop.f32.mrf.mxu0
    %v5203 = vpop.f32.mrf.mxu0
    %5204 = vdwg.mxu0
    %v5205 = vadd.f32 %v4926, %v5158
    %v5206 = vadd.f32 %v4927, %v5160
    %v5207 = vadd.f32 %v4928, %v5199
    %v5208 = vadd.f32 %v4929, %v5201
    %v5209 = vxor.u32 %v5205, 2147483648
    %v5210 = vxor.u32 %v5206, 2147483648
    %v5211 = vxor.u32 %v5207, 2147483648
    %v5212 = vmul.f32 %v5209, 1.442695
    %v5213 = vpow.pop %v5212
    %v5214 = vmul.f32 %v5210, 1.442695
    %v5215 = vpow.pop %v5214
    %v5216 = vmul.f32 %v5211, 1.442695
    %v5217 = vpow.pop %v5216
    %v5218 = vadd.f32 %v5213, 1.0
    %v5219 = vadd.f32 %v5215, 1.0
    %v5220 = vadd.f32 %v5217, 1.0
    %v5221 = vrcp.pop %v5218
    %v5222 = vmul.f32 1.0, %v5221
    %v5223 = vrcp.pop %v5219
    %v5224 = vmul.f32 1.0, %v5223
    %v5225 = vrcp.pop %v5220
    %v5226 = vmul.f32 1.0, %v5225
    %v5227 = vtanh.pop %v5208
    %v5228 = vmul.f32 %v5224, %v4922
    %v5229 = vmul.f32 %v5222, %v5227
    %v5230 = vadd.f32 %v5228, %v5229
    %v5231 = vtanh.pop %v5230
    %v5232 = vmul.f32 %v5226, %v5231
    %5233 = vst [vmem:[#allocation3 + $0x70] sm:$0xff] %v5232
    %v5234 = vld [vmem:[#allocation2 + $0x1e0] sm:$0xff]
    %v5235 = vld [vmem:[#allocation2 + $0x1e8] sm:$0xff]
    %v5236 = vld [vmem:[#allocation2 + $0x1f0] sm:$0xff]
    %v5237 = vld [vmem:[#allocation2 + $0x1f8] sm:$0xff]
    %v5238 = vpack.c.bf16 %v5232, %v5232
    %v5239 = vld [vmem:[%s2] sm:$0xff]
    %v5240 = vld [vmem:[%s2 + $0x8] sm:$0xff]
    %v5241 = vld [vmem:[%s2 + $0x10] sm:$0xff]
    %v5242 = vld [vmem:[%s2 + $0x18] sm:$0xff]
    %v5243 = vld [vmem:[%s2 + $0x20] sm:$0xff]
    %v5244 = vld [vmem:[%s2 + $0x28] sm:$0xff]
    %v5245 = vld [vmem:[%s2 + $0x30] sm:$0xff]
    %v5246 = vld [vmem:[%s2 + $0x38] sm:$0xff]
    %v5247 = vld [vmem:[%s2 + $0x40] sm:$0xff]
    %v5248 = vld [vmem:[%s2 + $0x48] sm:$0xff]
    %v5249 = vld [vmem:[%s2 + $0x50] sm:$0xff]
    %v5250 = vld [vmem:[%s2 + $0x58] sm:$0xff]
    %v5251 = vld [vmem:[%s2 + $0x60] sm:$0xff]
    %v5252 = vld [vmem:[%s2 + $0x68] sm:$0xff]
    %v5253 = vld [vmem:[%s2 + $0x70] sm:$0xff]
    %v5254 = vld [vmem:[%s2 + $0x78] sm:$0xff]
    %v5255 = vld [vmem:[%s2 + $0x80] sm:$0xff]
    %v5256 = vld [vmem:[%s2 + $0x88] sm:$0xff]
    %v5257 = vld [vmem:[%s2 + $0x90] sm:$0xff]
    %v5258 = vld [vmem:[%s2 + $0x98] sm:$0xff]
    %v5259 = vld [vmem:[%s2 + $0xa0] sm:$0xff]
    %v5260 = vld [vmem:[%s2 + $0xa8] sm:$0xff]
    %v5261 = vld [vmem:[%s2 + $0xb0] sm:$0xff]
    %v5262 = vld [vmem:[%s2 + $0xb8] sm:$0xff]
    %v5263 = vld [vmem:[%s2 + $0xc0] sm:$0xff]
    %v5264 = vld [vmem:[%s2 + $0xc8] sm:$0xff]
    %v5265 = vld [vmem:[%s2 + $0xd0] sm:$0xff]
    %v5266 = vld [vmem:[%s2 + $0xd8] sm:$0xff]
    %v5267 = vld [vmem:[%s2 + $0xe0] sm:$0xff]
    %v5268 = vld [vmem:[%s2 + $0xe8] sm:$0xff]
    %v5269 = vld [vmem:[%s2 + $0xf0] sm:$0xff]
    %v5270 = vld [vmem:[%s2 + $0xf8] sm:$0xff]
    %v5303 = vunpack.c.l.b16 %v5239
    %v5304 = vunpack.c.h.b16 %v5239
    %v5305 = vunpack.c.l.b16 %v5240
    %v5306 = vunpack.c.h.b16 %v5240
    %v5307 = vunpack.c.l.b16 %v5241
    %v5308 = vunpack.c.h.b16 %v5241
    %v5309 = vunpack.c.l.b16 %v5242
    %v5310 = vunpack.c.h.b16 %v5242
    %v5311 = vunpack.c.l.b16 %v5243
    %v5312 = vunpack.c.h.b16 %v5243
    %v5313 = vunpack.c.l.b16 %v5244
    %v5314 = vunpack.c.h.b16 %v5244
    %v5315 = vunpack.c.l.b16 %v5245
    %v5316 = vunpack.c.h.b16 %v5245
    %v5317 = vunpack.c.l.b16 %v5246
    %v5318 = vunpack.c.h.b16 %v5246
    %v5319 = vunpack.c.l.b16 %v5247
    %v5320 = vunpack.c.h.b16 %v5247
    %v5321 = vunpack.c.l.b16 %v5248
    %v5322 = vunpack.c.h.b16 %v5248
    %v5323 = vunpack.c.l.b16 %v5249
    %v5324 = vunpack.c.h.b16 %v5249
    %v5325 = vunpack.c.l.b16 %v5250
    %v5326 = vunpack.c.h.b16 %v5250
    %v5327 = vunpack.c.l.b16 %v5251
    %v5328 = vunpack.c.h.b16 %v5251
    %v5329 = vunpack.c.l.b16 %v5252
    %v5330 = vunpack.c.h.b16 %v5252
    %v5331 = vunpack.c.l.b16 %v5253
    %v5332 = vunpack.c.h.b16 %v5253
    %v5333 = vunpack.c.l.b16 %v5254
    %v5334 = vunpack.c.h.b16 %v5254
    %v5335 = vunpack.c.l.b16 %v5255
    %v5336 = vunpack.c.h.b16 %v5255
    %v5337 = vunpack.c.l.b16 %v5256
    %v5338 = vunpack.c.h.b16 %v5256
    %v5339 = vunpack.c.l.b16 %v5257
    %v5340 = vunpack.c.h.b16 %v5257
    %v5341 = vunpack.c.l.b16 %v5258
    %v5342 = vunpack.c.h.b16 %v5258
    %v5343 = vunpack.c.l.b16 %v5259
    %v5344 = vunpack.c.h.b16 %v5259
    %v5345 = vunpack.c.l.b16 %v5260
    %v5346 = vunpack.c.h.b16 %v5260
    %v5347 = vunpack.c.l.b16 %v5261
    %v5348 = vunpack.c.h.b16 %v5261
    %v5349 = vunpack.c.l.b16 %v5262
    %v5350 = vunpack.c.h.b16 %v5262
    %v5351 = vunpack.c.l.b16 %v5263
    %v5352 = vunpack.c.h.b16 %v5263
    %v5353 = vunpack.c.l.b16 %v5264
    %v5354 = vunpack.c.h.b16 %v5264
    %v5355 = vunpack.c.l.b16 %v5265
    %v5356 = vunpack.c.h.b16 %v5265
    %v5357 = vunpack.c.l.b16 %v5266
    %v5358 = vunpack.c.h.b16 %v5266
    %v5359 = vunpack.c.l.b16 %v5267
    %v5360 = vunpack.c.h.b16 %v5267
    %v5361 = vunpack.c.l.b16 %v5268
    %v5362 = vunpack.c.h.b16 %v5268
    %v5363 = vunpack.c.l.b16 %v5269
    %v5364 = vunpack.c.h.b16 %v5269
    %v5365 = vunpack.c.l.b16 %v5270
    %v5366 = vunpack.c.h.b16 %v5270
    %v5367 = vpack.c.b16 %v5307, %v5303
    %v5368 = vpack.c.b16 %v5308, %v5304
    %v5369 = vpack.c.b16 %v5309, %v5305
    %v5370 = vpack.c.b16 %v5310, %v5306
    %v5371 = vpack.c.b16 %v5315, %v5311
    %v5372 = vpack.c.b16 %v5316, %v5312
    %v5373 = vpack.c.b16 %v5317, %v5313
    %v5374 = vpack.c.b16 %v5318, %v5314
    %v5375 = vpack.c.b16 %v5323, %v5319
    %v5376 = vpack.c.b16 %v5324, %v5320
    %v5377 = vpack.c.b16 %v5325, %v5321
    %v5378 = vpack.c.b16 %v5326, %v5322
    %v5379 = vpack.c.b16 %v5331, %v5327
    %v5380 = vpack.c.b16 %v5332, %v5328
    %v5381 = vpack.c.b16 %v5333, %v5329
    %v5382 = vpack.c.b16 %v5334, %v5330
    %v5383 = vpack.c.b16 %v5339, %v5335
    %v5384 = vpack.c.b16 %v5340, %v5336
    %v5385 = vpack.c.b16 %v5341, %v5337
    %v5386 = vpack.c.b16 %v5342, %v5338
    %v5387 = vpack.c.b16 %v5347, %v5343
    %v5388 = vpack.c.b16 %v5348, %v5344
    %v5389 = vpack.c.b16 %v5349, %v5345
    %v5390 = vpack.c.b16 %v5350, %v5346
    %v5391 = vpack.c.b16 %v5355, %v5351
    %v5392 = vpack.c.b16 %v5356, %v5352
    %v5393 = vpack.c.b16 %v5357, %v5353
    %v5394 = vpack.c.b16 %v5358, %v5354
    %v5395 = vpack.c.b16 %v5363, %v5359
    %v5396 = vpack.c.b16 %v5364, %v5360
    %v5397 = vpack.c.b16 %v5365, %v5361
    %v5398 = vpack.c.b16 %v5366, %v5362
    %5431 = vmatprep.subr.bf16.mxu0 %v5396
    %5432 = vmatpush1.bf16.msra.mxu0 %v5395
    %5433 = vmatprep.subr.bf16.mxu0 %v5392
    %5434 = vmatpush1.bf16.msra.mxu0 %v5391
    %5435 = vmatprep.subr.bf16.mxu0 %v5388
    %5436 = vmatpush1.bf16.msra.mxu0 %v5387
    %5437 = vmatprep.subr.bf16.mxu0 %v5384
    %5438 = vmatpush1.bf16.msra.mxu0 %v5383
    %5439 = vmatprep.subr.bf16.mxu0 %v5380
    %5440 = vmatpush1.bf16.msra.mxu0 %v5379
    %5441 = vmatprep.subr.bf16.mxu0 %v5376
    %5442 = vmatpush1.bf16.msra.mxu0 %v5375
    %5443 = vmatprep.subr.bf16.mxu0 %v5372
    %5444 = vmatpush1.bf16.msra.mxu0 %v5371
    %5445 = vmatprep.subr.bf16.mxu0 %v5368
    %5446 = vmatpush1.bf16.msra.mxu0 %v5367
    %5447 = vmatprep.subr.bf16.mxu0 0
    %5448 = vmatpush2.bf16.msra.mxu0 0
    %5449 = vmatprep.subr.bf16.mxu0 0
    %5450 = vmatpush2.bf16.msra.mxu0 0
    %5451 = vmatprep.subr.bf16.mxu0 0
    %5452 = vmatpush2.bf16.msra.mxu0 0
    %5453 = vmatprep.subr.bf16.mxu0 0
    %5454 = vmatpush2.bf16.msra.mxu0 0
    %5455 = vmatprep.subr.bf16.mxu0 0
    %5456 = vmatpush2.bf16.msra.mxu0 0
    %5457 = vmatprep.subr.bf16.mxu0 0
    %5458 = vmatpush2.bf16.msra.mxu0 0
    %5459 = vmatprep.subr.bf16.mxu0 0
    %5460 = vmatpush2.bf16.msra.mxu0 0
    %5461 = vmatprep.subr.bf16.mxu0 0
    %5462 = vmatpush2.bf16.msra.mxu0 0
    %5463 = vmatprep.mubr.bf16.mxu0 0
    %5464 = vmatmul.mubr.bf16.gmra.mxu0 %v5238
    %v5465 = vpop.f32.mrf.mxu0
    %v5466 = vadd.f32 0.0, %v5465
    %v5467 = vpop.f32.mrf.mxu0
    %v5468 = vadd.f32 0.0, %v5467
    %v5469 = vpop.f32.mrf.mxu0
    %v5470 = vpop.f32.mrf.mxu0
    %5471 = vdwg.mxu0
    %5472 = vmatprep.subr.bf16.mxu0 %v5398
    %5473 = vmatpush1.bf16.msra.mxu0 %v5397
    %5474 = vmatprep.subr.bf16.mxu0 %v5394
    %5475 = vmatpush1.bf16.msra.mxu0 %v5393
    %5476 = vmatprep.subr.bf16.mxu0 %v5390
    %5477 = vmatpush1.bf16.msra.mxu0 %v5389
    %5478 = vmatprep.subr.bf16.mxu0 %v5386
    %5479 = vmatpush1.bf16.msra.mxu0 %v5385
    %5480 = vmatprep.subr.bf16.mxu0 %v5382
    %5481 = vmatpush1.bf16.msra.mxu0 %v5381
    %5482 = vmatprep.subr.bf16.mxu0 %v5378
    %5483 = vmatpush1.bf16.msra.mxu0 %v5377
    %5484 = vmatprep.subr.bf16.mxu0 %v5374
    %5485 = vmatpush1.bf16.msra.mxu0 %v5373
    %5486 = vmatprep.subr.bf16.mxu0 %v5370
    %5487 = vmatpush1.bf16.msra.mxu0 %v5369
    %5488 = vmatprep.subr.bf16.mxu0 0
    %5489 = vmatpush2.bf16.msra.mxu0 0
    %5490 = vmatprep.subr.bf16.mxu0 0
    %5491 = vmatpush2.bf16.msra.mxu0 0
    %5492 = vmatprep.subr.bf16.mxu0 0
    %5493 = vmatpush2.bf16.msra.mxu0 0
    %5494 = vmatprep.subr.bf16.mxu0 0
    %5495 = vmatpush2.bf16.msra.mxu0 0
    %5496 = vmatprep.subr.bf16.mxu0 0
    %5497 = vmatpush2.bf16.msra.mxu0 0
    %5498 = vmatprep.subr.bf16.mxu0 0
    %5499 = vmatpush2.bf16.msra.mxu0 0
    %5500 = vmatprep.subr.bf16.mxu0 0
    %5501 = vmatpush2.bf16.msra.mxu0 0
    %5502 = vmatprep.subr.bf16.mxu0 0
    %5503 = vmatpush2.bf16.msra.mxu0 0
    %5504 = vmatprep.mubr.bf16.mxu0 0
    %5505 = vmatmul.mubr.bf16.gmra.mxu0 %v5238
    %v5506 = vpop.f32.mrf.mxu0
    %v5507 = vadd.f32 0.0, %v5506
    %v5508 = vpop.f32.mrf.mxu0
    %v5509 = vadd.f32 0.0, %v5508
    %v5510 = vpop.f32.mrf.mxu0
    %v5511 = vpop.f32.mrf.mxu0
    %5512 = vdwg.mxu0
    %v5513 = vadd.f32 %v5234, %v5466
    %v5514 = vadd.f32 %v5235, %v5468
    %v5515 = vadd.f32 %v5236, %v5507
    %v5516 = vadd.f32 %v5237, %v5509
    %v5517 = vxor.u32 %v5513, 2147483648
    %v5518 = vxor.u32 %v5514, 2147483648
    %v5519 = vxor.u32 %v5515, 2147483648
    %v5520 = vmul.f32 %v5517, 1.442695
    %v5521 = vpow.pop %v5520
    %v5522 = vmul.f32 %v5518, 1.442695
    %v5523 = vpow.pop %v5522
    %v5524 = vmul.f32 %v5519, 1.442695
    %v5525 = vpow.pop %v5524
    %v5526 = vadd.f32 %v5521, 1.0
    %v5527 = vadd.f32 %v5523, 1.0
    %v5528 = vadd.f32 %v5525, 1.0
    %v5529 = vrcp.pop %v5526
    %v5530 = vmul.f32 1.0, %v5529
    %v5531 = vrcp.pop %v5527
    %v5532 = vmul.f32 1.0, %v5531
    %v5533 = vrcp.pop %v5528
    %v5534 = vmul.f32 1.0, %v5533
    %v5535 = vtanh.pop %v5516
    %v5536 = vmul.f32 %v5532, %v5230
    %v5537 = vmul.f32 %v5530, %v5535
    %v5538 = vadd.f32 %v5536, %v5537
    %v5539 = vtanh.pop %v5538
    %v5540 = vmul.f32 %v5534, %v5539
    %5541 = vst [vmem:[#allocation3 + $0x78] sm:$0xff] %v5540
    %5542 = vst [vmem:[%s9] sm:$0xff] %v5540
    %5543 = vst [vmem:[%s10] sm:$0xff] %v5538
    %v5544 = vld [vmem:[#allocation3] sm:$0xff]
    %v5545 = vld [vmem:[#allocation3 + $0x8] sm:$0xff]
    %v5546 = vld [vmem:[#allocation3 + $0x10] sm:$0xff]
    %v5547 = vld [vmem:[#allocation3 + $0x18] sm:$0xff]
    %v5548 = vld [vmem:[#allocation3 + $0x20] sm:$0xff]
    %v5549 = vld [vmem:[#allocation3 + $0x28] sm:$0xff]
    %v5550 = vld [vmem:[#allocation3 + $0x30] sm:$0xff]
    %v5551 = vld [vmem:[#allocation3 + $0x38] sm:$0xff]
    %v5552 = vld [vmem:[#allocation3 + $0x40] sm:$0xff]
    %v5553 = vld [vmem:[#allocation3 + $0x48] sm:$0xff]
    %v5554 = vld [vmem:[#allocation3 + $0x50] sm:$0xff]
    %v5555 = vld [vmem:[#allocation3 + $0x58] sm:$0xff]
    %v5556 = vld [vmem:[#allocation3 + $0x60] sm:$0xff]
    %v5557 = vld [vmem:[#allocation3 + $0x68] sm:$0xff]
    %v5558 = vld [vmem:[#allocation3 + $0x70] sm:$0xff]
    %v5559 = vld [vmem:[#allocation3 + $0x78] sm:$0xff]
    %v5560 = vpack.c.bf16 %v5545, %v5544
    %v5561 = vpack.c.bf16 %v5547, %v5546
    %v5562 = vpack.c.bf16 %v5549, %v5548
    %v5563 = vpack.c.bf16 %v5551, %v5550
    %v5564 = vpack.c.bf16 %v5553, %v5552
    %v5565 = vpack.c.bf16 %v5555, %v5554
    %v5566 = vpack.c.bf16 %v5557, %v5556
    %v5567 = vpack.c.bf16 %v5559, %v5558
    %v5576 = vunpack.c.l.b16 %v5560
    %v5577 = vunpack.c.h.b16 %v5560
    %v5578 = vunpack.c.l.b16 %v5561
    %v5579 = vunpack.c.h.b16 %v5561
    %v5580 = vunpack.c.l.b16 %v5562
    %v5581 = vunpack.c.h.b16 %v5562
    %v5582 = vunpack.c.l.b16 %v5563
    %v5583 = vunpack.c.h.b16 %v5563
    %v5584 = vunpack.c.l.b16 %v5564
    %v5585 = vunpack.c.h.b16 %v5564
    %v5586 = vunpack.c.l.b16 %v5565
    %v5587 = vunpack.c.h.b16 %v5565
    %v5588 = vunpack.c.l.b16 %v5566
    %v5589 = vunpack.c.h.b16 %v5566
    %v5590 = vunpack.c.l.b16 %v5567
    %v5591 = vunpack.c.h.b16 %v5567
    %v5592 = vpack.c.b16 %v5576, %v5576
    %v5593 = vpack.c.b16 %v5577, %v5577
    %v5594 = vpack.c.b16 %v5578, %v5578
    %v5595 = vpack.c.b16 %v5579, %v5579
    %v5596 = vpack.c.b16 %v5580, %v5580
    %v5597 = vpack.c.b16 %v5581, %v5581
    %v5598 = vpack.c.b16 %v5582, %v5582
    %v5599 = vpack.c.b16 %v5583, %v5583
    %v5600 = vpack.c.b16 %v5584, %v5584
    %v5601 = vpack.c.b16 %v5585, %v5585
    %v5602 = vpack.c.b16 %v5586, %v5586
    %v5603 = vpack.c.b16 %v5587, %v5587
    %v5604 = vpack.c.b16 %v5588, %v5588
    %v5605 = vpack.c.b16 %v5589, %v5589
    %v5606 = vpack.c.b16 %v5590, %v5590
    %v5607 = vpack.c.b16 %v5591, %v5591
    %5624 = vst [vmem:[#allocation4] sm:$0xf] %v5592
    %5625 = vst [vmem:[#allocation4 + $0x4] sm:$0xf] %v5593
    %5626 = vst [vmem:[#allocation4 + $0x8] sm:$0xf] %v5594
    %5627 = vst [vmem:[#allocation4 + $0xc] sm:$0xf] %v5595
    %5628 = vst [vmem:[#allocation4 + $0x10] sm:$0xf] %v5596
    %5629 = vst [vmem:[#allocation4 + $0x14] sm:$0xf] %v5597
    %5630 = vst [vmem:[#allocation4 + $0x18] sm:$0xf] %v5598
    %5631 = vst [vmem:[#allocation4 + $0x1c] sm:$0xf] %v5599
    %5632 = vst [vmem:[#allocation4 + $0x20] sm:$0xf] %v5600
    %5633 = vst [vmem:[#allocation4 + $0x24] sm:$0xf] %v5601
    %5634 = vst [vmem:[#allocation4 + $0x28] sm:$0xf] %v5602
    %5635 = vst [vmem:[#allocation4 + $0x2c] sm:$0xf] %v5603
    %5636 = vst [vmem:[#allocation4 + $0x30] sm:$0xf] %v5604
    %5637 = vst [vmem:[#allocation4 + $0x34] sm:$0xf] %v5605
    %5638 = vst [vmem:[#allocation4 + $0x38] sm:$0xf] %v5606
    %5639 = vst [vmem:[#allocation4 + $0x3c] sm:$0xf] %v5607
    // Predicated region
    $region38: #{rnn_model_forward.3} parent=1 // pred_check
      %p5640 = pneg %p604
    $region39: #{rnn_model_forward.3} parent=1 // pred_check_branch
      %5642 = sbr.rel (%p5640) target = $region41
    $region40: #{rnn_model_forward.3} parent=1 // pred_region
      %v5643 = vpack.c.bf16 %v5540, %v5540
      %v5644 = vld [vmem:[%s6] sm:$0xff]
      %v5645 = vld [vmem:[%s6 + $0x8] sm:$0xff]
      %v5646 = vld [vmem:[%s6 + $0x10] sm:$0xff]
      %v5647 = vld [vmem:[%s6 + $0x18] sm:$0xff]
      %v5648 = vld [vmem:[%s6 + $0x20] sm:$0xff]
      %v5649 = vld [vmem:[%s6 + $0x28] sm:$0xff]
      %v5650 = vld [vmem:[%s6 + $0x30] sm:$0xff]
      %v5651 = vld [vmem:[%s6 + $0x38] sm:$0xff]
      %v5652 = vld [vmem:[%s6 + $0x40] sm:$0xff]
      %v5653 = vld [vmem:[%s6 + $0x48] sm:$0xff]
      %v5654 = vld [vmem:[%s6 + $0x50] sm:$0xff]
      %v5655 = vld [vmem:[%s6 + $0x58] sm:$0xff]
      %v5656 = vld [vmem:[%s6 + $0x60] sm:$0xff]
      %v5657 = vld [vmem:[%s6 + $0x68] sm:$0xff]
      %v5658 = vld [vmem:[%s6 + $0x70] sm:$0xff]
      %v5659 = vld [vmem:[%s6 + $0x78] sm:$0xff]
      %v5660 = vld [vmem:[%s7] sm:$0x3]
      %v5662 = vlaneseq
      %v5663 = vshrl.u32 %v5662, 7
      %v5664 = vsub.s32 0, %v5663
      %v5665 = vrot.slane %v5660, %v5664
      %v5666 = vlaneseq
      %v5667 = vshrl.u32 %v5666, 7
      %v5668 = vsub.s32 1, %v5667
      %v5669 = vrot.slane %v5660, %v5668
      %v5688 = vunpack.c.l.b16 %v5644
      %v5689 = vunpack.c.h.b16 %v5644
      %v5690 = vunpack.c.l.b16 %v5645
      %v5691 = vunpack.c.h.b16 %v5645
      %v5692 = vunpack.c.l.b16 %v5646
      %v5693 = vunpack.c.h.b16 %v5646
      %v5694 = vunpack.c.l.b16 %v5647
      %v5695 = vunpack.c.h.b16 %v5647
      %v5696 = vunpack.c.l.b16 %v5648
      %v5697 = vunpack.c.h.b16 %v5648
      %v5698 = vunpack.c.l.b16 %v5649
      %v5699 = vunpack.c.h.b16 %v5649
      %v5700 = vunpack.c.l.b16 %v5650
      %v5701 = vunpack.c.h.b16 %v5650
      %v5702 = vunpack.c.l.b16 %v5651
      %v5703 = vunpack.c.h.b16 %v5651
      %v5704 = vunpack.c.l.b16 %v5652
      %v5705 = vunpack.c.h.b16 %v5652
      %v5706 = vunpack.c.l.b16 %v5653
      %v5707 = vunpack.c.h.b16 %v5653
      %v5708 = vunpack.c.l.b16 %v5654
      %v5709 = vunpack.c.h.b16 %v5654
      %v5710 = vunpack.c.l.b16 %v5655
      %v5711 = vunpack.c.h.b16 %v5655
      %v5712 = vunpack.c.l.b16 %v5656
      %v5713 = vunpack.c.h.b16 %v5656
      %v5714 = vunpack.c.l.b16 %v5657
      %v5715 = vunpack.c.h.b16 %v5657
      %v5716 = vunpack.c.l.b16 %v5658
      %v5717 = vunpack.c.h.b16 %v5658
      %v5718 = vunpack.c.l.b16 %v5659
      %v5719 = vunpack.c.h.b16 %v5659
      %v5720 = vpack.c.b16 %v5690, %v5688
      %v5721 = vpack.c.b16 %v5691, %v5689
      %v5722 = vpack.c.b16 %v5694, %v5692
      %v5723 = vpack.c.b16 %v5695, %v5693
      %v5724 = vpack.c.b16 %v5698, %v5696
      %v5725 = vpack.c.b16 %v5699, %v5697
      %v5726 = vpack.c.b16 %v5702, %v5700
      %v5727 = vpack.c.b16 %v5703, %v5701
      %v5728 = vpack.c.b16 %v5706, %v5704
      %v5729 = vpack.c.b16 %v5707, %v5705
      %v5730 = vpack.c.b16 %v5710, %v5708
      %v5731 = vpack.c.b16 %v5711, %v5709
      %v5732 = vpack.c.b16 %v5714, %v5712
      %v5733 = vpack.c.b16 %v5715, %v5713
      %v5734 = vpack.c.b16 %v5718, %v5716
      %v5735 = vpack.c.b16 %v5719, %v5717
      %5752 = vmatprep.subr.bf16.mxu0 %v5735
      %5753 = vmatpush1.bf16.msra.mxu0 %v5734
      %5754 = vmatprep.subr.bf16.mxu0 %v5733
      %5755 = vmatpush1.bf16.msra.mxu0 %v5732
      %5756 = vmatprep.subr.bf16.mxu0 %v5731
      %5757 = vmatpush1.bf16.msra.mxu0 %v5730
      %5758 = vmatprep.subr.bf16.mxu0 %v5729
      %5759 = vmatpush1.bf16.msra.mxu0 %v5728
      %5760 = vmatprep.subr.bf16.mxu0 %v5727
      %5761 = vmatpush1.bf16.msra.mxu0 %v5726
      %5762 = vmatprep.subr.bf16.mxu0 %v5725
      %5763 = vmatpush1.bf16.msra.mxu0 %v5724
      %5764 = vmatprep.subr.bf16.mxu0 %v5723
      %5765 = vmatpush1.bf16.msra.mxu0 %v5722
      %5766 = vmatprep.subr.bf16.mxu0 %v5721
      %5767 = vmatpush1.bf16.msra.mxu0 %v5720
      %5768 = vmatprep.subr.bf16.mxu0 0
      %5769 = vmatpush2.bf16.msra.mxu0 0
      %5770 = vmatprep.subr.bf16.mxu0 0
      %5771 = vmatpush2.bf16.msra.mxu0 0
      %5772 = vmatprep.subr.bf16.mxu0 0
      %5773 = vmatpush2.bf16.msra.mxu0 0
      %5774 = vmatprep.subr.bf16.mxu0 0
      %5775 = vmatpush2.bf16.msra.mxu0 0
      %5776 = vmatprep.subr.bf16.mxu0 0
      %5777 = vmatpush2.bf16.msra.mxu0 0
      %5778 = vmatprep.subr.bf16.mxu0 0
      %5779 = vmatpush2.bf16.msra.mxu0 0
      %5780 = vmatprep.subr.bf16.mxu0 0
      %5781 = vmatpush2.bf16.msra.mxu0 0
      %5782 = vmatprep.subr.bf16.mxu0 0
      %5783 = vmatpush2.bf16.msra.mxu0 0
      %5784 = vmatprep.mubr.bf16.mxu0 0
      %5785 = vmatmul.mubr.bf16.gmra.mxu0 %v5643
      %v5786 = vpop.f32.mrf.mxu0
      %v5787 = vadd.f32 %v5665, %v5786
      %v5788 = vpop.f32.mrf.mxu0
      %v5789 = vadd.f32 %v5669, %v5788
      %v5790 = vpop.f32.mrf.mxu0
      %v5791 = vpop.f32.mrf.mxu0
      %5792 = vdwg.mxu0
      %5793 = vst [vmem:[#allocation6] sm:$0xff] %v5787
      %5794 = vst [vmem:[#allocation6 + $0x8] sm:$0xff] %v5789
    $region41: #{rnn_model_forward.3} parent=1 // pred_fallthru
      _
    // Predicated region
    $region42: #{rnn_model_forward.3} parent=1 // pred_check
      _
    $region43: #{rnn_model_forward.3} parent=1 // pred_check_branch
      %5796 = sbr.rel (0) target = $region45
    $region44: #{rnn_model_forward.3} parent=1 // pred_region
      %s5798 = ssub.s32 1024, 1024
      %5799 = vsyncadd [#allocation5], %s5798
      %s5800 = sshll.u32 [#allocation4], 4
      %s5801 = int_to_ptr.vmem [resolvable:$true] %s5800
      %5806 = dma.vmem_to_hbm [thread:$0]  %s5801, 1024, %s8, [#allocation5], 64, 64, 4
    $region45: #{rnn_model_forward.3} parent=1 // pred_fallthru
      _
    // Predicated region
    $region46: #{rnn_model_forward.3} parent=1 // pred_check
      _
    $region47: #{rnn_model_forward.3} parent=1 // pred_check_branch
      %5808 = sbr.rel (0) target = $region49
    $region48: #{rnn_model_forward.3} parent=1 // pred_region
      _
    $region49: #{rnn_model_forward.3} parent=1 // pred_fallthru
      _
    // Predicated region
    $region50: #{rnn_model_forward.3} parent=1 // pred_check
      _
    $region51: #{rnn_model_forward.3} parent=1 // pred_check_branch
      %5810 = sbr.rel (0) target = $region53
    $region52: #{rnn_model_forward.3} parent=1 // pred_region
      _
    $region53: #{rnn_model_forward.3} parent=1 // pred_fallthru
      _
    // Predicated region
    $region54: #{rnn_model_forward.3} parent=1 // pred_check
      _
    $region55: #{rnn_model_forward.3} parent=1 // pred_check_branch
      %5812 = sbr.rel (0) target = $region57
    $region56: #{rnn_model_forward.3} parent=1 // pred_region
      %s5814 = ssub.s32 256, 256
      %5815 = vsyncadd [#allocation7], %s5814
      %s5817 = sshll.u32 [#allocation6], 4
      %s5818 = int_to_ptr.vmem [resolvable:$true] %s5817
      %5820 = dma.vmem_to_hbm [thread:$0]  %s5818, 256, %s11, [#allocation7]
    $region57: #{rnn_model_forward.3} parent=1 // pred_fallthru
      _
    // Predicated region
    $region58: #{rnn_model_forward.3} parent=1 // pred_check
      _
    $region59: #{rnn_model_forward.3} parent=1 // pred_check_branch
      %5822 = sbr.rel (0) target = $region61
    $region60: #{rnn_model_forward.3} parent=1 // pred_region
      %5823 = dma.done [#allocation5], 1024
    $region61: #{rnn_model_forward.3} parent=1 // pred_fallthru
      _
    // Predicated region
    $region62: #{rnn_model_forward.3} parent=1 // pred_check
      _
    $region63: #{rnn_model_forward.3} parent=1 // pred_check_branch
      %5825 = sbr.rel (0) target = $region65
    $region64: #{rnn_model_forward.3} parent=1 // pred_region
      _
    $region65: #{rnn_model_forward.3} parent=1 // pred_fallthru
      _
    // Predicated region
    $region66: #{rnn_model_forward.3} parent=1 // pred_check
      _
    $region67: #{rnn_model_forward.3} parent=1 // pred_check_branch
      %5827 = sbr.rel (0) target = $region69
    $region68: #{rnn_model_forward.3} parent=1 // pred_region
      _
    $region69: #{rnn_model_forward.3} parent=1 // pred_fallthru
      _
    // Predicated region
    $region70: #{rnn_model_forward.3} parent=1 // pred_check
      _
    $region71: #{rnn_model_forward.3} parent=1 // pred_check_branch
      %5829 = sbr.rel (0) target = $region73
    $region72: #{rnn_model_forward.3} parent=1 // pred_region
      %5830 = dma.done [#allocation7], 256
    $region73: #{rnn_model_forward.3} parent=1 // pred_fallthru
      _
    %5831 = vsyncpa [#allocation5], 1
    %5832 = vsyncpa [#allocation7], 1

// kernel: rnn_model_forward.2
$region0: #{rnn_model_forward.2}
  #allocation0 [shape = 'u32[]', space=smem, size = 0x4, offset = 0x4, fixed_abs, tag = 'smem constant byte address 0x4 - core index']
  #allocation1 [shape = 'u32[144,128]{1,0:T(1,128)}', space=vmem, size = 0x12000, scoped, tag = 'internal scratch']
  #allocation2 [shape = 'f32[128,512]{1,0:T(8,128)}', space=vmem, size = 0x40000, scoped, tag = 'scratch operand']
  #allocation3 [shape = 'f32[128,128]{1,0:T(8,128)}', space=vmem, size = 0x10000, scoped, tag = 'scratch operand']
  %s0 = inlined_call_operand.vmem [shape: bf16[128,128], index: 0, kind: input, shape index: {}]
  %s1 = inlined_call_operand.vmem [shape: bf16[128,512], index: 1, kind: input, shape index: {}]
  %s2 = inlined_call_operand.vmem [shape: bf16[128,512], index: 2, kind: input, shape index: {}]
  %s3 = inlined_call_operand.vmem [shape: f32[1,512], index: 3, kind: input, shape index: {}]
  %s4 = inlined_call_operand.vmem [shape: f32[8,128], index: 4, kind: input, shape index: {}]
  %s5 = inlined_call_operand.vmem [shape: f32[8,128], index: 5, kind: input, shape index: {}]
  %s6 = inlined_call_operand.vmem [shape: bf16[128,128], index: 6, kind: output, shape index: {0}]
  %s7 = inlined_call_operand.vmem [shape: f32[8,128], index: 7, kind: output, shape index: {1}]
  %s8 = inlined_call_operand.vmem [shape: f32[8,128], index: 8, kind: output, shape index: {2}]
  %9 = xla_tuple %s6, %s7, %s8
  %s10 = sld [smem:[#allocation0]]
  $region54: #{rnn_model_forward.2} parent=0
    _
  %s12 = ssub.s32 1, %s10
  %s13 = scalar_select 0, %s12, %s10
  // Predicated region
  $region2: #{rnn_model_forward.2} parent=0 // pred_check
    _
  $region3: #{rnn_model_forward.2} parent=0 // pred_check_branch
    %15 = sbr.rel (0) target = $region5
  $region4: #{rnn_model_forward.2} parent=0 // pred_region
    _
  $region5: #{rnn_model_forward.2} parent=0 // pred_fallthru
    _
  // Predicated region
  $region6: #{rnn_model_forward.2} parent=0 // pred_check
    _
  $region7: #{rnn_model_forward.2} parent=0 // pred_check_branch
    %17 = sbr.rel (0) target = $region9
  $region8: #{rnn_model_forward.2} parent=0 // pred_region
    _
  $region9: #{rnn_model_forward.2} parent=0 // pred_fallthru
    _
  // Predicated region
  $region10: #{rnn_model_forward.2} parent=0 // pred_check
    _
  $region11: #{rnn_model_forward.2} parent=0 // pred_check_branch
    %19 = sbr.rel (0) target = $region13
  $region12: #{rnn_model_forward.2} parent=0 // pred_region
    _
  $region13: #{rnn_model_forward.2} parent=0 // pred_fallthru
    _
  // Predicated region
  $region14: #{rnn_model_forward.2} parent=0 // pred_check
    _
  $region15: #{rnn_model_forward.2} parent=0 // pred_check_branch
    %21 = sbr.rel (0) target = $region17
  $region16: #{rnn_model_forward.2} parent=0 // pred_region
    _
  $region17: #{rnn_model_forward.2} parent=0 // pred_fallthru
    _
  // Predicated region
  $region18: #{rnn_model_forward.2} parent=0 // pred_check
    _
  $region19: #{rnn_model_forward.2} parent=0 // pred_check_branch
    %23 = sbr.rel (0) target = $region21
  $region20: #{rnn_model_forward.2} parent=0 // pred_region
    _
  $region21: #{rnn_model_forward.2} parent=0 // pred_fallthru
    _
  // Predicated region
  $region22: #{rnn_model_forward.2} parent=0 // pred_check
    _
  $region23: #{rnn_model_forward.2} parent=0 // pred_check_branch
    %25 = sbr.rel (0) target = $region25
  $region24: #{rnn_model_forward.2} parent=0 // pred_region
    _
  $region25: #{rnn_model_forward.2} parent=0 // pred_fallthru
    _
  %v27 = vld [vmem:[%s0] sm:$0xf]
  %v28 = vld [vmem:[%s0 + $0x4] sm:$0xf]
  %v29 = vld [vmem:[%s0 + $0x8] sm:$0xf]
  %v30 = vld [vmem:[%s0 + $0xc] sm:$0xf]
  %v31 = vld [vmem:[%s0 + $0x10] sm:$0xf]
  %v32 = vld [vmem:[%s0 + $0x14] sm:$0xf]
  %v33 = vld [vmem:[%s0 + $0x18] sm:$0xf]
  %v34 = vld [vmem:[%s0 + $0x1c] sm:$0xf]
  %v35 = vld [vmem:[%s0 + $0x20] sm:$0xf]
  %v36 = vld [vmem:[%s0 + $0x24] sm:$0xf]
  %v37 = vld [vmem:[%s0 + $0x28] sm:$0xf]
  %v38 = vld [vmem:[%s0 + $0x2c] sm:$0xf]
  %v39 = vld [vmem:[%s0 + $0x30] sm:$0xf]
  %v40 = vld [vmem:[%s0 + $0x34] sm:$0xf]
  %v41 = vld [vmem:[%s0 + $0x38] sm:$0xf]
  %v42 = vld [vmem:[%s0 + $0x3c] sm:$0xf]
  %v43 = vld [vmem:[%s1] sm:$0xff]
  %v44 = vld [vmem:[%s1 + $0x8] sm:$0xff]
  %v45 = vld [vmem:[%s1 + $0x10] sm:$0xff]
  %v46 = vld [vmem:[%s1 + $0x18] sm:$0xff]
  %v47 = vld [vmem:[%s1 + $0x20] sm:$0xff]
  %v48 = vld [vmem:[%s1 + $0x28] sm:$0xff]
  %v49 = vld [vmem:[%s1 + $0x30] sm:$0xff]
  %v50 = vld [vmem:[%s1 + $0x38] sm:$0xff]
  %v51 = vld [vmem:[%s1 + $0x40] sm:$0xff]
  %v52 = vld [vmem:[%s1 + $0x48] sm:$0xff]
  %v53 = vld [vmem:[%s1 + $0x50] sm:$0xff]
  %v54 = vld [vmem:[%s1 + $0x58] sm:$0xff]
  %v55 = vld [vmem:[%s1 + $0x60] sm:$0xff]
  %v56 = vld [vmem:[%s1 + $0x68] sm:$0xff]
  %v57 = vld [vmem:[%s1 + $0x70] sm:$0xff]
  %v58 = vld [vmem:[%s1 + $0x78] sm:$0xff]
  %v59 = vld [vmem:[%s1 + $0x80] sm:$0xff]
  %v60 = vld [vmem:[%s1 + $0x88] sm:$0xff]
  %v61 = vld [vmem:[%s1 + $0x90] sm:$0xff]
  %v62 = vld [vmem:[%s1 + $0x98] sm:$0xff]
  %v63 = vld [vmem:[%s1 + $0xa0] sm:$0xff]
  %v64 = vld [vmem:[%s1 + $0xa8] sm:$0xff]
  %v65 = vld [vmem:[%s1 + $0xb0] sm:$0xff]
  %v66 = vld [vmem:[%s1 + $0xb8] sm:$0xff]
  %v67 = vld [vmem:[%s1 + $0xc0] sm:$0xff]
  %v68 = vld [vmem:[%s1 + $0xc8] sm:$0xff]
  %v69 = vld [vmem:[%s1 + $0xd0] sm:$0xff]
  %v70 = vld [vmem:[%s1 + $0xd8] sm:$0xff]
  %v71 = vld [vmem:[%s1 + $0xe0] sm:$0xff]
  %v72 = vld [vmem:[%s1 + $0xe8] sm:$0xff]
  %v73 = vld [vmem:[%s1 + $0xf0] sm:$0xff]
  %v74 = vld [vmem:[%s1 + $0xf8] sm:$0xff]
  %v75 = vld [vmem:[%s3] sm:$0xf]
  %v77 = vlaneseq
  %v78 = vshrl.u32 %v77, 7
  %v79 = vsub.s32 0, %v78
  %v80 = vrot.slane %v75, %v79
  %v81 = vlaneseq
  %v82 = vshrl.u32 %v81, 7
  %v83 = vsub.s32 1, %v82
  %v84 = vrot.slane %v75, %v83
  %v85 = vlaneseq
  %v86 = vshrl.u32 %v85, 7
  %v87 = vsub.s32 2, %v86
  %v88 = vrot.slane %v75, %v87
  %v89 = vlaneseq
  %v90 = vshrl.u32 %v89, 7
  %v91 = vsub.s32 3, %v90
  %v92 = vrot.slane %v75, %v91
  %v113 = vunpack.c.l.b16 %v27
  %v114 = vunpack.c.l.b16 %v28
  %v115 = vunpack.c.l.b16 %v29
  %v116 = vunpack.c.l.b16 %v30
  %v117 = vunpack.c.l.b16 %v31
  %v118 = vunpack.c.l.b16 %v32
  %v119 = vunpack.c.l.b16 %v33
  %v120 = vunpack.c.l.b16 %v34
  %v121 = vunpack.c.l.b16 %v35
  %v122 = vunpack.c.l.b16 %v36
  %v123 = vunpack.c.l.b16 %v37
  %v124 = vunpack.c.l.b16 %v38
  %v125 = vunpack.c.l.b16 %v39
  %v126 = vunpack.c.l.b16 %v40
  %v127 = vunpack.c.l.b16 %v41
  %v128 = vunpack.c.l.b16 %v42
  %v129 = vpack.c.b16 %v114, %v113
  %v130 = vpack.c.b16 %v116, %v115
  %v131 = vpack.c.b16 %v118, %v117
  %v132 = vpack.c.b16 %v120, %v119
  %v133 = vpack.c.b16 %v122, %v121
  %v134 = vpack.c.b16 %v124, %v123
  %v135 = vpack.c.b16 %v126, %v125
  %v136 = vpack.c.b16 %v128, %v127
  %v177 = vunpack.c.l.b16 %v43
  %v178 = vunpack.c.h.b16 %v43
  %v179 = vunpack.c.l.b16 %v44
  %v180 = vunpack.c.h.b16 %v44
  %v181 = vunpack.c.l.b16 %v45
  %v182 = vunpack.c.h.b16 %v45
  %v183 = vunpack.c.l.b16 %v46
  %v184 = vunpack.c.h.b16 %v46
  %v185 = vunpack.c.l.b16 %v47
  %v186 = vunpack.c.h.b16 %v47
  %v187 = vunpack.c.l.b16 %v48
  %v188 = vunpack.c.h.b16 %v48
  %v189 = vunpack.c.l.b16 %v49
  %v190 = vunpack.c.h.b16 %v49
  %v191 = vunpack.c.l.b16 %v50
  %v192 = vunpack.c.h.b16 %v50
  %v193 = vunpack.c.l.b16 %v51
  %v194 = vunpack.c.h.b16 %v51
  %v195 = vunpack.c.l.b16 %v52
  %v196 = vunpack.c.h.b16 %v52
  %v197 = vunpack.c.l.b16 %v53
  %v198 = vunpack.c.h.b16 %v53
  %v199 = vunpack.c.l.b16 %v54
  %v200 = vunpack.c.h.b16 %v54
  %v201 = vunpack.c.l.b16 %v55
  %v202 = vunpack.c.h.b16 %v55
  %v203 = vunpack.c.l.b16 %v56
  %v204 = vunpack.c.h.b16 %v56
  %v205 = vunpack.c.l.b16 %v57
  %v206 = vunpack.c.h.b16 %v57
  %v207 = vunpack.c.l.b16 %v58
  %v208 = vunpack.c.h.b16 %v58
  %v209 = vunpack.c.l.b16 %v59
  %v210 = vunpack.c.h.b16 %v59
  %v211 = vunpack.c.l.b16 %v60
  %v212 = vunpack.c.h.b16 %v60
  %v213 = vunpack.c.l.b16 %v61
  %v214 = vunpack.c.h.b16 %v61
  %v215 = vunpack.c.l.b16 %v62
  %v216 = vunpack.c.h.b16 %v62
  %v217 = vunpack.c.l.b16 %v63
  %v218 = vunpack.c.h.b16 %v63
  %v219 = vunpack.c.l.b16 %v64
  %v220 = vunpack.c.h.b16 %v64
  %v221 = vunpack.c.l.b16 %v65
  %v222 = vunpack.c.h.b16 %v65
  %v223 = vunpack.c.l.b16 %v66
  %v224 = vunpack.c.h.b16 %v66
  %v225 = vunpack.c.l.b16 %v67
  %v226 = vunpack.c.h.b16 %v67
  %v227 = vunpack.c.l.b16 %v68
  %v228 = vunpack.c.h.b16 %v68
  %v229 = vunpack.c.l.b16 %v69
  %v230 = vunpack.c.h.b16 %v69
  %v231 = vunpack.c.l.b16 %v70
  %v232 = vunpack.c.h.b16 %v70
  %v233 = vunpack.c.l.b16 %v71
  %v234 = vunpack.c.h.b16 %v71
  %v235 = vunpack.c.l.b16 %v72
  %v236 = vunpack.c.h.b16 %v72
  %v237 = vunpack.c.l.b16 %v73
  %v238 = vunpack.c.h.b16 %v73
  %v239 = vunpack.c.l.b16 %v74
  %v240 = vunpack.c.h.b16 %v74
  %v241 = vpack.c.b16 %v181, %v177
  %v242 = vpack.c.b16 %v182, %v178
  %v243 = vpack.c.b16 %v183, %v179
  %v244 = vpack.c.b16 %v184, %v180
  %v245 = vpack.c.b16 %v189, %v185
  %v246 = vpack.c.b16 %v190, %v186
  %v247 = vpack.c.b16 %v191, %v187
  %v248 = vpack.c.b16 %v192, %v188
  %v249 = vpack.c.b16 %v197, %v193
  %v250 = vpack.c.b16 %v198, %v194
  %v251 = vpack.c.b16 %v199, %v195
  %v252 = vpack.c.b16 %v200, %v196
  %v253 = vpack.c.b16 %v205, %v201
  %v254 = vpack.c.b16 %v206, %v202
  %v255 = vpack.c.b16 %v207, %v203
  %v256 = vpack.c.b16 %v208, %v204
  %v257 = vpack.c.b16 %v213, %v209
  %v258 = vpack.c.b16 %v214, %v210
  %v259 = vpack.c.b16 %v215, %v211
  %v260 = vpack.c.b16 %v216, %v212
  %v261 = vpack.c.b16 %v221, %v217
  %v262 = vpack.c.b16 %v222, %v218
  %v263 = vpack.c.b16 %v223, %v219
  %v264 = vpack.c.b16 %v224, %v220
  %v265 = vpack.c.b16 %v229, %v225
  %v266 = vpack.c.b16 %v230, %v226
  %v267 = vpack.c.b16 %v231, %v227
  %v268 = vpack.c.b16 %v232, %v228
  %v269 = vpack.c.b16 %v237, %v233
  %v270 = vpack.c.b16 %v238, %v234
  %v271 = vpack.c.b16 %v239, %v235
  %v272 = vpack.c.b16 %v240, %v236
  %305 = vmatprep.subr.bf16.mxu0 %v270
  %306 = vmatpush1.bf16.msra.mxu0 %v269
  %307 = vmatprep.subr.bf16.mxu0 %v266
  %308 = vmatpush1.bf16.msra.mxu0 %v265
  %309 = vmatprep.subr.bf16.mxu0 %v262
  %310 = vmatpush1.bf16.msra.mxu0 %v261
  %311 = vmatprep.subr.bf16.mxu0 %v258
  %312 = vmatpush1.bf16.msra.mxu0 %v257
  %313 = vmatprep.subr.bf16.mxu0 %v254
  %314 = vmatpush1.bf16.msra.mxu0 %v253
  %315 = vmatprep.subr.bf16.mxu0 %v250
  %316 = vmatpush1.bf16.msra.mxu0 %v249
  %317 = vmatprep.subr.bf16.mxu0 %v246
  %318 = vmatpush1.bf16.msra.mxu0 %v245
  %319 = vmatprep.subr.bf16.mxu0 %v242
  %320 = vmatpush1.bf16.msra.mxu0 %v241
  %321 = vmatprep.subr.bf16.mxu0 0
  %322 = vmatpush2.bf16.msra.mxu0 0
  %323 = vmatprep.subr.bf16.mxu0 0
  %324 = vmatpush2.bf16.msra.mxu0 0
  %325 = vmatprep.subr.bf16.mxu0 0
  %326 = vmatpush2.bf16.msra.mxu0 0
  %327 = vmatprep.subr.bf16.mxu0 0
  %328 = vmatpush2.bf16.msra.mxu0 0
  %329 = vmatprep.subr.bf16.mxu0 0
  %330 = vmatpush2.bf16.msra.mxu0 0
  %331 = vmatprep.subr.bf16.mxu0 0
  %332 = vmatpush2.bf16.msra.mxu0 0
  %333 = vmatprep.subr.bf16.mxu0 0
  %334 = vmatpush2.bf16.msra.mxu0 0
  %335 = vmatprep.subr.bf16.mxu0 0
  %336 = vmatpush2.bf16.msra.mxu0 0
  %337 = vmatprep.mubr.bf16.mxu0 0
  %338 = vmatmul.mubr.bf16.gmra.mxu0 %v129
  %v339 = vpop.f32.mrf.mxu0
  %v340 = vadd.f32 %v80, %v339
  %v341 = vpop.f32.mrf.mxu0
  %v342 = vadd.f32 %v84, %v341
  %v343 = vpop.f32.mrf.mxu0
  %v344 = vadd.f32 %v80, %v343
  %v345 = vpop.f32.mrf.mxu0
  %v346 = vadd.f32 %v84, %v345
  %347 = vmatprep.mubr.bf16.mxu0 0
  %348 = vmatmul.mubr.bf16.gmra.mxu0 %v130
  %v349 = vpop.f32.mrf.mxu0
  %v350 = vadd.f32 %v80, %v349
  %v351 = vpop.f32.mrf.mxu0
  %v352 = vadd.f32 %v84, %v351
  %v353 = vpop.f32.mrf.mxu0
  %v354 = vadd.f32 %v80, %v353
  %v355 = vpop.f32.mrf.mxu0
  %v356 = vadd.f32 %v84, %v355
  %357 = vmatprep.mubr.bf16.mxu0 0
  %358 = vmatmul.mubr.bf16.gmra.mxu0 %v131
  %v359 = vpop.f32.mrf.mxu0
  %v360 = vadd.f32 %v80, %v359
  %v361 = vpop.f32.mrf.mxu0
  %v362 = vadd.f32 %v84, %v361
  %v363 = vpop.f32.mrf.mxu0
  %v364 = vadd.f32 %v80, %v363
  %v365 = vpop.f32.mrf.mxu0
  %v366 = vadd.f32 %v84, %v365
  %367 = vmatprep.mubr.bf16.mxu0 0
  %368 = vmatmul.mubr.bf16.gmra.mxu0 %v132
  %v369 = vpop.f32.mrf.mxu0
  %v370 = vadd.f32 %v80, %v369
  %v371 = vpop.f32.mrf.mxu0
  %v372 = vadd.f32 %v84, %v371
  %v373 = vpop.f32.mrf.mxu0
  %v374 = vadd.f32 %v80, %v373
  %v375 = vpop.f32.mrf.mxu0
  %v376 = vadd.f32 %v84, %v375
  %377 = vmatprep.mubr.bf16.mxu0 0
  %378 = vmatmul.mubr.bf16.gmra.mxu0 %v133
  %v379 = vpop.f32.mrf.mxu0
  %v380 = vadd.f32 %v80, %v379
  %v381 = vpop.f32.mrf.mxu0
  %v382 = vadd.f32 %v84, %v381
  %v383 = vpop.f32.mrf.mxu0
  %v384 = vadd.f32 %v80, %v383
  %v385 = vpop.f32.mrf.mxu0
  %v386 = vadd.f32 %v84, %v385
  %387 = vmatprep.mubr.bf16.mxu0 0
  %388 = vmatmul.mubr.bf16.gmra.mxu0 %v134
  %v389 = vpop.f32.mrf.mxu0
  %v390 = vadd.f32 %v80, %v389
  %v391 = vpop.f32.mrf.mxu0
  %v392 = vadd.f32 %v84, %v391
  %v393 = vpop.f32.mrf.mxu0
  %v394 = vadd.f32 %v80, %v393
  %v395 = vpop.f32.mrf.mxu0
  %v396 = vadd.f32 %v84, %v395
  %397 = vmatprep.mubr.bf16.mxu0 0
  %398 = vmatmul.mubr.bf16.gmra.mxu0 %v135
  %v399 = vpop.f32.mrf.mxu0
  %v400 = vadd.f32 %v80, %v399
  %v401 = vpop.f32.mrf.mxu0
  %v402 = vadd.f32 %v84, %v401
  %v403 = vpop.f32.mrf.mxu0
  %v404 = vadd.f32 %v80, %v403
  %v405 = vpop.f32.mrf.mxu0
  %v406 = vadd.f32 %v84, %v405
  %407 = vmatprep.mubr.bf16.mxu0 0
  %408 = vmatmul.mubr.bf16.gmra.mxu0 %v136
  %v409 = vpop.f32.mrf.mxu0
  %v410 = vadd.f32 %v80, %v409
  %v411 = vpop.f32.mrf.mxu0
  %v412 = vadd.f32 %v84, %v411
  %v413 = vpop.f32.mrf.mxu0
  %v414 = vadd.f32 %v80, %v413
  %v415 = vpop.f32.mrf.mxu0
  %v416 = vadd.f32 %v84, %v415
  %417 = vdwg.mxu0
  %418 = vmatprep.subr.bf16.mxu0 %v272
  %419 = vmatpush1.bf16.msra.mxu0 %v271
  %420 = vmatprep.subr.bf16.mxu0 %v268
  %421 = vmatpush1.bf16.msra.mxu0 %v267
  %422 = vmatprep.subr.bf16.mxu0 %v264
  %423 = vmatpush1.bf16.msra.mxu0 %v263
  %424 = vmatprep.subr.bf16.mxu0 %v260
  %425 = vmatpush1.bf16.msra.mxu0 %v259
  %426 = vmatprep.subr.bf16.mxu0 %v256
  %427 = vmatpush1.bf16.msra.mxu0 %v255
  %428 = vmatprep.subr.bf16.mxu0 %v252
  %429 = vmatpush1.bf16.msra.mxu0 %v251
  %430 = vmatprep.subr.bf16.mxu0 %v248
  %431 = vmatpush1.bf16.msra.mxu0 %v247
  %432 = vmatprep.subr.bf16.mxu0 %v244
  %433 = vmatpush1.bf16.msra.mxu0 %v243
  %434 = vmatprep.subr.bf16.mxu0 0
  %435 = vmatpush2.bf16.msra.mxu0 0
  %436 = vmatprep.subr.bf16.mxu0 0
  %437 = vmatpush2.bf16.msra.mxu0 0
  %438 = vmatprep.subr.bf16.mxu0 0
  %439 = vmatpush2.bf16.msra.mxu0 0
  %440 = vmatprep.subr.bf16.mxu0 0
  %441 = vmatpush2.bf16.msra.mxu0 0
  %442 = vmatprep.subr.bf16.mxu0 0
  %443 = vmatpush2.bf16.msra.mxu0 0
  %444 = vmatprep.subr.bf16.mxu0 0
  %445 = vmatpush2.bf16.msra.mxu0 0
  %446 = vmatprep.subr.bf16.mxu0 0
  %447 = vmatpush2.bf16.msra.mxu0 0
  %448 = vmatprep.subr.bf16.mxu0 0
  %449 = vmatpush2.bf16.msra.mxu0 0
  %450 = vmatprep.mubr.bf16.mxu0 0
  %451 = vmatmul.mubr.bf16.gmra.mxu0 %v129
  %v452 = vpop.f32.mrf.mxu0
  %v453 = vadd.f32 %v88, %v452
  %v454 = vpop.f32.mrf.mxu0
  %v455 = vadd.f32 %v92, %v454
  %v456 = vpop.f32.mrf.mxu0
  %v457 = vadd.f32 %v88, %v456
  %v458 = vpop.f32.mrf.mxu0
  %v459 = vadd.f32 %v92, %v458
  %460 = vmatprep.mubr.bf16.mxu0 0
  %461 = vmatmul.mubr.bf16.gmra.mxu0 %v130
  %v462 = vpop.f32.mrf.mxu0
  %v463 = vadd.f32 %v88, %v462
  %v464 = vpop.f32.mrf.mxu0
  %v465 = vadd.f32 %v92, %v464
  %v466 = vpop.f32.mrf.mxu0
  %v467 = vadd.f32 %v88, %v466
  %v468 = vpop.f32.mrf.mxu0
  %v469 = vadd.f32 %v92, %v468
  %470 = vmatprep.mubr.bf16.mxu0 0
  %471 = vmatmul.mubr.bf16.gmra.mxu0 %v131
  %v472 = vpop.f32.mrf.mxu0
  %v473 = vadd.f32 %v88, %v472
  %v474 = vpop.f32.mrf.mxu0
  %v475 = vadd.f32 %v92, %v474
  %v476 = vpop.f32.mrf.mxu0
  %v477 = vadd.f32 %v88, %v476
  %v478 = vpop.f32.mrf.mxu0
  %v479 = vadd.f32 %v92, %v478
  %480 = vmatprep.mubr.bf16.mxu0 0
  %481 = vmatmul.mubr.bf16.gmra.mxu0 %v132
  %v482 = vpop.f32.mrf.mxu0
  %v483 = vadd.f32 %v88, %v482
  %v484 = vpop.f32.mrf.mxu0
  %v485 = vadd.f32 %v92, %v484
  %v486 = vpop.f32.mrf.mxu0
  %v487 = vadd.f32 %v88, %v486
  %v488 = vpop.f32.mrf.mxu0
  %v489 = vadd.f32 %v92, %v488
  %490 = vmatprep.mubr.bf16.mxu0 0
  %491 = vmatmul.mubr.bf16.gmra.mxu0 %v133
  %v492 = vpop.f32.mrf.mxu0
  %v493 = vadd.f32 %v88, %v492
  %v494 = vpop.f32.mrf.mxu0
  %v495 = vadd.f32 %v92, %v494
  %v496 = vpop.f32.mrf.mxu0
  %v497 = vadd.f32 %v88, %v496
  %v498 = vpop.f32.mrf.mxu0
  %v499 = vadd.f32 %v92, %v498
  %500 = vmatprep.mubr.bf16.mxu0 0
  %501 = vmatmul.mubr.bf16.gmra.mxu0 %v134
  %v502 = vpop.f32.mrf.mxu0
  %v503 = vadd.f32 %v88, %v502
  %v504 = vpop.f32.mrf.mxu0
  %v505 = vadd.f32 %v92, %v504
  %v506 = vpop.f32.mrf.mxu0
  %v507 = vadd.f32 %v88, %v506
  %v508 = vpop.f32.mrf.mxu0
  %v509 = vadd.f32 %v92, %v508
  %510 = vmatprep.mubr.bf16.mxu0 0
  %511 = vmatmul.mubr.bf16.gmra.mxu0 %v135
  %v512 = vpop.f32.mrf.mxu0
  %v513 = vadd.f32 %v88, %v512
  %v514 = vpop.f32.mrf.mxu0
  %v515 = vadd.f32 %v92, %v514
  %v516 = vpop.f32.mrf.mxu0
  %v517 = vadd.f32 %v88, %v516
  %v518 = vpop.f32.mrf.mxu0
  %v519 = vadd.f32 %v92, %v518
  %520 = vmatprep.mubr.bf16.mxu0 0
  %521 = vmatmul.mubr.bf16.gmra.mxu0 %v136
  %v522 = vpop.f32.mrf.mxu0
  %v523 = vadd.f32 %v88, %v522
  %v524 = vpop.f32.mrf.mxu0
  %v525 = vadd.f32 %v92, %v524
  %v526 = vpop.f32.mrf.mxu0
  %v527 = vadd.f32 %v88, %v526
  %v528 = vpop.f32.mrf.mxu0
  %v529 = vadd.f32 %v92, %v528
  %530 = vdwg.mxu0
  %531 = vst [vmem:[#allocation2] sm:$0xff] %v340
  %532 = vst [vmem:[#allocation2 + $0x8] sm:$0xff] %v342
  %533 = vst [vmem:[#allocation2 + $0x10] sm:$0xff] %v453
  %534 = vst [vmem:[#allocation2 + $0x18] sm:$0xff] %v455
  %535 = vst [vmem:[#allocation2 + $0x20] sm:$0xff] %v344
  %536 = vst [vmem:[#allocation2 + $0x28] sm:$0xff] %v346
  %537 = vst [vmem:[#allocation2 + $0x30] sm:$0xff] %v457
  %538 = vst [vmem:[#allocation2 + $0x38] sm:$0xff] %v459
  %539 = vst [vmem:[#allocation2 + $0x40] sm:$0xff] %v350
  %540 = vst [vmem:[#allocation2 + $0x48] sm:$0xff] %v352
  %541 = vst [vmem:[#allocation2 + $0x50] sm:$0xff] %v463
  %542 = vst [vmem:[#allocation2 + $0x58] sm:$0xff] %v465
  %543 = vst [vmem:[#allocation2 + $0x60] sm:$0xff] %v354
  %544 = vst [vmem:[#allocation2 + $0x68] sm:$0xff] %v356
  %545 = vst [vmem:[#allocation2 + $0x70] sm:$0xff] %v467
  %546 = vst [vmem:[#allocation2 + $0x78] sm:$0xff] %v469
  %547 = vst [vmem:[#allocation2 + $0x80] sm:$0xff] %v360
  %548 = vst [vmem:[#allocation2 + $0x88] sm:$0xff] %v362
  %549 = vst [vmem:[#allocation2 + $0x90] sm:$0xff] %v473
  %550 = vst [vmem:[#allocation2 + $0x98] sm:$0xff] %v475
  %551 = vst [vmem:[#allocation2 + $0xa0] sm:$0xff] %v364
  %552 = vst [vmem:[#allocation2 + $0xa8] sm:$0xff] %v366
  %553 = vst [vmem:[#allocation2 + $0xb0] sm:$0xff] %v477
  %554 = vst [vmem:[#allocation2 + $0xb8] sm:$0xff] %v479
  %555 = vst [vmem:[#allocation2 + $0xc0] sm:$0xff] %v370
  %556 = vst [vmem:[#allocation2 + $0xc8] sm:$0xff] %v372
  %557 = vst [vmem:[#allocation2 + $0xd0] sm:$0xff] %v483
  %558 = vst [vmem:[#allocation2 + $0xd8] sm:$0xff] %v485
  %559 = vst [vmem:[#allocation2 + $0xe0] sm:$0xff] %v374
  %560 = vst [vmem:[#allocation2 + $0xe8] sm:$0xff] %v376
  %561 = vst [vmem:[#allocation2 + $0xf0] sm:$0xff] %v487
  %562 = vst [vmem:[#allocation2 + $0xf8] sm:$0xff] %v489
  %563 = vst [vmem:[#allocation2 + $0x100] sm:$0xff] %v380
  %564 = vst [vmem:[#allocation2 + $0x108] sm:$0xff] %v382
  %565 = vst [vmem:[#allocation2 + $0x110] sm:$0xff] %v493
  %566 = vst [vmem:[#allocation2 + $0x118] sm:$0xff] %v495
  %567 = vst [vmem:[#allocation2 + $0x120] sm:$0xff] %v384
  %568 = vst [vmem:[#allocation2 + $0x128] sm:$0xff] %v386
  %569 = vst [vmem:[#allocation2 + $0x130] sm:$0xff] %v497
  %570 = vst [vmem:[#allocation2 + $0x138] sm:$0xff] %v499
  %571 = vst [vmem:[#allocation2 + $0x140] sm:$0xff] %v390
  %572 = vst [vmem:[#allocation2 + $0x148] sm:$0xff] %v392
  %573 = vst [vmem:[#allocation2 + $0x150] sm:$0xff] %v503
  %574 = vst [vmem:[#allocation2 + $0x158] sm:$0xff] %v505
  %575 = vst [vmem:[#allocation2 + $0x160] sm:$0xff] %v394
  %576 = vst [vmem:[#allocation2 + $0x168] sm:$0xff] %v396
  %577 = vst [vmem:[#allocation2 + $0x170] sm:$0xff] %v507
  %578 = vst [vmem:[#allocation2 + $0x178] sm:$0xff] %v509
  %579 = vst [vmem:[#allocation2 + $0x180] sm:$0xff] %v400
  %580 = vst [vmem:[#allocation2 + $0x188] sm:$0xff] %v402
  %581 = vst [vmem:[#allocation2 + $0x190] sm:$0xff] %v513
  %582 = vst [vmem:[#allocation2 + $0x198] sm:$0xff] %v515
  %583 = vst [vmem:[#allocation2 + $0x1a0] sm:$0xff] %v404
  %584 = vst [vmem:[#allocation2 + $0x1a8] sm:$0xff] %v406
  %585 = vst [vmem:[#allocation2 + $0x1b0] sm:$0xff] %v517
  %586 = vst [vmem:[#allocation2 + $0x1b8] sm:$0xff] %v519
  %587 = vst [vmem:[#allocation2 + $0x1c0] sm:$0xff] %v410
  %588 = vst [vmem:[#allocation2 + $0x1c8] sm:$0xff] %v412
  %589 = vst [vmem:[#allocation2 + $0x1d0] sm:$0xff] %v523
  %590 = vst [vmem:[#allocation2 + $0x1d8] sm:$0xff] %v525
  %591 = vst [vmem:[#allocation2 + $0x1e0] sm:$0xff] %v414
  %592 = vst [vmem:[#allocation2 + $0x1e8] sm:$0xff] %v416
  %593 = vst [vmem:[#allocation2 + $0x1f0] sm:$0xff] %v527
  %594 = vst [vmem:[#allocation2 + $0x1f8] sm:$0xff] %v529
  %p595 = scmp.eq.s32.totalorder 0, 0
  // Predicated region
  $region26: #{rnn_model_forward.2} parent=0 // pred_check
    %p596 = pneg %p595
  $region27: #{rnn_model_forward.2} parent=0 // pred_check_branch
    %598 = sbr.rel (%p596) target = $region29
  $region28: #{rnn_model_forward.2} parent=0 // pred_region
    %v599 = vld [vmem:[%s4] sm:$0xff]
    %600 = vst [vmem:[%s7] sm:$0xff] %v599
    %v601 = vld [vmem:[%s5] sm:$0xff]
    %602 = vst [vmem:[%s8] sm:$0xff] %v601
  $region29: #{rnn_model_forward.2} parent=0 // pred_fallthru
    _
  %v603 = vld [vmem:[%s7] sm:$0xff]
  %v604 = vld [vmem:[%s8] sm:$0xff]
  %v605 = vld [vmem:[#allocation2] sm:$0xff]
  %v606 = vld [vmem:[#allocation2 + $0x8] sm:$0xff]
  %v607 = vld [vmem:[#allocation2 + $0x10] sm:$0xff]
  %v608 = vld [vmem:[#allocation2 + $0x18] sm:$0xff]
  %v609 = vpack.c.bf16 %v603, %v603
  %v610 = vld [vmem:[%s2] sm:$0xff]
  %v611 = vld [vmem:[%s2 + $0x8] sm:$0xff]
  %v612 = vld [vmem:[%s2 + $0x10] sm:$0xff]
  %v613 = vld [vmem:[%s2 + $0x18] sm:$0xff]
  %v614 = vld [vmem:[%s2 + $0x20] sm:$0xff]
  %v615 = vld [vmem:[%s2 + $0x28] sm:$0xff]
  %v616 = vld [vmem:[%s2 + $0x30] sm:$0xff]
  %v617 = vld [vmem:[%s2 + $0x38] sm:$0xff]
  %v618 = vld [vmem:[%s2 + $0x40] sm:$0xff]
  %v619 = vld [vmem:[%s2 + $0x48] sm:$0xff]
  %v620 = vld [vmem:[%s2 + $0x50] sm:$0xff]
  %v621 = vld [vmem:[%s2 + $0x58] sm:$0xff]
  %v622 = vld [vmem:[%s2 + $0x60] sm:$0xff]
  %v623 = vld [vmem:[%s2 + $0x68] sm:$0xff]
  %v624 = vld [vmem:[%s2 + $0x70] sm:$0xff]
  %v625 = vld [vmem:[%s2 + $0x78] sm:$0xff]
  %v626 = vld [vmem:[%s2 + $0x80] sm:$0xff]
  %v627 = vld [vmem:[%s2 + $0x88] sm:$0xff]
  %v628 = vld [vmem:[%s2 + $0x90] sm:$0xff]
  %v629 = vld [vmem:[%s2 + $0x98] sm:$0xff]
  %v630 = vld [vmem:[%s2 + $0xa0] sm:$0xff]
  %v631 = vld [vmem:[%s2 + $0xa8] sm:$0xff]
  %v632 = vld [vmem:[%s2 + $0xb0] sm:$0xff]
  %v633 = vld [vmem:[%s2 + $0xb8] sm:$0xff]
  %v634 = vld [vmem:[%s2 + $0xc0] sm:$0xff]
  %v635 = vld [vmem:[%s2 + $0xc8] sm:$0xff]
  %v636 = vld [vmem:[%s2 + $0xd0] sm:$0xff]
  %v637 = vld [vmem:[%s2 + $0xd8] sm:$0xff]
  %v638 = vld [vmem:[%s2 + $0xe0] sm:$0xff]
  %v639 = vld [vmem:[%s2 + $0xe8] sm:$0xff]
  %v640 = vld [vmem:[%s2 + $0xf0] sm:$0xff]
  %v641 = vld [vmem:[%s2 + $0xf8] sm:$0xff]
  %v674 = vunpack.c.l.b16 %v610
  %v675 = vunpack.c.h.b16 %v610
  %v676 = vunpack.c.l.b16 %v611
  %v677 = vunpack.c.h.b16 %v611
  %v678 = vunpack.c.l.b16 %v612
  %v679 = vunpack.c.h.b16 %v612
  %v680 = vunpack.c.l.b16 %v613
  %v681 = vunpack.c.h.b16 %v613
  %v682 = vunpack.c.l.b16 %v614
  %v683 = vunpack.c.h.b16 %v614
  %v684 = vunpack.c.l.b16 %v615
  %v685 = vunpack.c.h.b16 %v615
  %v686 = vunpack.c.l.b16 %v616
  %v687 = vunpack.c.h.b16 %v616
  %v688 = vunpack.c.l.b16 %v617
  %v689 = vunpack.c.h.b16 %v617
  %v690 = vunpack.c.l.b16 %v618
  %v691 = vunpack.c.h.b16 %v618
  %v692 = vunpack.c.l.b16 %v619
  %v693 = vunpack.c.h.b16 %v619
  %v694 = vunpack.c.l.b16 %v620
  %v695 = vunpack.c.h.b16 %v620
  %v696 = vunpack.c.l.b16 %v621
  %v697 = vunpack.c.h.b16 %v621
  %v698 = vunpack.c.l.b16 %v622
  %v699 = vunpack.c.h.b16 %v622
  %v700 = vunpack.c.l.b16 %v623
  %v701 = vunpack.c.h.b16 %v623
  %v702 = vunpack.c.l.b16 %v624
  %v703 = vunpack.c.h.b16 %v624
  %v704 = vunpack.c.l.b16 %v625
  %v705 = vunpack.c.h.b16 %v625
  %v706 = vunpack.c.l.b16 %v626
  %v707 = vunpack.c.h.b16 %v626
  %v708 = vunpack.c.l.b16 %v627
  %v709 = vunpack.c.h.b16 %v627
  %v710 = vunpack.c.l.b16 %v628
  %v711 = vunpack.c.h.b16 %v628
  %v712 = vunpack.c.l.b16 %v629
  %v713 = vunpack.c.h.b16 %v629
  %v714 = vunpack.c.l.b16 %v630
  %v715 = vunpack.c.h.b16 %v630
  %v716 = vunpack.c.l.b16 %v631
  %v717 = vunpack.c.h.b16 %v631
  %v718 = vunpack.c.l.b16 %v632
  %v719 = vunpack.c.h.b16 %v632
  %v720 = vunpack.c.l.b16 %v633
  %v721 = vunpack.c.h.b16 %v633
  %v722 = vunpack.c.l.b16 %v634
  %v723 = vunpack.c.h.b16 %v634
  %v724 = vunpack.c.l.b16 %v635
  %v725 = vunpack.c.h.b16 %v635
  %v726 = vunpack.c.l.b16 %v636
  %v727 = vunpack.c.h.b16 %v636
  %v728 = vunpack.c.l.b16 %v637
  %v729 = vunpack.c.h.b16 %v637
  %v730 = vunpack.c.l.b16 %v638
  %v731 = vunpack.c.h.b16 %v638
  %v732 = vunpack.c.l.b16 %v639
  %v733 = vunpack.c.h.b16 %v639
  %v734 = vunpack.c.l.b16 %v640
  %v735 = vunpack.c.h.b16 %v640
  %v736 = vunpack.c.l.b16 %v641
  %v737 = vunpack.c.h.b16 %v641
  %v738 = vpack.c.b16 %v678, %v674
  %v739 = vpack.c.b16 %v679, %v675
  %v740 = vpack.c.b16 %v680, %v676
  %v741 = vpack.c.b16 %v681, %v677
  %v742 = vpack.c.b16 %v686, %v682
  %v743 = vpack.c.b16 %v687, %v683
  %v744 = vpack.c.b16 %v688, %v684
  %v745 = vpack.c.b16 %v689, %v685
  %v746 = vpack.c.b16 %v694, %v690
  %v747 = vpack.c.b16 %v695, %v691
  %v748 = vpack.c.b16 %v696, %v692
  %v749 = vpack.c.b16 %v697, %v693
  %v750 = vpack.c.b16 %v702, %v698
  %v751 = vpack.c.b16 %v703, %v699
  %v752 = vpack.c.b16 %v704, %v700
  %v753 = vpack.c.b16 %v705, %v701
  %v754 = vpack.c.b16 %v710, %v706
  %v755 = vpack.c.b16 %v711, %v707
  %v756 = vpack.c.b16 %v712, %v708
  %v757 = vpack.c.b16 %v713, %v709
  %v758 = vpack.c.b16 %v718, %v714
  %v759 = vpack.c.b16 %v719, %v715
  %v760 = vpack.c.b16 %v720, %v716
  %v761 = vpack.c.b16 %v721, %v717
  %v762 = vpack.c.b16 %v726, %v722
  %v763 = vpack.c.b16 %v727, %v723
  %v764 = vpack.c.b16 %v728, %v724
  %v765 = vpack.c.b16 %v729, %v725
  %v766 = vpack.c.b16 %v734, %v730
  %v767 = vpack.c.b16 %v735, %v731
  %v768 = vpack.c.b16 %v736, %v732
  %v769 = vpack.c.b16 %v737, %v733
  %802 = vmatprep.subr.bf16.mxu0 %v767
  %803 = vmatpush1.bf16.msra.mxu0 %v766
  %804 = vmatprep.subr.bf16.mxu0 %v763
  %805 = vmatpush1.bf16.msra.mxu0 %v762
  %806 = vmatprep.subr.bf16.mxu0 %v759
  %807 = vmatpush1.bf16.msra.mxu0 %v758
  %808 = vmatprep.subr.bf16.mxu0 %v755
  %809 = vmatpush1.bf16.msra.mxu0 %v754
  %810 = vmatprep.subr.bf16.mxu0 %v751
  %811 = vmatpush1.bf16.msra.mxu0 %v750
  %812 = vmatprep.subr.bf16.mxu0 %v747
  %813 = vmatpush1.bf16.msra.mxu0 %v746
  %814 = vmatprep.subr.bf16.mxu0 %v743
  %815 = vmatpush1.bf16.msra.mxu0 %v742
  %816 = vmatprep.subr.bf16.mxu0 %v739
  %817 = vmatpush1.bf16.msra.mxu0 %v738
  %818 = vmatprep.subr.bf16.mxu0 0
  %819 = vmatpush2.bf16.msra.mxu0 0
  %820 = vmatprep.subr.bf16.mxu0 0
  %821 = vmatpush2.bf16.msra.mxu0 0
  %822 = vmatprep.subr.bf16.mxu0 0
  %823 = vmatpush2.bf16.msra.mxu0 0
  %824 = vmatprep.subr.bf16.mxu0 0
  %825 = vmatpush2.bf16.msra.mxu0 0
  %826 = vmatprep.subr.bf16.mxu0 0
  %827 = vmatpush2.bf16.msra.mxu0 0
  %828 = vmatprep.subr.bf16.mxu0 0
  %829 = vmatpush2.bf16.msra.mxu0 0
  %830 = vmatprep.subr.bf16.mxu0 0
  %831 = vmatpush2.bf16.msra.mxu0 0
  %832 = vmatprep.subr.bf16.mxu0 0
  %833 = vmatpush2.bf16.msra.mxu0 0
  %834 = vmatprep.mubr.bf16.mxu0 0
  %835 = vmatmul.mubr.bf16.gmra.mxu0 %v609
  %v836 = vpop.f32.mrf.mxu0
  %v837 = vadd.f32 0.0, %v836
  %v838 = vpop.f32.mrf.mxu0
  %v839 = vadd.f32 0.0, %v838
  %v840 = vpop.f32.mrf.mxu0
  %v841 = vpop.f32.mrf.mxu0
  %842 = vdwg.mxu0
  %843 = vmatprep.subr.bf16.mxu0 %v769
  %844 = vmatpush1.bf16.msra.mxu0 %v768
  %845 = vmatprep.subr.bf16.mxu0 %v765
  %846 = vmatpush1.bf16.msra.mxu0 %v764
  %847 = vmatprep.subr.bf16.mxu0 %v761
  %848 = vmatpush1.bf16.msra.mxu0 %v760
  %849 = vmatprep.subr.bf16.mxu0 %v757
  %850 = vmatpush1.bf16.msra.mxu0 %v756
  %851 = vmatprep.subr.bf16.mxu0 %v753
  %852 = vmatpush1.bf16.msra.mxu0 %v752
  %853 = vmatprep.subr.bf16.mxu0 %v749
  %854 = vmatpush1.bf16.msra.mxu0 %v748
  %855 = vmatprep.subr.bf16.mxu0 %v745
  %856 = vmatpush1.bf16.msra.mxu0 %v744
  %857 = vmatprep.subr.bf16.mxu0 %v741
  %858 = vmatpush1.bf16.msra.mxu0 %v740
  %859 = vmatprep.subr.bf16.mxu0 0
  %860 = vmatpush2.bf16.msra.mxu0 0
  %861 = vmatprep.subr.bf16.mxu0 0
  %862 = vmatpush2.bf16.msra.mxu0 0
  %863 = vmatprep.subr.bf16.mxu0 0
  %864 = vmatpush2.bf16.msra.mxu0 0
  %865 = vmatprep.subr.bf16.mxu0 0
  %866 = vmatpush2.bf16.msra.mxu0 0
  %867 = vmatprep.subr.bf16.mxu0 0
  %868 = vmatpush2.bf16.msra.mxu0 0
  %869 = vmatprep.subr.bf16.mxu0 0
  %870 = vmatpush2.bf16.msra.mxu0 0
  %871 = vmatprep.subr.bf16.mxu0 0
  %872 = vmatpush2.bf16.msra.mxu0 0
  %873 = vmatprep.subr.bf16.mxu0 0
  %874 = vmatpush2.bf16.msra.mxu0 0
  %875 = vmatprep.mubr.bf16.mxu0 0
  %876 = vmatmul.mubr.bf16.gmra.mxu0 %v609
  %v877 = vpop.f32.mrf.mxu0
  %v878 = vadd.f32 0.0, %v877
  %v879 = vpop.f32.mrf.mxu0
  %v880 = vadd.f32 0.0, %v879
  %v881 = vpop.f32.mrf.mxu0
  %v882 = vpop.f32.mrf.mxu0
  %883 = vdwg.mxu0
  %v884 = vadd.f32 %v605, %v837
  %v885 = vadd.f32 %v606, %v839
  %v886 = vadd.f32 %v607, %v878
  %v887 = vadd.f32 %v608, %v880
  %v888 = vxor.u32 %v884, 2147483648
  %v889 = vxor.u32 %v885, 2147483648
  %v890 = vxor.u32 %v886, 2147483648
  %v891 = vmul.f32 %v888, 1.442695
  %v892 = vpow.pop %v891
  %v893 = vmul.f32 %v889, 1.442695
  %v894 = vpow.pop %v893
  %v895 = vmul.f32 %v890, 1.442695
  %v896 = vpow.pop %v895
  %v897 = vadd.f32 %v892, 1.0
  %v898 = vadd.f32 %v894, 1.0
  %v899 = vadd.f32 %v896, 1.0
  %v900 = vrcp.pop %v897
  %v901 = vmul.f32 1.0, %v900
  %v902 = vrcp.pop %v898
  %v903 = vmul.f32 1.0, %v902
  %v904 = vrcp.pop %v899
  %v905 = vmul.f32 1.0, %v904
  %v906 = vtanh.pop %v887
  %v907 = vmul.f32 %v903, %v604
  %v908 = vmul.f32 %v901, %v906
  %v909 = vadd.f32 %v907, %v908
  %v910 = vtanh.pop %v909
  %v911 = vmul.f32 %v905, %v910
  %912 = vst [vmem:[#allocation3] sm:$0xff] %v911
  %v913 = vld [vmem:[#allocation2 + $0x20] sm:$0xff]
  %v914 = vld [vmem:[#allocation2 + $0x28] sm:$0xff]
  %v915 = vld [vmem:[#allocation2 + $0x30] sm:$0xff]
  %v916 = vld [vmem:[#allocation2 + $0x38] sm:$0xff]
  %v917 = vpack.c.bf16 %v911, %v911
  %v918 = vld [vmem:[%s2] sm:$0xff]
  %v919 = vld [vmem:[%s2 + $0x8] sm:$0xff]
  %v920 = vld [vmem:[%s2 + $0x10] sm:$0xff]
  %v921 = vld [vmem:[%s2 + $0x18] sm:$0xff]
  %v922 = vld [vmem:[%s2 + $0x20] sm:$0xff]
  %v923 = vld [vmem:[%s2 + $0x28] sm:$0xff]
  %v924 = vld [vmem:[%s2 + $0x30] sm:$0xff]
  %v925 = vld [vmem:[%s2 + $0x38] sm:$0xff]
  %v926 = vld [vmem:[%s2 + $0x40] sm:$0xff]
  %v927 = vld [vmem:[%s2 + $0x48] sm:$0xff]
  %v928 = vld [vmem:[%s2 + $0x50] sm:$0xff]
  %v929 = vld [vmem:[%s2 + $0x58] sm:$0xff]
  %v930 = vld [vmem:[%s2 + $0x60] sm:$0xff]
  %v931 = vld [vmem:[%s2 + $0x68] sm:$0xff]
  %v932 = vld [vmem:[%s2 + $0x70] sm:$0xff]
  %v933 = vld [vmem:[%s2 + $0x78] sm:$0xff]
  %v934 = vld [vmem:[%s2 + $0x80] sm:$0xff]
  %v935 = vld [vmem:[%s2 + $0x88] sm:$0xff]
  %v936 = vld [vmem:[%s2 + $0x90] sm:$0xff]
  %v937 = vld [vmem:[%s2 + $0x98] sm:$0xff]
  %v938 = vld [vmem:[%s2 + $0xa0] sm:$0xff]
  %v939 = vld [vmem:[%s2 + $0xa8] sm:$0xff]
  %v940 = vld [vmem:[%s2 + $0xb0] sm:$0xff]
  %v941 = vld [vmem:[%s2 + $0xb8] sm:$0xff]
  %v942 = vld [vmem:[%s2 + $0xc0] sm:$0xff]
  %v943 = vld [vmem:[%s2 + $0xc8] sm:$0xff]
  %v944 = vld [vmem:[%s2 + $0xd0] sm:$0xff]
  %v945 = vld [vmem:[%s2 + $0xd8] sm:$0xff]
  %v946 = vld [vmem:[%s2 + $0xe0] sm:$0xff]
  %v947 = vld [vmem:[%s2 + $0xe8] sm:$0xff]
  %v948 = vld [vmem:[%s2 + $0xf0] sm:$0xff]
  %v949 = vld [vmem:[%s2 + $0xf8] sm:$0xff]
  %v982 = vunpack.c.l.b16 %v918
  %v983 = vunpack.c.h.b16 %v918
  %v984 = vunpack.c.l.b16 %v919
  %v985 = vunpack.c.h.b16 %v919
  %v986 = vunpack.c.l.b16 %v920
  %v987 = vunpack.c.h.b16 %v920
  %v988 = vunpack.c.l.b16 %v921
  %v989 = vunpack.c.h.b16 %v921
  %v990 = vunpack.c.l.b16 %v922
  %v991 = vunpack.c.h.b16 %v922
  %v992 = vunpack.c.l.b16 %v923
  %v993 = vunpack.c.h.b16 %v923
  %v994 = vunpack.c.l.b16 %v924
  %v995 = vunpack.c.h.b16 %v924
  %v996 = vunpack.c.l.b16 %v925
  %v997 = vunpack.c.h.b16 %v925
  %v998 = vunpack.c.l.b16 %v926
  %v999 = vunpack.c.h.b16 %v926
  %v1000 = vunpack.c.l.b16 %v927
  %v1001 = vunpack.c.h.b16 %v927
  %v1002 = vunpack.c.l.b16 %v928
  %v1003 = vunpack.c.h.b16 %v928
  %v1004 = vunpack.c.l.b16 %v929
  %v1005 = vunpack.c.h.b16 %v929
  %v1006 = vunpack.c.l.b16 %v930
  %v1007 = vunpack.c.h.b16 %v930
  %v1008 = vunpack.c.l.b16 %v931
  %v1009 = vunpack.c.h.b16 %v931
  %v1010 = vunpack.c.l.b16 %v932
  %v1011 = vunpack.c.h.b16 %v932
  %v1012 = vunpack.c.l.b16 %v933
  %v1013 = vunpack.c.h.b16 %v933
  %v1014 = vunpack.c.l.b16 %v934
  %v1015 = vunpack.c.h.b16 %v934
  %v1016 = vunpack.c.l.b16 %v935
  %v1017 = vunpack.c.h.b16 %v935
  %v1018 = vunpack.c.l.b16 %v936
  %v1019 = vunpack.c.h.b16 %v936
  %v1020 = vunpack.c.l.b16 %v937
  %v1021 = vunpack.c.h.b16 %v937
  %v1022 = vunpack.c.l.b16 %v938
  %v1023 = vunpack.c.h.b16 %v938
  %v1024 = vunpack.c.l.b16 %v939
  %v1025 = vunpack.c.h.b16 %v939
  %v1026 = vunpack.c.l.b16 %v940
  %v1027 = vunpack.c.h.b16 %v940
  %v1028 = vunpack.c.l.b16 %v941
  %v1029 = vunpack.c.h.b16 %v941
  %v1030 = vunpack.c.l.b16 %v942
  %v1031 = vunpack.c.h.b16 %v942
  %v1032 = vunpack.c.l.b16 %v943
  %v1033 = vunpack.c.h.b16 %v943
  %v1034 = vunpack.c.l.b16 %v944
  %v1035 = vunpack.c.h.b16 %v944
  %v1036 = vunpack.c.l.b16 %v945
  %v1037 = vunpack.c.h.b16 %v945
  %v1038 = vunpack.c.l.b16 %v946
  %v1039 = vunpack.c.h.b16 %v946
  %v1040 = vunpack.c.l.b16 %v947
  %v1041 = vunpack.c.h.b16 %v947
  %v1042 = vunpack.c.l.b16 %v948
  %v1043 = vunpack.c.h.b16 %v948
  %v1044 = vunpack.c.l.b16 %v949
  %v1045 = vunpack.c.h.b16 %v949
  %v1046 = vpack.c.b16 %v986, %v982
  %v1047 = vpack.c.b16 %v987, %v983
  %v1048 = vpack.c.b16 %v988, %v984
  %v1049 = vpack.c.b16 %v989, %v985
  %v1050 = vpack.c.b16 %v994, %v990
  %v1051 = vpack.c.b16 %v995, %v991
  %v1052 = vpack.c.b16 %v996, %v992
  %v1053 = vpack.c.b16 %v997, %v993
  %v1054 = vpack.c.b16 %v1002, %v998
  %v1055 = vpack.c.b16 %v1003, %v999
  %v1056 = vpack.c.b16 %v1004, %v1000
  %v1057 = vpack.c.b16 %v1005, %v1001
  %v1058 = vpack.c.b16 %v1010, %v1006
  %v1059 = vpack.c.b16 %v1011, %v1007
  %v1060 = vpack.c.b16 %v1012, %v1008
  %v1061 = vpack.c.b16 %v1013, %v1009
  %v1062 = vpack.c.b16 %v1018, %v1014
  %v1063 = vpack.c.b16 %v1019, %v1015
  %v1064 = vpack.c.b16 %v1020, %v1016
  %v1065 = vpack.c.b16 %v1021, %v1017
  %v1066 = vpack.c.b16 %v1026, %v1022
  %v1067 = vpack.c.b16 %v1027, %v1023
  %v1068 = vpack.c.b16 %v1028, %v1024
  %v1069 = vpack.c.b16 %v1029, %v1025
  %v1070 = vpack.c.b16 %v1034, %v1030
  %v1071 = vpack.c.b16 %v1035, %v1031
  %v1072 = vpack.c.b16 %v1036, %v1032
  %v1073 = vpack.c.b16 %v1037, %v1033
  %v1074 = vpack.c.b16 %v1042, %v1038
  %v1075 = vpack.c.b16 %v1043, %v1039
  %v1076 = vpack.c.b16 %v1044, %v1040
  %v1077 = vpack.c.b16 %v1045, %v1041
  %1110 = vmatprep.subr.bf16.mxu0 %v1075
  %1111 = vmatpush1.bf16.msra.mxu0 %v1074
  %1112 = vmatprep.subr.bf16.mxu0 %v1071
  %1113 = vmatpush1.bf16.msra.mxu0 %v1070
  %1114 = vmatprep.subr.bf16.mxu0 %v1067
  %1115 = vmatpush1.bf16.msra.mxu0 %v1066
  %1116 = vmatprep.subr.bf16.mxu0 %v1063
  %1117 = vmatpush1.bf16.msra.mxu0 %v1062
  %1118 = vmatprep.subr.bf16.mxu0 %v1059
  %1119 = vmatpush1.bf16.msra.mxu0 %v1058
  %1120 = vmatprep.subr.bf16.mxu0 %v1055
  %1121 = vmatpush1.bf16.msra.mxu0 %v1054
  %1122 = vmatprep.subr.bf16.mxu0 %v1051
  %1123 = vmatpush1.bf16.msra.mxu0 %v1050
  %1124 = vmatprep.subr.bf16.mxu0 %v1047
  %1125 = vmatpush1.bf16.msra.mxu0 %v1046
  %1126 = vmatprep.subr.bf16.mxu0 0
  %1127 = vmatpush2.bf16.msra.mxu0 0
  %1128 = vmatprep.subr.bf16.mxu0 0
  %1129 = vmatpush2.bf16.msra.mxu0 0
  %1130 = vmatprep.subr.bf16.mxu0 0
  %1131 = vmatpush2.bf16.msra.mxu0 0
  %1132 = vmatprep.subr.bf16.mxu0 0
  %1133 = vmatpush2.bf16.msra.mxu0 0
  %1134 = vmatprep.subr.bf16.mxu0 0
  %1135 = vmatpush2.bf16.msra.mxu0 0
  %1136 = vmatprep.subr.bf16.mxu0 0
  %1137 = vmatpush2.bf16.msra.mxu0 0
  %1138 = vmatprep.subr.bf16.mxu0 0
  %1139 = vmatpush2.bf16.msra.mxu0 0
  %1140 = vmatprep.subr.bf16.mxu0 0
  %1141 = vmatpush2.bf16.msra.mxu0 0
  %1142 = vmatprep.mubr.bf16.mxu0 0
  %1143 = vmatmul.mubr.bf16.gmra.mxu0 %v917
  %v1144 = vpop.f32.mrf.mxu0
  %v1145 = vadd.f32 0.0, %v1144
  %v1146 = vpop.f32.mrf.mxu0
  %v1147 = vadd.f32 0.0, %v1146
  %v1148 = vpop.f32.mrf.mxu0
  %v1149 = vpop.f32.mrf.mxu0
  %1150 = vdwg.mxu0
  %1151 = vmatprep.subr.bf16.mxu0 %v1077
  %1152 = vmatpush1.bf16.msra.mxu0 %v1076
  %1153 = vmatprep.subr.bf16.mxu0 %v1073
  %1154 = vmatpush1.bf16.msra.mxu0 %v1072
  %1155 = vmatprep.subr.bf16.mxu0 %v1069
  %1156 = vmatpush1.bf16.msra.mxu0 %v1068
  %1157 = vmatprep.subr.bf16.mxu0 %v1065
  %1158 = vmatpush1.bf16.msra.mxu0 %v1064
  %1159 = vmatprep.subr.bf16.mxu0 %v1061
  %1160 = vmatpush1.bf16.msra.mxu0 %v1060
  %1161 = vmatprep.subr.bf16.mxu0 %v1057
  %1162 = vmatpush1.bf16.msra.mxu0 %v1056
  %1163 = vmatprep.subr.bf16.mxu0 %v1053
  %1164 = vmatpush1.bf16.msra.mxu0 %v1052
  %1165 = vmatprep.subr.bf16.mxu0 %v1049
  %1166 = vmatpush1.bf16.msra.mxu0 %v1048
  %1167 = vmatprep.subr.bf16.mxu0 0
  %1168 = vmatpush2.bf16.msra.mxu0 0
  %1169 = vmatprep.subr.bf16.mxu0 0
  %1170 = vmatpush2.bf16.msra.mxu0 0
  %1171 = vmatprep.subr.bf16.mxu0 0
  %1172 = vmatpush2.bf16.msra.mxu0 0
  %1173 = vmatprep.subr.bf16.mxu0 0
  %1174 = vmatpush2.bf16.msra.mxu0 0
  %1175 = vmatprep.subr.bf16.mxu0 0
  %1176 = vmatpush2.bf16.msra.mxu0 0
  %1177 = vmatprep.subr.bf16.mxu0 0
  %1178 = vmatpush2.bf16.msra.mxu0 0
  %1179 = vmatprep.subr.bf16.mxu0 0
  %1180 = vmatpush2.bf16.msra.mxu0 0
  %1181 = vmatprep.subr.bf16.mxu0 0
  %1182 = vmatpush2.bf16.msra.mxu0 0
  %1183 = vmatprep.mubr.bf16.mxu0 0
  %1184 = vmatmul.mubr.bf16.gmra.mxu0 %v917
  %v1185 = vpop.f32.mrf.mxu0
  %v1186 = vadd.f32 0.0, %v1185
  %v1187 = vpop.f32.mrf.mxu0
  %v1188 = vadd.f32 0.0, %v1187
  %v1189 = vpop.f32.mrf.mxu0
  %v1190 = vpop.f32.mrf.mxu0
  %1191 = vdwg.mxu0
  %v1192 = vadd.f32 %v913, %v1145
  %v1193 = vadd.f32 %v914, %v1147
  %v1194 = vadd.f32 %v915, %v1186
  %v1195 = vadd.f32 %v916, %v1188
  %v1196 = vxor.u32 %v1192, 2147483648
  %v1197 = vxor.u32 %v1193, 2147483648
  %v1198 = vxor.u32 %v1194, 2147483648
  %v1199 = vmul.f32 %v1196, 1.442695
  %v1200 = vpow.pop %v1199
  %v1201 = vmul.f32 %v1197, 1.442695
  %v1202 = vpow.pop %v1201
  %v1203 = vmul.f32 %v1198, 1.442695
  %v1204 = vpow.pop %v1203
  %v1205 = vadd.f32 %v1200, 1.0
  %v1206 = vadd.f32 %v1202, 1.0
  %v1207 = vadd.f32 %v1204, 1.0
  %v1208 = vrcp.pop %v1205
  %v1209 = vmul.f32 1.0, %v1208
  %v1210 = vrcp.pop %v1206
  %v1211 = vmul.f32 1.0, %v1210
  %v1212 = vrcp.pop %v1207
  %v1213 = vmul.f32 1.0, %v1212
  %v1214 = vtanh.pop %v1195
  %v1215 = vmul.f32 %v1211, %v909
  %v1216 = vmul.f32 %v1209, %v1214
  %v1217 = vadd.f32 %v1215, %v1216
  %v1218 = vtanh.pop %v1217
  %v1219 = vmul.f32 %v1213, %v1218
  %1220 = vst [vmem:[#allocation3 + $0x8] sm:$0xff] %v1219
  %v1221 = vld [vmem:[#allocation2 + $0x40] sm:$0xff]
  %v1222 = vld [vmem:[#allocation2 + $0x48] sm:$0xff]
  %v1223 = vld [vmem:[#allocation2 + $0x50] sm:$0xff]
  %v1224 = vld [vmem:[#allocation2 + $0x58] sm:$0xff]
  %v1225 = vpack.c.bf16 %v1219, %v1219
  %v1226 = vld [vmem:[%s2] sm:$0xff]
  %v1227 = vld [vmem:[%s2 + $0x8] sm:$0xff]
  %v1228 = vld [vmem:[%s2 + $0x10] sm:$0xff]
  %v1229 = vld [vmem:[%s2 + $0x18] sm:$0xff]
  %v1230 = vld [vmem:[%s2 + $0x20] sm:$0xff]
  %v1231 = vld [vmem:[%s2 + $0x28] sm:$0xff]
  %v1232 = vld [vmem:[%s2 + $0x30] sm:$0xff]
  %v1233 = vld [vmem:[%s2 + $0x38] sm:$0xff]
  %v1234 = vld [vmem:[%s2 + $0x40] sm:$0xff]
  %v1235 = vld [vmem:[%s2 + $0x48] sm:$0xff]
  %v1236 = vld [vmem:[%s2 + $0x50] sm:$0xff]
  %v1237 = vld [vmem:[%s2 + $0x58] sm:$0xff]
  %v1238 = vld [vmem:[%s2 + $0x60] sm:$0xff]
  %v1239 = vld [vmem:[%s2 + $0x68] sm:$0xff]
  %v1240 = vld [vmem:[%s2 + $0x70] sm:$0xff]
  %v1241 = vld [vmem:[%s2 + $0x78] sm:$0xff]
  %v1242 = vld [vmem:[%s2 + $0x80] sm:$0xff]
  %v1243 = vld [vmem:[%s2 + $0x88] sm:$0xff]
  %v1244 = vld [vmem:[%s2 + $0x90] sm:$0xff]
  %v1245 = vld [vmem:[%s2 + $0x98] sm:$0xff]
  %v1246 = vld [vmem:[%s2 + $0xa0] sm:$0xff]
  %v1247 = vld [vmem:[%s2 + $0xa8] sm:$0xff]
  %v1248 = vld [vmem:[%s2 + $0xb0] sm:$0xff]
  %v1249 = vld [vmem:[%s2 + $0xb8] sm:$0xff]
  %v1250 = vld [vmem:[%s2 + $0xc0] sm:$0xff]
  %v1251 = vld [vmem:[%s2 + $0xc8] sm:$0xff]
  %v1252 = vld [vmem:[%s2 + $0xd0] sm:$0xff]
  %v1253 = vld [vmem:[%s2 + $0xd8] sm:$0xff]
  %v1254 = vld [vmem:[%s2 + $0xe0] sm:$0xff]
  %v1255 = vld [vmem:[%s2 + $0xe8] sm:$0xff]
  %v1256 = vld [vmem:[%s2 + $0xf0] sm:$0xff]
  %v1257 = vld [vmem:[%s2 + $0xf8] sm:$0xff]
  %v1290 = vunpack.c.l.b16 %v1226
  %v1291 = vunpack.c.h.b16 %v1226
  %v1292 = vunpack.c.l.b16 %v1227
  %v1293 = vunpack.c.h.b16 %v1227
  %v1294 = vunpack.c.l.b16 %v1228
  %v1295 = vunpack.c.h.b16 %v1228
  %v1296 = vunpack.c.l.b16 %v1229
  %v1297 = vunpack.c.h.b16 %v1229
  %v1298 = vunpack.c.l.b16 %v1230
  %v1299 = vunpack.c.h.b16 %v1230
  %v1300 = vunpack.c.l.b16 %v1231
  %v1301 = vunpack.c.h.b16 %v1231
  %v1302 = vunpack.c.l.b16 %v1232
  %v1303 = vunpack.c.h.b16 %v1232
  %v1304 = vunpack.c.l.b16 %v1233
  %v1305 = vunpack.c.h.b16 %v1233
  %v1306 = vunpack.c.l.b16 %v1234
  %v1307 = vunpack.c.h.b16 %v1234
  %v1308 = vunpack.c.l.b16 %v1235
  %v1309 = vunpack.c.h.b16 %v1235
  %v1310 = vunpack.c.l.b16 %v1236
  %v1311 = vunpack.c.h.b16 %v1236
  %v1312 = vunpack.c.l.b16 %v1237
  %v1313 = vunpack.c.h.b16 %v1237
  %v1314 = vunpack.c.l.b16 %v1238
  %v1315 = vunpack.c.h.b16 %v1238
  %v1316 = vunpack.c.l.b16 %v1239
  %v1317 = vunpack.c.h.b16 %v1239
  %v1318 = vunpack.c.l.b16 %v1240
  %v1319 = vunpack.c.h.b16 %v1240
  %v1320 = vunpack.c.l.b16 %v1241
  %v1321 = vunpack.c.h.b16 %v1241
  %v1322 = vunpack.c.l.b16 %v1242
  %v1323 = vunpack.c.h.b16 %v1242
  %v1324 = vunpack.c.l.b16 %v1243
  %v1325 = vunpack.c.h.b16 %v1243
  %v1326 = vunpack.c.l.b16 %v1244
  %v1327 = vunpack.c.h.b16 %v1244
  %v1328 = vunpack.c.l.b16 %v1245
  %v1329 = vunpack.c.h.b16 %v1245
  %v1330 = vunpack.c.l.b16 %v1246
  %v1331 = vunpack.c.h.b16 %v1246
  %v1332 = vunpack.c.l.b16 %v1247
  %v1333 = vunpack.c.h.b16 %v1247
  %v1334 = vunpack.c.l.b16 %v1248
  %v1335 = vunpack.c.h.b16 %v1248
  %v1336 = vunpack.c.l.b16 %v1249
  %v1337 = vunpack.c.h.b16 %v1249
  %v1338 = vunpack.c.l.b16 %v1250
  %v1339 = vunpack.c.h.b16 %v1250
  %v1340 = vunpack.c.l.b16 %v1251
  %v1341 = vunpack.c.h.b16 %v1251
  %v1342 = vunpack.c.l.b16 %v1252
  %v1343 = vunpack.c.h.b16 %v1252
  %v1344 = vunpack.c.l.b16 %v1253
  %v1345 = vunpack.c.h.b16 %v1253
  %v1346 = vunpack.c.l.b16 %v1254
  %v1347 = vunpack.c.h.b16 %v1254
  %v1348 = vunpack.c.l.b16 %v1255
  %v1349 = vunpack.c.h.b16 %v1255
  %v1350 = vunpack.c.l.b16 %v1256
  %v1351 = vunpack.c.h.b16 %v1256
  %v1352 = vunpack.c.l.b16 %v1257
  %v1353 = vunpack.c.h.b16 %v1257
  %v1354 = vpack.c.b16 %v1294, %v1290
  %v1355 = vpack.c.b16 %v1295, %v1291
  %v1356 = vpack.c.b16 %v1296, %v1292
  %v1357 = vpack.c.b16 %v1297, %v1293
  %v1358 = vpack.c.b16 %v1302, %v1298
  %v1359 = vpack.c.b16 %v1303, %v1299
  %v1360 = vpack.c.b16 %v1304, %v1300
  %v1361 = vpack.c.b16 %v1305, %v1301
  %v1362 = vpack.c.b16 %v1310, %v1306
  %v1363 = vpack.c.b16 %v1311, %v1307
  %v1364 = vpack.c.b16 %v1312, %v1308
  %v1365 = vpack.c.b16 %v1313, %v1309
  %v1366 = vpack.c.b16 %v1318, %v1314
  %v1367 = vpack.c.b16 %v1319, %v1315
  %v1368 = vpack.c.b16 %v1320, %v1316
  %v1369 = vpack.c.b16 %v1321, %v1317
  %v1370 = vpack.c.b16 %v1326, %v1322
  %v1371 = vpack.c.b16 %v1327, %v1323
  %v1372 = vpack.c.b16 %v1328, %v1324
  %v1373 = vpack.c.b16 %v1329, %v1325
  %v1374 = vpack.c.b16 %v1334, %v1330
  %v1375 = vpack.c.b16 %v1335, %v1331
  %v1376 = vpack.c.b16 %v1336, %v1332
  %v1377 = vpack.c.b16 %v1337, %v1333
  %v1378 = vpack.c.b16 %v1342, %v1338
  %v1379 = vpack.c.b16 %v1343, %v1339
  %v1380 = vpack.c.b16 %v1344, %v1340
  %v1381 = vpack.c.b16 %v1345, %v1341
  %v1382 = vpack.c.b16 %v1350, %v1346
  %v1383 = vpack.c.b16 %v1351, %v1347
  %v1384 = vpack.c.b16 %v1352, %v1348
  %v1385 = vpack.c.b16 %v1353, %v1349
  %1418 = vmatprep.subr.bf16.mxu0 %v1383
  %1419 = vmatpush1.bf16.msra.mxu0 %v1382
  %1420 = vmatprep.subr.bf16.mxu0 %v1379
  %1421 = vmatpush1.bf16.msra.mxu0 %v1378
  %1422 = vmatprep.subr.bf16.mxu0 %v1375
  %1423 = vmatpush1.bf16.msra.mxu0 %v1374
  %1424 = vmatprep.subr.bf16.mxu0 %v1371
  %1425 = vmatpush1.bf16.msra.mxu0 %v1370
  %1426 = vmatprep.subr.bf16.mxu0 %v1367
  %1427 = vmatpush1.bf16.msra.mxu0 %v1366
  %1428 = vmatprep.subr.bf16.mxu0 %v1363
  %1429 = vmatpush1.bf16.msra.mxu0 %v1362
  %1430 = vmatprep.subr.bf16.mxu0 %v1359
  %1431 = vmatpush1.bf16.msra.mxu0 %v1358
  %1432 = vmatprep.subr.bf16.mxu0 %v1355
  %1433 = vmatpush1.bf16.msra.mxu0 %v1354
  %1434 = vmatprep.subr.bf16.mxu0 0
  %1435 = vmatpush2.bf16.msra.mxu0 0
  %1436 = vmatprep.subr.bf16.mxu0 0
  %1437 = vmatpush2.bf16.msra.mxu0 0
  %1438 = vmatprep.subr.bf16.mxu0 0
  %1439 = vmatpush2.bf16.msra.mxu0 0
  %1440 = vmatprep.subr.bf16.mxu0 0
  %1441 = vmatpush2.bf16.msra.mxu0 0
  %1442 = vmatprep.subr.bf16.mxu0 0
  %1443 = vmatpush2.bf16.msra.mxu0 0
  %1444 = vmatprep.subr.bf16.mxu0 0
  %1445 = vmatpush2.bf16.msra.mxu0 0
  %1446 = vmatprep.subr.bf16.mxu0 0
  %1447 = vmatpush2.bf16.msra.mxu0 0
  %1448 = vmatprep.subr.bf16.mxu0 0
  %1449 = vmatpush2.bf16.msra.mxu0 0
  %1450 = vmatprep.mubr.bf16.mxu0 0
  %1451 = vmatmul.mubr.bf16.gmra.mxu0 %v1225
  %v1452 = vpop.f32.mrf.mxu0
  %v1453 = vadd.f32 0.0, %v1452
  %v1454 = vpop.f32.mrf.mxu0
  %v1455 = vadd.f32 0.0, %v1454
  %v1456 = vpop.f32.mrf.mxu0
  %v1457 = vpop.f32.mrf.mxu0
  %1458 = vdwg.mxu0
  %1459 = vmatprep.subr.bf16.mxu0 %v1385
  %1460 = vmatpush1.bf16.msra.mxu0 %v1384
  %1461 = vmatprep.subr.bf16.mxu0 %v1381
  %1462 = vmatpush1.bf16.msra.mxu0 %v1380
  %1463 = vmatprep.subr.bf16.mxu0 %v1377
  %1464 = vmatpush1.bf16.msra.mxu0 %v1376
  %1465 = vmatprep.subr.bf16.mxu0 %v1373
  %1466 = vmatpush1.bf16.msra.mxu0 %v1372
  %1467 = vmatprep.subr.bf16.mxu0 %v1369
  %1468 = vmatpush1.bf16.msra.mxu0 %v1368
  %1469 = vmatprep.subr.bf16.mxu0 %v1365
  %1470 = vmatpush1.bf16.msra.mxu0 %v1364
  %1471 = vmatprep.subr.bf16.mxu0 %v1361
  %1472 = vmatpush1.bf16.msra.mxu0 %v1360
  %1473 = vmatprep.subr.bf16.mxu0 %v1357
  %1474 = vmatpush1.bf16.msra.mxu0 %v1356
  %1475 = vmatprep.subr.bf16.mxu0 0
  %1476 = vmatpush2.bf16.msra.mxu0 0
  %1477 = vmatprep.subr.bf16.mxu0 0
  %1478 = vmatpush2.bf16.msra.mxu0 0
  %1479 = vmatprep.subr.bf16.mxu0 0
  %1480 = vmatpush2.bf16.msra.mxu0 0
  %1481 = vmatprep.subr.bf16.mxu0 0
  %1482 = vmatpush2.bf16.msra.mxu0 0
  %1483 = vmatprep.subr.bf16.mxu0 0
  %1484 = vmatpush2.bf16.msra.mxu0 0
  %1485 = vmatprep.subr.bf16.mxu0 0
  %1486 = vmatpush2.bf16.msra.mxu0 0
  %1487 = vmatprep.subr.bf16.mxu0 0
  %1488 = vmatpush2.bf16.msra.mxu0 0
  %1489 = vmatprep.subr.bf16.mxu0 0
  %1490 = vmatpush2.bf16.msra.mxu0 0
  %1491 = vmatprep.mubr.bf16.mxu0 0
  %1492 = vmatmul.mubr.bf16.gmra.mxu0 %v1225
  %v1493 = vpop.f32.mrf.mxu0
  %v1494 = vadd.f32 0.0, %v1493
  %v1495 = vpop.f32.mrf.mxu0
  %v1496 = vadd.f32 0.0, %v1495
  %v1497 = vpop.f32.mrf.mxu0
  %v1498 = vpop.f32.mrf.mxu0
  %1499 = vdwg.mxu0
  %v1500 = vadd.f32 %v1221, %v1453
  %v1501 = vadd.f32 %v1222, %v1455
  %v1502 = vadd.f32 %v1223, %v1494
  %v1503 = vadd.f32 %v1224, %v1496
  %v1504 = vxor.u32 %v1500, 2147483648
  %v1505 = vxor.u32 %v1501, 2147483648
  %v1506 = vxor.u32 %v1502, 2147483648
  %v1507 = vmul.f32 %v1504, 1.442695
  %v1508 = vpow.pop %v1507
  %v1509 = vmul.f32 %v1505, 1.442695
  %v1510 = vpow.pop %v1509
  %v1511 = vmul.f32 %v1506, 1.442695
  %v1512 = vpow.pop %v1511
  %v1513 = vadd.f32 %v1508, 1.0
  %v1514 = vadd.f32 %v1510, 1.0
  %v1515 = vadd.f32 %v1512, 1.0
  %v1516 = vrcp.pop %v1513
  %v1517 = vmul.f32 1.0, %v1516
  %v1518 = vrcp.pop %v1514
  %v1519 = vmul.f32 1.0, %v1518
  %v1520 = vrcp.pop %v1515
  %v1521 = vmul.f32 1.0, %v1520
  %v1522 = vtanh.pop %v1503
  %v1523 = vmul.f32 %v1519, %v1217
  %v1524 = vmul.f32 %v1517, %v1522
  %v1525 = vadd.f32 %v1523, %v1524
  %v1526 = vtanh.pop %v1525
  %v1527 = vmul.f32 %v1521, %v1526
  %1528 = vst [vmem:[#allocation3 + $0x10] sm:$0xff] %v1527
  %v1529 = vld [vmem:[#allocation2 + $0x60] sm:$0xff]
  %v1530 = vld [vmem:[#allocation2 + $0x68] sm:$0xff]
  %v1531 = vld [vmem:[#allocation2 + $0x70] sm:$0xff]
  %v1532 = vld [vmem:[#allocation2 + $0x78] sm:$0xff]
  %v1533 = vpack.c.bf16 %v1527, %v1527
  %v1534 = vld [vmem:[%s2] sm:$0xff]
  %v1535 = vld [vmem:[%s2 + $0x8] sm:$0xff]
  %v1536 = vld [vmem:[%s2 + $0x10] sm:$0xff]
  %v1537 = vld [vmem:[%s2 + $0x18] sm:$0xff]
  %v1538 = vld [vmem:[%s2 + $0x20] sm:$0xff]
  %v1539 = vld [vmem:[%s2 + $0x28] sm:$0xff]
  %v1540 = vld [vmem:[%s2 + $0x30] sm:$0xff]
  %v1541 = vld [vmem:[%s2 + $0x38] sm:$0xff]
  %v1542 = vld [vmem:[%s2 + $0x40] sm:$0xff]
  %v1543 = vld [vmem:[%s2 + $0x48] sm:$0xff]
  %v1544 = vld [vmem:[%s2 + $0x50] sm:$0xff]
  %v1545 = vld [vmem:[%s2 + $0x58] sm:$0xff]
  %v1546 = vld [vmem:[%s2 + $0x60] sm:$0xff]
  %v1547 = vld [vmem:[%s2 + $0x68] sm:$0xff]
  %v1548 = vld [vmem:[%s2 + $0x70] sm:$0xff]
  %v1549 = vld [vmem:[%s2 + $0x78] sm:$0xff]
  %v1550 = vld [vmem:[%s2 + $0x80] sm:$0xff]
  %v1551 = vld [vmem:[%s2 + $0x88] sm:$0xff]
  %v1552 = vld [vmem:[%s2 + $0x90] sm:$0xff]
  %v1553 = vld [vmem:[%s2 + $0x98] sm:$0xff]
  %v1554 = vld [vmem:[%s2 + $0xa0] sm:$0xff]
  %v1555 = vld [vmem:[%s2 + $0xa8] sm:$0xff]
  %v1556 = vld [vmem:[%s2 + $0xb0] sm:$0xff]
  %v1557 = vld [vmem:[%s2 + $0xb8] sm:$0xff]
  %v1558 = vld [vmem:[%s2 + $0xc0] sm:$0xff]
  %v1559 = vld [vmem:[%s2 + $0xc8] sm:$0xff]
  %v1560 = vld [vmem:[%s2 + $0xd0] sm:$0xff]
  %v1561 = vld [vmem:[%s2 + $0xd8] sm:$0xff]
  %v1562 = vld [vmem:[%s2 + $0xe0] sm:$0xff]
  %v1563 = vld [vmem:[%s2 + $0xe8] sm:$0xff]
  %v1564 = vld [vmem:[%s2 + $0xf0] sm:$0xff]
  %v1565 = vld [vmem:[%s2 + $0xf8] sm:$0xff]
  %v1598 = vunpack.c.l.b16 %v1534
  %v1599 = vunpack.c.h.b16 %v1534
  %v1600 = vunpack.c.l.b16 %v1535
  %v1601 = vunpack.c.h.b16 %v1535
  %v1602 = vunpack.c.l.b16 %v1536
  %v1603 = vunpack.c.h.b16 %v1536
  %v1604 = vunpack.c.l.b16 %v1537
  %v1605 = vunpack.c.h.b16 %v1537
  %v1606 = vunpack.c.l.b16 %v1538
  %v1607 = vunpack.c.h.b16 %v1538
  %v1608 = vunpack.c.l.b16 %v1539
  %v1609 = vunpack.c.h.b16 %v1539
  %v1610 = vunpack.c.l.b16 %v1540
  %v1611 = vunpack.c.h.b16 %v1540
  %v1612 = vunpack.c.l.b16 %v1541
  %v1613 = vunpack.c.h.b16 %v1541
  %v1614 = vunpack.c.l.b16 %v1542
  %v1615 = vunpack.c.h.b16 %v1542
  %v1616 = vunpack.c.l.b16 %v1543
  %v1617 = vunpack.c.h.b16 %v1543
  %v1618 = vunpack.c.l.b16 %v1544
  %v1619 = vunpack.c.h.b16 %v1544
  %v1620 = vunpack.c.l.b16 %v1545
  %v1621 = vunpack.c.h.b16 %v1545
  %v1622 = vunpack.c.l.b16 %v1546
  %v1623 = vunpack.c.h.b16 %v1546
  %v1624 = vunpack.c.l.b16 %v1547
  %v1625 = vunpack.c.h.b16 %v1547
  %v1626 = vunpack.c.l.b16 %v1548
  %v1627 = vunpack.c.h.b16 %v1548
  %v1628 = vunpack.c.l.b16 %v1549
  %v1629 = vunpack.c.h.b16 %v1549
  %v1630 = vunpack.c.l.b16 %v1550
  %v1631 = vunpack.c.h.b16 %v1550
  %v1632 = vunpack.c.l.b16 %v1551
  %v1633 = vunpack.c.h.b16 %v1551
  %v1634 = vunpack.c.l.b16 %v1552
  %v1635 = vunpack.c.h.b16 %v1552
  %v1636 = vunpack.c.l.b16 %v1553
  %v1637 = vunpack.c.h.b16 %v1553
  %v1638 = vunpack.c.l.b16 %v1554
  %v1639 = vunpack.c.h.b16 %v1554
  %v1640 = vunpack.c.l.b16 %v1555
  %v1641 = vunpack.c.h.b16 %v1555
  %v1642 = vunpack.c.l.b16 %v1556
  %v1643 = vunpack.c.h.b16 %v1556
  %v1644 = vunpack.c.l.b16 %v1557
  %v1645 = vunpack.c.h.b16 %v1557
  %v1646 = vunpack.c.l.b16 %v1558
  %v1647 = vunpack.c.h.b16 %v1558
  %v1648 = vunpack.c.l.b16 %v1559
  %v1649 = vunpack.c.h.b16 %v1559
  %v1650 = vunpack.c.l.b16 %v1560
  %v1651 = vunpack.c.h.b16 %v1560
  %v1652 = vunpack.c.l.b16 %v1561
  %v1653 = vunpack.c.h.b16 %v1561
  %v1654 = vunpack.c.l.b16 %v1562
  %v1655 = vunpack.c.h.b16 %v1562
  %v1656 = vunpack.c.l.b16 %v1563
  %v1657 = vunpack.c.h.b16 %v1563
  %v1658 = vunpack.c.l.b16 %v1564
  %v1659 = vunpack.c.h.b16 %v1564
  %v1660 = vunpack.c.l.b16 %v1565
  %v1661 = vunpack.c.h.b16 %v1565
  %v1662 = vpack.c.b16 %v1602, %v1598
  %v1663 = vpack.c.b16 %v1603, %v1599
  %v1664 = vpack.c.b16 %v1604, %v1600
  %v1665 = vpack.c.b16 %v1605, %v1601
  %v1666 = vpack.c.b16 %v1610, %v1606
  %v1667 = vpack.c.b16 %v1611, %v1607
  %v1668 = vpack.c.b16 %v1612, %v1608
  %v1669 = vpack.c.b16 %v1613, %v1609
  %v1670 = vpack.c.b16 %v1618, %v1614
  %v1671 = vpack.c.b16 %v1619, %v1615
  %v1672 = vpack.c.b16 %v1620, %v1616
  %v1673 = vpack.c.b16 %v1621, %v1617
  %v1674 = vpack.c.b16 %v1626, %v1622
  %v1675 = vpack.c.b16 %v1627, %v1623
  %v1676 = vpack.c.b16 %v1628, %v1624
  %v1677 = vpack.c.b16 %v1629, %v1625
  %v1678 = vpack.c.b16 %v1634, %v1630
  %v1679 = vpack.c.b16 %v1635, %v1631
  %v1680 = vpack.c.b16 %v1636, %v1632
  %v1681 = vpack.c.b16 %v1637, %v1633
  %v1682 = vpack.c.b16 %v1642, %v1638
  %v1683 = vpack.c.b16 %v1643, %v1639
  %v1684 = vpack.c.b16 %v1644, %v1640
  %v1685 = vpack.c.b16 %v1645, %v1641
  %v1686 = vpack.c.b16 %v1650, %v1646
  %v1687 = vpack.c.b16 %v1651, %v1647
  %v1688 = vpack.c.b16 %v1652, %v1648
  %v1689 = vpack.c.b16 %v1653, %v1649
  %v1690 = vpack.c.b16 %v1658, %v1654
  %v1691 = vpack.c.b16 %v1659, %v1655
  %v1692 = vpack.c.b16 %v1660, %v1656
  %v1693 = vpack.c.b16 %v1661, %v1657
  %1726 = vmatprep.subr.bf16.mxu0 %v1691
  %1727 = vmatpush1.bf16.msra.mxu0 %v1690
  %1728 = vmatprep.subr.bf16.mxu0 %v1687
  %1729 = vmatpush1.bf16.msra.mxu0 %v1686
  %1730 = vmatprep.subr.bf16.mxu0 %v1683
  %1731 = vmatpush1.bf16.msra.mxu0 %v1682
  %1732 = vmatprep.subr.bf16.mxu0 %v1679
  %1733 = vmatpush1.bf16.msra.mxu0 %v1678
  %1734 = vmatprep.subr.bf16.mxu0 %v1675
  %1735 = vmatpush1.bf16.msra.mxu0 %v1674
  %1736 = vmatprep.subr.bf16.mxu0 %v1671
  %1737 = vmatpush1.bf16.msra.mxu0 %v1670
  %1738 = vmatprep.subr.bf16.mxu0 %v1667
  %1739 = vmatpush1.bf16.msra.mxu0 %v1666
  %1740 = vmatprep.subr.bf16.mxu0 %v1663
  %1741 = vmatpush1.bf16.msra.mxu0 %v1662
  %1742 = vmatprep.subr.bf16.mxu0 0
  %1743 = vmatpush2.bf16.msra.mxu0 0
  %1744 = vmatprep.subr.bf16.mxu0 0
  %1745 = vmatpush2.bf16.msra.mxu0 0
  %1746 = vmatprep.subr.bf16.mxu0 0
  %1747 = vmatpush2.bf16.msra.mxu0 0
  %1748 = vmatprep.subr.bf16.mxu0 0
  %1749 = vmatpush2.bf16.msra.mxu0 0
  %1750 = vmatprep.subr.bf16.mxu0 0
  %1751 = vmatpush2.bf16.msra.mxu0 0
  %1752 = vmatprep.subr.bf16.mxu0 0
  %1753 = vmatpush2.bf16.msra.mxu0 0
  %1754 = vmatprep.subr.bf16.mxu0 0
  %1755 = vmatpush2.bf16.msra.mxu0 0
  %1756 = vmatprep.subr.bf16.mxu0 0
  %1757 = vmatpush2.bf16.msra.mxu0 0
  %1758 = vmatprep.mubr.bf16.mxu0 0
  %1759 = vmatmul.mubr.bf16.gmra.mxu0 %v1533
  %v1760 = vpop.f32.mrf.mxu0
  %v1761 = vadd.f32 0.0, %v1760
  %v1762 = vpop.f32.mrf.mxu0
  %v1763 = vadd.f32 0.0, %v1762
  %v1764 = vpop.f32.mrf.mxu0
  %v1765 = vpop.f32.mrf.mxu0
  %1766 = vdwg.mxu0
  %1767 = vmatprep.subr.bf16.mxu0 %v1693
  %1768 = vmatpush1.bf16.msra.mxu0 %v1692
  %1769 = vmatprep.subr.bf16.mxu0 %v1689
  %1770 = vmatpush1.bf16.msra.mxu0 %v1688
  %1771 = vmatprep.subr.bf16.mxu0 %v1685
  %1772 = vmatpush1.bf16.msra.mxu0 %v1684
  %1773 = vmatprep.subr.bf16.mxu0 %v1681
  %1774 = vmatpush1.bf16.msra.mxu0 %v1680
  %1775 = vmatprep.subr.bf16.mxu0 %v1677
  %1776 = vmatpush1.bf16.msra.mxu0 %v1676
  %1777 = vmatprep.subr.bf16.mxu0 %v1673
  %1778 = vmatpush1.bf16.msra.mxu0 %v1672
  %1779 = vmatprep.subr.bf16.mxu0 %v1669
  %1780 = vmatpush1.bf16.msra.mxu0 %v1668
  %1781 = vmatprep.subr.bf16.mxu0 %v1665
  %1782 = vmatpush1.bf16.msra.mxu0 %v1664
  %1783 = vmatprep.subr.bf16.mxu0 0
  %1784 = vmatpush2.bf16.msra.mxu0 0
  %1785 = vmatprep.subr.bf16.mxu0 0
  %1786 = vmatpush2.bf16.msra.mxu0 0
  %1787 = vmatprep.subr.bf16.mxu0 0
  %1788 = vmatpush2.bf16.msra.mxu0 0
  %1789 = vmatprep.subr.bf16.mxu0 0
  %1790 = vmatpush2.bf16.msra.mxu0 0
  %1791 = vmatprep.subr.bf16.mxu0 0
  %1792 = vmatpush2.bf16.msra.mxu0 0
  %1793 = vmatprep.subr.bf16.mxu0 0
  %1794 = vmatpush2.bf16.msra.mxu0 0
  %1795 = vmatprep.subr.bf16.mxu0 0
  %1796 = vmatpush2.bf16.msra.mxu0 0
  %1797 = vmatprep.subr.bf16.mxu0 0
  %1798 = vmatpush2.bf16.msra.mxu0 0
  %1799 = vmatprep.mubr.bf16.mxu0 0
  %1800 = vmatmul.mubr.bf16.gmra.mxu0 %v1533
  %v1801 = vpop.f32.mrf.mxu0
  %v1802 = vadd.f32 0.0, %v1801
  %v1803 = vpop.f32.mrf.mxu0
  %v1804 = vadd.f32 0.0, %v1803
  %v1805 = vpop.f32.mrf.mxu0
  %v1806 = vpop.f32.mrf.mxu0
  %1807 = vdwg.mxu0
  %v1808 = vadd.f32 %v1529, %v1761
  %v1809 = vadd.f32 %v1530, %v1763
  %v1810 = vadd.f32 %v1531, %v1802
  %v1811 = vadd.f32 %v1532, %v1804
  %v1812 = vxor.u32 %v1808, 2147483648
  %v1813 = vxor.u32 %v1809, 2147483648
  %v1814 = vxor.u32 %v1810, 2147483648
  %v1815 = vmul.f32 %v1812, 1.442695
  %v1816 = vpow.pop %v1815
  %v1817 = vmul.f32 %v1813, 1.442695
  %v1818 = vpow.pop %v1817
  %v1819 = vmul.f32 %v1814, 1.442695
  %v1820 = vpow.pop %v1819
  %v1821 = vadd.f32 %v1816, 1.0
  %v1822 = vadd.f32 %v1818, 1.0
  %v1823 = vadd.f32 %v1820, 1.0
  %v1824 = vrcp.pop %v1821
  %v1825 = vmul.f32 1.0, %v1824
  %v1826 = vrcp.pop %v1822
  %v1827 = vmul.f32 1.0, %v1826
  %v1828 = vrcp.pop %v1823
  %v1829 = vmul.f32 1.0, %v1828
  %v1830 = vtanh.pop %v1811
  %v1831 = vmul.f32 %v1827, %v1525
  %v1832 = vmul.f32 %v1825, %v1830
  %v1833 = vadd.f32 %v1831, %v1832
  %v1834 = vtanh.pop %v1833
  %v1835 = vmul.f32 %v1829, %v1834
  %1836 = vst [vmem:[#allocation3 + $0x18] sm:$0xff] %v1835
  %v1837 = vld [vmem:[#allocation2 + $0x80] sm:$0xff]
  %v1838 = vld [vmem:[#allocation2 + $0x88] sm:$0xff]
  %v1839 = vld [vmem:[#allocation2 + $0x90] sm:$0xff]
  %v1840 = vld [vmem:[#allocation2 + $0x98] sm:$0xff]
  %v1841 = vpack.c.bf16 %v1835, %v1835
  %v1842 = vld [vmem:[%s2] sm:$0xff]
  %v1843 = vld [vmem:[%s2 + $0x8] sm:$0xff]
  %v1844 = vld [vmem:[%s2 + $0x10] sm:$0xff]
  %v1845 = vld [vmem:[%s2 + $0x18] sm:$0xff]
  %v1846 = vld [vmem:[%s2 + $0x20] sm:$0xff]
  %v1847 = vld [vmem:[%s2 + $0x28] sm:$0xff]
  %v1848 = vld [vmem:[%s2 + $0x30] sm:$0xff]
  %v1849 = vld [vmem:[%s2 + $0x38] sm:$0xff]
  %v1850 = vld [vmem:[%s2 + $0x40] sm:$0xff]
  %v1851 = vld [vmem:[%s2 + $0x48] sm:$0xff]
  %v1852 = vld [vmem:[%s2 + $0x50] sm:$0xff]
  %v1853 = vld [vmem:[%s2 + $0x58] sm:$0xff]
  %v1854 = vld [vmem:[%s2 + $0x60] sm:$0xff]
  %v1855 = vld [vmem:[%s2 + $0x68] sm:$0xff]
  %v1856 = vld [vmem:[%s2 + $0x70] sm:$0xff]
  %v1857 = vld [vmem:[%s2 + $0x78] sm:$0xff]
  %v1858 = vld [vmem:[%s2 + $0x80] sm:$0xff]
  %v1859 = vld [vmem:[%s2 + $0x88] sm:$0xff]
  %v1860 = vld [vmem:[%s2 + $0x90] sm:$0xff]
  %v1861 = vld [vmem:[%s2 + $0x98] sm:$0xff]
  %v1862 = vld [vmem:[%s2 + $0xa0] sm:$0xff]
  %v1863 = vld [vmem:[%s2 + $0xa8] sm:$0xff]
  %v1864 = vld [vmem:[%s2 + $0xb0] sm:$0xff]
  %v1865 = vld [vmem:[%s2 + $0xb8] sm:$0xff]
  %v1866 = vld [vmem:[%s2 + $0xc0] sm:$0xff]
  %v1867 = vld [vmem:[%s2 + $0xc8] sm:$0xff]
  %v1868 = vld [vmem:[%s2 + $0xd0] sm:$0xff]
  %v1869 = vld [vmem:[%s2 + $0xd8] sm:$0xff]
  %v1870 = vld [vmem:[%s2 + $0xe0] sm:$0xff]
  %v1871 = vld [vmem:[%s2 + $0xe8] sm:$0xff]
  %v1872 = vld [vmem:[%s2 + $0xf0] sm:$0xff]
  %v1873 = vld [vmem:[%s2 + $0xf8] sm:$0xff]
  %v1906 = vunpack.c.l.b16 %v1842
  %v1907 = vunpack.c.h.b16 %v1842
  %v1908 = vunpack.c.l.b16 %v1843
  %v1909 = vunpack.c.h.b16 %v1843
  %v1910 = vunpack.c.l.b16 %v1844
  %v1911 = vunpack.c.h.b16 %v1844
  %v1912 = vunpack.c.l.b16 %v1845
  %v1913 = vunpack.c.h.b16 %v1845
  %v1914 = vunpack.c.l.b16 %v1846
  %v1915 = vunpack.c.h.b16 %v1846
  %v1916 = vunpack.c.l.b16 %v1847
  %v1917 = vunpack.c.h.b16 %v1847
  %v1918 = vunpack.c.l.b16 %v1848
  %v1919 = vunpack.c.h.b16 %v1848
  %v1920 = vunpack.c.l.b16 %v1849
  %v1921 = vunpack.c.h.b16 %v1849
  %v1922 = vunpack.c.l.b16 %v1850
  %v1923 = vunpack.c.h.b16 %v1850
  %v1924 = vunpack.c.l.b16 %v1851
  %v1925 = vunpack.c.h.b16 %v1851
  %v1926 = vunpack.c.l.b16 %v1852
  %v1927 = vunpack.c.h.b16 %v1852
  %v1928 = vunpack.c.l.b16 %v1853
  %v1929 = vunpack.c.h.b16 %v1853
  %v1930 = vunpack.c.l.b16 %v1854
  %v1931 = vunpack.c.h.b16 %v1854
  %v1932 = vunpack.c.l.b16 %v1855
  %v1933 = vunpack.c.h.b16 %v1855
  %v1934 = vunpack.c.l.b16 %v1856
  %v1935 = vunpack.c.h.b16 %v1856
  %v1936 = vunpack.c.l.b16 %v1857
  %v1937 = vunpack.c.h.b16 %v1857
  %v1938 = vunpack.c.l.b16 %v1858
  %v1939 = vunpack.c.h.b16 %v1858
  %v1940 = vunpack.c.l.b16 %v1859
  %v1941 = vunpack.c.h.b16 %v1859
  %v1942 = vunpack.c.l.b16 %v1860
  %v1943 = vunpack.c.h.b16 %v1860
  %v1944 = vunpack.c.l.b16 %v1861
  %v1945 = vunpack.c.h.b16 %v1861
  %v1946 = vunpack.c.l.b16 %v1862
  %v1947 = vunpack.c.h.b16 %v1862
  %v1948 = vunpack.c.l.b16 %v1863
  %v1949 = vunpack.c.h.b16 %v1863
  %v1950 = vunpack.c.l.b16 %v1864
  %v1951 = vunpack.c.h.b16 %v1864
  %v1952 = vunpack.c.l.b16 %v1865
  %v1953 = vunpack.c.h.b16 %v1865
  %v1954 = vunpack.c.l.b16 %v1866
  %v1955 = vunpack.c.h.b16 %v1866
  %v1956 = vunpack.c.l.b16 %v1867
  %v1957 = vunpack.c.h.b16 %v1867
  %v1958 = vunpack.c.l.b16 %v1868
  %v1959 = vunpack.c.h.b16 %v1868
  %v1960 = vunpack.c.l.b16 %v1869
  %v1961 = vunpack.c.h.b16 %v1869
  %v1962 = vunpack.c.l.b16 %v1870
  %v1963 = vunpack.c.h.b16 %v1870
  %v1964 = vunpack.c.l.b16 %v1871
  %v1965 = vunpack.c.h.b16 %v1871
  %v1966 = vunpack.c.l.b16 %v1872
  %v1967 = vunpack.c.h.b16 %v1872
  %v1968 = vunpack.c.l.b16 %v1873
  %v1969 = vunpack.c.h.b16 %v1873
  %v1970 = vpack.c.b16 %v1910, %v1906
  %v1971 = vpack.c.b16 %v1911, %v1907
  %v1972 = vpack.c.b16 %v1912, %v1908
  %v1973 = vpack.c.b16 %v1913, %v1909
  %v1974 = vpack.c.b16 %v1918, %v1914
  %v1975 = vpack.c.b16 %v1919, %v1915
  %v1976 = vpack.c.b16 %v1920, %v1916
  %v1977 = vpack.c.b16 %v1921, %v1917
  %v1978 = vpack.c.b16 %v1926, %v1922
  %v1979 = vpack.c.b16 %v1927, %v1923
  %v1980 = vpack.c.b16 %v1928, %v1924
  %v1981 = vpack.c.b16 %v1929, %v1925
  %v1982 = vpack.c.b16 %v1934, %v1930
  %v1983 = vpack.c.b16 %v1935, %v1931
  %v1984 = vpack.c.b16 %v1936, %v1932
  %v1985 = vpack.c.b16 %v1937, %v1933
  %v1986 = vpack.c.b16 %v1942, %v1938
  %v1987 = vpack.c.b16 %v1943, %v1939
  %v1988 = vpack.c.b16 %v1944, %v1940
  %v1989 = vpack.c.b16 %v1945, %v1941
  %v1990 = vpack.c.b16 %v1950, %v1946
  %v1991 = vpack.c.b16 %v1951, %v1947
  %v1992 = vpack.c.b16 %v1952, %v1948
  %v1993 = vpack.c.b16 %v1953, %v1949
  %v1994 = vpack.c.b16 %v1958, %v1954
  %v1995 = vpack.c.b16 %v1959, %v1955
  %v1996 = vpack.c.b16 %v1960, %v1956
  %v1997 = vpack.c.b16 %v1961, %v1957
  %v1998 = vpack.c.b16 %v1966, %v1962
  %v1999 = vpack.c.b16 %v1967, %v1963
  %v2000 = vpack.c.b16 %v1968, %v1964
  %v2001 = vpack.c.b16 %v1969, %v1965
  %2034 = vmatprep.subr.bf16.mxu0 %v1999
  %2035 = vmatpush1.bf16.msra.mxu0 %v1998
  %2036 = vmatprep.subr.bf16.mxu0 %v1995
  %2037 = vmatpush1.bf16.msra.mxu0 %v1994
  %2038 = vmatprep.subr.bf16.mxu0 %v1991
  %2039 = vmatpush1.bf16.msra.mxu0 %v1990
  %2040 = vmatprep.subr.bf16.mxu0 %v1987
  %2041 = vmatpush1.bf16.msra.mxu0 %v1986
  %2042 = vmatprep.subr.bf16.mxu0 %v1983
  %2043 = vmatpush1.bf16.msra.mxu0 %v1982
  %2044 = vmatprep.subr.bf16.mxu0 %v1979
  %2045 = vmatpush1.bf16.msra.mxu0 %v1978
  %2046 = vmatprep.subr.bf16.mxu0 %v1975
  %2047 = vmatpush1.bf16.msra.mxu0 %v1974
  %2048 = vmatprep.subr.bf16.mxu0 %v1971
  %2049 = vmatpush1.bf16.msra.mxu0 %v1970
  %2050 = vmatprep.subr.bf16.mxu0 0
  %2051 = vmatpush2.bf16.msra.mxu0 0
  %2052 = vmatprep.subr.bf16.mxu0 0
  %2053 = vmatpush2.bf16.msra.mxu0 0
  %2054 = vmatprep.subr.bf16.mxu0 0
  %2055 = vmatpush2.bf16.msra.mxu0 0
  %2056 = vmatprep.subr.bf16.mxu0 0
  %2057 = vmatpush2.bf16.msra.mxu0 0
  %2058 = vmatprep.subr.bf16.mxu0 0
  %2059 = vmatpush2.bf16.msra.mxu0 0
  %2060 = vmatprep.subr.bf16.mxu0 0
  %2061 = vmatpush2.bf16.msra.mxu0 0
  %2062 = vmatprep.subr.bf16.mxu0 0
  %2063 = vmatpush2.bf16.msra.mxu0 0
  %2064 = vmatprep.subr.bf16.mxu0 0
  %2065 = vmatpush2.bf16.msra.mxu0 0
  %2066 = vmatprep.mubr.bf16.mxu0 0
  %2067 = vmatmul.mubr.bf16.gmra.mxu0 %v1841
  %v2068 = vpop.f32.mrf.mxu0
  %v2069 = vadd.f32 0.0, %v2068
  %v2070 = vpop.f32.mrf.mxu0
  %v2071 = vadd.f32 0.0, %v2070
  %v2072 = vpop.f32.mrf.mxu0
  %v2073 = vpop.f32.mrf.mxu0
  %2074 = vdwg.mxu0
  %2075 = vmatprep.subr.bf16.mxu0 %v2001
  %2076 = vmatpush1.bf16.msra.mxu0 %v2000
  %2077 = vmatprep.subr.bf16.mxu0 %v1997
  %2078 = vmatpush1.bf16.msra.mxu0 %v1996
  %2079 = vmatprep.subr.bf16.mxu0 %v1993
  %2080 = vmatpush1.bf16.msra.mxu0 %v1992
  %2081 = vmatprep.subr.bf16.mxu0 %v1989
  %2082 = vmatpush1.bf16.msra.mxu0 %v1988
  %2083 = vmatprep.subr.bf16.mxu0 %v1985
  %2084 = vmatpush1.bf16.msra.mxu0 %v1984
  %2085 = vmatprep.subr.bf16.mxu0 %v1981
  %2086 = vmatpush1.bf16.msra.mxu0 %v1980
  %2087 = vmatprep.subr.bf16.mxu0 %v1977
  %2088 = vmatpush1.bf16.msra.mxu0 %v1976
  %2089 = vmatprep.subr.bf16.mxu0 %v1973
  %2090 = vmatpush1.bf16.msra.mxu0 %v1972
  %2091 = vmatprep.subr.bf16.mxu0 0
  %2092 = vmatpush2.bf16.msra.mxu0 0
  %2093 = vmatprep.subr.bf16.mxu0 0
  %2094 = vmatpush2.bf16.msra.mxu0 0
  %2095 = vmatprep.subr.bf16.mxu0 0
  %2096 = vmatpush2.bf16.msra.mxu0 0
  %2097 = vmatprep.subr.bf16.mxu0 0
  %2098 = vmatpush2.bf16.msra.mxu0 0
  %2099 = vmatprep.subr.bf16.mxu0 0
  %2100 = vmatpush2.bf16.msra.mxu0 0
  %2101 = vmatprep.subr.bf16.mxu0 0
  %2102 = vmatpush2.bf16.msra.mxu0 0
  %2103 = vmatprep.subr.bf16.mxu0 0
  %2104 = vmatpush2.bf16.msra.mxu0 0
  %2105 = vmatprep.subr.bf16.mxu0 0
  %2106 = vmatpush2.bf16.msra.mxu0 0
  %2107 = vmatprep.mubr.bf16.mxu0 0
  %2108 = vmatmul.mubr.bf16.gmra.mxu0 %v1841
  %v2109 = vpop.f32.mrf.mxu0
  %v2110 = vadd.f32 0.0, %v2109
  %v2111 = vpop.f32.mrf.mxu0
  %v2112 = vadd.f32 0.0, %v2111
  %v2113 = vpop.f32.mrf.mxu0
  %v2114 = vpop.f32.mrf.mxu0
  %2115 = vdwg.mxu0
  %v2116 = vadd.f32 %v1837, %v2069
  %v2117 = vadd.f32 %v1838, %v2071
  %v2118 = vadd.f32 %v1839, %v2110
  %v2119 = vadd.f32 %v1840, %v2112
  %v2120 = vxor.u32 %v2116, 2147483648
  %v2121 = vxor.u32 %v2117, 2147483648
  %v2122 = vxor.u32 %v2118, 2147483648
  %v2123 = vmul.f32 %v2120, 1.442695
  %v2124 = vpow.pop %v2123
  %v2125 = vmul.f32 %v2121, 1.442695
  %v2126 = vpow.pop %v2125
  %v2127 = vmul.f32 %v2122, 1.442695
  %v2128 = vpow.pop %v2127
  %v2129 = vadd.f32 %v2124, 1.0
  %v2130 = vadd.f32 %v2126, 1.0
  %v2131 = vadd.f32 %v2128, 1.0
  %v2132 = vrcp.pop %v2129
  %v2133 = vmul.f32 1.0, %v2132
  %v2134 = vrcp.pop %v2130
  %v2135 = vmul.f32 1.0, %v2134
  %v2136 = vrcp.pop %v2131
  %v2137 = vmul.f32 1.0, %v2136
  %v2138 = vtanh.pop %v2119
  %v2139 = vmul.f32 %v2135, %v1833
  %v2140 = vmul.f32 %v2133, %v2138
  %v2141 = vadd.f32 %v2139, %v2140
  %v2142 = vtanh.pop %v2141
  %v2143 = vmul.f32 %v2137, %v2142
  %2144 = vst [vmem:[#allocation3 + $0x20] sm:$0xff] %v2143
  %v2145 = vld [vmem:[#allocation2 + $0xa0] sm:$0xff]
  %v2146 = vld [vmem:[#allocation2 + $0xa8] sm:$0xff]
  %v2147 = vld [vmem:[#allocation2 + $0xb0] sm:$0xff]
  %v2148 = vld [vmem:[#allocation2 + $0xb8] sm:$0xff]
  %v2149 = vpack.c.bf16 %v2143, %v2143
  %v2150 = vld [vmem:[%s2] sm:$0xff]
  %v2151 = vld [vmem:[%s2 + $0x8] sm:$0xff]
  %v2152 = vld [vmem:[%s2 + $0x10] sm:$0xff]
  %v2153 = vld [vmem:[%s2 + $0x18] sm:$0xff]
  %v2154 = vld [vmem:[%s2 + $0x20] sm:$0xff]
  %v2155 = vld [vmem:[%s2 + $0x28] sm:$0xff]
  %v2156 = vld [vmem:[%s2 + $0x30] sm:$0xff]
  %v2157 = vld [vmem:[%s2 + $0x38] sm:$0xff]
  %v2158 = vld [vmem:[%s2 + $0x40] sm:$0xff]
  %v2159 = vld [vmem:[%s2 + $0x48] sm:$0xff]
  %v2160 = vld [vmem:[%s2 + $0x50] sm:$0xff]
  %v2161 = vld [vmem:[%s2 + $0x58] sm:$0xff]
  %v2162 = vld [vmem:[%s2 + $0x60] sm:$0xff]
  %v2163 = vld [vmem:[%s2 + $0x68] sm:$0xff]
  %v2164 = vld [vmem:[%s2 + $0x70] sm:$0xff]
  %v2165 = vld [vmem:[%s2 + $0x78] sm:$0xff]
  %v2166 = vld [vmem:[%s2 + $0x80] sm:$0xff]
  %v2167 = vld [vmem:[%s2 + $0x88] sm:$0xff]
  %v2168 = vld [vmem:[%s2 + $0x90] sm:$0xff]
  %v2169 = vld [vmem:[%s2 + $0x98] sm:$0xff]
  %v2170 = vld [vmem:[%s2 + $0xa0] sm:$0xff]
  %v2171 = vld [vmem:[%s2 + $0xa8] sm:$0xff]
  %v2172 = vld [vmem:[%s2 + $0xb0] sm:$0xff]
  %v2173 = vld [vmem:[%s2 + $0xb8] sm:$0xff]
  %v2174 = vld [vmem:[%s2 + $0xc0] sm:$0xff]
  %v2175 = vld [vmem:[%s2 + $0xc8] sm:$0xff]
  %v2176 = vld [vmem:[%s2 + $0xd0] sm:$0xff]
  %v2177 = vld [vmem:[%s2 + $0xd8] sm:$0xff]
  %v2178 = vld [vmem:[%s2 + $0xe0] sm:$0xff]
  %v2179 = vld [vmem:[%s2 + $0xe8] sm:$0xff]
  %v2180 = vld [vmem:[%s2 + $0xf0] sm:$0xff]
  %v2181 = vld [vmem:[%s2 + $0xf8] sm:$0xff]
  %v2214 = vunpack.c.l.b16 %v2150
  %v2215 = vunpack.c.h.b16 %v2150
  %v2216 = vunpack.c.l.b16 %v2151
  %v2217 = vunpack.c.h.b16 %v2151
  %v2218 = vunpack.c.l.b16 %v2152
  %v2219 = vunpack.c.h.b16 %v2152
  %v2220 = vunpack.c.l.b16 %v2153
  %v2221 = vunpack.c.h.b16 %v2153
  %v2222 = vunpack.c.l.b16 %v2154
  %v2223 = vunpack.c.h.b16 %v2154
  %v2224 = vunpack.c.l.b16 %v2155
  %v2225 = vunpack.c.h.b16 %v2155
  %v2226 = vunpack.c.l.b16 %v2156
  %v2227 = vunpack.c.h.b16 %v2156
  %v2228 = vunpack.c.l.b16 %v2157
  %v2229 = vunpack.c.h.b16 %v2157
  %v2230 = vunpack.c.l.b16 %v2158
  %v2231 = vunpack.c.h.b16 %v2158
  %v2232 = vunpack.c.l.b16 %v2159
  %v2233 = vunpack.c.h.b16 %v2159
  %v2234 = vunpack.c.l.b16 %v2160
  %v2235 = vunpack.c.h.b16 %v2160
  %v2236 = vunpack.c.l.b16 %v2161
  %v2237 = vunpack.c.h.b16 %v2161
  %v2238 = vunpack.c.l.b16 %v2162
  %v2239 = vunpack.c.h.b16 %v2162
  %v2240 = vunpack.c.l.b16 %v2163
  %v2241 = vunpack.c.h.b16 %v2163
  %v2242 = vunpack.c.l.b16 %v2164
  %v2243 = vunpack.c.h.b16 %v2164
  %v2244 = vunpack.c.l.b16 %v2165
  %v2245 = vunpack.c.h.b16 %v2165
  %v2246 = vunpack.c.l.b16 %v2166
  %v2247 = vunpack.c.h.b16 %v2166
  %v2248 = vunpack.c.l.b16 %v2167
  %v2249 = vunpack.c.h.b16 %v2167
  %v2250 = vunpack.c.l.b16 %v2168
  %v2251 = vunpack.c.h.b16 %v2168
  %v2252 = vunpack.c.l.b16 %v2169
  %v2253 = vunpack.c.h.b16 %v2169
  %v2254 = vunpack.c.l.b16 %v2170
  %v2255 = vunpack.c.h.b16 %v2170
  %v2256 = vunpack.c.l.b16 %v2171
  %v2257 = vunpack.c.h.b16 %v2171
  %v2258 = vunpack.c.l.b16 %v2172
  %v2259 = vunpack.c.h.b16 %v2172
  %v2260 = vunpack.c.l.b16 %v2173
  %v2261 = vunpack.c.h.b16 %v2173
  %v2262 = vunpack.c.l.b16 %v2174
  %v2263 = vunpack.c.h.b16 %v2174
  %v2264 = vunpack.c.l.b16 %v2175
  %v2265 = vunpack.c.h.b16 %v2175
  %v2266 = vunpack.c.l.b16 %v2176
  %v2267 = vunpack.c.h.b16 %v2176
  %v2268 = vunpack.c.l.b16 %v2177
  %v2269 = vunpack.c.h.b16 %v2177
  %v2270 = vunpack.c.l.b16 %v2178
  %v2271 = vunpack.c.h.b16 %v2178
  %v2272 = vunpack.c.l.b16 %v2179
  %v2273 = vunpack.c.h.b16 %v2179
  %v2274 = vunpack.c.l.b16 %v2180
  %v2275 = vunpack.c.h.b16 %v2180
  %v2276 = vunpack.c.l.b16 %v2181
  %v2277 = vunpack.c.h.b16 %v2181
  %v2278 = vpack.c.b16 %v2218, %v2214
  %v2279 = vpack.c.b16 %v2219, %v2215
  %v2280 = vpack.c.b16 %v2220, %v2216
  %v2281 = vpack.c.b16 %v2221, %v2217
  %v2282 = vpack.c.b16 %v2226, %v2222
  %v2283 = vpack.c.b16 %v2227, %v2223
  %v2284 = vpack.c.b16 %v2228, %v2224
  %v2285 = vpack.c.b16 %v2229, %v2225
  %v2286 = vpack.c.b16 %v2234, %v2230
  %v2287 = vpack.c.b16 %v2235, %v2231
  %v2288 = vpack.c.b16 %v2236, %v2232
  %v2289 = vpack.c.b16 %v2237, %v2233
  %v2290 = vpack.c.b16 %v2242, %v2238
  %v2291 = vpack.c.b16 %v2243, %v2239
  %v2292 = vpack.c.b16 %v2244, %v2240
  %v2293 = vpack.c.b16 %v2245, %v2241
  %v2294 = vpack.c.b16 %v2250, %v2246
  %v2295 = vpack.c.b16 %v2251, %v2247
  %v2296 = vpack.c.b16 %v2252, %v2248
  %v2297 = vpack.c.b16 %v2253, %v2249
  %v2298 = vpack.c.b16 %v2258, %v2254
  %v2299 = vpack.c.b16 %v2259, %v2255
  %v2300 = vpack.c.b16 %v2260, %v2256
  %v2301 = vpack.c.b16 %v2261, %v2257
  %v2302 = vpack.c.b16 %v2266, %v2262
  %v2303 = vpack.c.b16 %v2267, %v2263
  %v2304 = vpack.c.b16 %v2268, %v2264
  %v2305 = vpack.c.b16 %v2269, %v2265
  %v2306 = vpack.c.b16 %v2274, %v2270
  %v2307 = vpack.c.b16 %v2275, %v2271
  %v2308 = vpack.c.b16 %v2276, %v2272
  %v2309 = vpack.c.b16 %v2277, %v2273
  %2342 = vmatprep.subr.bf16.mxu0 %v2307
  %2343 = vmatpush1.bf16.msra.mxu0 %v2306
  %2344 = vmatprep.subr.bf16.mxu0 %v2303
  %2345 = vmatpush1.bf16.msra.mxu0 %v2302
  %2346 = vmatprep.subr.bf16.mxu0 %v2299
  %2347 = vmatpush1.bf16.msra.mxu0 %v2298
  %2348 = vmatprep.subr.bf16.mxu0 %v2295
  %2349 = vmatpush1.bf16.msra.mxu0 %v2294
  %2350 = vmatprep.subr.bf16.mxu0 %v2291
  %2351 = vmatpush1.bf16.msra.mxu0 %v2290
  %2352 = vmatprep.subr.bf16.mxu0 %v2287
  %2353 = vmatpush1.bf16.msra.mxu0 %v2286
  %2354 = vmatprep.subr.bf16.mxu0 %v2283
  %2355 = vmatpush1.bf16.msra.mxu0 %v2282
  %2356 = vmatprep.subr.bf16.mxu0 %v2279
  %2357 = vmatpush1.bf16.msra.mxu0 %v2278
  %2358 = vmatprep.subr.bf16.mxu0 0
  %2359 = vmatpush2.bf16.msra.mxu0 0
  %2360 = vmatprep.subr.bf16.mxu0 0
  %2361 = vmatpush2.bf16.msra.mxu0 0
  %2362 = vmatprep.subr.bf16.mxu0 0
  %2363 = vmatpush2.bf16.msra.mxu0 0
  %2364 = vmatprep.subr.bf16.mxu0 0
  %2365 = vmatpush2.bf16.msra.mxu0 0
  %2366 = vmatprep.subr.bf16.mxu0 0
  %2367 = vmatpush2.bf16.msra.mxu0 0
  %2368 = vmatprep.subr.bf16.mxu0 0
  %2369 = vmatpush2.bf16.msra.mxu0 0
  %2370 = vmatprep.subr.bf16.mxu0 0
  %2371 = vmatpush2.bf16.msra.mxu0 0
  %2372 = vmatprep.subr.bf16.mxu0 0
  %2373 = vmatpush2.bf16.msra.mxu0 0
  %2374 = vmatprep.mubr.bf16.mxu0 0
  %2375 = vmatmul.mubr.bf16.gmra.mxu0 %v2149
  %v2376 = vpop.f32.mrf.mxu0
  %v2377 = vadd.f32 0.0, %v2376
  %v2378 = vpop.f32.mrf.mxu0
  %v2379 = vadd.f32 0.0, %v2378
  %v2380 = vpop.f32.mrf.mxu0
  %v2381 = vpop.f32.mrf.mxu0
  %2382 = vdwg.mxu0
  %2383 = vmatprep.subr.bf16.mxu0 %v2309
  %2384 = vmatpush1.bf16.msra.mxu0 %v2308
  %2385 = vmatprep.subr.bf16.mxu0 %v2305
  %2386 = vmatpush1.bf16.msra.mxu0 %v2304
  %2387 = vmatprep.subr.bf16.mxu0 %v2301
  %2388 = vmatpush1.bf16.msra.mxu0 %v2300
  %2389 = vmatprep.subr.bf16.mxu0 %v2297
  %2390 = vmatpush1.bf16.msra.mxu0 %v2296
  %2391 = vmatprep.subr.bf16.mxu0 %v2293
  %2392 = vmatpush1.bf16.msra.mxu0 %v2292
  %2393 = vmatprep.subr.bf16.mxu0 %v2289
  %2394 = vmatpush1.bf16.msra.mxu0 %v2288
  %2395 = vmatprep.subr.bf16.mxu0 %v2285
  %2396 = vmatpush1.bf16.msra.mxu0 %v2284
  %2397 = vmatprep.subr.bf16.mxu0 %v2281
  %2398 = vmatpush1.bf16.msra.mxu0 %v2280
  %2399 = vmatprep.subr.bf16.mxu0 0
  %2400 = vmatpush2.bf16.msra.mxu0 0
  %2401 = vmatprep.subr.bf16.mxu0 0
  %2402 = vmatpush2.bf16.msra.mxu0 0
  %2403 = vmatprep.subr.bf16.mxu0 0
  %2404 = vmatpush2.bf16.msra.mxu0 0
  %2405 = vmatprep.subr.bf16.mxu0 0
  %2406 = vmatpush2.bf16.msra.mxu0 0
  %2407 = vmatprep.subr.bf16.mxu0 0
  %2408 = vmatpush2.bf16.msra.mxu0 0
  %2409 = vmatprep.subr.bf16.mxu0 0
  %2410 = vmatpush2.bf16.msra.mxu0 0
  %2411 = vmatprep.subr.bf16.mxu0 0
  %2412 = vmatpush2.bf16.msra.mxu0 0
  %2413 = vmatprep.subr.bf16.mxu0 0
  %2414 = vmatpush2.bf16.msra.mxu0 0
  %2415 = vmatprep.mubr.bf16.mxu0 0
  %2416 = vmatmul.mubr.bf16.gmra.mxu0 %v2149
  %v2417 = vpop.f32.mrf.mxu0
  %v2418 = vadd.f32 0.0, %v2417
  %v2419 = vpop.f32.mrf.mxu0
  %v2420 = vadd.f32 0.0, %v2419
  %v2421 = vpop.f32.mrf.mxu0
  %v2422 = vpop.f32.mrf.mxu0
  %2423 = vdwg.mxu0
  %v2424 = vadd.f32 %v2145, %v2377
  %v2425 = vadd.f32 %v2146, %v2379
  %v2426 = vadd.f32 %v2147, %v2418
  %v2427 = vadd.f32 %v2148, %v2420
  %v2428 = vxor.u32 %v2424, 2147483648
  %v2429 = vxor.u32 %v2425, 2147483648
  %v2430 = vxor.u32 %v2426, 2147483648
  %v2431 = vmul.f32 %v2428, 1.442695
  %v2432 = vpow.pop %v2431
  %v2433 = vmul.f32 %v2429, 1.442695
  %v2434 = vpow.pop %v2433
  %v2435 = vmul.f32 %v2430, 1.442695
  %v2436 = vpow.pop %v2435
  %v2437 = vadd.f32 %v2432, 1.0
  %v2438 = vadd.f32 %v2434, 1.0
  %v2439 = vadd.f32 %v2436, 1.0
  %v2440 = vrcp.pop %v2437
  %v2441 = vmul.f32 1.0, %v2440
  %v2442 = vrcp.pop %v2438
  %v2443 = vmul.f32 1.0, %v2442
  %v2444 = vrcp.pop %v2439
  %v2445 = vmul.f32 1.0, %v2444
  %v2446 = vtanh.pop %v2427
  %v2447 = vmul.f32 %v2443, %v2141
  %v2448 = vmul.f32 %v2441, %v2446
  %v2449 = vadd.f32 %v2447, %v2448
  %v2450 = vtanh.pop %v2449
  %v2451 = vmul.f32 %v2445, %v2450
  %2452 = vst [vmem:[#allocation3 + $0x28] sm:$0xff] %v2451
  %v2453 = vld [vmem:[#allocation2 + $0xc0] sm:$0xff]
  %v2454 = vld [vmem:[#allocation2 + $0xc8] sm:$0xff]
  %v2455 = vld [vmem:[#allocation2 + $0xd0] sm:$0xff]
  %v2456 = vld [vmem:[#allocation2 + $0xd8] sm:$0xff]
  %v2457 = vpack.c.bf16 %v2451, %v2451
  %v2458 = vld [vmem:[%s2] sm:$0xff]
  %v2459 = vld [vmem:[%s2 + $0x8] sm:$0xff]
  %v2460 = vld [vmem:[%s2 + $0x10] sm:$0xff]
  %v2461 = vld [vmem:[%s2 + $0x18] sm:$0xff]
  %v2462 = vld [vmem:[%s2 + $0x20] sm:$0xff]
  %v2463 = vld [vmem:[%s2 + $0x28] sm:$0xff]
  %v2464 = vld [vmem:[%s2 + $0x30] sm:$0xff]
  %v2465 = vld [vmem:[%s2 + $0x38] sm:$0xff]
  %v2466 = vld [vmem:[%s2 + $0x40] sm:$0xff]
  %v2467 = vld [vmem:[%s2 + $0x48] sm:$0xff]
  %v2468 = vld [vmem:[%s2 + $0x50] sm:$0xff]
  %v2469 = vld [vmem:[%s2 + $0x58] sm:$0xff]
  %v2470 = vld [vmem:[%s2 + $0x60] sm:$0xff]
  %v2471 = vld [vmem:[%s2 + $0x68] sm:$0xff]
  %v2472 = vld [vmem:[%s2 + $0x70] sm:$0xff]
  %v2473 = vld [vmem:[%s2 + $0x78] sm:$0xff]
  %v2474 = vld [vmem:[%s2 + $0x80] sm:$0xff]
  %v2475 = vld [vmem:[%s2 + $0x88] sm:$0xff]
  %v2476 = vld [vmem:[%s2 + $0x90] sm:$0xff]
  %v2477 = vld [vmem:[%s2 + $0x98] sm:$0xff]
  %v2478 = vld [vmem:[%s2 + $0xa0] sm:$0xff]
  %v2479 = vld [vmem:[%s2 + $0xa8] sm:$0xff]
  %v2480 = vld [vmem:[%s2 + $0xb0] sm:$0xff]
  %v2481 = vld [vmem:[%s2 + $0xb8] sm:$0xff]
  %v2482 = vld [vmem:[%s2 + $0xc0] sm:$0xff]
  %v2483 = vld [vmem:[%s2 + $0xc8] sm:$0xff]
  %v2484 = vld [vmem:[%s2 + $0xd0] sm:$0xff]
  %v2485 = vld [vmem:[%s2 + $0xd8] sm:$0xff]
  %v2486 = vld [vmem:[%s2 + $0xe0] sm:$0xff]
  %v2487 = vld [vmem:[%s2 + $0xe8] sm:$0xff]
  %v2488 = vld [vmem:[%s2 + $0xf0] sm:$0xff]
  %v2489 = vld [vmem:[%s2 + $0xf8] sm:$0xff]
  %v2522 = vunpack.c.l.b16 %v2458
  %v2523 = vunpack.c.h.b16 %v2458
  %v2524 = vunpack.c.l.b16 %v2459
  %v2525 = vunpack.c.h.b16 %v2459
  %v2526 = vunpack.c.l.b16 %v2460
  %v2527 = vunpack.c.h.b16 %v2460
  %v2528 = vunpack.c.l.b16 %v2461
  %v2529 = vunpack.c.h.b16 %v2461
  %v2530 = vunpack.c.l.b16 %v2462
  %v2531 = vunpack.c.h.b16 %v2462
  %v2532 = vunpack.c.l.b16 %v2463
  %v2533 = vunpack.c.h.b16 %v2463
  %v2534 = vunpack.c.l.b16 %v2464
  %v2535 = vunpack.c.h.b16 %v2464
  %v2536 = vunpack.c.l.b16 %v2465
  %v2537 = vunpack.c.h.b16 %v2465
  %v2538 = vunpack.c.l.b16 %v2466
  %v2539 = vunpack.c.h.b16 %v2466
  %v2540 = vunpack.c.l.b16 %v2467
  %v2541 = vunpack.c.h.b16 %v2467
  %v2542 = vunpack.c.l.b16 %v2468
  %v2543 = vunpack.c.h.b16 %v2468
  %v2544 = vunpack.c.l.b16 %v2469
  %v2545 = vunpack.c.h.b16 %v2469
  %v2546 = vunpack.c.l.b16 %v2470
  %v2547 = vunpack.c.h.b16 %v2470
  %v2548 = vunpack.c.l.b16 %v2471
  %v2549 = vunpack.c.h.b16 %v2471
  %v2550 = vunpack.c.l.b16 %v2472
  %v2551 = vunpack.c.h.b16 %v2472
  %v2552 = vunpack.c.l.b16 %v2473
  %v2553 = vunpack.c.h.b16 %v2473
  %v2554 = vunpack.c.l.b16 %v2474
  %v2555 = vunpack.c.h.b16 %v2474
  %v2556 = vunpack.c.l.b16 %v2475
  %v2557 = vunpack.c.h.b16 %v2475
  %v2558 = vunpack.c.l.b16 %v2476
  %v2559 = vunpack.c.h.b16 %v2476
  %v2560 = vunpack.c.l.b16 %v2477
  %v2561 = vunpack.c.h.b16 %v2477
  %v2562 = vunpack.c.l.b16 %v2478
  %v2563 = vunpack.c.h.b16 %v2478
  %v2564 = vunpack.c.l.b16 %v2479
  %v2565 = vunpack.c.h.b16 %v2479
  %v2566 = vunpack.c.l.b16 %v2480
  %v2567 = vunpack.c.h.b16 %v2480
  %v2568 = vunpack.c.l.b16 %v2481
  %v2569 = vunpack.c.h.b16 %v2481
  %v2570 = vunpack.c.l.b16 %v2482
  %v2571 = vunpack.c.h.b16 %v2482
  %v2572 = vunpack.c.l.b16 %v2483
  %v2573 = vunpack.c.h.b16 %v2483
  %v2574 = vunpack.c.l.b16 %v2484
  %v2575 = vunpack.c.h.b16 %v2484
  %v2576 = vunpack.c.l.b16 %v2485
  %v2577 = vunpack.c.h.b16 %v2485
  %v2578 = vunpack.c.l.b16 %v2486
  %v2579 = vunpack.c.h.b16 %v2486
  %v2580 = vunpack.c.l.b16 %v2487
  %v2581 = vunpack.c.h.b16 %v2487
  %v2582 = vunpack.c.l.b16 %v2488
  %v2583 = vunpack.c.h.b16 %v2488
  %v2584 = vunpack.c.l.b16 %v2489
  %v2585 = vunpack.c.h.b16 %v2489
  %v2586 = vpack.c.b16 %v2526, %v2522
  %v2587 = vpack.c.b16 %v2527, %v2523
  %v2588 = vpack.c.b16 %v2528, %v2524
  %v2589 = vpack.c.b16 %v2529, %v2525
  %v2590 = vpack.c.b16 %v2534, %v2530
  %v2591 = vpack.c.b16 %v2535, %v2531
  %v2592 = vpack.c.b16 %v2536, %v2532
  %v2593 = vpack.c.b16 %v2537, %v2533
  %v2594 = vpack.c.b16 %v2542, %v2538
  %v2595 = vpack.c.b16 %v2543, %v2539
  %v2596 = vpack.c.b16 %v2544, %v2540
  %v2597 = vpack.c.b16 %v2545, %v2541
  %v2598 = vpack.c.b16 %v2550, %v2546
  %v2599 = vpack.c.b16 %v2551, %v2547
  %v2600 = vpack.c.b16 %v2552, %v2548
  %v2601 = vpack.c.b16 %v2553, %v2549
  %v2602 = vpack.c.b16 %v2558, %v2554
  %v2603 = vpack.c.b16 %v2559, %v2555
  %v2604 = vpack.c.b16 %v2560, %v2556
  %v2605 = vpack.c.b16 %v2561, %v2557
  %v2606 = vpack.c.b16 %v2566, %v2562
  %v2607 = vpack.c.b16 %v2567, %v2563
  %v2608 = vpack.c.b16 %v2568, %v2564
  %v2609 = vpack.c.b16 %v2569, %v2565
  %v2610 = vpack.c.b16 %v2574, %v2570
  %v2611 = vpack.c.b16 %v2575, %v2571
  %v2612 = vpack.c.b16 %v2576, %v2572
  %v2613 = vpack.c.b16 %v2577, %v2573
  %v2614 = vpack.c.b16 %v2582, %v2578
  %v2615 = vpack.c.b16 %v2583, %v2579
  %v2616 = vpack.c.b16 %v2584, %v2580
  %v2617 = vpack.c.b16 %v2585, %v2581
  %2650 = vmatprep.subr.bf16.mxu0 %v2615
  %2651 = vmatpush1.bf16.msra.mxu0 %v2614
  %2652 = vmatprep.subr.bf16.mxu0 %v2611
  %2653 = vmatpush1.bf16.msra.mxu0 %v2610
  %2654 = vmatprep.subr.bf16.mxu0 %v2607
  %2655 = vmatpush1.bf16.msra.mxu0 %v2606
  %2656 = vmatprep.subr.bf16.mxu0 %v2603
  %2657 = vmatpush1.bf16.msra.mxu0 %v2602
  %2658 = vmatprep.subr.bf16.mxu0 %v2599
  %2659 = vmatpush1.bf16.msra.mxu0 %v2598
  %2660 = vmatprep.subr.bf16.mxu0 %v2595
  %2661 = vmatpush1.bf16.msra.mxu0 %v2594
  %2662 = vmatprep.subr.bf16.mxu0 %v2591
  %2663 = vmatpush1.bf16.msra.mxu0 %v2590
  %2664 = vmatprep.subr.bf16.mxu0 %v2587
  %2665 = vmatpush1.bf16.msra.mxu0 %v2586
  %2666 = vmatprep.subr.bf16.mxu0 0
  %2667 = vmatpush2.bf16.msra.mxu0 0
  %2668 = vmatprep.subr.bf16.mxu0 0
  %2669 = vmatpush2.bf16.msra.mxu0 0
  %2670 = vmatprep.subr.bf16.mxu0 0
  %2671 = vmatpush2.bf16.msra.mxu0 0
  %2672 = vmatprep.subr.bf16.mxu0 0
  %2673 = vmatpush2.bf16.msra.mxu0 0
  %2674 = vmatprep.subr.bf16.mxu0 0
  %2675 = vmatpush2.bf16.msra.mxu0 0
  %2676 = vmatprep.subr.bf16.mxu0 0
  %2677 = vmatpush2.bf16.msra.mxu0 0
  %2678 = vmatprep.subr.bf16.mxu0 0
  %2679 = vmatpush2.bf16.msra.mxu0 0
  %2680 = vmatprep.subr.bf16.mxu0 0
  %2681 = vmatpush2.bf16.msra.mxu0 0
  %2682 = vmatprep.mubr.bf16.mxu0 0
  %2683 = vmatmul.mubr.bf16.gmra.mxu0 %v2457
  %v2684 = vpop.f32.mrf.mxu0
  %v2685 = vadd.f32 0.0, %v2684
  %v2686 = vpop.f32.mrf.mxu0
  %v2687 = vadd.f32 0.0, %v2686
  %v2688 = vpop.f32.mrf.mxu0
  %v2689 = vpop.f32.mrf.mxu0
  %2690 = vdwg.mxu0
  %2691 = vmatprep.subr.bf16.mxu0 %v2617
  %2692 = vmatpush1.bf16.msra.mxu0 %v2616
  %2693 = vmatprep.subr.bf16.mxu0 %v2613
  %2694 = vmatpush1.bf16.msra.mxu0 %v2612
  %2695 = vmatprep.subr.bf16.mxu0 %v2609
  %2696 = vmatpush1.bf16.msra.mxu0 %v2608
  %2697 = vmatprep.subr.bf16.mxu0 %v2605
  %2698 = vmatpush1.bf16.msra.mxu0 %v2604
  %2699 = vmatprep.subr.bf16.mxu0 %v2601
  %2700 = vmatpush1.bf16.msra.mxu0 %v2600
  %2701 = vmatprep.subr.bf16.mxu0 %v2597
  %2702 = vmatpush1.bf16.msra.mxu0 %v2596
  %2703 = vmatprep.subr.bf16.mxu0 %v2593
  %2704 = vmatpush1.bf16.msra.mxu0 %v2592
  %2705 = vmatprep.subr.bf16.mxu0 %v2589
  %2706 = vmatpush1.bf16.msra.mxu0 %v2588
  %2707 = vmatprep.subr.bf16.mxu0 0
  %2708 = vmatpush2.bf16.msra.mxu0 0
  %2709 = vmatprep.subr.bf16.mxu0 0
  %2710 = vmatpush2.bf16.msra.mxu0 0
  %2711 = vmatprep.subr.bf16.mxu0 0
  %2712 = vmatpush2.bf16.msra.mxu0 0
  %2713 = vmatprep.subr.bf16.mxu0 0
  %2714 = vmatpush2.bf16.msra.mxu0 0
  %2715 = vmatprep.subr.bf16.mxu0 0
  %2716 = vmatpush2.bf16.msra.mxu0 0
  %2717 = vmatprep.subr.bf16.mxu0 0
  %2718 = vmatpush2.bf16.msra.mxu0 0
  %2719 = vmatprep.subr.bf16.mxu0 0
  %2720 = vmatpush2.bf16.msra.mxu0 0
  %2721 = vmatprep.subr.bf16.mxu0 0
  %2722 = vmatpush2.bf16.msra.mxu0 0
  %2723 = vmatprep.mubr.bf16.mxu0 0
  %2724 = vmatmul.mubr.bf16.gmra.mxu0 %v2457
  %v2725 = vpop.f32.mrf.mxu0
  %v2726 = vadd.f32 0.0, %v2725
  %v2727 = vpop.f32.mrf.mxu0
  %v2728 = vadd.f32 0.0, %v2727
  %v2729 = vpop.f32.mrf.mxu0
  %v2730 = vpop.f32.mrf.mxu0
  %2731 = vdwg.mxu0
  %v2732 = vadd.f32 %v2453, %v2685
  %v2733 = vadd.f32 %v2454, %v2687
  %v2734 = vadd.f32 %v2455, %v2726
  %v2735 = vadd.f32 %v2456, %v2728
  %v2736 = vxor.u32 %v2732, 2147483648
  %v2737 = vxor.u32 %v2733, 2147483648
  %v2738 = vxor.u32 %v2734, 2147483648
  %v2739 = vmul.f32 %v2736, 1.442695
  %v2740 = vpow.pop %v2739
  %v2741 = vmul.f32 %v2737, 1.442695
  %v2742 = vpow.pop %v2741
  %v2743 = vmul.f32 %v2738, 1.442695
  %v2744 = vpow.pop %v2743
  %v2745 = vadd.f32 %v2740, 1.0
  %v2746 = vadd.f32 %v2742, 1.0
  %v2747 = vadd.f32 %v2744, 1.0
  %v2748 = vrcp.pop %v2745
  %v2749 = vmul.f32 1.0, %v2748
  %v2750 = vrcp.pop %v2746
  %v2751 = vmul.f32 1.0, %v2750
  %v2752 = vrcp.pop %v2747
  %v2753 = vmul.f32 1.0, %v2752
  %v2754 = vtanh.pop %v2735
  %v2755 = vmul.f32 %v2751, %v2449
  %v2756 = vmul.f32 %v2749, %v2754
  %v2757 = vadd.f32 %v2755, %v2756
  %v2758 = vtanh.pop %v2757
  %v2759 = vmul.f32 %v2753, %v2758
  %2760 = vst [vmem:[#allocation3 + $0x30] sm:$0xff] %v2759
  %v2761 = vld [vmem:[#allocation2 + $0xe0] sm:$0xff]
  %v2762 = vld [vmem:[#allocation2 + $0xe8] sm:$0xff]
  %v2763 = vld [vmem:[#allocation2 + $0xf0] sm:$0xff]
  %v2764 = vld [vmem:[#allocation2 + $0xf8] sm:$0xff]
  %v2765 = vpack.c.bf16 %v2759, %v2759
  %v2766 = vld [vmem:[%s2] sm:$0xff]
  %v2767 = vld [vmem:[%s2 + $0x8] sm:$0xff]
  %v2768 = vld [vmem:[%s2 + $0x10] sm:$0xff]
  %v2769 = vld [vmem:[%s2 + $0x18] sm:$0xff]
  %v2770 = vld [vmem:[%s2 + $0x20] sm:$0xff]
  %v2771 = vld [vmem:[%s2 + $0x28] sm:$0xff]
  %v2772 = vld [vmem:[%s2 + $0x30] sm:$0xff]
  %v2773 = vld [vmem:[%s2 + $0x38] sm:$0xff]
  %v2774 = vld [vmem:[%s2 + $0x40] sm:$0xff]
  %v2775 = vld [vmem:[%s2 + $0x48] sm:$0xff]
  %v2776 = vld [vmem:[%s2 + $0x50] sm:$0xff]
  %v2777 = vld [vmem:[%s2 + $0x58] sm:$0xff]
  %v2778 = vld [vmem:[%s2 + $0x60] sm:$0xff]
  %v2779 = vld [vmem:[%s2 + $0x68] sm:$0xff]
  %v2780 = vld [vmem:[%s2 + $0x70] sm:$0xff]
  %v2781 = vld [vmem:[%s2 + $0x78] sm:$0xff]
  %v2782 = vld [vmem:[%s2 + $0x80] sm:$0xff]
  %v2783 = vld [vmem:[%s2 + $0x88] sm:$0xff]
  %v2784 = vld [vmem:[%s2 + $0x90] sm:$0xff]
  %v2785 = vld [vmem:[%s2 + $0x98] sm:$0xff]
  %v2786 = vld [vmem:[%s2 + $0xa0] sm:$0xff]
  %v2787 = vld [vmem:[%s2 + $0xa8] sm:$0xff]
  %v2788 = vld [vmem:[%s2 + $0xb0] sm:$0xff]
  %v2789 = vld [vmem:[%s2 + $0xb8] sm:$0xff]
  %v2790 = vld [vmem:[%s2 + $0xc0] sm:$0xff]
  %v2791 = vld [vmem:[%s2 + $0xc8] sm:$0xff]
  %v2792 = vld [vmem:[%s2 + $0xd0] sm:$0xff]
  %v2793 = vld [vmem:[%s2 + $0xd8] sm:$0xff]
  %v2794 = vld [vmem:[%s2 + $0xe0] sm:$0xff]
  %v2795 = vld [vmem:[%s2 + $0xe8] sm:$0xff]
  %v2796 = vld [vmem:[%s2 + $0xf0] sm:$0xff]
  %v2797 = vld [vmem:[%s2 + $0xf8] sm:$0xff]
  %v2830 = vunpack.c.l.b16 %v2766
  %v2831 = vunpack.c.h.b16 %v2766
  %v2832 = vunpack.c.l.b16 %v2767
  %v2833 = vunpack.c.h.b16 %v2767
  %v2834 = vunpack.c.l.b16 %v2768
  %v2835 = vunpack.c.h.b16 %v2768
  %v2836 = vunpack.c.l.b16 %v2769
  %v2837 = vunpack.c.h.b16 %v2769
  %v2838 = vunpack.c.l.b16 %v2770
  %v2839 = vunpack.c.h.b16 %v2770
  %v2840 = vunpack.c.l.b16 %v2771
  %v2841 = vunpack.c.h.b16 %v2771
  %v2842 = vunpack.c.l.b16 %v2772
  %v2843 = vunpack.c.h.b16 %v2772
  %v2844 = vunpack.c.l.b16 %v2773
  %v2845 = vunpack.c.h.b16 %v2773
  %v2846 = vunpack.c.l.b16 %v2774
  %v2847 = vunpack.c.h.b16 %v2774
  %v2848 = vunpack.c.l.b16 %v2775
  %v2849 = vunpack.c.h.b16 %v2775
  %v2850 = vunpack.c.l.b16 %v2776
  %v2851 = vunpack.c.h.b16 %v2776
  %v2852 = vunpack.c.l.b16 %v2777
  %v2853 = vunpack.c.h.b16 %v2777
  %v2854 = vunpack.c.l.b16 %v2778
  %v2855 = vunpack.c.h.b16 %v2778
  %v2856 = vunpack.c.l.b16 %v2779
  %v2857 = vunpack.c.h.b16 %v2779
  %v2858 = vunpack.c.l.b16 %v2780
  %v2859 = vunpack.c.h.b16 %v2780
  %v2860 = vunpack.c.l.b16 %v2781
  %v2861 = vunpack.c.h.b16 %v2781
  %v2862 = vunpack.c.l.b16 %v2782
  %v2863 = vunpack.c.h.b16 %v2782
  %v2864 = vunpack.c.l.b16 %v2783
  %v2865 = vunpack.c.h.b16 %v2783
  %v2866 = vunpack.c.l.b16 %v2784
  %v2867 = vunpack.c.h.b16 %v2784
  %v2868 = vunpack.c.l.b16 %v2785
  %v2869 = vunpack.c.h.b16 %v2785
  %v2870 = vunpack.c.l.b16 %v2786
  %v2871 = vunpack.c.h.b16 %v2786
  %v2872 = vunpack.c.l.b16 %v2787
  %v2873 = vunpack.c.h.b16 %v2787
  %v2874 = vunpack.c.l.b16 %v2788
  %v2875 = vunpack.c.h.b16 %v2788
  %v2876 = vunpack.c.l.b16 %v2789
  %v2877 = vunpack.c.h.b16 %v2789
  %v2878 = vunpack.c.l.b16 %v2790
  %v2879 = vunpack.c.h.b16 %v2790
  %v2880 = vunpack.c.l.b16 %v2791
  %v2881 = vunpack.c.h.b16 %v2791
  %v2882 = vunpack.c.l.b16 %v2792
  %v2883 = vunpack.c.h.b16 %v2792
  %v2884 = vunpack.c.l.b16 %v2793
  %v2885 = vunpack.c.h.b16 %v2793
  %v2886 = vunpack.c.l.b16 %v2794
  %v2887 = vunpack.c.h.b16 %v2794
  %v2888 = vunpack.c.l.b16 %v2795
  %v2889 = vunpack.c.h.b16 %v2795
  %v2890 = vunpack.c.l.b16 %v2796
  %v2891 = vunpack.c.h.b16 %v2796
  %v2892 = vunpack.c.l.b16 %v2797
  %v2893 = vunpack.c.h.b16 %v2797
  %v2894 = vpack.c.b16 %v2834, %v2830
  %v2895 = vpack.c.b16 %v2835, %v2831
  %v2896 = vpack.c.b16 %v2836, %v2832
  %v2897 = vpack.c.b16 %v2837, %v2833
  %v2898 = vpack.c.b16 %v2842, %v2838
  %v2899 = vpack.c.b16 %v2843, %v2839
  %v2900 = vpack.c.b16 %v2844, %v2840
  %v2901 = vpack.c.b16 %v2845, %v2841
  %v2902 = vpack.c.b16 %v2850, %v2846
  %v2903 = vpack.c.b16 %v2851, %v2847
  %v2904 = vpack.c.b16 %v2852, %v2848
  %v2905 = vpack.c.b16 %v2853, %v2849
  %v2906 = vpack.c.b16 %v2858, %v2854
  %v2907 = vpack.c.b16 %v2859, %v2855
  %v2908 = vpack.c.b16 %v2860, %v2856
  %v2909 = vpack.c.b16 %v2861, %v2857
  %v2910 = vpack.c.b16 %v2866, %v2862
  %v2911 = vpack.c.b16 %v2867, %v2863
  %v2912 = vpack.c.b16 %v2868, %v2864
  %v2913 = vpack.c.b16 %v2869, %v2865
  %v2914 = vpack.c.b16 %v2874, %v2870
  %v2915 = vpack.c.b16 %v2875, %v2871
  %v2916 = vpack.c.b16 %v2876, %v2872
  %v2917 = vpack.c.b16 %v2877, %v2873
  %v2918 = vpack.c.b16 %v2882, %v2878
  %v2919 = vpack.c.b16 %v2883, %v2879
  %v2920 = vpack.c.b16 %v2884, %v2880
  %v2921 = vpack.c.b16 %v2885, %v2881
  %v2922 = vpack.c.b16 %v2890, %v2886
  %v2923 = vpack.c.b16 %v2891, %v2887
  %v2924 = vpack.c.b16 %v2892, %v2888
  %v2925 = vpack.c.b16 %v2893, %v2889
  %2958 = vmatprep.subr.bf16.mxu0 %v2923
  %2959 = vmatpush1.bf16.msra.mxu0 %v2922
  %2960 = vmatprep.subr.bf16.mxu0 %v2919
  %2961 = vmatpush1.bf16.msra.mxu0 %v2918
  %2962 = vmatprep.subr.bf16.mxu0 %v2915
  %2963 = vmatpush1.bf16.msra.mxu0 %v2914
  %2964 = vmatprep.subr.bf16.mxu0 %v2911
  %2965 = vmatpush1.bf16.msra.mxu0 %v2910
  %2966 = vmatprep.subr.bf16.mxu0 %v2907
  %2967 = vmatpush1.bf16.msra.mxu0 %v2906
  %2968 = vmatprep.subr.bf16.mxu0 %v2903
  %2969 = vmatpush1.bf16.msra.mxu0 %v2902
  %2970 = vmatprep.subr.bf16.mxu0 %v2899
  %2971 = vmatpush1.bf16.msra.mxu0 %v2898
  %2972 = vmatprep.subr.bf16.mxu0 %v2895
  %2973 = vmatpush1.bf16.msra.mxu0 %v2894
  %2974 = vmatprep.subr.bf16.mxu0 0
  %2975 = vmatpush2.bf16.msra.mxu0 0
  %2976 = vmatprep.subr.bf16.mxu0 0
  %2977 = vmatpush2.bf16.msra.mxu0 0
  %2978 = vmatprep.subr.bf16.mxu0 0
  %2979 = vmatpush2.bf16.msra.mxu0 0
  %2980 = vmatprep.subr.bf16.mxu0 0
  %2981 = vmatpush2.bf16.msra.mxu0 0
  %2982 = vmatprep.subr.bf16.mxu0 0
  %2983 = vmatpush2.bf16.msra.mxu0 0
  %2984 = vmatprep.subr.bf16.mxu0 0
  %2985 = vmatpush2.bf16.msra.mxu0 0
  %2986 = vmatprep.subr.bf16.mxu0 0
  %2987 = vmatpush2.bf16.msra.mxu0 0
  %2988 = vmatprep.subr.bf16.mxu0 0
  %2989 = vmatpush2.bf16.msra.mxu0 0
  %2990 = vmatprep.mubr.bf16.mxu0 0
  %2991 = vmatmul.mubr.bf16.gmra.mxu0 %v2765
  %v2992 = vpop.f32.mrf.mxu0
  %v2993 = vadd.f32 0.0, %v2992
  %v2994 = vpop.f32.mrf.mxu0
  %v2995 = vadd.f32 0.0, %v2994
  %v2996 = vpop.f32.mrf.mxu0
  %v2997 = vpop.f32.mrf.mxu0
  %2998 = vdwg.mxu0
  %2999 = vmatprep.subr.bf16.mxu0 %v2925
  %3000 = vmatpush1.bf16.msra.mxu0 %v2924
  %3001 = vmatprep.subr.bf16.mxu0 %v2921
  %3002 = vmatpush1.bf16.msra.mxu0 %v2920
  %3003 = vmatprep.subr.bf16.mxu0 %v2917
  %3004 = vmatpush1.bf16.msra.mxu0 %v2916
  %3005 = vmatprep.subr.bf16.mxu0 %v2913
  %3006 = vmatpush1.bf16.msra.mxu0 %v2912
  %3007 = vmatprep.subr.bf16.mxu0 %v2909
  %3008 = vmatpush1.bf16.msra.mxu0 %v2908
  %3009 = vmatprep.subr.bf16.mxu0 %v2905
  %3010 = vmatpush1.bf16.msra.mxu0 %v2904
  %3011 = vmatprep.subr.bf16.mxu0 %v2901
  %3012 = vmatpush1.bf16.msra.mxu0 %v2900
  %3013 = vmatprep.subr.bf16.mxu0 %v2897
  %3014 = vmatpush1.bf16.msra.mxu0 %v2896
  %3015 = vmatprep.subr.bf16.mxu0 0
  %3016 = vmatpush2.bf16.msra.mxu0 0
  %3017 = vmatprep.subr.bf16.mxu0 0
  %3018 = vmatpush2.bf16.msra.mxu0 0
  %3019 = vmatprep.subr.bf16.mxu0 0
  %3020 = vmatpush2.bf16.msra.mxu0 0
  %3021 = vmatprep.subr.bf16.mxu0 0
  %3022 = vmatpush2.bf16.msra.mxu0 0
  %3023 = vmatprep.subr.bf16.mxu0 0
  %3024 = vmatpush2.bf16.msra.mxu0 0
  %3025 = vmatprep.subr.bf16.mxu0 0
  %3026 = vmatpush2.bf16.msra.mxu0 0
  %3027 = vmatprep.subr.bf16.mxu0 0
  %3028 = vmatpush2.bf16.msra.mxu0 0
  %3029 = vmatprep.subr.bf16.mxu0 0
  %3030 = vmatpush2.bf16.msra.mxu0 0
  %3031 = vmatprep.mubr.bf16.mxu0 0
  %3032 = vmatmul.mubr.bf16.gmra.mxu0 %v2765
  %v3033 = vpop.f32.mrf.mxu0
  %v3034 = vadd.f32 0.0, %v3033
  %v3035 = vpop.f32.mrf.mxu0
  %v3036 = vadd.f32 0.0, %v3035
  %v3037 = vpop.f32.mrf.mxu0
  %v3038 = vpop.f32.mrf.mxu0
  %3039 = vdwg.mxu0
  %v3040 = vadd.f32 %v2761, %v2993
  %v3041 = vadd.f32 %v2762, %v2995
  %v3042 = vadd.f32 %v2763, %v3034
  %v3043 = vadd.f32 %v2764, %v3036
  %v3044 = vxor.u32 %v3040, 2147483648
  %v3045 = vxor.u32 %v3041, 2147483648
  %v3046 = vxor.u32 %v3042, 2147483648
  %v3047 = vmul.f32 %v3044, 1.442695
  %v3048 = vpow.pop %v3047
  %v3049 = vmul.f32 %v3045, 1.442695
  %v3050 = vpow.pop %v3049
  %v3051 = vmul.f32 %v3046, 1.442695
  %v3052 = vpow.pop %v3051
  %v3053 = vadd.f32 %v3048, 1.0
  %v3054 = vadd.f32 %v3050, 1.0
  %v3055 = vadd.f32 %v3052, 1.0
  %v3056 = vrcp.pop %v3053
  %v3057 = vmul.f32 1.0, %v3056
  %v3058 = vrcp.pop %v3054
  %v3059 = vmul.f32 1.0, %v3058
  %v3060 = vrcp.pop %v3055
  %v3061 = vmul.f32 1.0, %v3060
  %v3062 = vtanh.pop %v3043
  %v3063 = vmul.f32 %v3059, %v2757
  %v3064 = vmul.f32 %v3057, %v3062
  %v3065 = vadd.f32 %v3063, %v3064
  %v3066 = vtanh.pop %v3065
  %v3067 = vmul.f32 %v3061, %v3066
  %3068 = vst [vmem:[#allocation3 + $0x38] sm:$0xff] %v3067
  %v3069 = vld [vmem:[#allocation2 + $0x100] sm:$0xff]
  %v3070 = vld [vmem:[#allocation2 + $0x108] sm:$0xff]
  %v3071 = vld [vmem:[#allocation2 + $0x110] sm:$0xff]
  %v3072 = vld [vmem:[#allocation2 + $0x118] sm:$0xff]
  %v3073 = vpack.c.bf16 %v3067, %v3067
  %v3074 = vld [vmem:[%s2] sm:$0xff]
  %v3075 = vld [vmem:[%s2 + $0x8] sm:$0xff]
  %v3076 = vld [vmem:[%s2 + $0x10] sm:$0xff]
  %v3077 = vld [vmem:[%s2 + $0x18] sm:$0xff]
  %v3078 = vld [vmem:[%s2 + $0x20] sm:$0xff]
  %v3079 = vld [vmem:[%s2 + $0x28] sm:$0xff]
  %v3080 = vld [vmem:[%s2 + $0x30] sm:$0xff]
  %v3081 = vld [vmem:[%s2 + $0x38] sm:$0xff]
  %v3082 = vld [vmem:[%s2 + $0x40] sm:$0xff]
  %v3083 = vld [vmem:[%s2 + $0x48] sm:$0xff]
  %v3084 = vld [vmem:[%s2 + $0x50] sm:$0xff]
  %v3085 = vld [vmem:[%s2 + $0x58] sm:$0xff]
  %v3086 = vld [vmem:[%s2 + $0x60] sm:$0xff]
  %v3087 = vld [vmem:[%s2 + $0x68] sm:$0xff]
  %v3088 = vld [vmem:[%s2 + $0x70] sm:$0xff]
  %v3089 = vld [vmem:[%s2 + $0x78] sm:$0xff]
  %v3090 = vld [vmem:[%s2 + $0x80] sm:$0xff]
  %v3091 = vld [vmem:[%s2 + $0x88] sm:$0xff]
  %v3092 = vld [vmem:[%s2 + $0x90] sm:$0xff]
  %v3093 = vld [vmem:[%s2 + $0x98] sm:$0xff]
  %v3094 = vld [vmem:[%s2 + $0xa0] sm:$0xff]
  %v3095 = vld [vmem:[%s2 + $0xa8] sm:$0xff]
  %v3096 = vld [vmem:[%s2 + $0xb0] sm:$0xff]
  %v3097 = vld [vmem:[%s2 + $0xb8] sm:$0xff]
  %v3098 = vld [vmem:[%s2 + $0xc0] sm:$0xff]
  %v3099 = vld [vmem:[%s2 + $0xc8] sm:$0xff]
  %v3100 = vld [vmem:[%s2 + $0xd0] sm:$0xff]
  %v3101 = vld [vmem:[%s2 + $0xd8] sm:$0xff]
  %v3102 = vld [vmem:[%s2 + $0xe0] sm:$0xff]
  %v3103 = vld [vmem:[%s2 + $0xe8] sm:$0xff]
  %v3104 = vld [vmem:[%s2 + $0xf0] sm:$0xff]
  %v3105 = vld [vmem:[%s2 + $0xf8] sm:$0xff]
  %v3138 = vunpack.c.l.b16 %v3074
  %v3139 = vunpack.c.h.b16 %v3074
  %v3140 = vunpack.c.l.b16 %v3075
  %v3141 = vunpack.c.h.b16 %v3075
  %v3142 = vunpack.c.l.b16 %v3076
  %v3143 = vunpack.c.h.b16 %v3076
  %v3144 = vunpack.c.l.b16 %v3077
  %v3145 = vunpack.c.h.b16 %v3077
  %v3146 = vunpack.c.l.b16 %v3078
  %v3147 = vunpack.c.h.b16 %v3078
  %v3148 = vunpack.c.l.b16 %v3079
  %v3149 = vunpack.c.h.b16 %v3079
  %v3150 = vunpack.c.l.b16 %v3080
  %v3151 = vunpack.c.h.b16 %v3080
  %v3152 = vunpack.c.l.b16 %v3081
  %v3153 = vunpack.c.h.b16 %v3081
  %v3154 = vunpack.c.l.b16 %v3082
  %v3155 = vunpack.c.h.b16 %v3082
  %v3156 = vunpack.c.l.b16 %v3083
  %v3157 = vunpack.c.h.b16 %v3083
  %v3158 = vunpack.c.l.b16 %v3084
  %v3159 = vunpack.c.h.b16 %v3084
  %v3160 = vunpack.c.l.b16 %v3085
  %v3161 = vunpack.c.h.b16 %v3085
  %v3162 = vunpack.c.l.b16 %v3086
  %v3163 = vunpack.c.h.b16 %v3086
  %v3164 = vunpack.c.l.b16 %v3087
  %v3165 = vunpack.c.h.b16 %v3087
  %v3166 = vunpack.c.l.b16 %v3088
  %v3167 = vunpack.c.h.b16 %v3088
  %v3168 = vunpack.c.l.b16 %v3089
  %v3169 = vunpack.c.h.b16 %v3089
  %v3170 = vunpack.c.l.b16 %v3090
  %v3171 = vunpack.c.h.b16 %v3090
  %v3172 = vunpack.c.l.b16 %v3091
  %v3173 = vunpack.c.h.b16 %v3091
  %v3174 = vunpack.c.l.b16 %v3092
  %v3175 = vunpack.c.h.b16 %v3092
  %v3176 = vunpack.c.l.b16 %v3093
  %v3177 = vunpack.c.h.b16 %v3093
  %v3178 = vunpack.c.l.b16 %v3094
  %v3179 = vunpack.c.h.b16 %v3094
  %v3180 = vunpack.c.l.b16 %v3095
  %v3181 = vunpack.c.h.b16 %v3095
  %v3182 = vunpack.c.l.b16 %v3096
  %v3183 = vunpack.c.h.b16 %v3096
  %v3184 = vunpack.c.l.b16 %v3097
  %v3185 = vunpack.c.h.b16 %v3097
  %v3186 = vunpack.c.l.b16 %v3098
  %v3187 = vunpack.c.h.b16 %v3098
  %v3188 = vunpack.c.l.b16 %v3099
  %v3189 = vunpack.c.h.b16 %v3099
  %v3190 = vunpack.c.l.b16 %v3100
  %v3191 = vunpack.c.h.b16 %v3100
  %v3192 = vunpack.c.l.b16 %v3101
  %v3193 = vunpack.c.h.b16 %v3101
  %v3194 = vunpack.c.l.b16 %v3102
  %v3195 = vunpack.c.h.b16 %v3102
  %v3196 = vunpack.c.l.b16 %v3103
  %v3197 = vunpack.c.h.b16 %v3103
  %v3198 = vunpack.c.l.b16 %v3104
  %v3199 = vunpack.c.h.b16 %v3104
  %v3200 = vunpack.c.l.b16 %v3105
  %v3201 = vunpack.c.h.b16 %v3105
  %v3202 = vpack.c.b16 %v3142, %v3138
  %v3203 = vpack.c.b16 %v3143, %v3139
  %v3204 = vpack.c.b16 %v3144, %v3140
  %v3205 = vpack.c.b16 %v3145, %v3141
  %v3206 = vpack.c.b16 %v3150, %v3146
  %v3207 = vpack.c.b16 %v3151, %v3147
  %v3208 = vpack.c.b16 %v3152, %v3148
  %v3209 = vpack.c.b16 %v3153, %v3149
  %v3210 = vpack.c.b16 %v3158, %v3154
  %v3211 = vpack.c.b16 %v3159, %v3155
  %v3212 = vpack.c.b16 %v3160, %v3156
  %v3213 = vpack.c.b16 %v3161, %v3157
  %v3214 = vpack.c.b16 %v3166, %v3162
  %v3215 = vpack.c.b16 %v3167, %v3163
  %v3216 = vpack.c.b16 %v3168, %v3164
  %v3217 = vpack.c.b16 %v3169, %v3165
  %v3218 = vpack.c.b16 %v3174, %v3170
  %v3219 = vpack.c.b16 %v3175, %v3171
  %v3220 = vpack.c.b16 %v3176, %v3172
  %v3221 = vpack.c.b16 %v3177, %v3173
  %v3222 = vpack.c.b16 %v3182, %v3178
  %v3223 = vpack.c.b16 %v3183, %v3179
  %v3224 = vpack.c.b16 %v3184, %v3180
  %v3225 = vpack.c.b16 %v3185, %v3181
  %v3226 = vpack.c.b16 %v3190, %v3186
  %v3227 = vpack.c.b16 %v3191, %v3187
  %v3228 = vpack.c.b16 %v3192, %v3188
  %v3229 = vpack.c.b16 %v3193, %v3189
  %v3230 = vpack.c.b16 %v3198, %v3194
  %v3231 = vpack.c.b16 %v3199, %v3195
  %v3232 = vpack.c.b16 %v3200, %v3196
  %v3233 = vpack.c.b16 %v3201, %v3197
  %3266 = vmatprep.subr.bf16.mxu0 %v3231
  %3267 = vmatpush1.bf16.msra.mxu0 %v3230
  %3268 = vmatprep.subr.bf16.mxu0 %v3227
  %3269 = vmatpush1.bf16.msra.mxu0 %v3226
  %3270 = vmatprep.subr.bf16.mxu0 %v3223
  %3271 = vmatpush1.bf16.msra.mxu0 %v3222
  %3272 = vmatprep.subr.bf16.mxu0 %v3219
  %3273 = vmatpush1.bf16.msra.mxu0 %v3218
  %3274 = vmatprep.subr.bf16.mxu0 %v3215
  %3275 = vmatpush1.bf16.msra.mxu0 %v3214
  %3276 = vmatprep.subr.bf16.mxu0 %v3211
  %3277 = vmatpush1.bf16.msra.mxu0 %v3210
  %3278 = vmatprep.subr.bf16.mxu0 %v3207
  %3279 = vmatpush1.bf16.msra.mxu0 %v3206
  %3280 = vmatprep.subr.bf16.mxu0 %v3203
  %3281 = vmatpush1.bf16.msra.mxu0 %v3202
  %3282 = vmatprep.subr.bf16.mxu0 0
  %3283 = vmatpush2.bf16.msra.mxu0 0
  %3284 = vmatprep.subr.bf16.mxu0 0
  %3285 = vmatpush2.bf16.msra.mxu0 0
  %3286 = vmatprep.subr.bf16.mxu0 0
  %3287 = vmatpush2.bf16.msra.mxu0 0
  %3288 = vmatprep.subr.bf16.mxu0 0
  %3289 = vmatpush2.bf16.msra.mxu0 0
  %3290 = vmatprep.subr.bf16.mxu0 0
  %3291 = vmatpush2.bf16.msra.mxu0 0
  %3292 = vmatprep.subr.bf16.mxu0 0
  %3293 = vmatpush2.bf16.msra.mxu0 0
  %3294 = vmatprep.subr.bf16.mxu0 0
  %3295 = vmatpush2.bf16.msra.mxu0 0
  %3296 = vmatprep.subr.bf16.mxu0 0
  %3297 = vmatpush2.bf16.msra.mxu0 0
  %3298 = vmatprep.mubr.bf16.mxu0 0
  %3299 = vmatmul.mubr.bf16.gmra.mxu0 %v3073
  %v3300 = vpop.f32.mrf.mxu0
  %v3301 = vadd.f32 0.0, %v3300
  %v3302 = vpop.f32.mrf.mxu0
  %v3303 = vadd.f32 0.0, %v3302
  %v3304 = vpop.f32.mrf.mxu0
  %v3305 = vpop.f32.mrf.mxu0
  %3306 = vdwg.mxu0
  %3307 = vmatprep.subr.bf16.mxu0 %v3233
  %3308 = vmatpush1.bf16.msra.mxu0 %v3232
  %3309 = vmatprep.subr.bf16.mxu0 %v3229
  %3310 = vmatpush1.bf16.msra.mxu0 %v3228
  %3311 = vmatprep.subr.bf16.mxu0 %v3225
  %3312 = vmatpush1.bf16.msra.mxu0 %v3224
  %3313 = vmatprep.subr.bf16.mxu0 %v3221
  %3314 = vmatpush1.bf16.msra.mxu0 %v3220
  %3315 = vmatprep.subr.bf16.mxu0 %v3217
  %3316 = vmatpush1.bf16.msra.mxu0 %v3216
  %3317 = vmatprep.subr.bf16.mxu0 %v3213
  %3318 = vmatpush1.bf16.msra.mxu0 %v3212
  %3319 = vmatprep.subr.bf16.mxu0 %v3209
  %3320 = vmatpush1.bf16.msra.mxu0 %v3208
  %3321 = vmatprep.subr.bf16.mxu0 %v3205
  %3322 = vmatpush1.bf16.msra.mxu0 %v3204
  %3323 = vmatprep.subr.bf16.mxu0 0
  %3324 = vmatpush2.bf16.msra.mxu0 0
  %3325 = vmatprep.subr.bf16.mxu0 0
  %3326 = vmatpush2.bf16.msra.mxu0 0
  %3327 = vmatprep.subr.bf16.mxu0 0
  %3328 = vmatpush2.bf16.msra.mxu0 0
  %3329 = vmatprep.subr.bf16.mxu0 0
  %3330 = vmatpush2.bf16.msra.mxu0 0
  %3331 = vmatprep.subr.bf16.mxu0 0
  %3332 = vmatpush2.bf16.msra.mxu0 0
  %3333 = vmatprep.subr.bf16.mxu0 0
  %3334 = vmatpush2.bf16.msra.mxu0 0
  %3335 = vmatprep.subr.bf16.mxu0 0
  %3336 = vmatpush2.bf16.msra.mxu0 0
  %3337 = vmatprep.subr.bf16.mxu0 0
  %3338 = vmatpush2.bf16.msra.mxu0 0
  %3339 = vmatprep.mubr.bf16.mxu0 0
  %3340 = vmatmul.mubr.bf16.gmra.mxu0 %v3073
  %v3341 = vpop.f32.mrf.mxu0
  %v3342 = vadd.f32 0.0, %v3341
  %v3343 = vpop.f32.mrf.mxu0
  %v3344 = vadd.f32 0.0, %v3343
  %v3345 = vpop.f32.mrf.mxu0
  %v3346 = vpop.f32.mrf.mxu0
  %3347 = vdwg.mxu0
  %v3348 = vadd.f32 %v3069, %v3301
  %v3349 = vadd.f32 %v3070, %v3303
  %v3350 = vadd.f32 %v3071, %v3342
  %v3351 = vadd.f32 %v3072, %v3344
  %v3352 = vxor.u32 %v3348, 2147483648
  %v3353 = vxor.u32 %v3349, 2147483648
  %v3354 = vxor.u32 %v3350, 2147483648
  %v3355 = vmul.f32 %v3352, 1.442695
  %v3356 = vpow.pop %v3355
  %v3357 = vmul.f32 %v3353, 1.442695
  %v3358 = vpow.pop %v3357
  %v3359 = vmul.f32 %v3354, 1.442695
  %v3360 = vpow.pop %v3359
  %v3361 = vadd.f32 %v3356, 1.0
  %v3362 = vadd.f32 %v3358, 1.0
  %v3363 = vadd.f32 %v3360, 1.0
  %v3364 = vrcp.pop %v3361
  %v3365 = vmul.f32 1.0, %v3364
  %v3366 = vrcp.pop %v3362
  %v3367 = vmul.f32 1.0, %v3366
  %v3368 = vrcp.pop %v3363
  %v3369 = vmul.f32 1.0, %v3368
  %v3370 = vtanh.pop %v3351
  %v3371 = vmul.f32 %v3367, %v3065
  %v3372 = vmul.f32 %v3365, %v3370
  %v3373 = vadd.f32 %v3371, %v3372
  %v3374 = vtanh.pop %v3373
  %v3375 = vmul.f32 %v3369, %v3374
  %3376 = vst [vmem:[#allocation3 + $0x40] sm:$0xff] %v3375
  %v3377 = vld [vmem:[#allocation2 + $0x120] sm:$0xff]
  %v3378 = vld [vmem:[#allocation2 + $0x128] sm:$0xff]
  %v3379 = vld [vmem:[#allocation2 + $0x130] sm:$0xff]
  %v3380 = vld [vmem:[#allocation2 + $0x138] sm:$0xff]
  %v3381 = vpack.c.bf16 %v3375, %v3375
  %v3382 = vld [vmem:[%s2] sm:$0xff]
  %v3383 = vld [vmem:[%s2 + $0x8] sm:$0xff]
  %v3384 = vld [vmem:[%s2 + $0x10] sm:$0xff]
  %v3385 = vld [vmem:[%s2 + $0x18] sm:$0xff]
  %v3386 = vld [vmem:[%s2 + $0x20] sm:$0xff]
  %v3387 = vld [vmem:[%s2 + $0x28] sm:$0xff]
  %v3388 = vld [vmem:[%s2 + $0x30] sm:$0xff]
  %v3389 = vld [vmem:[%s2 + $0x38] sm:$0xff]
  %v3390 = vld [vmem:[%s2 + $0x40] sm:$0xff]
  %v3391 = vld [vmem:[%s2 + $0x48] sm:$0xff]
  %v3392 = vld [vmem:[%s2 + $0x50] sm:$0xff]
  %v3393 = vld [vmem:[%s2 + $0x58] sm:$0xff]
  %v3394 = vld [vmem:[%s2 + $0x60] sm:$0xff]
  %v3395 = vld [vmem:[%s2 + $0x68] sm:$0xff]
  %v3396 = vld [vmem:[%s2 + $0x70] sm:$0xff]
  %v3397 = vld [vmem:[%s2 + $0x78] sm:$0xff]
  %v3398 = vld [vmem:[%s2 + $0x80] sm:$0xff]
  %v3399 = vld [vmem:[%s2 + $0x88] sm:$0xff]
  %v3400 = vld [vmem:[%s2 + $0x90] sm:$0xff]
  %v3401 = vld [vmem:[%s2 + $0x98] sm:$0xff]
  %v3402 = vld [vmem:[%s2 + $0xa0] sm:$0xff]
  %v3403 = vld [vmem:[%s2 + $0xa8] sm:$0xff]
  %v3404 = vld [vmem:[%s2 + $0xb0] sm:$0xff]
  %v3405 = vld [vmem:[%s2 + $0xb8] sm:$0xff]
  %v3406 = vld [vmem:[%s2 + $0xc0] sm:$0xff]
  %v3407 = vld [vmem:[%s2 + $0xc8] sm:$0xff]
  %v3408 = vld [vmem:[%s2 + $0xd0] sm:$0xff]
  %v3409 = vld [vmem:[%s2 + $0xd8] sm:$0xff]
  %v3410 = vld [vmem:[%s2 + $0xe0] sm:$0xff]
  %v3411 = vld [vmem:[%s2 + $0xe8] sm:$0xff]
  %v3412 = vld [vmem:[%s2 + $0xf0] sm:$0xff]
  %v3413 = vld [vmem:[%s2 + $0xf8] sm:$0xff]
  %v3446 = vunpack.c.l.b16 %v3382
  %v3447 = vunpack.c.h.b16 %v3382
  %v3448 = vunpack.c.l.b16 %v3383
  %v3449 = vunpack.c.h.b16 %v3383
  %v3450 = vunpack.c.l.b16 %v3384
  %v3451 = vunpack.c.h.b16 %v3384
  %v3452 = vunpack.c.l.b16 %v3385
  %v3453 = vunpack.c.h.b16 %v3385
  %v3454 = vunpack.c.l.b16 %v3386
  %v3455 = vunpack.c.h.b16 %v3386
  %v3456 = vunpack.c.l.b16 %v3387
  %v3457 = vunpack.c.h.b16 %v3387
  %v3458 = vunpack.c.l.b16 %v3388
  %v3459 = vunpack.c.h.b16 %v3388
  %v3460 = vunpack.c.l.b16 %v3389
  %v3461 = vunpack.c.h.b16 %v3389
  %v3462 = vunpack.c.l.b16 %v3390
  %v3463 = vunpack.c.h.b16 %v3390
  %v3464 = vunpack.c.l.b16 %v3391
  %v3465 = vunpack.c.h.b16 %v3391
  %v3466 = vunpack.c.l.b16 %v3392
  %v3467 = vunpack.c.h.b16 %v3392
  %v3468 = vunpack.c.l.b16 %v3393
  %v3469 = vunpack.c.h.b16 %v3393
  %v3470 = vunpack.c.l.b16 %v3394
  %v3471 = vunpack.c.h.b16 %v3394
  %v3472 = vunpack.c.l.b16 %v3395
  %v3473 = vunpack.c.h.b16 %v3395
  %v3474 = vunpack.c.l.b16 %v3396
  %v3475 = vunpack.c.h.b16 %v3396
  %v3476 = vunpack.c.l.b16 %v3397
  %v3477 = vunpack.c.h.b16 %v3397
  %v3478 = vunpack.c.l.b16 %v3398
  %v3479 = vunpack.c.h.b16 %v3398
  %v3480 = vunpack.c.l.b16 %v3399
  %v3481 = vunpack.c.h.b16 %v3399
  %v3482 = vunpack.c.l.b16 %v3400
  %v3483 = vunpack.c.h.b16 %v3400
  %v3484 = vunpack.c.l.b16 %v3401
  %v3485 = vunpack.c.h.b16 %v3401
  %v3486 = vunpack.c.l.b16 %v3402
  %v3487 = vunpack.c.h.b16 %v3402
  %v3488 = vunpack.c.l.b16 %v3403
  %v3489 = vunpack.c.h.b16 %v3403
  %v3490 = vunpack.c.l.b16 %v3404
  %v3491 = vunpack.c.h.b16 %v3404
  %v3492 = vunpack.c.l.b16 %v3405
  %v3493 = vunpack.c.h.b16 %v3405
  %v3494 = vunpack.c.l.b16 %v3406
  %v3495 = vunpack.c.h.b16 %v3406
  %v3496 = vunpack.c.l.b16 %v3407
  %v3497 = vunpack.c.h.b16 %v3407
  %v3498 = vunpack.c.l.b16 %v3408
  %v3499 = vunpack.c.h.b16 %v3408
  %v3500 = vunpack.c.l.b16 %v3409
  %v3501 = vunpack.c.h.b16 %v3409
  %v3502 = vunpack.c.l.b16 %v3410
  %v3503 = vunpack.c.h.b16 %v3410
  %v3504 = vunpack.c.l.b16 %v3411
  %v3505 = vunpack.c.h.b16 %v3411
  %v3506 = vunpack.c.l.b16 %v3412
  %v3507 = vunpack.c.h.b16 %v3412
  %v3508 = vunpack.c.l.b16 %v3413
  %v3509 = vunpack.c.h.b16 %v3413
  %v3510 = vpack.c.b16 %v3450, %v3446
  %v3511 = vpack.c.b16 %v3451, %v3447
  %v3512 = vpack.c.b16 %v3452, %v3448
  %v3513 = vpack.c.b16 %v3453, %v3449
  %v3514 = vpack.c.b16 %v3458, %v3454
  %v3515 = vpack.c.b16 %v3459, %v3455
  %v3516 = vpack.c.b16 %v3460, %v3456
  %v3517 = vpack.c.b16 %v3461, %v3457
  %v3518 = vpack.c.b16 %v3466, %v3462
  %v3519 = vpack.c.b16 %v3467, %v3463
  %v3520 = vpack.c.b16 %v3468, %v3464
  %v3521 = vpack.c.b16 %v3469, %v3465
  %v3522 = vpack.c.b16 %v3474, %v3470
  %v3523 = vpack.c.b16 %v3475, %v3471
  %v3524 = vpack.c.b16 %v3476, %v3472
  %v3525 = vpack.c.b16 %v3477, %v3473
  %v3526 = vpack.c.b16 %v3482, %v3478
  %v3527 = vpack.c.b16 %v3483, %v3479
  %v3528 = vpack.c.b16 %v3484, %v3480
  %v3529 = vpack.c.b16 %v3485, %v3481
  %v3530 = vpack.c.b16 %v3490, %v3486
  %v3531 = vpack.c.b16 %v3491, %v3487
  %v3532 = vpack.c.b16 %v3492, %v3488
  %v3533 = vpack.c.b16 %v3493, %v3489
  %v3534 = vpack.c.b16 %v3498, %v3494
  %v3535 = vpack.c.b16 %v3499, %v3495
  %v3536 = vpack.c.b16 %v3500, %v3496
  %v3537 = vpack.c.b16 %v3501, %v3497
  %v3538 = vpack.c.b16 %v3506, %v3502
  %v3539 = vpack.c.b16 %v3507, %v3503
  %v3540 = vpack.c.b16 %v3508, %v3504
  %v3541 = vpack.c.b16 %v3509, %v3505
  %3574 = vmatprep.subr.bf16.mxu0 %v3539
  %3575 = vmatpush1.bf16.msra.mxu0 %v3538
  %3576 = vmatprep.subr.bf16.mxu0 %v3535
  %3577 = vmatpush1.bf16.msra.mxu0 %v3534
  %3578 = vmatprep.subr.bf16.mxu0 %v3531
  %3579 = vmatpush1.bf16.msra.mxu0 %v3530
  %3580 = vmatprep.subr.bf16.mxu0 %v3527
  %3581 = vmatpush1.bf16.msra.mxu0 %v3526
  %3582 = vmatprep.subr.bf16.mxu0 %v3523
  %3583 = vmatpush1.bf16.msra.mxu0 %v3522
  %3584 = vmatprep.subr.bf16.mxu0 %v3519
  %3585 = vmatpush1.bf16.msra.mxu0 %v3518
  %3586 = vmatprep.subr.bf16.mxu0 %v3515
  %3587 = vmatpush1.bf16.msra.mxu0 %v3514
  %3588 = vmatprep.subr.bf16.mxu0 %v3511
  %3589 = vmatpush1.bf16.msra.mxu0 %v3510
  %3590 = vmatprep.subr.bf16.mxu0 0
  %3591 = vmatpush2.bf16.msra.mxu0 0
  %3592 = vmatprep.subr.bf16.mxu0 0
  %3593 = vmatpush2.bf16.msra.mxu0 0
  %3594 = vmatprep.subr.bf16.mxu0 0
  %3595 = vmatpush2.bf16.msra.mxu0 0
  %3596 = vmatprep.subr.bf16.mxu0 0
  %3597 = vmatpush2.bf16.msra.mxu0 0
  %3598 = vmatprep.subr.bf16.mxu0 0
  %3599 = vmatpush2.bf16.msra.mxu0 0
  %3600 = vmatprep.subr.bf16.mxu0 0
  %3601 = vmatpush2.bf16.msra.mxu0 0
  %3602 = vmatprep.subr.bf16.mxu0 0
  %3603 = vmatpush2.bf16.msra.mxu0 0
  %3604 = vmatprep.subr.bf16.mxu0 0
  %3605 = vmatpush2.bf16.msra.mxu0 0
  %3606 = vmatprep.mubr.bf16.mxu0 0
  %3607 = vmatmul.mubr.bf16.gmra.mxu0 %v3381
  %v3608 = vpop.f32.mrf.mxu0
  %v3609 = vadd.f32 0.0, %v3608
  %v3610 = vpop.f32.mrf.mxu0
  %v3611 = vadd.f32 0.0, %v3610
  %v3612 = vpop.f32.mrf.mxu0
  %v3613 = vpop.f32.mrf.mxu0
  %3614 = vdwg.mxu0
  %3615 = vmatprep.subr.bf16.mxu0 %v3541
  %3616 = vmatpush1.bf16.msra.mxu0 %v3540
  %3617 = vmatprep.subr.bf16.mxu0 %v3537
  %3618 = vmatpush1.bf16.msra.mxu0 %v3536
  %3619 = vmatprep.subr.bf16.mxu0 %v3533
  %3620 = vmatpush1.bf16.msra.mxu0 %v3532
  %3621 = vmatprep.subr.bf16.mxu0 %v3529
  %3622 = vmatpush1.bf16.msra.mxu0 %v3528
  %3623 = vmatprep.subr.bf16.mxu0 %v3525
  %3624 = vmatpush1.bf16.msra.mxu0 %v3524
  %3625 = vmatprep.subr.bf16.mxu0 %v3521
  %3626 = vmatpush1.bf16.msra.mxu0 %v3520
  %3627 = vmatprep.subr.bf16.mxu0 %v3517
  %3628 = vmatpush1.bf16.msra.mxu0 %v3516
  %3629 = vmatprep.subr.bf16.mxu0 %v3513
  %3630 = vmatpush1.bf16.msra.mxu0 %v3512
  %3631 = vmatprep.subr.bf16.mxu0 0
  %3632 = vmatpush2.bf16.msra.mxu0 0
  %3633 = vmatprep.subr.bf16.mxu0 0
  %3634 = vmatpush2.bf16.msra.mxu0 0
  %3635 = vmatprep.subr.bf16.mxu0 0
  %3636 = vmatpush2.bf16.msra.mxu0 0
  %3637 = vmatprep.subr.bf16.mxu0 0
  %3638 = vmatpush2.bf16.msra.mxu0 0
  %3639 = vmatprep.subr.bf16.mxu0 0
  %3640 = vmatpush2.bf16.msra.mxu0 0
  %3641 = vmatprep.subr.bf16.mxu0 0
  %3642 = vmatpush2.bf16.msra.mxu0 0
  %3643 = vmatprep.subr.bf16.mxu0 0
  %3644 = vmatpush2.bf16.msra.mxu0 0
  %3645 = vmatprep.subr.bf16.mxu0 0
  %3646 = vmatpush2.bf16.msra.mxu0 0
  %3647 = vmatprep.mubr.bf16.mxu0 0
  %3648 = vmatmul.mubr.bf16.gmra.mxu0 %v3381
  %v3649 = vpop.f32.mrf.mxu0
  %v3650 = vadd.f32 0.0, %v3649
  %v3651 = vpop.f32.mrf.mxu0
  %v3652 = vadd.f32 0.0, %v3651
  %v3653 = vpop.f32.mrf.mxu0
  %v3654 = vpop.f32.mrf.mxu0
  %3655 = vdwg.mxu0
  %v3656 = vadd.f32 %v3377, %v3609
  %v3657 = vadd.f32 %v3378, %v3611
  %v3658 = vadd.f32 %v3379, %v3650
  %v3659 = vadd.f32 %v3380, %v3652
  %v3660 = vxor.u32 %v3656, 2147483648
  %v3661 = vxor.u32 %v3657, 2147483648
  %v3662 = vxor.u32 %v3658, 2147483648
  %v3663 = vmul.f32 %v3660, 1.442695
  %v3664 = vpow.pop %v3663
  %v3665 = vmul.f32 %v3661, 1.442695
  %v3666 = vpow.pop %v3665
  %v3667 = vmul.f32 %v3662, 1.442695
  %v3668 = vpow.pop %v3667
  %v3669 = vadd.f32 %v3664, 1.0
  %v3670 = vadd.f32 %v3666, 1.0
  %v3671 = vadd.f32 %v3668, 1.0
  %v3672 = vrcp.pop %v3669
  %v3673 = vmul.f32 1.0, %v3672
  %v3674 = vrcp.pop %v3670
  %v3675 = vmul.f32 1.0, %v3674
  %v3676 = vrcp.pop %v3671
  %v3677 = vmul.f32 1.0, %v3676
  %v3678 = vtanh.pop %v3659
  %v3679 = vmul.f32 %v3675, %v3373
  %v3680 = vmul.f32 %v3673, %v3678
  %v3681 = vadd.f32 %v3679, %v3680
  %v3682 = vtanh.pop %v3681
  %v3683 = vmul.f32 %v3677, %v3682
  %3684 = vst [vmem:[#allocation3 + $0x48] sm:$0xff] %v3683
  %v3685 = vld [vmem:[#allocation2 + $0x140] sm:$0xff]
  %v3686 = vld [vmem:[#allocation2 + $0x148] sm:$0xff]
  %v3687 = vld [vmem:[#allocation2 + $0x150] sm:$0xff]
  %v3688 = vld [vmem:[#allocation2 + $0x158] sm:$0xff]
  %v3689 = vpack.c.bf16 %v3683, %v3683
  %v3690 = vld [vmem:[%s2] sm:$0xff]
  %v3691 = vld [vmem:[%s2 + $0x8] sm:$0xff]
  %v3692 = vld [vmem:[%s2 + $0x10] sm:$0xff]
  %v3693 = vld [vmem:[%s2 + $0x18] sm:$0xff]
  %v3694 = vld [vmem:[%s2 + $0x20] sm:$0xff]
  %v3695 = vld [vmem:[%s2 + $0x28] sm:$0xff]
  %v3696 = vld [vmem:[%s2 + $0x30] sm:$0xff]
  %v3697 = vld [vmem:[%s2 + $0x38] sm:$0xff]
  %v3698 = vld [vmem:[%s2 + $0x40] sm:$0xff]
  %v3699 = vld [vmem:[%s2 + $0x48] sm:$0xff]
  %v3700 = vld [vmem:[%s2 + $0x50] sm:$0xff]
  %v3701 = vld [vmem:[%s2 + $0x58] sm:$0xff]
  %v3702 = vld [vmem:[%s2 + $0x60] sm:$0xff]
  %v3703 = vld [vmem:[%s2 + $0x68] sm:$0xff]
  %v3704 = vld [vmem:[%s2 + $0x70] sm:$0xff]
  %v3705 = vld [vmem:[%s2 + $0x78] sm:$0xff]
  %v3706 = vld [vmem:[%s2 + $0x80] sm:$0xff]
  %v3707 = vld [vmem:[%s2 + $0x88] sm:$0xff]
  %v3708 = vld [vmem:[%s2 + $0x90] sm:$0xff]
  %v3709 = vld [vmem:[%s2 + $0x98] sm:$0xff]
  %v3710 = vld [vmem:[%s2 + $0xa0] sm:$0xff]
  %v3711 = vld [vmem:[%s2 + $0xa8] sm:$0xff]
  %v3712 = vld [vmem:[%s2 + $0xb0] sm:$0xff]
  %v3713 = vld [vmem:[%s2 + $0xb8] sm:$0xff]
  %v3714 = vld [vmem:[%s2 + $0xc0] sm:$0xff]
  %v3715 = vld [vmem:[%s2 + $0xc8] sm:$0xff]
  %v3716 = vld [vmem:[%s2 + $0xd0] sm:$0xff]
  %v3717 = vld [vmem:[%s2 + $0xd8] sm:$0xff]
  %v3718 = vld [vmem:[%s2 + $0xe0] sm:$0xff]
  %v3719 = vld [vmem:[%s2 + $0xe8] sm:$0xff]
  %v3720 = vld [vmem:[%s2 + $0xf0] sm:$0xff]
  %v3721 = vld [vmem:[%s2 + $0xf8] sm:$0xff]
  %v3754 = vunpack.c.l.b16 %v3690
  %v3755 = vunpack.c.h.b16 %v3690
  %v3756 = vunpack.c.l.b16 %v3691
  %v3757 = vunpack.c.h.b16 %v3691
  %v3758 = vunpack.c.l.b16 %v3692
  %v3759 = vunpack.c.h.b16 %v3692
  %v3760 = vunpack.c.l.b16 %v3693
  %v3761 = vunpack.c.h.b16 %v3693
  %v3762 = vunpack.c.l.b16 %v3694
  %v3763 = vunpack.c.h.b16 %v3694
  %v3764 = vunpack.c.l.b16 %v3695
  %v3765 = vunpack.c.h.b16 %v3695
  %v3766 = vunpack.c.l.b16 %v3696
  %v3767 = vunpack.c.h.b16 %v3696
  %v3768 = vunpack.c.l.b16 %v3697
  %v3769 = vunpack.c.h.b16 %v3697
  %v3770 = vunpack.c.l.b16 %v3698
  %v3771 = vunpack.c.h.b16 %v3698
  %v3772 = vunpack.c.l.b16 %v3699
  %v3773 = vunpack.c.h.b16 %v3699
  %v3774 = vunpack.c.l.b16 %v3700
  %v3775 = vunpack.c.h.b16 %v3700
  %v3776 = vunpack.c.l.b16 %v3701
  %v3777 = vunpack.c.h.b16 %v3701
  %v3778 = vunpack.c.l.b16 %v3702
  %v3779 = vunpack.c.h.b16 %v3702
  %v3780 = vunpack.c.l.b16 %v3703
  %v3781 = vunpack.c.h.b16 %v3703
  %v3782 = vunpack.c.l.b16 %v3704
  %v3783 = vunpack.c.h.b16 %v3704
  %v3784 = vunpack.c.l.b16 %v3705
  %v3785 = vunpack.c.h.b16 %v3705
  %v3786 = vunpack.c.l.b16 %v3706
  %v3787 = vunpack.c.h.b16 %v3706
  %v3788 = vunpack.c.l.b16 %v3707
  %v3789 = vunpack.c.h.b16 %v3707
  %v3790 = vunpack.c.l.b16 %v3708
  %v3791 = vunpack.c.h.b16 %v3708
  %v3792 = vunpack.c.l.b16 %v3709
  %v3793 = vunpack.c.h.b16 %v3709
  %v3794 = vunpack.c.l.b16 %v3710
  %v3795 = vunpack.c.h.b16 %v3710
  %v3796 = vunpack.c.l.b16 %v3711
  %v3797 = vunpack.c.h.b16 %v3711
  %v3798 = vunpack.c.l.b16 %v3712
  %v3799 = vunpack.c.h.b16 %v3712
  %v3800 = vunpack.c.l.b16 %v3713
  %v3801 = vunpack.c.h.b16 %v3713
  %v3802 = vunpack.c.l.b16 %v3714
  %v3803 = vunpack.c.h.b16 %v3714
  %v3804 = vunpack.c.l.b16 %v3715
  %v3805 = vunpack.c.h.b16 %v3715
  %v3806 = vunpack.c.l.b16 %v3716
  %v3807 = vunpack.c.h.b16 %v3716
  %v3808 = vunpack.c.l.b16 %v3717
  %v3809 = vunpack.c.h.b16 %v3717
  %v3810 = vunpack.c.l.b16 %v3718
  %v3811 = vunpack.c.h.b16 %v3718
  %v3812 = vunpack.c.l.b16 %v3719
  %v3813 = vunpack.c.h.b16 %v3719
  %v3814 = vunpack.c.l.b16 %v3720
  %v3815 = vunpack.c.h.b16 %v3720
  %v3816 = vunpack.c.l.b16 %v3721
  %v3817 = vunpack.c.h.b16 %v3721
  %v3818 = vpack.c.b16 %v3758, %v3754
  %v3819 = vpack.c.b16 %v3759, %v3755
  %v3820 = vpack.c.b16 %v3760, %v3756
  %v3821 = vpack.c.b16 %v3761, %v3757
  %v3822 = vpack.c.b16 %v3766, %v3762
  %v3823 = vpack.c.b16 %v3767, %v3763
  %v3824 = vpack.c.b16 %v3768, %v3764
  %v3825 = vpack.c.b16 %v3769, %v3765
  %v3826 = vpack.c.b16 %v3774, %v3770
  %v3827 = vpack.c.b16 %v3775, %v3771
  %v3828 = vpack.c.b16 %v3776, %v3772
  %v3829 = vpack.c.b16 %v3777, %v3773
  %v3830 = vpack.c.b16 %v3782, %v3778
  %v3831 = vpack.c.b16 %v3783, %v3779
  %v3832 = vpack.c.b16 %v3784, %v3780
  %v3833 = vpack.c.b16 %v3785, %v3781
  %v3834 = vpack.c.b16 %v3790, %v3786
  %v3835 = vpack.c.b16 %v3791, %v3787
  %v3836 = vpack.c.b16 %v3792, %v3788
  %v3837 = vpack.c.b16 %v3793, %v3789
  %v3838 = vpack.c.b16 %v3798, %v3794
  %v3839 = vpack.c.b16 %v3799, %v3795
  %v3840 = vpack.c.b16 %v3800, %v3796
  %v3841 = vpack.c.b16 %v3801, %v3797
  %v3842 = vpack.c.b16 %v3806, %v3802
  %v3843 = vpack.c.b16 %v3807, %v3803
  %v3844 = vpack.c.b16 %v3808, %v3804
  %v3845 = vpack.c.b16 %v3809, %v3805
  %v3846 = vpack.c.b16 %v3814, %v3810
  %v3847 = vpack.c.b16 %v3815, %v3811
  %v3848 = vpack.c.b16 %v3816, %v3812
  %v3849 = vpack.c.b16 %v3817, %v3813
  %3882 = vmatprep.subr.bf16.mxu0 %v3847
  %3883 = vmatpush1.bf16.msra.mxu0 %v3846
  %3884 = vmatprep.subr.bf16.mxu0 %v3843
  %3885 = vmatpush1.bf16.msra.mxu0 %v3842
  %3886 = vmatprep.subr.bf16.mxu0 %v3839
  %3887 = vmatpush1.bf16.msra.mxu0 %v3838
  %3888 = vmatprep.subr.bf16.mxu0 %v3835
  %3889 = vmatpush1.bf16.msra.mxu0 %v3834
  %3890 = vmatprep.subr.bf16.mxu0 %v3831
  %3891 = vmatpush1.bf16.msra.mxu0 %v3830
  %3892 = vmatprep.subr.bf16.mxu0 %v3827
  %3893 = vmatpush1.bf16.msra.mxu0 %v3826
  %3894 = vmatprep.subr.bf16.mxu0 %v3823
  %3895 = vmatpush1.bf16.msra.mxu0 %v3822
  %3896 = vmatprep.subr.bf16.mxu0 %v3819
  %3897 = vmatpush1.bf16.msra.mxu0 %v3818
  %3898 = vmatprep.subr.bf16.mxu0 0
  %3899 = vmatpush2.bf16.msra.mxu0 0
  %3900 = vmatprep.subr.bf16.mxu0 0
  %3901 = vmatpush2.bf16.msra.mxu0 0
  %3902 = vmatprep.subr.bf16.mxu0 0
  %3903 = vmatpush2.bf16.msra.mxu0 0
  %3904 = vmatprep.subr.bf16.mxu0 0
  %3905 = vmatpush2.bf16.msra.mxu0 0
  %3906 = vmatprep.subr.bf16.mxu0 0
  %3907 = vmatpush2.bf16.msra.mxu0 0
  %3908 = vmatprep.subr.bf16.mxu0 0
  %3909 = vmatpush2.bf16.msra.mxu0 0
  %3910 = vmatprep.subr.bf16.mxu0 0
  %3911 = vmatpush2.bf16.msra.mxu0 0
  %3912 = vmatprep.subr.bf16.mxu0 0
  %3913 = vmatpush2.bf16.msra.mxu0 0
  %3914 = vmatprep.mubr.bf16.mxu0 0
  %3915 = vmatmul.mubr.bf16.gmra.mxu0 %v3689
  %v3916 = vpop.f32.mrf.mxu0
  %v3917 = vadd.f32 0.0, %v3916
  %v3918 = vpop.f32.mrf.mxu0
  %v3919 = vadd.f32 0.0, %v3918
  %v3920 = vpop.f32.mrf.mxu0
  %v3921 = vpop.f32.mrf.mxu0
  %3922 = vdwg.mxu0
  %3923 = vmatprep.subr.bf16.mxu0 %v3849
  %3924 = vmatpush1.bf16.msra.mxu0 %v3848
  %3925 = vmatprep.subr.bf16.mxu0 %v3845
  %3926 = vmatpush1.bf16.msra.mxu0 %v3844
  %3927 = vmatprep.subr.bf16.mxu0 %v3841
  %3928 = vmatpush1.bf16.msra.mxu0 %v3840
  %3929 = vmatprep.subr.bf16.mxu0 %v3837
  %3930 = vmatpush1.bf16.msra.mxu0 %v3836
  %3931 = vmatprep.subr.bf16.mxu0 %v3833
  %3932 = vmatpush1.bf16.msra.mxu0 %v3832
  %3933 = vmatprep.subr.bf16.mxu0 %v3829
  %3934 = vmatpush1.bf16.msra.mxu0 %v3828
  %3935 = vmatprep.subr.bf16.mxu0 %v3825
  %3936 = vmatpush1.bf16.msra.mxu0 %v3824
  %3937 = vmatprep.subr.bf16.mxu0 %v3821
  %3938 = vmatpush1.bf16.msra.mxu0 %v3820
  %3939 = vmatprep.subr.bf16.mxu0 0
  %3940 = vmatpush2.bf16.msra.mxu0 0
  %3941 = vmatprep.subr.bf16.mxu0 0
  %3942 = vmatpush2.bf16.msra.mxu0 0
  %3943 = vmatprep.subr.bf16.mxu0 0
  %3944 = vmatpush2.bf16.msra.mxu0 0
  %3945 = vmatprep.subr.bf16.mxu0 0
  %3946 = vmatpush2.bf16.msra.mxu0 0
  %3947 = vmatprep.subr.bf16.mxu0 0
  %3948 = vmatpush2.bf16.msra.mxu0 0
  %3949 = vmatprep.subr.bf16.mxu0 0
  %3950 = vmatpush2.bf16.msra.mxu0 0
  %3951 = vmatprep.subr.bf16.mxu0 0
  %3952 = vmatpush2.bf16.msra.mxu0 0
  %3953 = vmatprep.subr.bf16.mxu0 0
  %3954 = vmatpush2.bf16.msra.mxu0 0
  %3955 = vmatprep.mubr.bf16.mxu0 0
  %3956 = vmatmul.mubr.bf16.gmra.mxu0 %v3689
  %v3957 = vpop.f32.mrf.mxu0
  %v3958 = vadd.f32 0.0, %v3957
  %v3959 = vpop.f32.mrf.mxu0
  %v3960 = vadd.f32 0.0, %v3959
  %v3961 = vpop.f32.mrf.mxu0
  %v3962 = vpop.f32.mrf.mxu0
  %3963 = vdwg.mxu0
  %v3964 = vadd.f32 %v3685, %v3917
  %v3965 = vadd.f32 %v3686, %v3919
  %v3966 = vadd.f32 %v3687, %v3958
  %v3967 = vadd.f32 %v3688, %v3960
  %v3968 = vxor.u32 %v3964, 2147483648
  %v3969 = vxor.u32 %v3965, 2147483648
  %v3970 = vxor.u32 %v3966, 2147483648
  %v3971 = vmul.f32 %v3968, 1.442695
  %v3972 = vpow.pop %v3971
  %v3973 = vmul.f32 %v3969, 1.442695
  %v3974 = vpow.pop %v3973
  %v3975 = vmul.f32 %v3970, 1.442695
  %v3976 = vpow.pop %v3975
  %v3977 = vadd.f32 %v3972, 1.0
  %v3978 = vadd.f32 %v3974, 1.0
  %v3979 = vadd.f32 %v3976, 1.0
  %v3980 = vrcp.pop %v3977
  %v3981 = vmul.f32 1.0, %v3980
  %v3982 = vrcp.pop %v3978
  %v3983 = vmul.f32 1.0, %v3982
  %v3984 = vrcp.pop %v3979
  %v3985 = vmul.f32 1.0, %v3984
  %v3986 = vtanh.pop %v3967
  %v3987 = vmul.f32 %v3983, %v3681
  %v3988 = vmul.f32 %v3981, %v3986
  %v3989 = vadd.f32 %v3987, %v3988
  %v3990 = vtanh.pop %v3989
  %v3991 = vmul.f32 %v3985, %v3990
  %3992 = vst [vmem:[#allocation3 + $0x50] sm:$0xff] %v3991
  %v3993 = vld [vmem:[#allocation2 + $0x160] sm:$0xff]
  %v3994 = vld [vmem:[#allocation2 + $0x168] sm:$0xff]
  %v3995 = vld [vmem:[#allocation2 + $0x170] sm:$0xff]
  %v3996 = vld [vmem:[#allocation2 + $0x178] sm:$0xff]
  %v3997 = vpack.c.bf16 %v3991, %v3991
  %v3998 = vld [vmem:[%s2] sm:$0xff]
  %v3999 = vld [vmem:[%s2 + $0x8] sm:$0xff]
  %v4000 = vld [vmem:[%s2 + $0x10] sm:$0xff]
  %v4001 = vld [vmem:[%s2 + $0x18] sm:$0xff]
  %v4002 = vld [vmem:[%s2 + $0x20] sm:$0xff]
  %v4003 = vld [vmem:[%s2 + $0x28] sm:$0xff]
  %v4004 = vld [vmem:[%s2 + $0x30] sm:$0xff]
  %v4005 = vld [vmem:[%s2 + $0x38] sm:$0xff]
  %v4006 = vld [vmem:[%s2 + $0x40] sm:$0xff]
  %v4007 = vld [vmem:[%s2 + $0x48] sm:$0xff]
  %v4008 = vld [vmem:[%s2 + $0x50] sm:$0xff]
  %v4009 = vld [vmem:[%s2 + $0x58] sm:$0xff]
  %v4010 = vld [vmem:[%s2 + $0x60] sm:$0xff]
  %v4011 = vld [vmem:[%s2 + $0x68] sm:$0xff]
  %v4012 = vld [vmem:[%s2 + $0x70] sm:$0xff]
  %v4013 = vld [vmem:[%s2 + $0x78] sm:$0xff]
  %v4014 = vld [vmem:[%s2 + $0x80] sm:$0xff]
  %v4015 = vld [vmem:[%s2 + $0x88] sm:$0xff]
  %v4016 = vld [vmem:[%s2 + $0x90] sm:$0xff]
  %v4017 = vld [vmem:[%s2 + $0x98] sm:$0xff]
  %v4018 = vld [vmem:[%s2 + $0xa0] sm:$0xff]
  %v4019 = vld [vmem:[%s2 + $0xa8] sm:$0xff]
  %v4020 = vld [vmem:[%s2 + $0xb0] sm:$0xff]
  %v4021 = vld [vmem:[%s2 + $0xb8] sm:$0xff]
  %v4022 = vld [vmem:[%s2 + $0xc0] sm:$0xff]
  %v4023 = vld [vmem:[%s2 + $0xc8] sm:$0xff]
  %v4024 = vld [vmem:[%s2 + $0xd0] sm:$0xff]
  %v4025 = vld [vmem:[%s2 + $0xd8] sm:$0xff]
  %v4026 = vld [vmem:[%s2 + $0xe0] sm:$0xff]
  %v4027 = vld [vmem:[%s2 + $0xe8] sm:$0xff]
  %v4028 = vld [vmem:[%s2 + $0xf0] sm:$0xff]
  %v4029 = vld [vmem:[%s2 + $0xf8] sm:$0xff]
  %v4062 = vunpack.c.l.b16 %v3998
  %v4063 = vunpack.c.h.b16 %v3998
  %v4064 = vunpack.c.l.b16 %v3999
  %v4065 = vunpack.c.h.b16 %v3999
  %v4066 = vunpack.c.l.b16 %v4000
  %v4067 = vunpack.c.h.b16 %v4000
  %v4068 = vunpack.c.l.b16 %v4001
  %v4069 = vunpack.c.h.b16 %v4001
  %v4070 = vunpack.c.l.b16 %v4002
  %v4071 = vunpack.c.h.b16 %v4002
  %v4072 = vunpack.c.l.b16 %v4003
  %v4073 = vunpack.c.h.b16 %v4003
  %v4074 = vunpack.c.l.b16 %v4004
  %v4075 = vunpack.c.h.b16 %v4004
  %v4076 = vunpack.c.l.b16 %v4005
  %v4077 = vunpack.c.h.b16 %v4005
  %v4078 = vunpack.c.l.b16 %v4006
  %v4079 = vunpack.c.h.b16 %v4006
  %v4080 = vunpack.c.l.b16 %v4007
  %v4081 = vunpack.c.h.b16 %v4007
  %v4082 = vunpack.c.l.b16 %v4008
  %v4083 = vunpack.c.h.b16 %v4008
  %v4084 = vunpack.c.l.b16 %v4009
  %v4085 = vunpack.c.h.b16 %v4009
  %v4086 = vunpack.c.l.b16 %v4010
  %v4087 = vunpack.c.h.b16 %v4010
  %v4088 = vunpack.c.l.b16 %v4011
  %v4089 = vunpack.c.h.b16 %v4011
  %v4090 = vunpack.c.l.b16 %v4012
  %v4091 = vunpack.c.h.b16 %v4012
  %v4092 = vunpack.c.l.b16 %v4013
  %v4093 = vunpack.c.h.b16 %v4013
  %v4094 = vunpack.c.l.b16 %v4014
  %v4095 = vunpack.c.h.b16 %v4014
  %v4096 = vunpack.c.l.b16 %v4015
  %v4097 = vunpack.c.h.b16 %v4015
  %v4098 = vunpack.c.l.b16 %v4016
  %v4099 = vunpack.c.h.b16 %v4016
  %v4100 = vunpack.c.l.b16 %v4017
  %v4101 = vunpack.c.h.b16 %v4017
  %v4102 = vunpack.c.l.b16 %v4018
  %v4103 = vunpack.c.h.b16 %v4018
  %v4104 = vunpack.c.l.b16 %v4019
  %v4105 = vunpack.c.h.b16 %v4019
  %v4106 = vunpack.c.l.b16 %v4020
  %v4107 = vunpack.c.h.b16 %v4020
  %v4108 = vunpack.c.l.b16 %v4021
  %v4109 = vunpack.c.h.b16 %v4021
  %v4110 = vunpack.c.l.b16 %v4022
  %v4111 = vunpack.c.h.b16 %v4022
  %v4112 = vunpack.c.l.b16 %v4023
  %v4113 = vunpack.c.h.b16 %v4023
  %v4114 = vunpack.c.l.b16 %v4024
  %v4115 = vunpack.c.h.b16 %v4024
  %v4116 = vunpack.c.l.b16 %v4025
  %v4117 = vunpack.c.h.b16 %v4025
  %v4118 = vunpack.c.l.b16 %v4026
  %v4119 = vunpack.c.h.b16 %v4026
  %v4120 = vunpack.c.l.b16 %v4027
  %v4121 = vunpack.c.h.b16 %v4027
  %v4122 = vunpack.c.l.b16 %v4028
  %v4123 = vunpack.c.h.b16 %v4028
  %v4124 = vunpack.c.l.b16 %v4029
  %v4125 = vunpack.c.h.b16 %v4029
  %v4126 = vpack.c.b16 %v4066, %v4062
  %v4127 = vpack.c.b16 %v4067, %v4063
  %v4128 = vpack.c.b16 %v4068, %v4064
  %v4129 = vpack.c.b16 %v4069, %v4065
  %v4130 = vpack.c.b16 %v4074, %v4070
  %v4131 = vpack.c.b16 %v4075, %v4071
  %v4132 = vpack.c.b16 %v4076, %v4072
  %v4133 = vpack.c.b16 %v4077, %v4073
  %v4134 = vpack.c.b16 %v4082, %v4078
  %v4135 = vpack.c.b16 %v4083, %v4079
  %v4136 = vpack.c.b16 %v4084, %v4080
  %v4137 = vpack.c.b16 %v4085, %v4081
  %v4138 = vpack.c.b16 %v4090, %v4086
  %v4139 = vpack.c.b16 %v4091, %v4087
  %v4140 = vpack.c.b16 %v4092, %v4088
  %v4141 = vpack.c.b16 %v4093, %v4089
  %v4142 = vpack.c.b16 %v4098, %v4094
  %v4143 = vpack.c.b16 %v4099, %v4095
  %v4144 = vpack.c.b16 %v4100, %v4096
  %v4145 = vpack.c.b16 %v4101, %v4097
  %v4146 = vpack.c.b16 %v4106, %v4102
  %v4147 = vpack.c.b16 %v4107, %v4103
  %v4148 = vpack.c.b16 %v4108, %v4104
  %v4149 = vpack.c.b16 %v4109, %v4105
  %v4150 = vpack.c.b16 %v4114, %v4110
  %v4151 = vpack.c.b16 %v4115, %v4111
  %v4152 = vpack.c.b16 %v4116, %v4112
  %v4153 = vpack.c.b16 %v4117, %v4113
  %v4154 = vpack.c.b16 %v4122, %v4118
  %v4155 = vpack.c.b16 %v4123, %v4119
  %v4156 = vpack.c.b16 %v4124, %v4120
  %v4157 = vpack.c.b16 %v4125, %v4121
  %4190 = vmatprep.subr.bf16.mxu0 %v4155
  %4191 = vmatpush1.bf16.msra.mxu0 %v4154
  %4192 = vmatprep.subr.bf16.mxu0 %v4151
  %4193 = vmatpush1.bf16.msra.mxu0 %v4150
  %4194 = vmatprep.subr.bf16.mxu0 %v4147
  %4195 = vmatpush1.bf16.msra.mxu0 %v4146
  %4196 = vmatprep.subr.bf16.mxu0 %v4143
  %4197 = vmatpush1.bf16.msra.mxu0 %v4142
  %4198 = vmatprep.subr.bf16.mxu0 %v4139
  %4199 = vmatpush1.bf16.msra.mxu0 %v4138
  %4200 = vmatprep.subr.bf16.mxu0 %v4135
  %4201 = vmatpush1.bf16.msra.mxu0 %v4134
  %4202 = vmatprep.subr.bf16.mxu0 %v4131
  %4203 = vmatpush1.bf16.msra.mxu0 %v4130
  %4204 = vmatprep.subr.bf16.mxu0 %v4127
  %4205 = vmatpush1.bf16.msra.mxu0 %v4126
  %4206 = vmatprep.subr.bf16.mxu0 0
  %4207 = vmatpush2.bf16.msra.mxu0 0
  %4208 = vmatprep.subr.bf16.mxu0 0
  %4209 = vmatpush2.bf16.msra.mxu0 0
  %4210 = vmatprep.subr.bf16.mxu0 0
  %4211 = vmatpush2.bf16.msra.mxu0 0
  %4212 = vmatprep.subr.bf16.mxu0 0
  %4213 = vmatpush2.bf16.msra.mxu0 0
  %4214 = vmatprep.subr.bf16.mxu0 0
  %4215 = vmatpush2.bf16.msra.mxu0 0
  %4216 = vmatprep.subr.bf16.mxu0 0
  %4217 = vmatpush2.bf16.msra.mxu0 0
  %4218 = vmatprep.subr.bf16.mxu0 0
  %4219 = vmatpush2.bf16.msra.mxu0 0
  %4220 = vmatprep.subr.bf16.mxu0 0
  %4221 = vmatpush2.bf16.msra.mxu0 0
  %4222 = vmatprep.mubr.bf16.mxu0 0
  %4223 = vmatmul.mubr.bf16.gmra.mxu0 %v3997
  %v4224 = vpop.f32.mrf.mxu0
  %v4225 = vadd.f32 0.0, %v4224
  %v4226 = vpop.f32.mrf.mxu0
  %v4227 = vadd.f32 0.0, %v4226
  %v4228 = vpop.f32.mrf.mxu0
  %v4229 = vpop.f32.mrf.mxu0
  %4230 = vdwg.mxu0
  %4231 = vmatprep.subr.bf16.mxu0 %v4157
  %4232 = vmatpush1.bf16.msra.mxu0 %v4156
  %4233 = vmatprep.subr.bf16.mxu0 %v4153
  %4234 = vmatpush1.bf16.msra.mxu0 %v4152
  %4235 = vmatprep.subr.bf16.mxu0 %v4149
  %4236 = vmatpush1.bf16.msra.mxu0 %v4148
  %4237 = vmatprep.subr.bf16.mxu0 %v4145
  %4238 = vmatpush1.bf16.msra.mxu0 %v4144
  %4239 = vmatprep.subr.bf16.mxu0 %v4141
  %4240 = vmatpush1.bf16.msra.mxu0 %v4140
  %4241 = vmatprep.subr.bf16.mxu0 %v4137
  %4242 = vmatpush1.bf16.msra.mxu0 %v4136
  %4243 = vmatprep.subr.bf16.mxu0 %v4133
  %4244 = vmatpush1.bf16.msra.mxu0 %v4132
  %4245 = vmatprep.subr.bf16.mxu0 %v4129
  %4246 = vmatpush1.bf16.msra.mxu0 %v4128
  %4247 = vmatprep.subr.bf16.mxu0 0
  %4248 = vmatpush2.bf16.msra.mxu0 0
  %4249 = vmatprep.subr.bf16.mxu0 0
  %4250 = vmatpush2.bf16.msra.mxu0 0
  %4251 = vmatprep.subr.bf16.mxu0 0
  %4252 = vmatpush2.bf16.msra.mxu0 0
  %4253 = vmatprep.subr.bf16.mxu0 0
  %4254 = vmatpush2.bf16.msra.mxu0 0
  %4255 = vmatprep.subr.bf16.mxu0 0
  %4256 = vmatpush2.bf16.msra.mxu0 0
  %4257 = vmatprep.subr.bf16.mxu0 0
  %4258 = vmatpush2.bf16.msra.mxu0 0
  %4259 = vmatprep.subr.bf16.mxu0 0
  %4260 = vmatpush2.bf16.msra.mxu0 0
  %4261 = vmatprep.subr.bf16.mxu0 0
  %4262 = vmatpush2.bf16.msra.mxu0 0
  %4263 = vmatprep.mubr.bf16.mxu0 0
  %4264 = vmatmul.mubr.bf16.gmra.mxu0 %v3997
  %v4265 = vpop.f32.mrf.mxu0
  %v4266 = vadd.f32 0.0, %v4265
  %v4267 = vpop.f32.mrf.mxu0
  %v4268 = vadd.f32 0.0, %v4267
  %v4269 = vpop.f32.mrf.mxu0
  %v4270 = vpop.f32.mrf.mxu0
  %4271 = vdwg.mxu0
  %v4272 = vadd.f32 %v3993, %v4225
  %v4273 = vadd.f32 %v3994, %v4227
  %v4274 = vadd.f32 %v3995, %v4266
  %v4275 = vadd.f32 %v3996, %v4268
  %v4276 = vxor.u32 %v4272, 2147483648
  %v4277 = vxor.u32 %v4273, 2147483648
  %v4278 = vxor.u32 %v4274, 2147483648
  %v4279 = vmul.f32 %v4276, 1.442695
  %v4280 = vpow.pop %v4279
  %v4281 = vmul.f32 %v4277, 1.442695
  %v4282 = vpow.pop %v4281
  %v4283 = vmul.f32 %v4278, 1.442695
  %v4284 = vpow.pop %v4283
  %v4285 = vadd.f32 %v4280, 1.0
  %v4286 = vadd.f32 %v4282, 1.0
  %v4287 = vadd.f32 %v4284, 1.0
  %v4288 = vrcp.pop %v4285
  %v4289 = vmul.f32 1.0, %v4288
  %v4290 = vrcp.pop %v4286
  %v4291 = vmul.f32 1.0, %v4290
  %v4292 = vrcp.pop %v4287
  %v4293 = vmul.f32 1.0, %v4292
  %v4294 = vtanh.pop %v4275
  %v4295 = vmul.f32 %v4291, %v3989
  %v4296 = vmul.f32 %v4289, %v4294
  %v4297 = vadd.f32 %v4295, %v4296
  %v4298 = vtanh.pop %v4297
  %v4299 = vmul.f32 %v4293, %v4298
  %4300 = vst [vmem:[#allocation3 + $0x58] sm:$0xff] %v4299
  %v4301 = vld [vmem:[#allocation2 + $0x180] sm:$0xff]
  %v4302 = vld [vmem:[#allocation2 + $0x188] sm:$0xff]
  %v4303 = vld [vmem:[#allocation2 + $0x190] sm:$0xff]
  %v4304 = vld [vmem:[#allocation2 + $0x198] sm:$0xff]
  %v4305 = vpack.c.bf16 %v4299, %v4299
  %v4306 = vld [vmem:[%s2] sm:$0xff]
  %v4307 = vld [vmem:[%s2 + $0x8] sm:$0xff]
  %v4308 = vld [vmem:[%s2 + $0x10] sm:$0xff]
  %v4309 = vld [vmem:[%s2 + $0x18] sm:$0xff]
  %v4310 = vld [vmem:[%s2 + $0x20] sm:$0xff]
  %v4311 = vld [vmem:[%s2 + $0x28] sm:$0xff]
  %v4312 = vld [vmem:[%s2 + $0x30] sm:$0xff]
  %v4313 = vld [vmem:[%s2 + $0x38] sm:$0xff]
  %v4314 = vld [vmem:[%s2 + $0x40] sm:$0xff]
  %v4315 = vld [vmem:[%s2 + $0x48] sm:$0xff]
  %v4316 = vld [vmem:[%s2 + $0x50] sm:$0xff]
  %v4317 = vld [vmem:[%s2 + $0x58] sm:$0xff]
  %v4318 = vld [vmem:[%s2 + $0x60] sm:$0xff]
  %v4319 = vld [vmem:[%s2 + $0x68] sm:$0xff]
  %v4320 = vld [vmem:[%s2 + $0x70] sm:$0xff]
  %v4321 = vld [vmem:[%s2 + $0x78] sm:$0xff]
  %v4322 = vld [vmem:[%s2 + $0x80] sm:$0xff]
  %v4323 = vld [vmem:[%s2 + $0x88] sm:$0xff]
  %v4324 = vld [vmem:[%s2 + $0x90] sm:$0xff]
  %v4325 = vld [vmem:[%s2 + $0x98] sm:$0xff]
  %v4326 = vld [vmem:[%s2 + $0xa0] sm:$0xff]
  %v4327 = vld [vmem:[%s2 + $0xa8] sm:$0xff]
  %v4328 = vld [vmem:[%s2 + $0xb0] sm:$0xff]
  %v4329 = vld [vmem:[%s2 + $0xb8] sm:$0xff]
  %v4330 = vld [vmem:[%s2 + $0xc0] sm:$0xff]
  %v4331 = vld [vmem:[%s2 + $0xc8] sm:$0xff]
  %v4332 = vld [vmem:[%s2 + $0xd0] sm:$0xff]
  %v4333 = vld [vmem:[%s2 + $0xd8] sm:$0xff]
  %v4334 = vld [vmem:[%s2 + $0xe0] sm:$0xff]
  %v4335 = vld [vmem:[%s2 + $0xe8] sm:$0xff]
  %v4336 = vld [vmem:[%s2 + $0xf0] sm:$0xff]
  %v4337 = vld [vmem:[%s2 + $0xf8] sm:$0xff]
  %v4370 = vunpack.c.l.b16 %v4306
  %v4371 = vunpack.c.h.b16 %v4306
  %v4372 = vunpack.c.l.b16 %v4307
  %v4373 = vunpack.c.h.b16 %v4307
  %v4374 = vunpack.c.l.b16 %v4308
  %v4375 = vunpack.c.h.b16 %v4308
  %v4376 = vunpack.c.l.b16 %v4309
  %v4377 = vunpack.c.h.b16 %v4309
  %v4378 = vunpack.c.l.b16 %v4310
  %v4379 = vunpack.c.h.b16 %v4310
  %v4380 = vunpack.c.l.b16 %v4311
  %v4381 = vunpack.c.h.b16 %v4311
  %v4382 = vunpack.c.l.b16 %v4312
  %v4383 = vunpack.c.h.b16 %v4312
  %v4384 = vunpack.c.l.b16 %v4313
  %v4385 = vunpack.c.h.b16 %v4313
  %v4386 = vunpack.c.l.b16 %v4314
  %v4387 = vunpack.c.h.b16 %v4314
  %v4388 = vunpack.c.l.b16 %v4315
  %v4389 = vunpack.c.h.b16 %v4315
  %v4390 = vunpack.c.l.b16 %v4316
  %v4391 = vunpack.c.h.b16 %v4316
  %v4392 = vunpack.c.l.b16 %v4317
  %v4393 = vunpack.c.h.b16 %v4317
  %v4394 = vunpack.c.l.b16 %v4318
  %v4395 = vunpack.c.h.b16 %v4318
  %v4396 = vunpack.c.l.b16 %v4319
  %v4397 = vunpack.c.h.b16 %v4319
  %v4398 = vunpack.c.l.b16 %v4320
  %v4399 = vunpack.c.h.b16 %v4320
  %v4400 = vunpack.c.l.b16 %v4321
  %v4401 = vunpack.c.h.b16 %v4321
  %v4402 = vunpack.c.l.b16 %v4322
  %v4403 = vunpack.c.h.b16 %v4322
  %v4404 = vunpack.c.l.b16 %v4323
  %v4405 = vunpack.c.h.b16 %v4323
  %v4406 = vunpack.c.l.b16 %v4324
  %v4407 = vunpack.c.h.b16 %v4324
  %v4408 = vunpack.c.l.b16 %v4325
  %v4409 = vunpack.c.h.b16 %v4325
  %v4410 = vunpack.c.l.b16 %v4326
  %v4411 = vunpack.c.h.b16 %v4326
  %v4412 = vunpack.c.l.b16 %v4327
  %v4413 = vunpack.c.h.b16 %v4327
  %v4414 = vunpack.c.l.b16 %v4328
  %v4415 = vunpack.c.h.b16 %v4328
  %v4416 = vunpack.c.l.b16 %v4329
  %v4417 = vunpack.c.h.b16 %v4329
  %v4418 = vunpack.c.l.b16 %v4330
  %v4419 = vunpack.c.h.b16 %v4330
  %v4420 = vunpack.c.l.b16 %v4331
  %v4421 = vunpack.c.h.b16 %v4331
  %v4422 = vunpack.c.l.b16 %v4332
  %v4423 = vunpack.c.h.b16 %v4332
  %v4424 = vunpack.c.l.b16 %v4333
  %v4425 = vunpack.c.h.b16 %v4333
  %v4426 = vunpack.c.l.b16 %v4334
  %v4427 = vunpack.c.h.b16 %v4334
  %v4428 = vunpack.c.l.b16 %v4335
  %v4429 = vunpack.c.h.b16 %v4335
  %v4430 = vunpack.c.l.b16 %v4336
  %v4431 = vunpack.c.h.b16 %v4336
  %v4432 = vunpack.c.l.b16 %v4337
  %v4433 = vunpack.c.h.b16 %v4337
  %v4434 = vpack.c.b16 %v4374, %v4370
  %v4435 = vpack.c.b16 %v4375, %v4371
  %v4436 = vpack.c.b16 %v4376, %v4372
  %v4437 = vpack.c.b16 %v4377, %v4373
  %v4438 = vpack.c.b16 %v4382, %v4378
  %v4439 = vpack.c.b16 %v4383, %v4379
  %v4440 = vpack.c.b16 %v4384, %v4380
  %v4441 = vpack.c.b16 %v4385, %v4381
  %v4442 = vpack.c.b16 %v4390, %v4386
  %v4443 = vpack.c.b16 %v4391, %v4387
  %v4444 = vpack.c.b16 %v4392, %v4388
  %v4445 = vpack.c.b16 %v4393, %v4389
  %v4446 = vpack.c.b16 %v4398, %v4394
  %v4447 = vpack.c.b16 %v4399, %v4395
  %v4448 = vpack.c.b16 %v4400, %v4396
  %v4449 = vpack.c.b16 %v4401, %v4397
  %v4450 = vpack.c.b16 %v4406, %v4402
  %v4451 = vpack.c.b16 %v4407, %v4403
  %v4452 = vpack.c.b16 %v4408, %v4404
  %v4453 = vpack.c.b16 %v4409, %v4405
  %v4454 = vpack.c.b16 %v4414, %v4410
  %v4455 = vpack.c.b16 %v4415, %v4411
  %v4456 = vpack.c.b16 %v4416, %v4412
  %v4457 = vpack.c.b16 %v4417, %v4413
  %v4458 = vpack.c.b16 %v4422, %v4418
  %v4459 = vpack.c.b16 %v4423, %v4419
  %v4460 = vpack.c.b16 %v4424, %v4420
  %v4461 = vpack.c.b16 %v4425, %v4421
  %v4462 = vpack.c.b16 %v4430, %v4426
  %v4463 = vpack.c.b16 %v4431, %v4427
  %v4464 = vpack.c.b16 %v4432, %v4428
  %v4465 = vpack.c.b16 %v4433, %v4429
  %4498 = vmatprep.subr.bf16.mxu0 %v4463
  %4499 = vmatpush1.bf16.msra.mxu0 %v4462
  %4500 = vmatprep.subr.bf16.mxu0 %v4459
  %4501 = vmatpush1.bf16.msra.mxu0 %v4458
  %4502 = vmatprep.subr.bf16.mxu0 %v4455
  %4503 = vmatpush1.bf16.msra.mxu0 %v4454
  %4504 = vmatprep.subr.bf16.mxu0 %v4451
  %4505 = vmatpush1.bf16.msra.mxu0 %v4450
  %4506 = vmatprep.subr.bf16.mxu0 %v4447
  %4507 = vmatpush1.bf16.msra.mxu0 %v4446
  %4508 = vmatprep.subr.bf16.mxu0 %v4443
  %4509 = vmatpush1.bf16.msra.mxu0 %v4442
  %4510 = vmatprep.subr.bf16.mxu0 %v4439
  %4511 = vmatpush1.bf16.msra.mxu0 %v4438
  %4512 = vmatprep.subr.bf16.mxu0 %v4435
  %4513 = vmatpush1.bf16.msra.mxu0 %v4434
  %4514 = vmatprep.subr.bf16.mxu0 0
  %4515 = vmatpush2.bf16.msra.mxu0 0
  %4516 = vmatprep.subr.bf16.mxu0 0
  %4517 = vmatpush2.bf16.msra.mxu0 0
  %4518 = vmatprep.subr.bf16.mxu0 0
  %4519 = vmatpush2.bf16.msra.mxu0 0
  %4520 = vmatprep.subr.bf16.mxu0 0
  %4521 = vmatpush2.bf16.msra.mxu0 0
  %4522 = vmatprep.subr.bf16.mxu0 0
  %4523 = vmatpush2.bf16.msra.mxu0 0
  %4524 = vmatprep.subr.bf16.mxu0 0
  %4525 = vmatpush2.bf16.msra.mxu0 0
  %4526 = vmatprep.subr.bf16.mxu0 0
  %4527 = vmatpush2.bf16.msra.mxu0 0
  %4528 = vmatprep.subr.bf16.mxu0 0
  %4529 = vmatpush2.bf16.msra.mxu0 0
  %4530 = vmatprep.mubr.bf16.mxu0 0
  %4531 = vmatmul.mubr.bf16.gmra.mxu0 %v4305
  %v4532 = vpop.f32.mrf.mxu0
  %v4533 = vadd.f32 0.0, %v4532
  %v4534 = vpop.f32.mrf.mxu0
  %v4535 = vadd.f32 0.0, %v4534
  %v4536 = vpop.f32.mrf.mxu0
  %v4537 = vpop.f32.mrf.mxu0
  %4538 = vdwg.mxu0
  %4539 = vmatprep.subr.bf16.mxu0 %v4465
  %4540 = vmatpush1.bf16.msra.mxu0 %v4464
  %4541 = vmatprep.subr.bf16.mxu0 %v4461
  %4542 = vmatpush1.bf16.msra.mxu0 %v4460
  %4543 = vmatprep.subr.bf16.mxu0 %v4457
  %4544 = vmatpush1.bf16.msra.mxu0 %v4456
  %4545 = vmatprep.subr.bf16.mxu0 %v4453
  %4546 = vmatpush1.bf16.msra.mxu0 %v4452
  %4547 = vmatprep.subr.bf16.mxu0 %v4449
  %4548 = vmatpush1.bf16.msra.mxu0 %v4448
  %4549 = vmatprep.subr.bf16.mxu0 %v4445
  %4550 = vmatpush1.bf16.msra.mxu0 %v4444
  %4551 = vmatprep.subr.bf16.mxu0 %v4441
  %4552 = vmatpush1.bf16.msra.mxu0 %v4440
  %4553 = vmatprep.subr.bf16.mxu0 %v4437
  %4554 = vmatpush1.bf16.msra.mxu0 %v4436
  %4555 = vmatprep.subr.bf16.mxu0 0
  %4556 = vmatpush2.bf16.msra.mxu0 0
  %4557 = vmatprep.subr.bf16.mxu0 0
  %4558 = vmatpush2.bf16.msra.mxu0 0
  %4559 = vmatprep.subr.bf16.mxu0 0
  %4560 = vmatpush2.bf16.msra.mxu0 0
  %4561 = vmatprep.subr.bf16.mxu0 0
  %4562 = vmatpush2.bf16.msra.mxu0 0
  %4563 = vmatprep.subr.bf16.mxu0 0
  %4564 = vmatpush2.bf16.msra.mxu0 0
  %4565 = vmatprep.subr.bf16.mxu0 0
  %4566 = vmatpush2.bf16.msra.mxu0 0
  %4567 = vmatprep.subr.bf16.mxu0 0
  %4568 = vmatpush2.bf16.msra.mxu0 0
  %4569 = vmatprep.subr.bf16.mxu0 0
  %4570 = vmatpush2.bf16.msra.mxu0 0
  %4571 = vmatprep.mubr.bf16.mxu0 0
  %4572 = vmatmul.mubr.bf16.gmra.mxu0 %v4305
  %v4573 = vpop.f32.mrf.mxu0
  %v4574 = vadd.f32 0.0, %v4573
  %v4575 = vpop.f32.mrf.mxu0
  %v4576 = vadd.f32 0.0, %v4575
  %v4577 = vpop.f32.mrf.mxu0
  %v4578 = vpop.f32.mrf.mxu0
  %4579 = vdwg.mxu0
  %v4580 = vadd.f32 %v4301, %v4533
  %v4581 = vadd.f32 %v4302, %v4535
  %v4582 = vadd.f32 %v4303, %v4574
  %v4583 = vadd.f32 %v4304, %v4576
  %v4584 = vxor.u32 %v4580, 2147483648
  %v4585 = vxor.u32 %v4581, 2147483648
  %v4586 = vxor.u32 %v4582, 2147483648
  %v4587 = vmul.f32 %v4584, 1.442695
  %v4588 = vpow.pop %v4587
  %v4589 = vmul.f32 %v4585, 1.442695
  %v4590 = vpow.pop %v4589
  %v4591 = vmul.f32 %v4586, 1.442695
  %v4592 = vpow.pop %v4591
  %v4593 = vadd.f32 %v4588, 1.0
  %v4594 = vadd.f32 %v4590, 1.0
  %v4595 = vadd.f32 %v4592, 1.0
  %v4596 = vrcp.pop %v4593
  %v4597 = vmul.f32 1.0, %v4596
  %v4598 = vrcp.pop %v4594
  %v4599 = vmul.f32 1.0, %v4598
  %v4600 = vrcp.pop %v4595
  %v4601 = vmul.f32 1.0, %v4600
  %v4602 = vtanh.pop %v4583
  %v4603 = vmul.f32 %v4599, %v4297
  %v4604 = vmul.f32 %v4597, %v4602
  %v4605 = vadd.f32 %v4603, %v4604
  %v4606 = vtanh.pop %v4605
  %v4607 = vmul.f32 %v4601, %v4606
  %4608 = vst [vmem:[#allocation3 + $0x60] sm:$0xff] %v4607
  %v4609 = vld [vmem:[#allocation2 + $0x1a0] sm:$0xff]
  %v4610 = vld [vmem:[#allocation2 + $0x1a8] sm:$0xff]
  %v4611 = vld [vmem:[#allocation2 + $0x1b0] sm:$0xff]
  %v4612 = vld [vmem:[#allocation2 + $0x1b8] sm:$0xff]
  %v4613 = vpack.c.bf16 %v4607, %v4607
  %v4614 = vld [vmem:[%s2] sm:$0xff]
  %v4615 = vld [vmem:[%s2 + $0x8] sm:$0xff]
  %v4616 = vld [vmem:[%s2 + $0x10] sm:$0xff]
  %v4617 = vld [vmem:[%s2 + $0x18] sm:$0xff]
  %v4618 = vld [vmem:[%s2 + $0x20] sm:$0xff]
  %v4619 = vld [vmem:[%s2 + $0x28] sm:$0xff]
  %v4620 = vld [vmem:[%s2 + $0x30] sm:$0xff]
  %v4621 = vld [vmem:[%s2 + $0x38] sm:$0xff]
  %v4622 = vld [vmem:[%s2 + $0x40] sm:$0xff]
  %v4623 = vld [vmem:[%s2 + $0x48] sm:$0xff]
  %v4624 = vld [vmem:[%s2 + $0x50] sm:$0xff]
  %v4625 = vld [vmem:[%s2 + $0x58] sm:$0xff]
  %v4626 = vld [vmem:[%s2 + $0x60] sm:$0xff]
  %v4627 = vld [vmem:[%s2 + $0x68] sm:$0xff]
  %v4628 = vld [vmem:[%s2 + $0x70] sm:$0xff]
  %v4629 = vld [vmem:[%s2 + $0x78] sm:$0xff]
  %v4630 = vld [vmem:[%s2 + $0x80] sm:$0xff]
  %v4631 = vld [vmem:[%s2 + $0x88] sm:$0xff]
  %v4632 = vld [vmem:[%s2 + $0x90] sm:$0xff]
  %v4633 = vld [vmem:[%s2 + $0x98] sm:$0xff]
  %v4634 = vld [vmem:[%s2 + $0xa0] sm:$0xff]
  %v4635 = vld [vmem:[%s2 + $0xa8] sm:$0xff]
  %v4636 = vld [vmem:[%s2 + $0xb0] sm:$0xff]
  %v4637 = vld [vmem:[%s2 + $0xb8] sm:$0xff]
  %v4638 = vld [vmem:[%s2 + $0xc0] sm:$0xff]
  %v4639 = vld [vmem:[%s2 + $0xc8] sm:$0xff]
  %v4640 = vld [vmem:[%s2 + $0xd0] sm:$0xff]
  %v4641 = vld [vmem:[%s2 + $0xd8] sm:$0xff]
  %v4642 = vld [vmem:[%s2 + $0xe0] sm:$0xff]
  %v4643 = vld [vmem:[%s2 + $0xe8] sm:$0xff]
  %v4644 = vld [vmem:[%s2 + $0xf0] sm:$0xff]
  %v4645 = vld [vmem:[%s2 + $0xf8] sm:$0xff]
  %v4678 = vunpack.c.l.b16 %v4614
  %v4679 = vunpack.c.h.b16 %v4614
  %v4680 = vunpack.c.l.b16 %v4615
  %v4681 = vunpack.c.h.b16 %v4615
  %v4682 = vunpack.c.l.b16 %v4616
  %v4683 = vunpack.c.h.b16 %v4616
  %v4684 = vunpack.c.l.b16 %v4617
  %v4685 = vunpack.c.h.b16 %v4617
  %v4686 = vunpack.c.l.b16 %v4618
  %v4687 = vunpack.c.h.b16 %v4618
  %v4688 = vunpack.c.l.b16 %v4619
  %v4689 = vunpack.c.h.b16 %v4619
  %v4690 = vunpack.c.l.b16 %v4620
  %v4691 = vunpack.c.h.b16 %v4620
  %v4692 = vunpack.c.l.b16 %v4621
  %v4693 = vunpack.c.h.b16 %v4621
  %v4694 = vunpack.c.l.b16 %v4622
  %v4695 = vunpack.c.h.b16 %v4622
  %v4696 = vunpack.c.l.b16 %v4623
  %v4697 = vunpack.c.h.b16 %v4623
  %v4698 = vunpack.c.l.b16 %v4624
  %v4699 = vunpack.c.h.b16 %v4624
  %v4700 = vunpack.c.l.b16 %v4625
  %v4701 = vunpack.c.h.b16 %v4625
  %v4702 = vunpack.c.l.b16 %v4626
  %v4703 = vunpack.c.h.b16 %v4626
  %v4704 = vunpack.c.l.b16 %v4627
  %v4705 = vunpack.c.h.b16 %v4627
  %v4706 = vunpack.c.l.b16 %v4628
  %v4707 = vunpack.c.h.b16 %v4628
  %v4708 = vunpack.c.l.b16 %v4629
  %v4709 = vunpack.c.h.b16 %v4629
  %v4710 = vunpack.c.l.b16 %v4630
  %v4711 = vunpack.c.h.b16 %v4630
  %v4712 = vunpack.c.l.b16 %v4631
  %v4713 = vunpack.c.h.b16 %v4631
  %v4714 = vunpack.c.l.b16 %v4632
  %v4715 = vunpack.c.h.b16 %v4632
  %v4716 = vunpack.c.l.b16 %v4633
  %v4717 = vunpack.c.h.b16 %v4633
  %v4718 = vunpack.c.l.b16 %v4634
  %v4719 = vunpack.c.h.b16 %v4634
  %v4720 = vunpack.c.l.b16 %v4635
  %v4721 = vunpack.c.h.b16 %v4635
  %v4722 = vunpack.c.l.b16 %v4636
  %v4723 = vunpack.c.h.b16 %v4636
  %v4724 = vunpack.c.l.b16 %v4637
  %v4725 = vunpack.c.h.b16 %v4637
  %v4726 = vunpack.c.l.b16 %v4638
  %v4727 = vunpack.c.h.b16 %v4638
  %v4728 = vunpack.c.l.b16 %v4639
  %v4729 = vunpack.c.h.b16 %v4639
  %v4730 = vunpack.c.l.b16 %v4640
  %v4731 = vunpack.c.h.b16 %v4640
  %v4732 = vunpack.c.l.b16 %v4641
  %v4733 = vunpack.c.h.b16 %v4641
  %v4734 = vunpack.c.l.b16 %v4642
  %v4735 = vunpack.c.h.b16 %v4642
  %v4736 = vunpack.c.l.b16 %v4643
  %v4737 = vunpack.c.h.b16 %v4643
  %v4738 = vunpack.c.l.b16 %v4644
  %v4739 = vunpack.c.h.b16 %v4644
  %v4740 = vunpack.c.l.b16 %v4645
  %v4741 = vunpack.c.h.b16 %v4645
  %v4742 = vpack.c.b16 %v4682, %v4678
  %v4743 = vpack.c.b16 %v4683, %v4679
  %v4744 = vpack.c.b16 %v4684, %v4680
  %v4745 = vpack.c.b16 %v4685, %v4681
  %v4746 = vpack.c.b16 %v4690, %v4686
  %v4747 = vpack.c.b16 %v4691, %v4687
  %v4748 = vpack.c.b16 %v4692, %v4688
  %v4749 = vpack.c.b16 %v4693, %v4689
  %v4750 = vpack.c.b16 %v4698, %v4694
  %v4751 = vpack.c.b16 %v4699, %v4695
  %v4752 = vpack.c.b16 %v4700, %v4696
  %v4753 = vpack.c.b16 %v4701, %v4697
  %v4754 = vpack.c.b16 %v4706, %v4702
  %v4755 = vpack.c.b16 %v4707, %v4703
  %v4756 = vpack.c.b16 %v4708, %v4704
  %v4757 = vpack.c.b16 %v4709, %v4705
  %v4758 = vpack.c.b16 %v4714, %v4710
  %v4759 = vpack.c.b16 %v4715, %v4711
  %v4760 = vpack.c.b16 %v4716, %v4712
  %v4761 = vpack.c.b16 %v4717, %v4713
  %v4762 = vpack.c.b16 %v4722, %v4718
  %v4763 = vpack.c.b16 %v4723, %v4719
  %v4764 = vpack.c.b16 %v4724, %v4720
  %v4765 = vpack.c.b16 %v4725, %v4721
  %v4766 = vpack.c.b16 %v4730, %v4726
  %v4767 = vpack.c.b16 %v4731, %v4727
  %v4768 = vpack.c.b16 %v4732, %v4728
  %v4769 = vpack.c.b16 %v4733, %v4729
  %v4770 = vpack.c.b16 %v4738, %v4734
  %v4771 = vpack.c.b16 %v4739, %v4735
  %v4772 = vpack.c.b16 %v4740, %v4736
  %v4773 = vpack.c.b16 %v4741, %v4737
  %4806 = vmatprep.subr.bf16.mxu0 %v4771
  %4807 = vmatpush1.bf16.msra.mxu0 %v4770
  %4808 = vmatprep.subr.bf16.mxu0 %v4767
  %4809 = vmatpush1.bf16.msra.mxu0 %v4766
  %4810 = vmatprep.subr.bf16.mxu0 %v4763
  %4811 = vmatpush1.bf16.msra.mxu0 %v4762
  %4812 = vmatprep.subr.bf16.mxu0 %v4759
  %4813 = vmatpush1.bf16.msra.mxu0 %v4758
  %4814 = vmatprep.subr.bf16.mxu0 %v4755
  %4815 = vmatpush1.bf16.msra.mxu0 %v4754
  %4816 = vmatprep.subr.bf16.mxu0 %v4751
  %4817 = vmatpush1.bf16.msra.mxu0 %v4750
  %4818 = vmatprep.subr.bf16.mxu0 %v4747
  %4819 = vmatpush1.bf16.msra.mxu0 %v4746
  %4820 = vmatprep.subr.bf16.mxu0 %v4743
  %4821 = vmatpush1.bf16.msra.mxu0 %v4742
  %4822 = vmatprep.subr.bf16.mxu0 0
  %4823 = vmatpush2.bf16.msra.mxu0 0
  %4824 = vmatprep.subr.bf16.mxu0 0
  %4825 = vmatpush2.bf16.msra.mxu0 0
  %4826 = vmatprep.subr.bf16.mxu0 0
  %4827 = vmatpush2.bf16.msra.mxu0 0
  %4828 = vmatprep.subr.bf16.mxu0 0
  %4829 = vmatpush2.bf16.msra.mxu0 0
  %4830 = vmatprep.subr.bf16.mxu0 0
  %4831 = vmatpush2.bf16.msra.mxu0 0
  %4832 = vmatprep.subr.bf16.mxu0 0
  %4833 = vmatpush2.bf16.msra.mxu0 0
  %4834 = vmatprep.subr.bf16.mxu0 0
  %4835 = vmatpush2.bf16.msra.mxu0 0
  %4836 = vmatprep.subr.bf16.mxu0 0
  %4837 = vmatpush2.bf16.msra.mxu0 0
  %4838 = vmatprep.mubr.bf16.mxu0 0
  %4839 = vmatmul.mubr.bf16.gmra.mxu0 %v4613
  %v4840 = vpop.f32.mrf.mxu0
  %v4841 = vadd.f32 0.0, %v4840
  %v4842 = vpop.f32.mrf.mxu0
  %v4843 = vadd.f32 0.0, %v4842
  %v4844 = vpop.f32.mrf.mxu0
  %v4845 = vpop.f32.mrf.mxu0
  %4846 = vdwg.mxu0
  %4847 = vmatprep.subr.bf16.mxu0 %v4773
  %4848 = vmatpush1.bf16.msra.mxu0 %v4772
  %4849 = vmatprep.subr.bf16.mxu0 %v4769
  %4850 = vmatpush1.bf16.msra.mxu0 %v4768
  %4851 = vmatprep.subr.bf16.mxu0 %v4765
  %4852 = vmatpush1.bf16.msra.mxu0 %v4764
  %4853 = vmatprep.subr.bf16.mxu0 %v4761
  %4854 = vmatpush1.bf16.msra.mxu0 %v4760
  %4855 = vmatprep.subr.bf16.mxu0 %v4757
  %4856 = vmatpush1.bf16.msra.mxu0 %v4756
  %4857 = vmatprep.subr.bf16.mxu0 %v4753
  %4858 = vmatpush1.bf16.msra.mxu0 %v4752
  %4859 = vmatprep.subr.bf16.mxu0 %v4749
  %4860 = vmatpush1.bf16.msra.mxu0 %v4748
  %4861 = vmatprep.subr.bf16.mxu0 %v4745
  %4862 = vmatpush1.bf16.msra.mxu0 %v4744
  %4863 = vmatprep.subr.bf16.mxu0 0
  %4864 = vmatpush2.bf16.msra.mxu0 0
  %4865 = vmatprep.subr.bf16.mxu0 0
  %4866 = vmatpush2.bf16.msra.mxu0 0
  %4867 = vmatprep.subr.bf16.mxu0 0
  %4868 = vmatpush2.bf16.msra.mxu0 0
  %4869 = vmatprep.subr.bf16.mxu0 0
  %4870 = vmatpush2.bf16.msra.mxu0 0
  %4871 = vmatprep.subr.bf16.mxu0 0
  %4872 = vmatpush2.bf16.msra.mxu0 0
  %4873 = vmatprep.subr.bf16.mxu0 0
  %4874 = vmatpush2.bf16.msra.mxu0 0
  %4875 = vmatprep.subr.bf16.mxu0 0
  %4876 = vmatpush2.bf16.msra.mxu0 0
  %4877 = vmatprep.subr.bf16.mxu0 0
  %4878 = vmatpush2.bf16.msra.mxu0 0
  %4879 = vmatprep.mubr.bf16.mxu0 0
  %4880 = vmatmul.mubr.bf16.gmra.mxu0 %v4613
  %v4881 = vpop.f32.mrf.mxu0
  %v4882 = vadd.f32 0.0, %v4881
  %v4883 = vpop.f32.mrf.mxu0
  %v4884 = vadd.f32 0.0, %v4883
  %v4885 = vpop.f32.mrf.mxu0
  %v4886 = vpop.f32.mrf.mxu0
  %4887 = vdwg.mxu0
  %v4888 = vadd.f32 %v4609, %v4841
  %v4889 = vadd.f32 %v4610, %v4843
  %v4890 = vadd.f32 %v4611, %v4882
  %v4891 = vadd.f32 %v4612, %v4884
  %v4892 = vxor.u32 %v4888, 2147483648
  %v4893 = vxor.u32 %v4889, 2147483648
  %v4894 = vxor.u32 %v4890, 2147483648
  %v4895 = vmul.f32 %v4892, 1.442695
  %v4896 = vpow.pop %v4895
  %v4897 = vmul.f32 %v4893, 1.442695
  %v4898 = vpow.pop %v4897
  %v4899 = vmul.f32 %v4894, 1.442695
  %v4900 = vpow.pop %v4899
  %v4901 = vadd.f32 %v4896, 1.0
  %v4902 = vadd.f32 %v4898, 1.0
  %v4903 = vadd.f32 %v4900, 1.0
  %v4904 = vrcp.pop %v4901
  %v4905 = vmul.f32 1.0, %v4904
  %v4906 = vrcp.pop %v4902
  %v4907 = vmul.f32 1.0, %v4906
  %v4908 = vrcp.pop %v4903
  %v4909 = vmul.f32 1.0, %v4908
  %v4910 = vtanh.pop %v4891
  %v4911 = vmul.f32 %v4907, %v4605
  %v4912 = vmul.f32 %v4905, %v4910
  %v4913 = vadd.f32 %v4911, %v4912
  %v4914 = vtanh.pop %v4913
  %v4915 = vmul.f32 %v4909, %v4914
  %4916 = vst [vmem:[#allocation3 + $0x68] sm:$0xff] %v4915
  %v4917 = vld [vmem:[#allocation2 + $0x1c0] sm:$0xff]
  %v4918 = vld [vmem:[#allocation2 + $0x1c8] sm:$0xff]
  %v4919 = vld [vmem:[#allocation2 + $0x1d0] sm:$0xff]
  %v4920 = vld [vmem:[#allocation2 + $0x1d8] sm:$0xff]
  %v4921 = vpack.c.bf16 %v4915, %v4915
  %v4922 = vld [vmem:[%s2] sm:$0xff]
  %v4923 = vld [vmem:[%s2 + $0x8] sm:$0xff]
  %v4924 = vld [vmem:[%s2 + $0x10] sm:$0xff]
  %v4925 = vld [vmem:[%s2 + $0x18] sm:$0xff]
  %v4926 = vld [vmem:[%s2 + $0x20] sm:$0xff]
  %v4927 = vld [vmem:[%s2 + $0x28] sm:$0xff]
  %v4928 = vld [vmem:[%s2 + $0x30] sm:$0xff]
  %v4929 = vld [vmem:[%s2 + $0x38] sm:$0xff]
  %v4930 = vld [vmem:[%s2 + $0x40] sm:$0xff]
  %v4931 = vld [vmem:[%s2 + $0x48] sm:$0xff]
  %v4932 = vld [vmem:[%s2 + $0x50] sm:$0xff]
  %v4933 = vld [vmem:[%s2 + $0x58] sm:$0xff]
  %v4934 = vld [vmem:[%s2 + $0x60] sm:$0xff]
  %v4935 = vld [vmem:[%s2 + $0x68] sm:$0xff]
  %v4936 = vld [vmem:[%s2 + $0x70] sm:$0xff]
  %v4937 = vld [vmem:[%s2 + $0x78] sm:$0xff]
  %v4938 = vld [vmem:[%s2 + $0x80] sm:$0xff]
  %v4939 = vld [vmem:[%s2 + $0x88] sm:$0xff]
  %v4940 = vld [vmem:[%s2 + $0x90] sm:$0xff]
  %v4941 = vld [vmem:[%s2 + $0x98] sm:$0xff]
  %v4942 = vld [vmem:[%s2 + $0xa0] sm:$0xff]
  %v4943 = vld [vmem:[%s2 + $0xa8] sm:$0xff]
  %v4944 = vld [vmem:[%s2 + $0xb0] sm:$0xff]
  %v4945 = vld [vmem:[%s2 + $0xb8] sm:$0xff]
  %v4946 = vld [vmem:[%s2 + $0xc0] sm:$0xff]
  %v4947 = vld [vmem:[%s2 + $0xc8] sm:$0xff]
  %v4948 = vld [vmem:[%s2 + $0xd0] sm:$0xff]
  %v4949 = vld [vmem:[%s2 + $0xd8] sm:$0xff]
  %v4950 = vld [vmem:[%s2 + $0xe0] sm:$0xff]
  %v4951 = vld [vmem:[%s2 + $0xe8] sm:$0xff]
  %v4952 = vld [vmem:[%s2 + $0xf0] sm:$0xff]
  %v4953 = vld [vmem:[%s2 + $0xf8] sm:$0xff]
  %v4986 = vunpack.c.l.b16 %v4922
  %v4987 = vunpack.c.h.b16 %v4922
  %v4988 = vunpack.c.l.b16 %v4923
  %v4989 = vunpack.c.h.b16 %v4923
  %v4990 = vunpack.c.l.b16 %v4924
  %v4991 = vunpack.c.h.b16 %v4924
  %v4992 = vunpack.c.l.b16 %v4925
  %v4993 = vunpack.c.h.b16 %v4925
  %v4994 = vunpack.c.l.b16 %v4926
  %v4995 = vunpack.c.h.b16 %v4926
  %v4996 = vunpack.c.l.b16 %v4927
  %v4997 = vunpack.c.h.b16 %v4927
  %v4998 = vunpack.c.l.b16 %v4928
  %v4999 = vunpack.c.h.b16 %v4928
  %v5000 = vunpack.c.l.b16 %v4929
  %v5001 = vunpack.c.h.b16 %v4929
  %v5002 = vunpack.c.l.b16 %v4930
  %v5003 = vunpack.c.h.b16 %v4930
  %v5004 = vunpack.c.l.b16 %v4931
  %v5005 = vunpack.c.h.b16 %v4931
  %v5006 = vunpack.c.l.b16 %v4932
  %v5007 = vunpack.c.h.b16 %v4932
  %v5008 = vunpack.c.l.b16 %v4933
  %v5009 = vunpack.c.h.b16 %v4933
  %v5010 = vunpack.c.l.b16 %v4934
  %v5011 = vunpack.c.h.b16 %v4934
  %v5012 = vunpack.c.l.b16 %v4935
  %v5013 = vunpack.c.h.b16 %v4935
  %v5014 = vunpack.c.l.b16 %v4936
  %v5015 = vunpack.c.h.b16 %v4936
  %v5016 = vunpack.c.l.b16 %v4937
  %v5017 = vunpack.c.h.b16 %v4937
  %v5018 = vunpack.c.l.b16 %v4938
  %v5019 = vunpack.c.h.b16 %v4938
  %v5020 = vunpack.c.l.b16 %v4939
  %v5021 = vunpack.c.h.b16 %v4939
  %v5022 = vunpack.c.l.b16 %v4940
  %v5023 = vunpack.c.h.b16 %v4940
  %v5024 = vunpack.c.l.b16 %v4941
  %v5025 = vunpack.c.h.b16 %v4941
  %v5026 = vunpack.c.l.b16 %v4942
  %v5027 = vunpack.c.h.b16 %v4942
  %v5028 = vunpack.c.l.b16 %v4943
  %v5029 = vunpack.c.h.b16 %v4943
  %v5030 = vunpack.c.l.b16 %v4944
  %v5031 = vunpack.c.h.b16 %v4944
  %v5032 = vunpack.c.l.b16 %v4945
  %v5033 = vunpack.c.h.b16 %v4945
  %v5034 = vunpack.c.l.b16 %v4946
  %v5035 = vunpack.c.h.b16 %v4946
  %v5036 = vunpack.c.l.b16 %v4947
  %v5037 = vunpack.c.h.b16 %v4947
  %v5038 = vunpack.c.l.b16 %v4948
  %v5039 = vunpack.c.h.b16 %v4948
  %v5040 = vunpack.c.l.b16 %v4949
  %v5041 = vunpack.c.h.b16 %v4949
  %v5042 = vunpack.c.l.b16 %v4950
  %v5043 = vunpack.c.h.b16 %v4950
  %v5044 = vunpack.c.l.b16 %v4951
  %v5045 = vunpack.c.h.b16 %v4951
  %v5046 = vunpack.c.l.b16 %v4952
  %v5047 = vunpack.c.h.b16 %v4952
  %v5048 = vunpack.c.l.b16 %v4953
  %v5049 = vunpack.c.h.b16 %v4953
  %v5050 = vpack.c.b16 %v4990, %v4986
  %v5051 = vpack.c.b16 %v4991, %v4987
  %v5052 = vpack.c.b16 %v4992, %v4988
  %v5053 = vpack.c.b16 %v4993, %v4989
  %v5054 = vpack.c.b16 %v4998, %v4994
  %v5055 = vpack.c.b16 %v4999, %v4995
  %v5056 = vpack.c.b16 %v5000, %v4996
  %v5057 = vpack.c.b16 %v5001, %v4997
  %v5058 = vpack.c.b16 %v5006, %v5002
  %v5059 = vpack.c.b16 %v5007, %v5003
  %v5060 = vpack.c.b16 %v5008, %v5004
  %v5061 = vpack.c.b16 %v5009, %v5005
  %v5062 = vpack.c.b16 %v5014, %v5010
  %v5063 = vpack.c.b16 %v5015, %v5011
  %v5064 = vpack.c.b16 %v5016, %v5012
  %v5065 = vpack.c.b16 %v5017, %v5013
  %v5066 = vpack.c.b16 %v5022, %v5018
  %v5067 = vpack.c.b16 %v5023, %v5019
  %v5068 = vpack.c.b16 %v5024, %v5020
  %v5069 = vpack.c.b16 %v5025, %v5021
  %v5070 = vpack.c.b16 %v5030, %v5026
  %v5071 = vpack.c.b16 %v5031, %v5027
  %v5072 = vpack.c.b16 %v5032, %v5028
  %v5073 = vpack.c.b16 %v5033, %v5029
  %v5074 = vpack.c.b16 %v5038, %v5034
  %v5075 = vpack.c.b16 %v5039, %v5035
  %v5076 = vpack.c.b16 %v5040, %v5036
  %v5077 = vpack.c.b16 %v5041, %v5037
  %v5078 = vpack.c.b16 %v5046, %v5042
  %v5079 = vpack.c.b16 %v5047, %v5043
  %v5080 = vpack.c.b16 %v5048, %v5044
  %v5081 = vpack.c.b16 %v5049, %v5045
  %5114 = vmatprep.subr.bf16.mxu0 %v5079
  %5115 = vmatpush1.bf16.msra.mxu0 %v5078
  %5116 = vmatprep.subr.bf16.mxu0 %v5075
  %5117 = vmatpush1.bf16.msra.mxu0 %v5074
  %5118 = vmatprep.subr.bf16.mxu0 %v5071
  %5119 = vmatpush1.bf16.msra.mxu0 %v5070
  %5120 = vmatprep.subr.bf16.mxu0 %v5067
  %5121 = vmatpush1.bf16.msra.mxu0 %v5066
  %5122 = vmatprep.subr.bf16.mxu0 %v5063
  %5123 = vmatpush1.bf16.msra.mxu0 %v5062
  %5124 = vmatprep.subr.bf16.mxu0 %v5059
  %5125 = vmatpush1.bf16.msra.mxu0 %v5058
  %5126 = vmatprep.subr.bf16.mxu0 %v5055
  %5127 = vmatpush1.bf16.msra.mxu0 %v5054
  %5128 = vmatprep.subr.bf16.mxu0 %v5051
  %5129 = vmatpush1.bf16.msra.mxu0 %v5050
  %5130 = vmatprep.subr.bf16.mxu0 0
  %5131 = vmatpush2.bf16.msra.mxu0 0
  %5132 = vmatprep.subr.bf16.mxu0 0
  %5133 = vmatpush2.bf16.msra.mxu0 0
  %5134 = vmatprep.subr.bf16.mxu0 0
  %5135 = vmatpush2.bf16.msra.mxu0 0
  %5136 = vmatprep.subr.bf16.mxu0 0
  %5137 = vmatpush2.bf16.msra.mxu0 0
  %5138 = vmatprep.subr.bf16.mxu0 0
  %5139 = vmatpush2.bf16.msra.mxu0 0
  %5140 = vmatprep.subr.bf16.mxu0 0
  %5141 = vmatpush2.bf16.msra.mxu0 0
  %5142 = vmatprep.subr.bf16.mxu0 0
  %5143 = vmatpush2.bf16.msra.mxu0 0
  %5144 = vmatprep.subr.bf16.mxu0 0
  %5145 = vmatpush2.bf16.msra.mxu0 0
  %5146 = vmatprep.mubr.bf16.mxu0 0
  %5147 = vmatmul.mubr.bf16.gmra.mxu0 %v4921
  %v5148 = vpop.f32.mrf.mxu0
  %v5149 = vadd.f32 0.0, %v5148
  %v5150 = vpop.f32.mrf.mxu0
  %v5151 = vadd.f32 0.0, %v5150
  %v5152 = vpop.f32.mrf.mxu0
  %v5153 = vpop.f32.mrf.mxu0
  %5154 = vdwg.mxu0
  %5155 = vmatprep.subr.bf16.mxu0 %v5081
  %5156 = vmatpush1.bf16.msra.mxu0 %v5080
  %5157 = vmatprep.subr.bf16.mxu0 %v5077
  %5158 = vmatpush1.bf16.msra.mxu0 %v5076
  %5159 = vmatprep.subr.bf16.mxu0 %v5073
  %5160 = vmatpush1.bf16.msra.mxu0 %v5072
  %5161 = vmatprep.subr.bf16.mxu0 %v5069
  %5162 = vmatpush1.bf16.msra.mxu0 %v5068
  %5163 = vmatprep.subr.bf16.mxu0 %v5065
  %5164 = vmatpush1.bf16.msra.mxu0 %v5064
  %5165 = vmatprep.subr.bf16.mxu0 %v5061
  %5166 = vmatpush1.bf16.msra.mxu0 %v5060
  %5167 = vmatprep.subr.bf16.mxu0 %v5057
  %5168 = vmatpush1.bf16.msra.mxu0 %v5056
  %5169 = vmatprep.subr.bf16.mxu0 %v5053
  %5170 = vmatpush1.bf16.msra.mxu0 %v5052
  %5171 = vmatprep.subr.bf16.mxu0 0
  %5172 = vmatpush2.bf16.msra.mxu0 0
  %5173 = vmatprep.subr.bf16.mxu0 0
  %5174 = vmatpush2.bf16.msra.mxu0 0
  %5175 = vmatprep.subr.bf16.mxu0 0
  %5176 = vmatpush2.bf16.msra.mxu0 0
  %5177 = vmatprep.subr.bf16.mxu0 0
  %5178 = vmatpush2.bf16.msra.mxu0 0
  %5179 = vmatprep.subr.bf16.mxu0 0
  %5180 = vmatpush2.bf16.msra.mxu0 0
  %5181 = vmatprep.subr.bf16.mxu0 0
  %5182 = vmatpush2.bf16.msra.mxu0 0
  %5183 = vmatprep.subr.bf16.mxu0 0
  %5184 = vmatpush2.bf16.msra.mxu0 0
  %5185 = vmatprep.subr.bf16.mxu0 0
  %5186 = vmatpush2.bf16.msra.mxu0 0
  %5187 = vmatprep.mubr.bf16.mxu0 0
  %5188 = vmatmul.mubr.bf16.gmra.mxu0 %v4921
  %v5189 = vpop.f32.mrf.mxu0
  %v5190 = vadd.f32 0.0, %v5189
  %v5191 = vpop.f32.mrf.mxu0
  %v5192 = vadd.f32 0.0, %v5191
  %v5193 = vpop.f32.mrf.mxu0
  %v5194 = vpop.f32.mrf.mxu0
  %5195 = vdwg.mxu0
  %v5196 = vadd.f32 %v4917, %v5149
  %v5197 = vadd.f32 %v4918, %v5151
  %v5198 = vadd.f32 %v4919, %v5190
  %v5199 = vadd.f32 %v4920, %v5192
  %v5200 = vxor.u32 %v5196, 2147483648
  %v5201 = vxor.u32 %v5197, 2147483648
  %v5202 = vxor.u32 %v5198, 2147483648
  %v5203 = vmul.f32 %v5200, 1.442695
  %v5204 = vpow.pop %v5203
  %v5205 = vmul.f32 %v5201, 1.442695
  %v5206 = vpow.pop %v5205
  %v5207 = vmul.f32 %v5202, 1.442695
  %v5208 = vpow.pop %v5207
  %v5209 = vadd.f32 %v5204, 1.0
  %v5210 = vadd.f32 %v5206, 1.0
  %v5211 = vadd.f32 %v5208, 1.0
  %v5212 = vrcp.pop %v5209
  %v5213 = vmul.f32 1.0, %v5212
  %v5214 = vrcp.pop %v5210
  %v5215 = vmul.f32 1.0, %v5214
  %v5216 = vrcp.pop %v5211
  %v5217 = vmul.f32 1.0, %v5216
  %v5218 = vtanh.pop %v5199
  %v5219 = vmul.f32 %v5215, %v4913
  %v5220 = vmul.f32 %v5213, %v5218
  %v5221 = vadd.f32 %v5219, %v5220
  %v5222 = vtanh.pop %v5221
  %v5223 = vmul.f32 %v5217, %v5222
  %5224 = vst [vmem:[#allocation3 + $0x70] sm:$0xff] %v5223
  %v5225 = vld [vmem:[#allocation2 + $0x1e0] sm:$0xff]
  %v5226 = vld [vmem:[#allocation2 + $0x1e8] sm:$0xff]
  %v5227 = vld [vmem:[#allocation2 + $0x1f0] sm:$0xff]
  %v5228 = vld [vmem:[#allocation2 + $0x1f8] sm:$0xff]
  %v5229 = vpack.c.bf16 %v5223, %v5223
  %v5230 = vld [vmem:[%s2] sm:$0xff]
  %v5231 = vld [vmem:[%s2 + $0x8] sm:$0xff]
  %v5232 = vld [vmem:[%s2 + $0x10] sm:$0xff]
  %v5233 = vld [vmem:[%s2 + $0x18] sm:$0xff]
  %v5234 = vld [vmem:[%s2 + $0x20] sm:$0xff]
  %v5235 = vld [vmem:[%s2 + $0x28] sm:$0xff]
  %v5236 = vld [vmem:[%s2 + $0x30] sm:$0xff]
  %v5237 = vld [vmem:[%s2 + $0x38] sm:$0xff]
  %v5238 = vld [vmem:[%s2 + $0x40] sm:$0xff]
  %v5239 = vld [vmem:[%s2 + $0x48] sm:$0xff]
  %v5240 = vld [vmem:[%s2 + $0x50] sm:$0xff]
  %v5241 = vld [vmem:[%s2 + $0x58] sm:$0xff]
  %v5242 = vld [vmem:[%s2 + $0x60] sm:$0xff]
  %v5243 = vld [vmem:[%s2 + $0x68] sm:$0xff]
  %v5244 = vld [vmem:[%s2 + $0x70] sm:$0xff]
  %v5245 = vld [vmem:[%s2 + $0x78] sm:$0xff]
  %v5246 = vld [vmem:[%s2 + $0x80] sm:$0xff]
  %v5247 = vld [vmem:[%s2 + $0x88] sm:$0xff]
  %v5248 = vld [vmem:[%s2 + $0x90] sm:$0xff]
  %v5249 = vld [vmem:[%s2 + $0x98] sm:$0xff]
  %v5250 = vld [vmem:[%s2 + $0xa0] sm:$0xff]
  %v5251 = vld [vmem:[%s2 + $0xa8] sm:$0xff]
  %v5252 = vld [vmem:[%s2 + $0xb0] sm:$0xff]
  %v5253 = vld [vmem:[%s2 + $0xb8] sm:$0xff]
  %v5254 = vld [vmem:[%s2 + $0xc0] sm:$0xff]
  %v5255 = vld [vmem:[%s2 + $0xc8] sm:$0xff]
  %v5256 = vld [vmem:[%s2 + $0xd0] sm:$0xff]
  %v5257 = vld [vmem:[%s2 + $0xd8] sm:$0xff]
  %v5258 = vld [vmem:[%s2 + $0xe0] sm:$0xff]
  %v5259 = vld [vmem:[%s2 + $0xe8] sm:$0xff]
  %v5260 = vld [vmem:[%s2 + $0xf0] sm:$0xff]
  %v5261 = vld [vmem:[%s2 + $0xf8] sm:$0xff]
  %v5294 = vunpack.c.l.b16 %v5230
  %v5295 = vunpack.c.h.b16 %v5230
  %v5296 = vunpack.c.l.b16 %v5231
  %v5297 = vunpack.c.h.b16 %v5231
  %v5298 = vunpack.c.l.b16 %v5232
  %v5299 = vunpack.c.h.b16 %v5232
  %v5300 = vunpack.c.l.b16 %v5233
  %v5301 = vunpack.c.h.b16 %v5233
  %v5302 = vunpack.c.l.b16 %v5234
  %v5303 = vunpack.c.h.b16 %v5234
  %v5304 = vunpack.c.l.b16 %v5235
  %v5305 = vunpack.c.h.b16 %v5235
  %v5306 = vunpack.c.l.b16 %v5236
  %v5307 = vunpack.c.h.b16 %v5236
  %v5308 = vunpack.c.l.b16 %v5237
  %v5309 = vunpack.c.h.b16 %v5237
  %v5310 = vunpack.c.l.b16 %v5238
  %v5311 = vunpack.c.h.b16 %v5238
  %v5312 = vunpack.c.l.b16 %v5239
  %v5313 = vunpack.c.h.b16 %v5239
  %v5314 = vunpack.c.l.b16 %v5240
  %v5315 = vunpack.c.h.b16 %v5240
  %v5316 = vunpack.c.l.b16 %v5241
  %v5317 = vunpack.c.h.b16 %v5241
  %v5318 = vunpack.c.l.b16 %v5242
  %v5319 = vunpack.c.h.b16 %v5242
  %v5320 = vunpack.c.l.b16 %v5243
  %v5321 = vunpack.c.h.b16 %v5243
  %v5322 = vunpack.c.l.b16 %v5244
  %v5323 = vunpack.c.h.b16 %v5244
  %v5324 = vunpack.c.l.b16 %v5245
  %v5325 = vunpack.c.h.b16 %v5245
  %v5326 = vunpack.c.l.b16 %v5246
  %v5327 = vunpack.c.h.b16 %v5246
  %v5328 = vunpack.c.l.b16 %v5247
  %v5329 = vunpack.c.h.b16 %v5247
  %v5330 = vunpack.c.l.b16 %v5248
  %v5331 = vunpack.c.h.b16 %v5248
  %v5332 = vunpack.c.l.b16 %v5249
  %v5333 = vunpack.c.h.b16 %v5249
  %v5334 = vunpack.c.l.b16 %v5250
  %v5335 = vunpack.c.h.b16 %v5250
  %v5336 = vunpack.c.l.b16 %v5251
  %v5337 = vunpack.c.h.b16 %v5251
  %v5338 = vunpack.c.l.b16 %v5252
  %v5339 = vunpack.c.h.b16 %v5252
  %v5340 = vunpack.c.l.b16 %v5253
  %v5341 = vunpack.c.h.b16 %v5253
  %v5342 = vunpack.c.l.b16 %v5254
  %v5343 = vunpack.c.h.b16 %v5254
  %v5344 = vunpack.c.l.b16 %v5255
  %v5345 = vunpack.c.h.b16 %v5255
  %v5346 = vunpack.c.l.b16 %v5256
  %v5347 = vunpack.c.h.b16 %v5256
  %v5348 = vunpack.c.l.b16 %v5257
  %v5349 = vunpack.c.h.b16 %v5257
  %v5350 = vunpack.c.l.b16 %v5258
  %v5351 = vunpack.c.h.b16 %v5258
  %v5352 = vunpack.c.l.b16 %v5259
  %v5353 = vunpack.c.h.b16 %v5259
  %v5354 = vunpack.c.l.b16 %v5260
  %v5355 = vunpack.c.h.b16 %v5260
  %v5356 = vunpack.c.l.b16 %v5261
  %v5357 = vunpack.c.h.b16 %v5261
  %v5358 = vpack.c.b16 %v5298, %v5294
  %v5359 = vpack.c.b16 %v5299, %v5295
  %v5360 = vpack.c.b16 %v5300, %v5296
  %v5361 = vpack.c.b16 %v5301, %v5297
  %v5362 = vpack.c.b16 %v5306, %v5302
  %v5363 = vpack.c.b16 %v5307, %v5303
  %v5364 = vpack.c.b16 %v5308, %v5304
  %v5365 = vpack.c.b16 %v5309, %v5305
  %v5366 = vpack.c.b16 %v5314, %v5310
  %v5367 = vpack.c.b16 %v5315, %v5311
  %v5368 = vpack.c.b16 %v5316, %v5312
  %v5369 = vpack.c.b16 %v5317, %v5313
  %v5370 = vpack.c.b16 %v5322, %v5318
  %v5371 = vpack.c.b16 %v5323, %v5319
  %v5372 = vpack.c.b16 %v5324, %v5320
  %v5373 = vpack.c.b16 %v5325, %v5321
  %v5374 = vpack.c.b16 %v5330, %v5326
  %v5375 = vpack.c.b16 %v5331, %v5327
  %v5376 = vpack.c.b16 %v5332, %v5328
  %v5377 = vpack.c.b16 %v5333, %v5329
  %v5378 = vpack.c.b16 %v5338, %v5334
  %v5379 = vpack.c.b16 %v5339, %v5335
  %v5380 = vpack.c.b16 %v5340, %v5336
  %v5381 = vpack.c.b16 %v5341, %v5337
  %v5382 = vpack.c.b16 %v5346, %v5342
  %v5383 = vpack.c.b16 %v5347, %v5343
  %v5384 = vpack.c.b16 %v5348, %v5344
  %v5385 = vpack.c.b16 %v5349, %v5345
  %v5386 = vpack.c.b16 %v5354, %v5350
  %v5387 = vpack.c.b16 %v5355, %v5351
  %v5388 = vpack.c.b16 %v5356, %v5352
  %v5389 = vpack.c.b16 %v5357, %v5353
  %5422 = vmatprep.subr.bf16.mxu0 %v5387
  %5423 = vmatpush1.bf16.msra.mxu0 %v5386
  %5424 = vmatprep.subr.bf16.mxu0 %v5383
  %5425 = vmatpush1.bf16.msra.mxu0 %v5382
  %5426 = vmatprep.subr.bf16.mxu0 %v5379
  %5427 = vmatpush1.bf16.msra.mxu0 %v5378
  %5428 = vmatprep.subr.bf16.mxu0 %v5375
  %5429 = vmatpush1.bf16.msra.mxu0 %v5374
  %5430 = vmatprep.subr.bf16.mxu0 %v5371
  %5431 = vmatpush1.bf16.msra.mxu0 %v5370
  %5432 = vmatprep.subr.bf16.mxu0 %v5367
  %5433 = vmatpush1.bf16.msra.mxu0 %v5366
  %5434 = vmatprep.subr.bf16.mxu0 %v5363
  %5435 = vmatpush1.bf16.msra.mxu0 %v5362
  %5436 = vmatprep.subr.bf16.mxu0 %v5359
  %5437 = vmatpush1.bf16.msra.mxu0 %v5358
  %5438 = vmatprep.subr.bf16.mxu0 0
  %5439 = vmatpush2.bf16.msra.mxu0 0
  %5440 = vmatprep.subr.bf16.mxu0 0
  %5441 = vmatpush2.bf16.msra.mxu0 0
  %5442 = vmatprep.subr.bf16.mxu0 0
  %5443 = vmatpush2.bf16.msra.mxu0 0
  %5444 = vmatprep.subr.bf16.mxu0 0
  %5445 = vmatpush2.bf16.msra.mxu0 0
  %5446 = vmatprep.subr.bf16.mxu0 0
  %5447 = vmatpush2.bf16.msra.mxu0 0
  %5448 = vmatprep.subr.bf16.mxu0 0
  %5449 = vmatpush2.bf16.msra.mxu0 0
  %5450 = vmatprep.subr.bf16.mxu0 0
  %5451 = vmatpush2.bf16.msra.mxu0 0
  %5452 = vmatprep.subr.bf16.mxu0 0
  %5453 = vmatpush2.bf16.msra.mxu0 0
  %5454 = vmatprep.mubr.bf16.mxu0 0
  %5455 = vmatmul.mubr.bf16.gmra.mxu0 %v5229
  %v5456 = vpop.f32.mrf.mxu0
  %v5457 = vadd.f32 0.0, %v5456
  %v5458 = vpop.f32.mrf.mxu0
  %v5459 = vadd.f32 0.0, %v5458
  %v5460 = vpop.f32.mrf.mxu0
  %v5461 = vpop.f32.mrf.mxu0
  %5462 = vdwg.mxu0
  %5463 = vmatprep.subr.bf16.mxu0 %v5389
  %5464 = vmatpush1.bf16.msra.mxu0 %v5388
  %5465 = vmatprep.subr.bf16.mxu0 %v5385
  %5466 = vmatpush1.bf16.msra.mxu0 %v5384
  %5467 = vmatprep.subr.bf16.mxu0 %v5381
  %5468 = vmatpush1.bf16.msra.mxu0 %v5380
  %5469 = vmatprep.subr.bf16.mxu0 %v5377
  %5470 = vmatpush1.bf16.msra.mxu0 %v5376
  %5471 = vmatprep.subr.bf16.mxu0 %v5373
  %5472 = vmatpush1.bf16.msra.mxu0 %v5372
  %5473 = vmatprep.subr.bf16.mxu0 %v5369
  %5474 = vmatpush1.bf16.msra.mxu0 %v5368
  %5475 = vmatprep.subr.bf16.mxu0 %v5365
  %5476 = vmatpush1.bf16.msra.mxu0 %v5364
  %5477 = vmatprep.subr.bf16.mxu0 %v5361
  %5478 = vmatpush1.bf16.msra.mxu0 %v5360
  %5479 = vmatprep.subr.bf16.mxu0 0
  %5480 = vmatpush2.bf16.msra.mxu0 0
  %5481 = vmatprep.subr.bf16.mxu0 0
  %5482 = vmatpush2.bf16.msra.mxu0 0
  %5483 = vmatprep.subr.bf16.mxu0 0
  %5484 = vmatpush2.bf16.msra.mxu0 0
  %5485 = vmatprep.subr.bf16.mxu0 0
  %5486 = vmatpush2.bf16.msra.mxu0 0
  %5487 = vmatprep.subr.bf16.mxu0 0
  %5488 = vmatpush2.bf16.msra.mxu0 0
  %5489 = vmatprep.subr.bf16.mxu0 0
  %5490 = vmatpush2.bf16.msra.mxu0 0
  %5491 = vmatprep.subr.bf16.mxu0 0
  %5492 = vmatpush2.bf16.msra.mxu0 0
  %5493 = vmatprep.subr.bf16.mxu0 0
  %5494 = vmatpush2.bf16.msra.mxu0 0
  %5495 = vmatprep.mubr.bf16.mxu0 0
  %5496 = vmatmul.mubr.bf16.gmra.mxu0 %v5229
  %v5497 = vpop.f32.mrf.mxu0
  %v5498 = vadd.f32 0.0, %v5497
  %v5499 = vpop.f32.mrf.mxu0
  %v5500 = vadd.f32 0.0, %v5499
  %v5501 = vpop.f32.mrf.mxu0
  %v5502 = vpop.f32.mrf.mxu0
  %5503 = vdwg.mxu0
  %v5504 = vadd.f32 %v5225, %v5457
  %v5505 = vadd.f32 %v5226, %v5459
  %v5506 = vadd.f32 %v5227, %v5498
  %v5507 = vadd.f32 %v5228, %v5500
  %v5508 = vxor.u32 %v5504, 2147483648
  %v5509 = vxor.u32 %v5505, 2147483648
  %v5510 = vxor.u32 %v5506, 2147483648
  %v5511 = vmul.f32 %v5508, 1.442695
  %v5512 = vpow.pop %v5511
  %v5513 = vmul.f32 %v5509, 1.442695
  %v5514 = vpow.pop %v5513
  %v5515 = vmul.f32 %v5510, 1.442695
  %v5516 = vpow.pop %v5515
  %v5517 = vadd.f32 %v5512, 1.0
  %v5518 = vadd.f32 %v5514, 1.0
  %v5519 = vadd.f32 %v5516, 1.0
  %v5520 = vrcp.pop %v5517
  %v5521 = vmul.f32 1.0, %v5520
  %v5522 = vrcp.pop %v5518
  %v5523 = vmul.f32 1.0, %v5522
  %v5524 = vrcp.pop %v5519
  %v5525 = vmul.f32 1.0, %v5524
  %v5526 = vtanh.pop %v5507
  %v5527 = vmul.f32 %v5523, %v5221
  %v5528 = vmul.f32 %v5521, %v5526
  %v5529 = vadd.f32 %v5527, %v5528
  %v5530 = vtanh.pop %v5529
  %v5531 = vmul.f32 %v5525, %v5530
  %5532 = vst [vmem:[#allocation3 + $0x78] sm:$0xff] %v5531
  %5533 = vst [vmem:[%s7] sm:$0xff] %v5531
  %5534 = vst [vmem:[%s8] sm:$0xff] %v5529
  %v5535 = vld [vmem:[#allocation3] sm:$0xff]
  %v5536 = vld [vmem:[#allocation3 + $0x8] sm:$0xff]
  %v5537 = vld [vmem:[#allocation3 + $0x10] sm:$0xff]
  %v5538 = vld [vmem:[#allocation3 + $0x18] sm:$0xff]
  %v5539 = vld [vmem:[#allocation3 + $0x20] sm:$0xff]
  %v5540 = vld [vmem:[#allocation3 + $0x28] sm:$0xff]
  %v5541 = vld [vmem:[#allocation3 + $0x30] sm:$0xff]
  %v5542 = vld [vmem:[#allocation3 + $0x38] sm:$0xff]
  %v5543 = vld [vmem:[#allocation3 + $0x40] sm:$0xff]
  %v5544 = vld [vmem:[#allocation3 + $0x48] sm:$0xff]
  %v5545 = vld [vmem:[#allocation3 + $0x50] sm:$0xff]
  %v5546 = vld [vmem:[#allocation3 + $0x58] sm:$0xff]
  %v5547 = vld [vmem:[#allocation3 + $0x60] sm:$0xff]
  %v5548 = vld [vmem:[#allocation3 + $0x68] sm:$0xff]
  %v5549 = vld [vmem:[#allocation3 + $0x70] sm:$0xff]
  %v5550 = vld [vmem:[#allocation3 + $0x78] sm:$0xff]
  %v5551 = vpack.c.bf16 %v5536, %v5535
  %v5552 = vpack.c.bf16 %v5538, %v5537
  %v5553 = vpack.c.bf16 %v5540, %v5539
  %v5554 = vpack.c.bf16 %v5542, %v5541
  %v5555 = vpack.c.bf16 %v5544, %v5543
  %v5556 = vpack.c.bf16 %v5546, %v5545
  %v5557 = vpack.c.bf16 %v5548, %v5547
  %v5558 = vpack.c.bf16 %v5550, %v5549
  %v5567 = vunpack.c.l.b16 %v5551
  %v5568 = vunpack.c.h.b16 %v5551
  %v5569 = vunpack.c.l.b16 %v5552
  %v5570 = vunpack.c.h.b16 %v5552
  %v5571 = vunpack.c.l.b16 %v5553
  %v5572 = vunpack.c.h.b16 %v5553
  %v5573 = vunpack.c.l.b16 %v5554
  %v5574 = vunpack.c.h.b16 %v5554
  %v5575 = vunpack.c.l.b16 %v5555
  %v5576 = vunpack.c.h.b16 %v5555
  %v5577 = vunpack.c.l.b16 %v5556
  %v5578 = vunpack.c.h.b16 %v5556
  %v5579 = vunpack.c.l.b16 %v5557
  %v5580 = vunpack.c.h.b16 %v5557
  %v5581 = vunpack.c.l.b16 %v5558
  %v5582 = vunpack.c.h.b16 %v5558
  %v5583 = vpack.c.b16 %v5567, %v5567
  %v5584 = vpack.c.b16 %v5568, %v5568
  %v5585 = vpack.c.b16 %v5569, %v5569
  %v5586 = vpack.c.b16 %v5570, %v5570
  %v5587 = vpack.c.b16 %v5571, %v5571
  %v5588 = vpack.c.b16 %v5572, %v5572
  %v5589 = vpack.c.b16 %v5573, %v5573
  %v5590 = vpack.c.b16 %v5574, %v5574
  %v5591 = vpack.c.b16 %v5575, %v5575
  %v5592 = vpack.c.b16 %v5576, %v5576
  %v5593 = vpack.c.b16 %v5577, %v5577
  %v5594 = vpack.c.b16 %v5578, %v5578
  %v5595 = vpack.c.b16 %v5579, %v5579
  %v5596 = vpack.c.b16 %v5580, %v5580
  %v5597 = vpack.c.b16 %v5581, %v5581
  %v5598 = vpack.c.b16 %v5582, %v5582
  %5615 = vst [vmem:[%s6] sm:$0xf] %v5583
  %5616 = vst [vmem:[%s6 + $0x4] sm:$0xf] %v5584
  %5617 = vst [vmem:[%s6 + $0x8] sm:$0xf] %v5585
  %5618 = vst [vmem:[%s6 + $0xc] sm:$0xf] %v5586
  %5619 = vst [vmem:[%s6 + $0x10] sm:$0xf] %v5587
  %5620 = vst [vmem:[%s6 + $0x14] sm:$0xf] %v5588
  %5621 = vst [vmem:[%s6 + $0x18] sm:$0xf] %v5589
  %5622 = vst [vmem:[%s6 + $0x1c] sm:$0xf] %v5590
  %5623 = vst [vmem:[%s6 + $0x20] sm:$0xf] %v5591
  %5624 = vst [vmem:[%s6 + $0x24] sm:$0xf] %v5592
  %5625 = vst [vmem:[%s6 + $0x28] sm:$0xf] %v5593
  %5626 = vst [vmem:[%s6 + $0x2c] sm:$0xf] %v5594
  %5627 = vst [vmem:[%s6 + $0x30] sm:$0xf] %v5595
  %5628 = vst [vmem:[%s6 + $0x34] sm:$0xf] %v5596
  %5629 = vst [vmem:[%s6 + $0x38] sm:$0xf] %v5597
  %5630 = vst [vmem:[%s6 + $0x3c] sm:$0xf] %v5598
  // Predicated region
  $region30: #{rnn_model_forward.2} parent=0 // pred_check
    _
  $region31: #{rnn_model_forward.2} parent=0 // pred_check_branch
    %5632 = sbr.rel (0) target = $region33
  $region32: #{rnn_model_forward.2} parent=0 // pred_region
    _
  $region33: #{rnn_model_forward.2} parent=0 // pred_fallthru
    _
  // Predicated region
  $region34: #{rnn_model_forward.2} parent=0 // pred_check
    _
  $region35: #{rnn_model_forward.2} parent=0 // pred_check_branch
    %5634 = sbr.rel (0) target = $region37
  $region36: #{rnn_model_forward.2} parent=0 // pred_region
    _
  $region37: #{rnn_model_forward.2} parent=0 // pred_fallthru
    _
  // Predicated region
  $region38: #{rnn_model_forward.2} parent=0 // pred_check
    _
  $region39: #{rnn_model_forward.2} parent=0 // pred_check_branch
    %5636 = sbr.rel (0) target = $region41
  $region40: #{rnn_model_forward.2} parent=0 // pred_region
    _
  $region41: #{rnn_model_forward.2} parent=0 // pred_fallthru
    _
  // Predicated region
  $region42: #{rnn_model_forward.2} parent=0 // pred_check
    _
  $region43: #{rnn_model_forward.2} parent=0 // pred_check_branch
    %5638 = sbr.rel (0) target = $region45
  $region44: #{rnn_model_forward.2} parent=0 // pred_region
    _
  $region45: #{rnn_model_forward.2} parent=0 // pred_fallthru
    _
  // Predicated region
  $region46: #{rnn_model_forward.2} parent=0 // pred_check
    _
  $region47: #{rnn_model_forward.2} parent=0 // pred_check_branch
    %5640 = sbr.rel (0) target = $region49
  $region48: #{rnn_model_forward.2} parent=0 // pred_region
    _
  $region49: #{rnn_model_forward.2} parent=0 // pred_fallthru
    _
  // Predicated region
  $region50: #{rnn_model_forward.2} parent=0 // pred_check
    _
  $region51: #{rnn_model_forward.2} parent=0 // pred_check_branch
    %5642 = sbr.rel (0) target = $region53
  $region52: #{rnn_model_forward.2} parent=0 // pred_region
    _
  $region53: #{rnn_model_forward.2} parent=0 // pred_fallthru
    _

</llo_original>
